<compile_context>
chip_gen: v7x
topology: tpu7x:2x2x1
jax: 0.10.0
libtpu: 0.0.40
codegen_flags: <defaults>
</compile_context>

<pallas_src>
import functools

import jax
import jax.numpy as jnp
from jax.experimental import pallas as pl
from jax.experimental.pallas import tpu as pltpu


# ---------------------------------------------------------------------------
# Fused kernel body (one grid step == one batch image)
# ---------------------------------------------------------------------------
def _dense_block_kernel(x_ref, w_ref, b_ref, o_ref, pad_ref, col_ref, *,
                        H, W, C, res_scale, slope):
    """x_ref: (H, W, C); w_ref: (5, 45C, C); b_ref: (5, 1, C);
    o_ref: (H, W, C); pad_ref: (H+2, W+2, C) scratch; col_ref: (H*W, 45C)."""
    cdt = col_ref.dtype

    # Zero scratch once per grid step: keeps the conv halo and the columns of
    # not-yet-computed slabs exactly zero (also clears any stale NaNs).
    pad_ref[...] = jnp.zeros_like(pad_ref)
    col_ref[...] = jnp.zeros_like(col_ref)

    x = x_ref[...]                                    # (H, W, C), input dtype

    def im2col_slab(slab_hwc, s):
        # Stage the slab into the zero-padded buffer, then scatter its 9
        # shifted views into the im2col matrix (slab-major column layout).
        pad_ref[1:H + 1, 1:W + 1, :] = slab_hwc.astype(cdt)
        for dh in range(3):
            for dw in range(3):
                off = (s * 9 + dh * 3 + dw) * C
                col_ref[:, off:off + C] = (
                    pad_ref[dh:dh + H, dw:dw + W, :].reshape(H * W, C))

    def conv(i, leaky):
        # One big-K matmul on the MXU; K covers all 5 slabs, weights of
        # slabs this conv does not consume are zero.
        acc = jnp.dot(col_ref[...], w_ref[i],
                      preferred_element_type=jnp.float32)
        acc = acc + b_ref[i].astype(jnp.float32)       # (1, C) broadcast
        if leaky:
            acc = jnp.where(acc >= 0.0, acc, slope * acc)
        return acc                                     # (H*W, C) float32

    im2col_slab(x, 0)                    # slab 0 = x
    for i in range(4):                   # conv1..conv4 (+ LeakyReLU)
        o = conv(i, leaky=True)
        im2col_slab(o.reshape(H, W, C), i + 1)
    o5 = conv(4, leaky=False)            # conv5 (no activation)

    out = o5.reshape(H, W, C) * res_scale + x.astype(jnp.float32)
    o_ref[...] = out.astype(o_ref.dtype)


# ---------------------------------------------------------------------------
# Host-side weight packing
# ---------------------------------------------------------------------------
def _pack_weight(w_hwio, conv_idx, C, n_slabs=5, dtype=jnp.float32):
    """HWIO (3, 3, conv_idx*C, C) -> (n_slabs*9*C, C) matmul layout.

    The Cin axis of conv `conv_idx` is ordered per the module's concat
    (o_{i-1}, ..., o1, x); the fused kernel stores slabs in buffer order
    (x, o1, ..., o4), so channel groups are reversed and zero-padded for the
    slabs this conv does not consume.
    """
    kh, kw, cin, cout = w_hwio.shape
    i = conv_idx
    w = w_hwio.reshape(kh, kw, i, C, cout)
    w = jnp.flip(w, axis=2)                            # concat order -> slab order
    w = jnp.pad(w, ((0, 0), (0, 0), (0, n_slabs - i), (0, 0), (0, 0)))
    w = jnp.transpose(w, (2, 0, 1, 3, 4))              # (slab, kh, kw, C, cout)
    return w.reshape(n_slabs * kh * kw * C, cout).astype(dtype)


# ---------------------------------------------------------------------------
# Forward
# ---------------------------------------------------------------------------
def dense_block_forward(x_nchw, params, *, res_scale=0.2, slope=0.2,
                        compute_dtype=jnp.float32):
    """params: list of 5 (w_hwio, b) with w_i: (3, 3, i*C, C), b_i: (C,)."""
    B, C, H, W = x_nchw.shape
    x = jnp.transpose(x_nchw, (0, 2, 3, 1))            # NCHW -> NHWC

    kcol = 5 * 9 * C
    w_all = jnp.stack([_pack_weight(w, i + 1, C, dtype=compute_dtype)
                       for i, (w, _) in enumerate(params)])     # (5, 45C, C)
    b_all = jnp.stack([b for _, b in params]
                      ).reshape(5, 1, C).astype(jnp.float32)    # (5, 1, C)

    kernel = functools.partial(_dense_block_kernel, H=H, W=W, C=C,
                               res_scale=res_scale, slope=slope)

    # VMEM budget: scratch + double-buffered pipeline blocks, with headroom.
    comp_item = jnp.dtype(compute_dtype).itemsize
    io_item = jnp.dtype(x.dtype).itemsize
    scratch_bytes = ((H + 2) * (W + 2) * C + H * W * kcol) * comp_item
    block_bytes = 2 * (2 * H * W * C * io_item          # x tile + out tile
                       + 5 * kcol * C * comp_item       # packed weights
                       + 5 * C * 4)                     # bias
    vmem_limit = min(2 * (scratch_bytes + block_bytes) + (8 << 20), 64 << 20)

    # TODO(synk): for large spatial sizes (real RRDB, H*W >> 16*16) add an
    # H-tile grid axis with a 5-row recompute halo and shrink the im2col
    # scratch accordingly — mandatory on v7x's 64 MiB VMEM.
    out = pl.pallas_call(
        kernel,
        out_shape=jax.ShapeDtypeStruct((B, H, W, C), x.dtype),
        grid=(B,),
        in_specs=[
            pl.BlockSpec((None, H, W, C), lambda b: (b, 0, 0, 0)),   # x
            pl.BlockSpec((5, kcol, C), lambda b: (0, 0, 0)),         # weights
            pl.BlockSpec((5, 1, C), lambda b: (0, 0, 0)),            # bias
        ],
        out_specs=pl.BlockSpec((None, H, W, C), lambda b: (b, 0, 0, 0)),
        scratch_shapes=[
            pltpu.VMEM((H + 2, W + 2, C), compute_dtype),   # padded slab stage
            pltpu.VMEM((H * W, kcol), compute_dtype),       # im2col matrix
        ],
        compiler_params=pltpu.CompilerParams(
            dimension_semantics=("parallel",),
            vmem_limit_bytes=vmem_limit),
    )(x, w_all, b_all)

    return jnp.transpose(out, (0, 3, 1, 2))             # NHWC -> NCHW


# ---------------------------------------------------------------------------
# Param init (HWIO, mirrors the PyTorch module's conv shapes)
# ---------------------------------------------------------------------------
def init_dense_block_params(key, in_channels, out_channels):
    assert in_channels == out_channels, "residual add needs Cin == Cout"
    params = []
    for i in range(1, 6):
        cin = i * in_channels
        key, kw_, kb_ = jax.random.split(key, 3)
        w = jax.random.normal(kw_, (3, 3, cin, out_channels),
                              jnp.float32) * 0.05
        b = jax.random.normal(kb_, (out_channels,), jnp.float32) * 0.01
        params.append((w, b))
    return params


if __name__ == "__main__":
    B, C, H, W = 2, 4, 16, 16          # small test shapes (NCHW like PyTorch)
    key = jax.random.PRNGKey(0)
    key, kx = jax.random.split(key)
    x = jax.random.normal(kx, (B, C, H, W), jnp.float32)

    params = init_dense_block_params(key, in_channels=C, out_channels=C)

    # compute_dtype=jnp.bfloat16 is a one-arg switch for real-sized runs
    # (native MXU input, half the VMEM/HBM traffic); f32 kept here for
    # reference-exact numerics.
    fwd = jax.jit(functools.partial(dense_block_forward,
                                    res_scale=0.2, slope=0.2,
                                    compute_dtype=jnp.float32))
    y = fwd(x, params)
    jax.block_until_ready(y)
    assert y.shape == x.shape and y.dtype == x.dtype
    print("KERNEL_OK")
</pallas_src>

<mosaic_0001>
module attributes {stable_mosaic.version = 11 : i64} {
  func.func @_dense_block_kernel(%arg0: i32, %arg1: memref<1x16x16x4xf32, #tpu.memory_space<vmem>>, %arg2: memref<5x180x4xf32, #tpu.memory_space<vmem>>, %arg3: memref<5x1x4xf32, #tpu.memory_space<vmem>>, %arg4: memref<1x16x16x4xf32, #tpu.memory_space<vmem>>, %arg5: memref<18x18x4xf32, #tpu.memory_space<vmem>>, %arg6: memref<256x180xf32, #tpu.memory_space<vmem>>) attributes {dimension_semantics = [#tpu.dimension_semantics<parallel>], iteration_bounds = array<i64: 2>, scalar_prefetch = 0 : i64, scratch_operands = 2 : i64, tpu.core_type = #tpu.core_type<tc>, window_params = [{transform_indices = @transform_0, window_bounds = array<i64: 1, 16, 16, 4>}, {pipeline_mode = #tpu.pipeline_mode<synchronous>, transform_indices = @transform_1, window_bounds = array<i64: 5, 180, 4>}, {pipeline_mode = #tpu.pipeline_mode<synchronous>, transform_indices = @transform_2, window_bounds = array<i64: 5, 1, 4>}, {transform_indices = @transform_3, window_bounds = array<i64: 1, 16, 16, 4>}]} {
    %cst = arith.constant 0.000000e+00 : f32
    %0 = vector.broadcast %cst : f32 to vector<18x18x4xf32>
    %c0 = arith.constant 0 : index
    %c0_0 = arith.constant 0 : index
    %c0_1 = arith.constant 0 : index
    %1 = vector.load %arg5[%c0, %c0_0, %c0_1] : memref<18x18x4xf32, #tpu.memory_space<vmem>>, vector<18x18x4xf32>
    tpu.vector_store %arg5[%c0, %c0_0, %c0_1], %0 {strides = array<i32>} : memref<18x18x4xf32, #tpu.memory_space<vmem>>, vector<18x18x4xf32>,
    %cst_2 = arith.constant 0.000000e+00 : f32
    %2 = vector.broadcast %cst_2 : f32 to vector<256x180xf32>
    %c0_3 = arith.constant 0 : index
    %c0_4 = arith.constant 0 : index
    %3 = vector.load %arg6[%c0_3, %c0_4] : memref<256x180xf32, #tpu.memory_space<vmem>>, vector<256x180xf32>
    tpu.vector_store %arg6[%c0_3, %c0_4], %2 {strides = array<i32>} : memref<256x180xf32, #tpu.memory_space<vmem>>, vector<256x180xf32>,
    %c0_5 = arith.constant 0 : index
    %c0_6 = arith.constant 0 : index
    %c0_7 = arith.constant 0 : index
    %c0_8 = arith.constant 0 : index
    %4 = vector.load %arg1[%c0_5, %c0_6, %c0_7, %c0_8] : memref<1x16x16x4xf32, #tpu.memory_space<vmem>>, vector<1x16x16x4xf32>
    %5 = vector.shape_cast %4 : vector<1x16x16x4xf32> to vector<16x16x4xf32>
    %c1 = arith.constant 1 : index
    %c1_9 = arith.constant 1 : index
    %c0_10 = arith.constant 0 : index
    %6 = vector.load %arg5[%c1, %c1_9, %c0_10] : memref<18x18x4xf32, #tpu.memory_space<vmem>>, vector<16x16x4xf32>
    tpu.vector_store %arg5[%c1, %c1_9, %c0_10], %5 {strides = array<i32>} : memref<18x18x4xf32, #tpu.memory_space<vmem>>, vector<16x16x4xf32>,
    %c0_11 = arith.constant 0 : index
    %c0_12 = arith.constant 0 : index
    %c0_13 = arith.constant 0 : index
    %7 = vector.load %arg5[%c0_11, %c0_12, %c0_13] : memref<18x18x4xf32, #tpu.memory_space<vmem>>, vector<16x16x4xf32>
    %8 = vector.shape_cast %7 : vector<16x16x4xf32> to vector<256x4xf32>
    %c0_14 = arith.constant 0 : index
    %c0_15 = arith.constant 0 : index
    %9 = vector.load %arg6[%c0_14, %c0_15] : memref<256x180xf32, #tpu.memory_space<vmem>>, vector<256x4xf32>
    tpu.vector_store %arg6[%c0_14, %c0_15], %8 {strides = array<i32>} : memref<256x180xf32, #tpu.memory_space<vmem>>, vector<256x4xf32>,
    %c0_16 = arith.constant 0 : index
    %c1_17 = arith.constant 1 : index
    %c0_18 = arith.constant 0 : index
    %10 = vector.load %arg5[%c0_16, %c1_17, %c0_18] : memref<18x18x4xf32, #tpu.memory_space<vmem>>, vector<16x16x4xf32>
    %11 = vector.shape_cast %10 : vector<16x16x4xf32> to vector<256x4xf32>
    %c0_19 = arith.constant 0 : index
    %c4 = arith.constant 4 : index
    %12 = vector.load %arg6[%c0_19, %c4] : memref<256x180xf32, #tpu.memory_space<vmem>>, vector<256x4xf32>
    tpu.vector_store %arg6[%c0_19, %c4], %11 {strides = array<i32>} : memref<256x180xf32, #tpu.memory_space<vmem>>, vector<256x4xf32>,
    %c0_20 = arith.constant 0 : index
    %c2 = arith.constant 2 : index
    %c0_21 = arith.constant 0 : index
    %13 = vector.load %arg5[%c0_20, %c2, %c0_21] : memref<18x18x4xf32, #tpu.memory_space<vmem>>, vector<16x16x4xf32>
    %14 = vector.shape_cast %13 : vector<16x16x4xf32> to vector<256x4xf32>
    %c0_22 = arith.constant 0 : index
    %c8 = arith.constant 8 : index
    %15 = vector.load %arg6[%c0_22, %c8] : memref<256x180xf32, #tpu.memory_space<vmem>>, vector<256x4xf32>
    tpu.vector_store %arg6[%c0_22, %c8], %14 {strides = array<i32>} : memref<256x180xf32, #tpu.memory_space<vmem>>, vector<256x4xf32>,
    %c1_23 = arith.constant 1 : index
    %c0_24 = arith.constant 0 : index
    %c0_25 = arith.constant 0 : index
    %16 = vector.load %arg5[%c1_23, %c0_24, %c0_25] : memref<18x18x4xf32, #tpu.memory_space<vmem>>, vector<16x16x4xf32>
    %17 = vector.shape_cast %16 : vector<16x16x4xf32> to vector<256x4xf32>
    %c0_26 = arith.constant 0 : index
    %c12 = arith.constant 12 : index
    %18 = vector.load %arg6[%c0_26, %c12] : memref<256x180xf32, #tpu.memory_space<vmem>>, vector<256x4xf32>
    tpu.vector_store %arg6[%c0_26, %c12], %17 {strides = array<i32>} : memref<256x180xf32, #tpu.memory_space<vmem>>, vector<256x4xf32>,
    %c1_27 = arith.constant 1 : index
    %c1_28 = arith.constant 1 : index
    %c0_29 = arith.constant 0 : index
    %19 = vector.load %arg5[%c1_27, %c1_28, %c0_29] : memref<18x18x4xf32, #tpu.memory_space<vmem>>, vector<16x16x4xf32>
    %20 = vector.shape_cast %19 : vector<16x16x4xf32> to vector<256x4xf32>
    %c0_30 = arith.constant 0 : index
    %c16 = arith.constant 16 : index
    %21 = vector.load %arg6[%c0_30, %c16] : memref<256x180xf32, #tpu.memory_space<vmem>>, vector<256x4xf32>
    tpu.vector_store %arg6[%c0_30, %c16], %20 {strides = array<i32>} : memref<256x180xf32, #tpu.memory_space<vmem>>, vector<256x4xf32>,
    %c1_31 = arith.constant 1 : index
    %c2_32 = arith.constant 2 : index
    %c0_33 = arith.constant 0 : index
    %22 = vector.load %arg5[%c1_31, %c2_32, %c0_33] : memref<18x18x4xf32, #tpu.memory_space<vmem>>, vector<16x16x4xf32>
    %23 = vector.shape_cast %22 : vector<16x16x4xf32> to vector<256x4xf32>
    %c0_34 = arith.constant 0 : index
    %c20 = arith.constant 20 : index
    %24 = vector.load %arg6[%c0_34, %c20] : memref<256x180xf32, #tpu.memory_space<vmem>>, vector<256x4xf32>
    tpu.vector_store %arg6[%c0_34, %c20], %23 {strides = array<i32>} : memref<256x180xf32, #tpu.memory_space<vmem>>, vector<256x4xf32>,
    %c2_35 = arith.constant 2 : index
    %c0_36 = arith.constant 0 : index
    %c0_37 = arith.constant 0 : index
    %25 = vector.load %arg5[%c2_35, %c0_36, %c0_37] : memref<18x18x4xf32, #tpu.memory_space<vmem>>, vector<16x16x4xf32>
    %26 = vector.shape_cast %25 : vector<16x16x4xf32> to vector<256x4xf32>
    %c0_38 = arith.constant 0 : index
    %c24 = arith.constant 24 : index
    %27 = vector.load %arg6[%c0_38, %c24] : memref<256x180xf32, #tpu.memory_space<vmem>>, vector<256x4xf32>
    tpu.vector_store %arg6[%c0_38, %c24], %26 {strides = array<i32>} : memref<256x180xf32, #tpu.memory_space<vmem>>, vector<256x4xf32>,
    %c2_39 = arith.constant 2 : index
    %c1_40 = arith.constant 1 : index
    %c0_41 = arith.constant 0 : index
    %28 = vector.load %arg5[%c2_39, %c1_40, %c0_41] : memref<18x18x4xf32, #tpu.memory_space<vmem>>, vector<16x16x4xf32>
    %29 = vector.shape_cast %28 : vector<16x16x4xf32> to vector<256x4xf32>
    %c0_42 = arith.constant 0 : index
    %c28 = arith.constant 28 : index
    %30 = vector.load %arg6[%c0_42, %c28] : memref<256x180xf32, #tpu.memory_space<vmem>>, vector<256x4xf32>
    tpu.vector_store %arg6[%c0_42, %c28], %29 {strides = array<i32>} : memref<256x180xf32, #tpu.memory_space<vmem>>, vector<256x4xf32>,
    %c2_43 = arith.constant 2 : index
    %c2_44 = arith.constant 2 : index
    %c0_45 = arith.constant 0 : index
    %31 = vector.load %arg5[%c2_43, %c2_44, %c0_45] : memref<18x18x4xf32, #tpu.memory_space<vmem>>, vector<16x16x4xf32>
    %32 = vector.shape_cast %31 : vector<16x16x4xf32> to vector<256x4xf32>
    %c0_46 = arith.constant 0 : index
    %c32 = arith.constant 32 : index
    %33 = vector.load %arg6[%c0_46, %c32] : memref<256x180xf32, #tpu.memory_space<vmem>>, vector<256x4xf32>
    tpu.vector_store %arg6[%c0_46, %c32], %32 {strides = array<i32>} : memref<256x180xf32, #tpu.memory_space<vmem>>, vector<256x4xf32>,
    %c0_47 = arith.constant 0 : index
    %c0_48 = arith.constant 0 : index
    %34 = vector.load %arg6[%c0_47, %c0_48] : memref<256x180xf32, #tpu.memory_space<vmem>>, vector<256x180xf32>
    %c0_49 = arith.constant 0 : index
    %c0_50 = arith.constant 0 : index
    %c0_51 = arith.constant 0 : index
    %35 = vector.load %arg2[%c0_49, %c0_50, %c0_51] : memref<5x180x4xf32, #tpu.memory_space<vmem>>, vector<1x180x4xf32>
    %36 = vector.shape_cast %35 : vector<1x180x4xf32> to vector<180x4xf32>
    %cst_52 = arith.constant dense<0.000000e+00> : vector<256x4xf32>
    %37 = tpu.matmul %34, %36, %cst_52 {dimension_numbers = #tpu.dot_dimension_numbers<[1], [0], [0], [1], [0, 0, 1, 1], [], []>} : vector<256x180xf32>, vector<180x4xf32>, vector<256x4xf32> -> vector<256x4xf32>
    %c0_53 = arith.constant 0 : index
    %c0_54 = arith.constant 0 : index
    %c0_55 = arith.constant 0 : index
    %38 = vector.load %arg3[%c0_53, %c0_54, %c0_55] : memref<5x1x4xf32, #tpu.memory_space<vmem>>, vector<1x1x4xf32>
    %39 = vector.shape_cast %38 : vector<1x1x4xf32> to vector<1x4xf32>
    %40 = vector.broadcast %39 : vector<1x4xf32> to vector<256x4xf32>
    %41 = arith.addf %37, %40 : vector<256x4xf32>
    %cst_56 = arith.constant 0.000000e+00 : f32
    %42 = vector.broadcast %cst_56 : f32 to vector<256x4xf32>
    %43 = arith.cmpf oge, %41, %42 : vector<256x4xf32>
    %cst_57 = arith.constant 2.000000e-01 : f32
    %44 = vector.broadcast %cst_57 : f32 to vector<256x4xf32>
    %45 = arith.mulf %44, %41 : vector<256x4xf32>
    %46 = arith.select %43, %41, %45 : vector<256x4xi1>, vector<256x4xf32>
    %47 = vector.shape_cast %46 : vector<256x4xf32> to vector<16x16x4xf32>
    %c1_58 = arith.constant 1 : index
    %c1_59 = arith.constant 1 : index
    %c0_60 = arith.constant 0 : index
    %48 = vector.load %arg5[%c1_58, %c1_59, %c0_60] : memref<18x18x4xf32, #tpu.memory_space<vmem>>, vector<16x16x4xf32>
    tpu.vector_store %arg5[%c1_58, %c1_59, %c0_60], %47 {strides = array<i32>} : memref<18x18x4xf32, #tpu.memory_space<vmem>>, vector<16x16x4xf32>,
    %c0_61 = arith.constant 0 : index
    %c0_62 = arith.constant 0 : index
    %c0_63 = arith.constant 0 : index
    %49 = vector.load %arg5[%c0_61, %c0_62, %c0_63] : memref<18x18x4xf32, #tpu.memory_space<vmem>>, vector<16x16x4xf32>
    %50 = vector.shape_cast %49 : vector<16x16x4xf32> to vector<256x4xf32>
    %c0_64 = arith.constant 0 : index
    %c36 = arith.constant 36 : index
    %51 = vector.load %arg6[%c0_64, %c36] : memref<256x180xf32, #tpu.memory_space<vmem>>, vector<256x4xf32>
    tpu.vector_store %arg6[%c0_64, %c36], %50 {strides = array<i32>} : memref<256x180xf32, #tpu.memory_space<vmem>>, vector<256x4xf32>,
    %c0_65 = arith.constant 0 : index
    %c1_66 = arith.constant 1 : index
    %c0_67 = arith.constant 0 : index
    %52 = vector.load %arg5[%c0_65, %c1_66, %c0_67] : memref<18x18x4xf32, #tpu.memory_space<vmem>>, vector<16x16x4xf32>
    %53 = vector.shape_cast %52 : vector<16x16x4xf32> to vector<256x4xf32>
    %c0_68 = arith.constant 0 : index
    %c40 = arith.constant 40 : index
    %54 = vector.load %arg6[%c0_68, %c40] : memref<256x180xf32, #tpu.memory_space<vmem>>, vector<256x4xf32>
    tpu.vector_store %arg6[%c0_68, %c40], %53 {strides = array<i32>} : memref<256x180xf32, #tpu.memory_space<vmem>>, vector<256x4xf32>,
    %c0_69 = arith.constant 0 : index
    %c2_70 = arith.constant 2 : index
    %c0_71 = arith.constant 0 : index
    %55 = vector.load %arg5[%c0_69, %c2_70, %c0_71] : memref<18x18x4xf32, #tpu.memory_space<vmem>>, vector<16x16x4xf32>
    %56 = vector.shape_cast %55 : vector<16x16x4xf32> to vector<256x4xf32>
    %c0_72 = arith.constant 0 : index
    %c44 = arith.constant 44 : index
    %57 = vector.load %arg6[%c0_72, %c44] : memref<256x180xf32, #tpu.memory_space<vmem>>, vector<256x4xf32>
    tpu.vector_store %arg6[%c0_72, %c44], %56 {strides = array<i32>} : memref<256x180xf32, #tpu.memory_space<vmem>>, vector<256x4xf32>,
    %c1_73 = arith.constant 1 : index
    %c0_74 = arith.constant 0 : index
    %c0_75 = arith.constant 0 : index
    %58 = vector.load %arg5[%c1_73, %c0_74, %c0_75] : memref<18x18x4xf32, #tpu.memory_space<vmem>>, vector<16x16x4xf32>
    %59 = vector.shape_cast %58 : vector<16x16x4xf32> to vector<256x4xf32>
    %c0_76 = arith.constant 0 : index
    %c48 = arith.constant 48 : index
    %60 = vector.load %arg6[%c0_76, %c48] : memref<256x180xf32, #tpu.memory_space<vmem>>, vector<256x4xf32>
    tpu.vector_store %arg6[%c0_76, %c48], %59 {strides = array<i32>} : memref<256x180xf32, #tpu.memory_space<vmem>>, vector<256x4xf32>,
    %c1_77 = arith.constant 1 : index
    %c1_78 = arith.constant 1 : index
    %c0_79 = arith.constant 0 : index
    %61 = vector.load %arg5[%c1_77, %c1_78, %c0_79] : memref<18x18x4xf32, #tpu.memory_space<vmem>>, vector<16x16x4xf32>
    %62 = vector.shape_cast %61 : vector<16x16x4xf32> to vector<256x4xf32>
    %c0_80 = arith.constant 0 : index
    %c52 = arith.constant 52 : index
    %63 = vector.load %arg6[%c0_80, %c52] : memref<256x180xf32, #tpu.memory_space<vmem>>, vector<256x4xf32>
    tpu.vector_store %arg6[%c0_80, %c52], %62 {strides = array<i32>} : memref<256x180xf32, #tpu.memory_space<vmem>>, vector<256x4xf32>,
    %c1_81 = arith.constant 1 : index
    %c2_82 = arith.constant 2 : index
    %c0_83 = arith.constant 0 : index
    %64 = vector.load %arg5[%c1_81, %c2_82, %c0_83] : memref<18x18x4xf32, #tpu.memory_space<vmem>>, vector<16x16x4xf32>
    %65 = vector.shape_cast %64 : vector<16x16x4xf32> to vector<256x4xf32>
    %c0_84 = arith.constant 0 : index
    %c56 = arith.constant 56 : index
    %66 = vector.load %arg6[%c0_84, %c56] : memref<256x180xf32, #tpu.memory_space<vmem>>, vector<256x4xf32>
    tpu.vector_store %arg6[%c0_84, %c56], %65 {strides = array<i32>} : memref<256x180xf32, #tpu.memory_space<vmem>>, vector<256x4xf32>,
    %c2_85 = arith.constant 2 : index
    %c0_86 = arith.constant 0 : index
    %c0_87 = arith.constant 0 : index
    %67 = vector.load %arg5[%c2_85, %c0_86, %c0_87] : memref<18x18x4xf32, #tpu.memory_space<vmem>>, vector<16x16x4xf32>
    %68 = vector.shape_cast %67 : vector<16x16x4xf32> to vector<256x4xf32>
    %c0_88 = arith.constant 0 : index
    %c60 = arith.constant 60 : index
    %69 = vector.load %arg6[%c0_88, %c60] : memref<256x180xf32, #tpu.memory_space<vmem>>, vector<256x4xf32>
    tpu.vector_store %arg6[%c0_88, %c60], %68 {strides = array<i32>} : memref<256x180xf32, #tpu.memory_space<vmem>>, vector<256x4xf32>,
    %c2_89 = arith.constant 2 : index
    %c1_90 = arith.constant 1 : index
    %c0_91 = arith.constant 0 : index
    %70 = vector.load %arg5[%c2_89, %c1_90, %c0_91] : memref<18x18x4xf32, #tpu.memory_space<vmem>>, vector<16x16x4xf32>
    %71 = vector.shape_cast %70 : vector<16x16x4xf32> to vector<256x4xf32>
    %c0_92 = arith.constant 0 : index
    %c64 = arith.constant 64 : index
    %72 = vector.load %arg6[%c0_92, %c64] : memref<256x180xf32, #tpu.memory_space<vmem>>, vector<256x4xf32>
    tpu.vector_store %arg6[%c0_92, %c64], %71 {strides = array<i32>} : memref<256x180xf32, #tpu.memory_space<vmem>>, vector<256x4xf32>,
    %c2_93 = arith.constant 2 : index
    %c2_94 = arith.constant 2 : index
    %c0_95 = arith.constant 0 : index
    %73 = vector.load %arg5[%c2_93, %c2_94, %c0_95] : memref<18x18x4xf32, #tpu.memory_space<vmem>>, vector<16x16x4xf32>
    %74 = vector.shape_cast %73 : vector<16x16x4xf32> to vector<256x4xf32>
    %c0_96 = arith.constant 0 : index
    %c68 = arith.constant 68 : index
    %75 = vector.load %arg6[%c0_96, %c68] : memref<256x180xf32, #tpu.memory_space<vmem>>, vector<256x4xf32>
    tpu.vector_store %arg6[%c0_96, %c68], %74 {strides = array<i32>} : memref<256x180xf32, #tpu.memory_space<vmem>>, vector<256x4xf32>,
    %c0_97 = arith.constant 0 : index
    %c0_98 = arith.constant 0 : index
    %76 = vector.load %arg6[%c0_97, %c0_98] : memref<256x180xf32, #tpu.memory_space<vmem>>, vector<256x180xf32>
    %c1_99 = arith.constant 1 : index
    %c0_100 = arith.constant 0 : index
    %c0_101 = arith.constant 0 : index
    %77 = vector.load %arg2[%c1_99, %c0_100, %c0_101] : memref<5x180x4xf32, #tpu.memory_space<vmem>>, vector<1x180x4xf32>
    %78 = vector.shape_cast %77 : vector<1x180x4xf32> to vector<180x4xf32>
    %cst_102 = arith.constant dense<0.000000e+00> : vector<256x4xf32>
    %79 = tpu.matmul %76, %78, %cst_102 {dimension_numbers = #tpu.dot_dimension_numbers<[1], [0], [0], [1], [0, 0, 1, 1], [], []>} : vector<256x180xf32>, vector<180x4xf32>, vector<256x4xf32> -> vector<256x4xf32>
    %c1_103 = arith.constant 1 : index
    %c0_104 = arith.constant 0 : index
    %c0_105 = arith.constant 0 : index
    %80 = vector.load %arg3[%c1_103, %c0_104, %c0_105] : memref<5x1x4xf32, #tpu.memory_space<vmem>>, vector<1x1x4xf32>
    %81 = vector.shape_cast %80 : vector<1x1x4xf32> to vector<1x4xf32>
    %82 = vector.broadcast %81 : vector<1x4xf32> to vector<256x4xf32>
    %83 = arith.addf %79, %82 : vector<256x4xf32>
    %cst_106 = arith.constant 0.000000e+00 : f32
    %84 = vector.broadcast %cst_106 : f32 to vector<256x4xf32>
    %85 = arith.cmpf oge, %83, %84 : vector<256x4xf32>
    %cst_107 = arith.constant 2.000000e-01 : f32
    %86 = vector.broadcast %cst_107 : f32 to vector<256x4xf32>
    %87 = arith.mulf %86, %83 : vector<256x4xf32>
    %88 = arith.select %85, %83, %87 : vector<256x4xi1>, vector<256x4xf32>
    %89 = vector.shape_cast %88 : vector<256x4xf32> to vector<16x16x4xf32>
    %c1_108 = arith.constant 1 : index
    %c1_109 = arith.constant 1 : index
    %c0_110 = arith.constant 0 : index
    %90 = vector.load %arg5[%c1_108, %c1_109, %c0_110] : memref<18x18x4xf32, #tpu.memory_space<vmem>>, vector<16x16x4xf32>
    tpu.vector_store %arg5[%c1_108, %c1_109, %c0_110], %89 {strides = array<i32>} : memref<18x18x4xf32, #tpu.memory_space<vmem>>, vector<16x16x4xf32>,
    %c0_111 = arith.constant 0 : index
    %c0_112 = arith.constant 0 : index
    %c0_113 = arith.constant 0 : index
    %91 = vector.load %arg5[%c0_111, %c0_112, %c0_113] : memref<18x18x4xf32, #tpu.memory_space<vmem>>, vector<16x16x4xf32>
    %92 = vector.shape_cast %91 : vector<16x16x4xf32> to vector<256x4xf32>
    %c0_114 = arith.constant 0 : index
    %c72 = arith.constant 72 : index
    %93 = vector.load %arg6[%c0_114, %c72] : memref<256x180xf32, #tpu.memory_space<vmem>>, vector<256x4xf32>
    tpu.vector_store %arg6[%c0_114, %c72], %92 {strides = array<i32>} : memref<256x180xf32, #tpu.memory_space<vmem>>, vector<256x4xf32>,
    %c0_115 = arith.constant 0 : index
    %c1_116 = arith.constant 1 : index
    %c0_117 = arith.constant 0 : index
    %94 = vector.load %arg5[%c0_115, %c1_116, %c0_117] : memref<18x18x4xf32, #tpu.memory_space<vmem>>, vector<16x16x4xf32>
    %95 = vector.shape_cast %94 : vector<16x16x4xf32> to vector<256x4xf32>
    %c0_118 = arith.constant 0 : index
    %c76 = arith.constant 76 : index
    %96 = vector.load %arg6[%c0_118, %c76] : memref<256x180xf32, #tpu.memory_space<vmem>>, vector<256x4xf32>
    tpu.vector_store %arg6[%c0_118, %c76], %95 {strides = array<i32>} : memref<256x180xf32, #tpu.memory_space<vmem>>, vector<256x4xf32>,
    %c0_119 = arith.constant 0 : index
    %c2_120 = arith.constant 2 : index
    %c0_121 = arith.constant 0 : index
    %97 = vector.load %arg5[%c0_119, %c2_120, %c0_121] : memref<18x18x4xf32, #tpu.memory_space<vmem>>, vector<16x16x4xf32>
    %98 = vector.shape_cast %97 : vector<16x16x4xf32> to vector<256x4xf32>
    %c0_122 = arith.constant 0 : index
    %c80 = arith.constant 80 : index
    %99 = vector.load %arg6[%c0_122, %c80] : memref<256x180xf32, #tpu.memory_space<vmem>>, vector<256x4xf32>
    tpu.vector_store %arg6[%c0_122, %c80], %98 {strides = array<i32>} : memref<256x180xf32, #tpu.memory_space<vmem>>, vector<256x4xf32>,
    %c1_123 = arith.constant 1 : index
    %c0_124 = arith.constant 0 : index
    %c0_125 = arith.constant 0 : index
    %100 = vector.load %arg5[%c1_123, %c0_124, %c0_125] : memref<18x18x4xf32, #tpu.memory_space<vmem>>, vector<16x16x4xf32>
    %101 = vector.shape_cast %100 : vector<16x16x4xf32> to vector<256x4xf32>
    %c0_126 = arith.constant 0 : index
    %c84 = arith.constant 84 : index
    %102 = vector.load %arg6[%c0_126, %c84] : memref<256x180xf32, #tpu.memory_space<vmem>>, vector<256x4xf32>
    tpu.vector_store %arg6[%c0_126, %c84], %101 {strides = array<i32>} : memref<256x180xf32, #tpu.memory_space<vmem>>, vector<256x4xf32>,
    %c1_127 = arith.constant 1 : index
    %c1_128 = arith.constant 1 : index
    %c0_129 = arith.constant 0 : index
    %103 = vector.load %arg5[%c1_127, %c1_128, %c0_129] : memref<18x18x4xf32, #tpu.memory_space<vmem>>, vector<16x16x4xf32>
    %104 = vector.shape_cast %103 : vector<16x16x4xf32> to vector<256x4xf32>
    %c0_130 = arith.constant 0 : index
    %c88 = arith.constant 88 : index
    %105 = vector.load %arg6[%c0_130, %c88] : memref<256x180xf32, #tpu.memory_space<vmem>>, vector<256x4xf32>
    tpu.vector_store %arg6[%c0_130, %c88], %104 {strides = array<i32>} : memref<256x180xf32, #tpu.memory_space<vmem>>, vector<256x4xf32>,
    %c1_131 = arith.constant 1 : index
    %c2_132 = arith.constant 2 : index
    %c0_133 = arith.constant 0 : index
    %106 = vector.load %arg5[%c1_131, %c2_132, %c0_133] : memref<18x18x4xf32, #tpu.memory_space<vmem>>, vector<16x16x4xf32>
    %107 = vector.shape_cast %106 : vector<16x16x4xf32> to vector<256x4xf32>
    %c0_134 = arith.constant 0 : index
    %c92 = arith.constant 92 : index
    %108 = vector.load %arg6[%c0_134, %c92] : memref<256x180xf32, #tpu.memory_space<vmem>>, vector<256x4xf32>
    tpu.vector_store %arg6[%c0_134, %c92], %107 {strides = array<i32>} : memref<256x180xf32, #tpu.memory_space<vmem>>, vector<256x4xf32>,
    %c2_135 = arith.constant 2 : index
    %c0_136 = arith.constant 0 : index
    %c0_137 = arith.constant 0 : index
    %109 = vector.load %arg5[%c2_135, %c0_136, %c0_137] : memref<18x18x4xf32, #tpu.memory_space<vmem>>, vector<16x16x4xf32>
    %110 = vector.shape_cast %109 : vector<16x16x4xf32> to vector<256x4xf32>
    %c0_138 = arith.constant 0 : index
    %c96 = arith.constant 96 : index
    %111 = vector.load %arg6[%c0_138, %c96] : memref<256x180xf32, #tpu.memory_space<vmem>>, vector<256x4xf32>
    tpu.vector_store %arg6[%c0_138, %c96], %110 {strides = array<i32>} : memref<256x180xf32, #tpu.memory_space<vmem>>, vector<256x4xf32>,
    %c2_139 = arith.constant 2 : index
    %c1_140 = arith.constant 1 : index
    %c0_141 = arith.constant 0 : index
    %112 = vector.load %arg5[%c2_139, %c1_140, %c0_141] : memref<18x18x4xf32, #tpu.memory_space<vmem>>, vector<16x16x4xf32>
    %113 = vector.shape_cast %112 : vector<16x16x4xf32> to vector<256x4xf32>
    %c0_142 = arith.constant 0 : index
    %c100 = arith.constant 100 : index
    %114 = vector.load %arg6[%c0_142, %c100] : memref<256x180xf32, #tpu.memory_space<vmem>>, vector<256x4xf32>
    tpu.vector_store %arg6[%c0_142, %c100], %113 {strides = array<i32>} : memref<256x180xf32, #tpu.memory_space<vmem>>, vector<256x4xf32>,
    %c2_143 = arith.constant 2 : index
    %c2_144 = arith.constant 2 : index
    %c0_145 = arith.constant 0 : index
    %115 = vector.load %arg5[%c2_143, %c2_144, %c0_145] : memref<18x18x4xf32, #tpu.memory_space<vmem>>, vector<16x16x4xf32>
    %116 = vector.shape_cast %115 : vector<16x16x4xf32> to vector<256x4xf32>
    %c0_146 = arith.constant 0 : index
    %c104 = arith.constant 104 : index
    %117 = vector.load %arg6[%c0_146, %c104] : memref<256x180xf32, #tpu.memory_space<vmem>>, vector<256x4xf32>
    tpu.vector_store %arg6[%c0_146, %c104], %116 {strides = array<i32>} : memref<256x180xf32, #tpu.memory_space<vmem>>, vector<256x4xf32>,
    %c0_147 = arith.constant 0 : index
    %c0_148 = arith.constant 0 : index
    %118 = vector.load %arg6[%c0_147, %c0_148] : memref<256x180xf32, #tpu.memory_space<vmem>>, vector<256x180xf32>
    %c2_149 = arith.constant 2 : index
    %c0_150 = arith.constant 0 : index
    %c0_151 = arith.constant 0 : index
    %119 = vector.load %arg2[%c2_149, %c0_150, %c0_151] : memref<5x180x4xf32, #tpu.memory_space<vmem>>, vector<1x180x4xf32>
    %120 = vector.shape_cast %119 : vector<1x180x4xf32> to vector<180x4xf32>
    %cst_152 = arith.constant dense<0.000000e+00> : vector<256x4xf32>
    %121 = tpu.matmul %118, %120, %cst_152 {dimension_numbers = #tpu.dot_dimension_numbers<[1], [0], [0], [1], [0, 0, 1, 1], [], []>} : vector<256x180xf32>, vector<180x4xf32>, vector<256x4xf32> -> vector<256x4xf32>
    %c2_153 = arith.constant 2 : index
    %c0_154 = arith.constant 0 : index
    %c0_155 = arith.constant 0 : index
    %122 = vector.load %arg3[%c2_153, %c0_154, %c0_155] : memref<5x1x4xf32, #tpu.memory_space<vmem>>, vector<1x1x4xf32>
    %123 = vector.shape_cast %122 : vector<1x1x4xf32> to vector<1x4xf32>
    %124 = vector.broadcast %123 : vector<1x4xf32> to vector<256x4xf32>
    %125 = arith.addf %121, %124 : vector<256x4xf32>
    %cst_156 = arith.constant 0.000000e+00 : f32
    %126 = vector.broadcast %cst_156 : f32 to vector<256x4xf32>
    %127 = arith.cmpf oge, %125, %126 : vector<256x4xf32>
    %cst_157 = arith.constant 2.000000e-01 : f32
    %128 = vector.broadcast %cst_157 : f32 to vector<256x4xf32>
    %129 = arith.mulf %128, %125 : vector<256x4xf32>
    %130 = arith.select %127, %125, %129 : vector<256x4xi1>, vector<256x4xf32>
    %131 = vector.shape_cast %130 : vector<256x4xf32> to vector<16x16x4xf32>
    %c1_158 = arith.constant 1 : index
    %c1_159 = arith.constant 1 : index
    %c0_160 = arith.constant 0 : index
    %132 = vector.load %arg5[%c1_158, %c1_159, %c0_160] : memref<18x18x4xf32, #tpu.memory_space<vmem>>, vector<16x16x4xf32>
    tpu.vector_store %arg5[%c1_158, %c1_159, %c0_160], %131 {strides = array<i32>} : memref<18x18x4xf32, #tpu.memory_space<vmem>>, vector<16x16x4xf32>,
    %c0_161 = arith.constant 0 : index
    %c0_162 = arith.constant 0 : index
    %c0_163 = arith.constant 0 : index
    %133 = vector.load %arg5[%c0_161, %c0_162, %c0_163] : memref<18x18x4xf32, #tpu.memory_space<vmem>>, vector<16x16x4xf32>
    %134 = vector.shape_cast %133 : vector<16x16x4xf32> to vector<256x4xf32>
    %c0_164 = arith.constant 0 : index
    %c108 = arith.constant 108 : index
    %135 = vector.load %arg6[%c0_164, %c108] : memref<256x180xf32, #tpu.memory_space<vmem>>, vector<256x4xf32>
    tpu.vector_store %arg6[%c0_164, %c108], %134 {strides = array<i32>} : memref<256x180xf32, #tpu.memory_space<vmem>>, vector<256x4xf32>,
    %c0_165 = arith.constant 0 : index
    %c1_166 = arith.constant 1 : index
    %c0_167 = arith.constant 0 : index
    %136 = vector.load %arg5[%c0_165, %c1_166, %c0_167] : memref<18x18x4xf32, #tpu.memory_space<vmem>>, vector<16x16x4xf32>
    %137 = vector.shape_cast %136 : vector<16x16x4xf32> to vector<256x4xf32>
    %c0_168 = arith.constant 0 : index
    %c112 = arith.constant 112 : index
    %138 = vector.load %arg6[%c0_168, %c112] : memref<256x180xf32, #tpu.memory_space<vmem>>, vector<256x4xf32>
    tpu.vector_store %arg6[%c0_168, %c112], %137 {strides = array<i32>} : memref<256x180xf32, #tpu.memory_space<vmem>>, vector<256x4xf32>,
    %c0_169 = arith.constant 0 : index
    %c2_170 = arith.constant 2 : index
    %c0_171 = arith.constant 0 : index
    %139 = vector.load %arg5[%c0_169, %c2_170, %c0_171] : memref<18x18x4xf32, #tpu.memory_space<vmem>>, vector<16x16x4xf32>
    %140 = vector.shape_cast %139 : vector<16x16x4xf32> to vector<256x4xf32>
    %c0_172 = arith.constant 0 : index
    %c116 = arith.constant 116 : index
    %141 = vector.load %arg6[%c0_172, %c116] : memref<256x180xf32, #tpu.memory_space<vmem>>, vector<256x4xf32>
    tpu.vector_store %arg6[%c0_172, %c116], %140 {strides = array<i32>} : memref<256x180xf32, #tpu.memory_space<vmem>>, vector<256x4xf32>,
    %c1_173 = arith.constant 1 : index
    %c0_174 = arith.constant 0 : index
    %c0_175 = arith.constant 0 : index
    %142 = vector.load %arg5[%c1_173, %c0_174, %c0_175] : memref<18x18x4xf32, #tpu.memory_space<vmem>>, vector<16x16x4xf32>
    %143 = vector.shape_cast %142 : vector<16x16x4xf32> to vector<256x4xf32>
    %c0_176 = arith.constant 0 : index
    %c120 = arith.constant 120 : index
    %144 = vector.load %arg6[%c0_176, %c120] : memref<256x180xf32, #tpu.memory_space<vmem>>, vector<256x4xf32>
    tpu.vector_store %arg6[%c0_176, %c120], %143 {strides = array<i32>} : memref<256x180xf32, #tpu.memory_space<vmem>>, vector<256x4xf32>,
    %c1_177 = arith.constant 1 : index
    %c1_178 = arith.constant 1 : index
    %c0_179 = arith.constant 0 : index
    %145 = vector.load %arg5[%c1_177, %c1_178, %c0_179] : memref<18x18x4xf32, #tpu.memory_space<vmem>>, vector<16x16x4xf32>
    %146 = vector.shape_cast %145 : vector<16x16x4xf32> to vector<256x4xf32>
    %c0_180 = arith.constant 0 : index
    %c124 = arith.constant 124 : index
    %147 = vector.load %arg6[%c0_180, %c124] : memref<256x180xf32, #tpu.memory_space<vmem>>, vector<256x4xf32>
    tpu.vector_store %arg6[%c0_180, %c124], %146 {strides = array<i32>} : memref<256x180xf32, #tpu.memory_space<vmem>>, vector<256x4xf32>,
    %c1_181 = arith.constant 1 : index
    %c2_182 = arith.constant 2 : index
    %c0_183 = arith.constant 0 : index
    %148 = vector.load %arg5[%c1_181, %c2_182, %c0_183] : memref<18x18x4xf32, #tpu.memory_space<vmem>>, vector<16x16x4xf32>
    %149 = vector.shape_cast %148 : vector<16x16x4xf32> to vector<256x4xf32>
    %c0_184 = arith.constant 0 : index
    %c128 = arith.constant 128 : index
    %150 = vector.load %arg6[%c0_184, %c128] : memref<256x180xf32, #tpu.memory_space<vmem>>, vector<256x4xf32>
    tpu.vector_store %arg6[%c0_184, %c128], %149 {strides = array<i32>} : memref<256x180xf32, #tpu.memory_space<vmem>>, vector<256x4xf32>,
    %c2_185 = arith.constant 2 : index
    %c0_186 = arith.constant 0 : index
    %c0_187 = arith.constant 0 : index
    %151 = vector.load %arg5[%c2_185, %c0_186, %c0_187] : memref<18x18x4xf32, #tpu.memory_space<vmem>>, vector<16x16x4xf32>
    %152 = vector.shape_cast %151 : vector<16x16x4xf32> to vector<256x4xf32>
    %c0_188 = arith.constant 0 : index
    %c132 = arith.constant 132 : index
    %153 = vector.load %arg6[%c0_188, %c132] : memref<256x180xf32, #tpu.memory_space<vmem>>, vector<256x4xf32>
    tpu.vector_store %arg6[%c0_188, %c132], %152 {strides = array<i32>} : memref<256x180xf32, #tpu.memory_space<vmem>>, vector<256x4xf32>,
    %c2_189 = arith.constant 2 : index
    %c1_190 = arith.constant 1 : index
    %c0_191 = arith.constant 0 : index
    %154 = vector.load %arg5[%c2_189, %c1_190, %c0_191] : memref<18x18x4xf32, #tpu.memory_space<vmem>>, vector<16x16x4xf32>
    %155 = vector.shape_cast %154 : vector<16x16x4xf32> to vector<256x4xf32>
    %c0_192 = arith.constant 0 : index
    %c136 = arith.constant 136 : index
    %156 = vector.load %arg6[%c0_192, %c136] : memref<256x180xf32, #tpu.memory_space<vmem>>, vector<256x4xf32>
    tpu.vector_store %arg6[%c0_192, %c136], %155 {strides = array<i32>} : memref<256x180xf32, #tpu.memory_space<vmem>>, vector<256x4xf32>,
    %c2_193 = arith.constant 2 : index
    %c2_194 = arith.constant 2 : index
    %c0_195 = arith.constant 0 : index
    %157 = vector.load %arg5[%c2_193, %c2_194, %c0_195] : memref<18x18x4xf32, #tpu.memory_space<vmem>>, vector<16x16x4xf32>
    %158 = vector.shape_cast %157 : vector<16x16x4xf32> to vector<256x4xf32>
    %c0_196 = arith.constant 0 : index
    %c140 = arith.constant 140 : index
    %159 = vector.load %arg6[%c0_196, %c140] : memref<256x180xf32, #tpu.memory_space<vmem>>, vector<256x4xf32>
    tpu.vector_store %arg6[%c0_196, %c140], %158 {strides = array<i32>} : memref<256x180xf32, #tpu.memory_space<vmem>>, vector<256x4xf32>,
    %c0_197 = arith.constant 0 : index
    %c0_198 = arith.constant 0 : index
    %160 = vector.load %arg6[%c0_197, %c0_198] : memref<256x180xf32, #tpu.memory_space<vmem>>, vector<256x180xf32>
    %c3 = arith.constant 3 : index
    %c0_199 = arith.constant 0 : index
    %c0_200 = arith.constant 0 : index
    %161 = vector.load %arg2[%c3, %c0_199, %c0_200] : memref<5x180x4xf32, #tpu.memory_space<vmem>>, vector<1x180x4xf32>
    %162 = vector.shape_cast %161 : vector<1x180x4xf32> to vector<180x4xf32>
    %cst_201 = arith.constant dense<0.000000e+00> : vector<256x4xf32>
    %163 = tpu.matmul %160, %162, %cst_201 {dimension_numbers = #tpu.dot_dimension_numbers<[1], [0], [0], [1], [0, 0, 1, 1], [], []>} : vector<256x180xf32>, vector<180x4xf32>, vector<256x4xf32> -> vector<256x4xf32>
    %c3_202 = arith.constant 3 : index
    %c0_203 = arith.constant 0 : index
    %c0_204 = arith.constant 0 : index
    %164 = vector.load %arg3[%c3_202, %c0_203, %c0_204] : memref<5x1x4xf32, #tpu.memory_space<vmem>>, vector<1x1x4xf32>
    %165 = vector.shape_cast %164 : vector<1x1x4xf32> to vector<1x4xf32>
    %166 = vector.broadcast %165 : vector<1x4xf32> to vector<256x4xf32>
    %167 = arith.addf %163, %166 : vector<256x4xf32>
    %cst_205 = arith.constant 0.000000e+00 : f32
    %168 = vector.broadcast %cst_205 : f32 to vector<256x4xf32>
    %169 = arith.cmpf oge, %167, %168 : vector<256x4xf32>
    %cst_206 = arith.constant 2.000000e-01 : f32
    %170 = vector.broadcast %cst_206 : f32 to vector<256x4xf32>
    %171 = arith.mulf %170, %167 : vector<256x4xf32>
    %172 = arith.select %169, %167, %171 : vector<256x4xi1>, vector<256x4xf32>
    %173 = vector.shape_cast %172 : vector<256x4xf32> to vector<16x16x4xf32>
    %c1_207 = arith.constant 1 : index
    %c1_208 = arith.constant 1 : index
    %c0_209 = arith.constant 0 : index
    %174 = vector.load %arg5[%c1_207, %c1_208, %c0_209] : memref<18x18x4xf32, #tpu.memory_space<vmem>>, vector<16x16x4xf32>
    tpu.vector_store %arg5[%c1_207, %c1_208, %c0_209], %173 {strides = array<i32>} : memref<18x18x4xf32, #tpu.memory_space<vmem>>, vector<16x16x4xf32>,
    %c0_210 = arith.constant 0 : index
    %c0_211 = arith.constant 0 : index
    %c0_212 = arith.constant 0 : index
    %175 = vector.load %arg5[%c0_210, %c0_211, %c0_212] : memref<18x18x4xf32, #tpu.memory_space<vmem>>, vector<16x16x4xf32>
    %176 = vector.shape_cast %175 : vector<16x16x4xf32> to vector<256x4xf32>
    %c0_213 = arith.constant 0 : index
    %c144 = arith.constant 144 : index
    %177 = vector.load %arg6[%c0_213, %c144] : memref<256x180xf32, #tpu.memory_space<vmem>>, vector<256x4xf32>
    tpu.vector_store %arg6[%c0_213, %c144], %176 {strides = array<i32>} : memref<256x180xf32, #tpu.memory_space<vmem>>, vector<256x4xf32>,
    %c0_214 = arith.constant 0 : index
    %c1_215 = arith.constant 1 : index
    %c0_216 = arith.constant 0 : index
    %178 = vector.load %arg5[%c0_214, %c1_215, %c0_216] : memref<18x18x4xf32, #tpu.memory_space<vmem>>, vector<16x16x4xf32>
    %179 = vector.shape_cast %178 : vector<16x16x4xf32> to vector<256x4xf32>
    %c0_217 = arith.constant 0 : index
    %c148 = arith.constant 148 : index
    %180 = vector.load %arg6[%c0_217, %c148] : memref<256x180xf32, #tpu.memory_space<vmem>>, vector<256x4xf32>
    tpu.vector_store %arg6[%c0_217, %c148], %179 {strides = array<i32>} : memref<256x180xf32, #tpu.memory_space<vmem>>, vector<256x4xf32>,
    %c0_218 = arith.constant 0 : index
    %c2_219 = arith.constant 2 : index
    %c0_220 = arith.constant 0 : index
    %181 = vector.load %arg5[%c0_218, %c2_219, %c0_220] : memref<18x18x4xf32, #tpu.memory_space<vmem>>, vector<16x16x4xf32>
    %182 = vector.shape_cast %181 : vector<16x16x4xf32> to vector<256x4xf32>
    %c0_221 = arith.constant 0 : index
    %c152 = arith.constant 152 : index
    %183 = vector.load %arg6[%c0_221, %c152] : memref<256x180xf32, #tpu.memory_space<vmem>>, vector<256x4xf32>
    tpu.vector_store %arg6[%c0_221, %c152], %182 {strides = array<i32>} : memref<256x180xf32, #tpu.memory_space<vmem>>, vector<256x4xf32>,
    %c1_222 = arith.constant 1 : index
    %c0_223 = arith.constant 0 : index
    %c0_224 = arith.constant 0 : index
    %184 = vector.load %arg5[%c1_222, %c0_223, %c0_224] : memref<18x18x4xf32, #tpu.memory_space<vmem>>, vector<16x16x4xf32>
    %185 = vector.shape_cast %184 : vector<16x16x4xf32> to vector<256x4xf32>
    %c0_225 = arith.constant 0 : index
    %c156 = arith.constant 156 : index
    %186 = vector.load %arg6[%c0_225, %c156] : memref<256x180xf32, #tpu.memory_space<vmem>>, vector<256x4xf32>
    tpu.vector_store %arg6[%c0_225, %c156], %185 {strides = array<i32>} : memref<256x180xf32, #tpu.memory_space<vmem>>, vector<256x4xf32>,
    %c1_226 = arith.constant 1 : index
    %c1_227 = arith.constant 1 : index
    %c0_228 = arith.constant 0 : index
    %187 = vector.load %arg5[%c1_226, %c1_227, %c0_228] : memref<18x18x4xf32, #tpu.memory_space<vmem>>, vector<16x16x4xf32>
    %188 = vector.shape_cast %187 : vector<16x16x4xf32> to vector<256x4xf32>
    %c0_229 = arith.constant 0 : index
    %c160 = arith.constant 160 : index
    %189 = vector.load %arg6[%c0_229, %c160] : memref<256x180xf32, #tpu.memory_space<vmem>>, vector<256x4xf32>
    tpu.vector_store %arg6[%c0_229, %c160], %188 {strides = array<i32>} : memref<256x180xf32, #tpu.memory_space<vmem>>, vector<256x4xf32>,
    %c1_230 = arith.constant 1 : index
    %c2_231 = arith.constant 2 : index
    %c0_232 = arith.constant 0 : index
    %190 = vector.load %arg5[%c1_230, %c2_231, %c0_232] : memref<18x18x4xf32, #tpu.memory_space<vmem>>, vector<16x16x4xf32>
    %191 = vector.shape_cast %190 : vector<16x16x4xf32> to vector<256x4xf32>
    %c0_233 = arith.constant 0 : index
    %c164 = arith.constant 164 : index
    %192 = vector.load %arg6[%c0_233, %c164] : memref<256x180xf32, #tpu.memory_space<vmem>>, vector<256x4xf32>
    tpu.vector_store %arg6[%c0_233, %c164], %191 {strides = array<i32>} : memref<256x180xf32, #tpu.memory_space<vmem>>, vector<256x4xf32>,
    %c2_234 = arith.constant 2 : index
    %c0_235 = arith.constant 0 : index
    %c0_236 = arith.constant 0 : index
    %193 = vector.load %arg5[%c2_234, %c0_235, %c0_236] : memref<18x18x4xf32, #tpu.memory_space<vmem>>, vector<16x16x4xf32>
    %194 = vector.shape_cast %193 : vector<16x16x4xf32> to vector<256x4xf32>
    %c0_237 = arith.constant 0 : index
    %c168 = arith.constant 168 : index
    %195 = vector.load %arg6[%c0_237, %c168] : memref<256x180xf32, #tpu.memory_space<vmem>>, vector<256x4xf32>
    tpu.vector_store %arg6[%c0_237, %c168], %194 {strides = array<i32>} : memref<256x180xf32, #tpu.memory_space<vmem>>, vector<256x4xf32>,
    %c2_238 = arith.constant 2 : index
    %c1_239 = arith.constant 1 : index
    %c0_240 = arith.constant 0 : index
    %196 = vector.load %arg5[%c2_238, %c1_239, %c0_240] : memref<18x18x4xf32, #tpu.memory_space<vmem>>, vector<16x16x4xf32>
    %197 = vector.shape_cast %196 : vector<16x16x4xf32> to vector<256x4xf32>
    %c0_241 = arith.constant 0 : index
    %c172 = arith.constant 172 : index
    %198 = vector.load %arg6[%c0_241, %c172] : memref<256x180xf32, #tpu.memory_space<vmem>>, vector<256x4xf32>
    tpu.vector_store %arg6[%c0_241, %c172], %197 {strides = array<i32>} : memref<256x180xf32, #tpu.memory_space<vmem>>, vector<256x4xf32>,
    %c2_242 = arith.constant 2 : index
    %c2_243 = arith.constant 2 : index
    %c0_244 = arith.constant 0 : index
    %199 = vector.load %arg5[%c2_242, %c2_243, %c0_244] : memref<18x18x4xf32, #tpu.memory_space<vmem>>, vector<16x16x4xf32>
    %200 = vector.shape_cast %199 : vector<16x16x4xf32> to vector<256x4xf32>
    %c0_245 = arith.constant 0 : index
    %c176 = arith.constant 176 : index
    %201 = vector.load %arg6[%c0_245, %c176] : memref<256x180xf32, #tpu.memory_space<vmem>>, vector<256x4xf32>
    tpu.vector_store %arg6[%c0_245, %c176], %200 {strides = array<i32>} : memref<256x180xf32, #tpu.memory_space<vmem>>, vector<256x4xf32>,
    %c0_246 = arith.constant 0 : index
    %c0_247 = arith.constant 0 : index
    %202 = vector.load %arg6[%c0_246, %c0_247] : memref<256x180xf32, #tpu.memory_space<vmem>>, vector<256x180xf32>
    %c4_248 = arith.constant 4 : index
    %c0_249 = arith.constant 0 : index
    %c0_250 = arith.constant 0 : index
    %203 = vector.load %arg2[%c4_248, %c0_249, %c0_250] : memref<5x180x4xf32, #tpu.memory_space<vmem>>, vector<1x180x4xf32>
    %204 = vector.shape_cast %203 : vector<1x180x4xf32> to vector<180x4xf32>
    %cst_251 = arith.constant dense<0.000000e+00> : vector<256x4xf32>
    %205 = tpu.matmul %202, %204, %cst_251 {dimension_numbers = #tpu.dot_dimension_numbers<[1], [0], [0], [1], [0, 0, 1, 1], [], []>} : vector<256x180xf32>, vector<180x4xf32>, vector<256x4xf32> -> vector<256x4xf32>
    %c4_252 = arith.constant 4 : index
    %c0_253 = arith.constant 0 : index
    %c0_254 = arith.constant 0 : index
    %206 = vector.load %arg3[%c4_252, %c0_253, %c0_254] : memref<5x1x4xf32, #tpu.memory_space<vmem>>, vector<1x1x4xf32>
    %207 = vector.shape_cast %206 : vector<1x1x4xf32> to vector<1x4xf32>
    %208 = vector.broadcast %207 : vector<1x4xf32> to vector<256x4xf32>
    %209 = arith.addf %205, %208 : vector<256x4xf32>
    %210 = vector.shape_cast %209 : vector<256x4xf32> to vector<16x16x4xf32>
    %cst_255 = arith.constant 2.000000e-01 : f32
    %211 = vector.broadcast %cst_255 : f32 to vector<16x16x4xf32>
    %212 = arith.mulf %210, %211 : vector<16x16x4xf32>
    %213 = arith.addf %212, %5 : vector<16x16x4xf32>
    %c0_256 = arith.constant 0 : index
    %c0_257 = arith.constant 0 : index
    %c0_258 = arith.constant 0 : index
    %c0_259 = arith.constant 0 : index
    %214 = vector.load %arg4[%c0_256, %c0_257, %c0_258, %c0_259] : memref<1x16x16x4xf32, #tpu.memory_space<vmem>>, vector<1x16x16x4xf32>
    %215 = vector.shape_cast %214 : vector<1x16x16x4xf32> to vector<16x16x4xf32>
    %216 = vector.shape_cast %213 : vector<16x16x4xf32> to vector<1x16x16x4xf32>
    tpu.vector_store %arg4[%c0_256, %c0_257, %c0_258, %c0_259], %216 {strides = array<i32>} : memref<1x16x16x4xf32, #tpu.memory_space<vmem>>, vector<1x16x16x4xf32>,
    return
  }
  func.func @transform_0(%arg0: i32) -> (i32, i32, i32, i32) {
    %c0_i32 = arith.constant 0 : i32
    %c0_i32_0 = arith.constant 0 : i32
    %c0_i32_1 = arith.constant 0 : i32
    %c0_i32_2 = arith.constant 0 : i32
    return %arg0, %c0_i32, %c0_i32_0, %c0_i32_1 : i32, i32, i32, i32
  }
  func.func @transform_1(%arg0: i32) -> (i32, i32, i32) {
    %c0_i32 = arith.constant 0 : i32
    %c0_i32_0 = arith.constant 0 : i32
    %c0_i32_1 = arith.constant 0 : i32
    %c0_i32_2 = arith.constant 0 : i32
    return %c0_i32, %c0_i32_0, %c0_i32_1 : i32, i32, i32
  }
  func.func @transform_2(%arg0: i32) -> (i32, i32, i32) {
    %c0_i32 = arith.constant 0 : i32
    %c0_i32_0 = arith.constant 0 : i32
    %c0_i32_1 = arith.constant 0 : i32
    %c0_i32_2 = arith.constant 0 : i32
    return %c0_i32, %c0_i32_0, %c0_i32_1 : i32, i32, i32
  }
  func.func @transform_3(%arg0: i32) -> (i32, i32, i32, i32) {
    %c0_i32 = arith.constant 0 : i32
    %c0_i32_0 = arith.constant 0 : i32
    %c0_i32_1 = arith.constant 0 : i32
    %c0_i32_2 = arith.constant 0 : i32
    return %arg0, %c0_i32, %c0_i32_0, %c0_i32_1 : i32, i32, i32, i32
  }
}

</mosaic_0001>

<llo_original>
// kernel: dense_block_forward.1
$region0: #{dense_block_forward.1}
  #allocation0 [shape = 'u32[]', space=smem, size = 0x4, offset = 0x4, fixed_abs, tag = 'smem constant byte address 0x4 - core index']
  #allocation1 [shape = 'u32[144,128]{1,0:T(1,128)}', space=vmem, size = 0x12000, scoped, tag = 'internal scratch']
  #allocation2 [shape = 'f32[18,18,4]{2,1,0:T(8,128)}', space=vmem, size = 0x36000, scoped, tag = 'scratch operand']
  #allocation3 [shape = 'f32[256,180]{1,0:T(8,128)}', space=vmem, size = 0x40000, scoped, tag = 'scratch operand']
  %s0 = inlined_call_operand.vmem [shape: f32[2,16,16,4], index: 0, kind: input, shape index: {}]
  %s1 = inlined_call_operand.vmem [shape: f32[5,180,4], index: 1, kind: input, shape index: {}]
  %s2 = inlined_call_operand.vmem [shape: f32[5,1,4], index: 2, kind: input, shape index: {}]
  %s3 = inlined_call_operand.vmem [shape: f32[2,16,16,4], index: 3, kind: output, shape index: {}]
  %s4 = sld [smem:[#allocation0]]
  $region45: #{dense_block_forward.1} parent=0
    _
  %s6 = ssub.s32 1, %s4
  %s7 = scalar_select 0, %s6, %s4
  loop: start=0, step=1, limit=4
  $region2: #{dense_block_forward.1} parent=0 // loop_pre_header
    _
  $region3: #{dense_block_forward.1} parent=0 // loop_header
    %s9 = sphi 0, %s13
    %p10 = scmp.ge.s32.totalorder %s9, 4
    %s19 = sphi 0, %s21
    %s22 = sphi 0, %s19
    %s23 = sphi 0, %s22
    %s39 = sphi 0, %s23
    %s43 = sphi 0, %s43
    %s45 = sphi 0, %s43
    %s46 = sphi 0, %s45
    %s60 = sphi 0, %s46
    %s64 = sphi 0, %s64
    %s66 = sphi 0, %s64
    %s67 = sphi 0, %s66
    %s81 = sphi 0, %s67
    %s87 = sphi 0, %s89
    %s90 = sphi 0, %s87
    %s91 = sphi 0, %s90
    %s107 = sphi 0, %s91
  $region4: #{dense_block_forward.1} parent=0 // loop_header_branch
    %12 = sbr.rel (%p10) target = $region8
  $region5: #{dense_block_forward.1} parent=0 // loop_body
    %s14 = ssub.s32 %s9, 1
    %s15 = ssub.s32 %s9, 2
    %s16 = sadd.s32 %s9, 1
    %s17 = ssub.s32 %s9, %s16
    %p18 = scmp.eq.s32.totalorder %s17, 0
    %s20 = sadd.s32 %s19, 1
    %s21 = scalar_select %p18, %s19, %s20
    %p24 = pneg %p18
    %p25 = scmp.eq.s32.totalorder %s9, 1
    %p26 = por %p24, %p25
    %p27 = scmp.ne.s32.totalorder %s19, %s22
    %p28 = scmp.eq.s32.totalorder %s9, 0
    %p29 = por %p27, %p28
    %p30 = scmp.ne.s32.totalorder %s19, %s22
    %p31 = scmp.eq.s32.totalorder %s14, 1
    %p32 = por %p30, %p31
    %p33 = scmp.ne.s32.totalorder %s22, %s23
    %p34 = scmp.eq.s32.totalorder %s14, 0
    %p35 = por %p33, %p34
    %p36 = scmp.ne.s32.totalorder %s22, %s23
    %p37 = scmp.eq.s32.totalorder %s15, 1
    %p38 = por %p36, %p37
    %p40 = scmp.ne.s32.totalorder %s23, %s39
    %p41 = scmp.eq.s32.totalorder %s15, 0
    %p42 = por %p40, %p41
    %s44 = sadd.s32 %s43, 1
    %p47 = scmp.eq.s32.totalorder %s9, 1
    %p48 = scmp.ne.s32.totalorder %s43, %s45
    %p49 = scmp.eq.s32.totalorder %s9, 0
    %p50 = por %p48, %p49
    %p51 = scmp.ne.s32.totalorder %s43, %s45
    %p52 = scmp.eq.s32.totalorder %s14, 1
    %p53 = por %p51, %p52
    %p54 = scmp.ne.s32.totalorder %s45, %s46
    %p55 = scmp.eq.s32.totalorder %s14, 0
    %p56 = por %p54, %p55
    %p57 = scmp.ne.s32.totalorder %s45, %s46
    %p58 = scmp.eq.s32.totalorder %s15, 1
    %p59 = por %p57, %p58
    %p61 = scmp.ne.s32.totalorder %s46, %s60
    %p62 = scmp.eq.s32.totalorder %s15, 0
    %p63 = por %p61, %p62
    %s65 = sadd.s32 %s64, 1
    %p68 = scmp.eq.s32.totalorder %s9, 1
    %p69 = scmp.ne.s32.totalorder %s64, %s66
    %p70 = scmp.eq.s32.totalorder %s9, 0
    %p71 = por %p69, %p70
    %p72 = scmp.ne.s32.totalorder %s64, %s66
    %p73 = scmp.eq.s32.totalorder %s14, 1
    %p74 = por %p72, %p73
    %p75 = scmp.ne.s32.totalorder %s66, %s67
    %p76 = scmp.eq.s32.totalorder %s14, 0
    %p77 = por %p75, %p76
    %p78 = scmp.ne.s32.totalorder %s66, %s67
    %p79 = scmp.eq.s32.totalorder %s15, 1
    %p80 = por %p78, %p79
    %p82 = scmp.ne.s32.totalorder %s67, %s81
    %p83 = scmp.eq.s32.totalorder %s15, 0
    %p84 = por %p82, %p83
    %s85 = ssub.s32 %s9, %s16
    %p86 = scmp.eq.s32.totalorder %s85, 0
    %s88 = sadd.s32 %s87, 1
    %s89 = scalar_select %p86, %s87, %s88
    %p92 = pneg %p86
    %p93 = scmp.eq.s32.totalorder %s9, 1
    %p94 = por %p92, %p93
    %p95 = scmp.ne.s32.totalorder %s87, %s90
    %p96 = scmp.eq.s32.totalorder %s9, 0
    %p97 = por %p95, %p96
    %p98 = scmp.ne.s32.totalorder %s87, %s90
    %p99 = scmp.eq.s32.totalorder %s14, 1
    %p100 = por %p98, %p99
    %p101 = scmp.ne.s32.totalorder %s90, %s91
    %p102 = scmp.eq.s32.totalorder %s14, 0
    %p103 = por %p101, %p102
    %p104 = scmp.ne.s32.totalorder %s90, %s91
    %p105 = scmp.eq.s32.totalorder %s15, 1
    %p106 = por %p104, %p105
    %p108 = scmp.ne.s32.totalorder %s91, %s107
    %p109 = scmp.eq.s32.totalorder %s15, 0
    %p110 = por %p108, %p109
    %p111 = scmp.le.s32.totalorder 1, %s9
    %p112 = scmp.lt.s32.totalorder %s9, 3
    %p113 = pnand %p111, %p112
    %p114 = pneg %p113
    // Predicated region
    $region9: #{dense_block_forward.1} parent=5 // pred_check
      _
    $region10: #{dense_block_forward.1} parent=5 // pred_check_branch
      %116 = sbr.rel (%p113) target = $region12
    $region11: #{dense_block_forward.1} parent=5 // pred_region
      %s117 = ssub.s32 %s9, 1
      // Predicated region
      $region13: #{dense_block_forward.1} parent=11 // pred_check
        %p118 = pneg %p56
      $region14: #{dense_block_forward.1} parent=11 // pred_check_branch
        %120 = sbr.rel (%p118) target = $region16
      $region15: #{dense_block_forward.1} parent=11 // pred_region
        _
      $region16: #{dense_block_forward.1} parent=11 // pred_fallthru
        _
      // Predicated region
      $region17: #{dense_block_forward.1} parent=11 // pred_check
        %p121 = pneg %p77
      $region18: #{dense_block_forward.1} parent=11 // pred_check_branch
        %123 = sbr.rel (%p121) target = $region20
      $region19: #{dense_block_forward.1} parent=11 // pred_region
        _
      $region20: #{dense_block_forward.1} parent=11 // pred_fallthru
        _
    $region12: #{dense_block_forward.1} parent=5 // pred_fallthru
      _
    %p124 = scmp.lt.s32.totalorder %s9, 2
    // Predicated region
    $region21: #{dense_block_forward.1} parent=5 // pred_check
      %p125 = pneg %p124
    $region22: #{dense_block_forward.1} parent=5 // pred_check_branch
      %127 = sbr.rel (%p125) target = $region24
    $region23: #{dense_block_forward.1} parent=5 // pred_region
      // Predicated region
      $region25: #{dense_block_forward.1} parent=23 // pred_check
        %p128 = pneg %p29
      $region26: #{dense_block_forward.1} parent=23 // pred_check_branch
        %130 = sbr.rel (%p128) target = $region28
      $region27: #{dense_block_forward.1} parent=23 // pred_region
        %p131 = scmp.lt.s32.totalorder %s9, 1
        %s132 = scalar_select %p131, %s9, 1
        %s133 = smul.addr %s132, 32
        %s134 = smul.addr %s133, 8
        %s135 = scalar_lea.vmem %s0, %s134
      $region28: #{dense_block_forward.1} parent=23 // pred_fallthru
        _
    $region24: #{dense_block_forward.1} parent=5 // pred_fallthru
      _
    %p136 = scmp.le.s32.totalorder 1, %s9
    %p137 = scmp.lt.s32.totalorder %s9, 3
    %p138 = pnand %p136, %p137
    %p139 = pneg %p138
    // Predicated region
    $region29: #{dense_block_forward.1} parent=5 // pred_check
      _
    $region30: #{dense_block_forward.1} parent=5 // pred_check_branch
      %141 = sbr.rel (%p138) target = $region32
    $region31: #{dense_block_forward.1} parent=5 // pred_region
      %s142 = ssub.s32 %s9, 1
      %p143 = scmp.lt.s32.totalorder %s14, 1
      %s144 = scalar_select %p143, %s14, 1
      %s145 = smul.addr %s144, 32
      %s146 = smul.addr %s145, 8
      %s147 = scalar_lea.vmem %s0, %s146
      %p148 = pneg %p35
      %p149 = pneg %p32
      %p150 = pneg %p56
      %p151 = pneg %p53
      %p152 = pneg %p77
      %p153 = pneg %p74
      %p154 = pneg %p103
      %p155 = pneg %p100
      %p156 = scmp.lt.s32.totalorder %s14, 1
      %s157 = scalar_select %p156, %s14, 1
      %s158 = smul.addr %s157, 32
      %s159 = smul.addr %s158, 8
      %s160 = scalar_lea.vmem %s3, %s159
      %p161 = scmp.lt.s32.totalorder %s14, 1
      %s162 = scalar_select %p161, %s14, 1
      %s163 = smul.addr %s162, 32
      %s164 = smul.addr %s163, 8
      %s165 = scalar_lea.vmem %s0, %s164
      %p166 = scmp.lt.s32.totalorder %s14, 1
      %s167 = scalar_select %p166, %s14, 1
      %s168 = smul.addr %s167, 32
      %s169 = smul.addr %s168, 8
      %s170 = scalar_lea.vmem %s3, %s169
      %vm171 = vcmask 31744
      %172 = vst.msk [vmem:[#allocation2] sm:$0xff] %vm171, 0.0
      %173 = vst.msk [vmem:[#allocation2 + $0x8] sm:$0xff] %vm171, 0.0
      %vm174 = vcmask 25600
      %175 = vst.msk [vmem:[#allocation2 + $0x10] sm:$0x3] %vm174, 0.0
      %176 = vst.msk [vmem:[#allocation2 + $0x18] sm:$0xff] %vm171, 0.0
      %177 = vst.msk [vmem:[#allocation2 + $0x20] sm:$0xff] %vm171, 0.0
      %178 = vst.msk [vmem:[#allocation2 + $0x28] sm:$0x3] %vm174, 0.0
      %179 = vst.msk [vmem:[#allocation2 + $0x30] sm:$0xff] %vm171, 0.0
      %180 = vst.msk [vmem:[#allocation2 + $0x38] sm:$0xff] %vm171, 0.0
      %181 = vst.msk [vmem:[#allocation2 + $0x40] sm:$0x3] %vm174, 0.0
      %182 = vst.msk [vmem:[#allocation2 + $0x48] sm:$0xff] %vm171, 0.0
      %183 = vst.msk [vmem:[#allocation2 + $0x50] sm:$0xff] %vm171, 0.0
      %184 = vst.msk [vmem:[#allocation2 + $0x58] sm:$0x3] %vm174, 0.0
      %185 = vst.msk [vmem:[#allocation2 + $0x60] sm:$0xff] %vm171, 0.0
      %186 = vst.msk [vmem:[#allocation2 + $0x68] sm:$0xff] %vm171, 0.0
      %187 = vst.msk [vmem:[#allocation2 + $0x70] sm:$0x3] %vm174, 0.0
      %188 = vst.msk [vmem:[#allocation2 + $0x78] sm:$0xff] %vm171, 0.0
      %189 = vst.msk [vmem:[#allocation2 + $0x80] sm:$0xff] %vm171, 0.0
      %190 = vst.msk [vmem:[#allocation2 + $0x88] sm:$0x3] %vm174, 0.0
      %191 = vst.msk [vmem:[#allocation2 + $0x90] sm:$0xff] %vm171, 0.0
      %192 = vst.msk [vmem:[#allocation2 + $0x98] sm:$0xff] %vm171, 0.0
      %193 = vst.msk [vmem:[#allocation2 + $0xa0] sm:$0x3] %vm174, 0.0
      %194 = vst.msk [vmem:[#allocation2 + $0xa8] sm:$0xff] %vm171, 0.0
      %195 = vst.msk [vmem:[#allocation2 + $0xb0] sm:$0xff] %vm171, 0.0
      %196 = vst.msk [vmem:[#allocation2 + $0xb8] sm:$0x3] %vm174, 0.0
      %197 = vst.msk [vmem:[#allocation2 + $0xc0] sm:$0xff] %vm171, 0.0
      %198 = vst.msk [vmem:[#allocation2 + $0xc8] sm:$0xff] %vm171, 0.0
      %199 = vst.msk [vmem:[#allocation2 + $0xd0] sm:$0x3] %vm174, 0.0
      %200 = vst.msk [vmem:[#allocation2 + $0xd8] sm:$0xff] %vm171, 0.0
      %201 = vst.msk [vmem:[#allocation2 + $0xe0] sm:$0xff] %vm171, 0.0
      %202 = vst.msk [vmem:[#allocation2 + $0xe8] sm:$0x3] %vm174, 0.0
      %203 = vst.msk [vmem:[#allocation2 + $0xf0] sm:$0xff] %vm171, 0.0
      %204 = vst.msk [vmem:[#allocation2 + $0xf8] sm:$0xff] %vm171, 0.0
      %205 = vst.msk [vmem:[#allocation2 + $0x100] sm:$0x3] %vm174, 0.0
      %206 = vst.msk [vmem:[#allocation2 + $0x108] sm:$0xff] %vm171, 0.0
      %207 = vst.msk [vmem:[#allocation2 + $0x110] sm:$0xff] %vm171, 0.0
      %208 = vst.msk [vmem:[#allocation2 + $0x118] sm:$0x3] %vm174, 0.0
      %209 = vst.msk [vmem:[#allocation2 + $0x120] sm:$0xff] %vm171, 0.0
      %210 = vst.msk [vmem:[#allocation2 + $0x128] sm:$0xff] %vm171, 0.0
      %211 = vst.msk [vmem:[#allocation2 + $0x130] sm:$0x3] %vm174, 0.0
      %212 = vst.msk [vmem:[#allocation2 + $0x138] sm:$0xff] %vm171, 0.0
      %213 = vst.msk [vmem:[#allocation2 + $0x140] sm:$0xff] %vm171, 0.0
      %214 = vst.msk [vmem:[#allocation2 + $0x148] sm:$0x3] %vm174, 0.0
      %215 = vst.msk [vmem:[#allocation2 + $0x150] sm:$0xff] %vm171, 0.0
      %216 = vst.msk [vmem:[#allocation2 + $0x158] sm:$0xff] %vm171, 0.0
      %217 = vst.msk [vmem:[#allocation2 + $0x160] sm:$0x3] %vm174, 0.0
      %218 = vst.msk [vmem:[#allocation2 + $0x168] sm:$0xff] %vm171, 0.0
      %219 = vst.msk [vmem:[#allocation2 + $0x170] sm:$0xff] %vm171, 0.0
      %220 = vst.msk [vmem:[#allocation2 + $0x178] sm:$0x3] %vm174, 0.0
      %221 = vst.msk [vmem:[#allocation2 + $0x180] sm:$0xff] %vm171, 0.0
      %222 = vst.msk [vmem:[#allocation2 + $0x188] sm:$0xff] %vm171, 0.0
      %223 = vst.msk [vmem:[#allocation2 + $0x190] sm:$0x3] %vm174, 0.0
      %224 = vst.msk [vmem:[#allocation2 + $0x198] sm:$0xff] %vm171, 0.0
      %225 = vst.msk [vmem:[#allocation2 + $0x1a0] sm:$0xff] %vm171, 0.0
      %226 = vst.msk [vmem:[#allocation2 + $0x1a8] sm:$0x3] %vm174, 0.0
      %227 = vst [vmem:[#allocation3] sm:$0xff] 0.0
      %vm228 = vcmask 424960
      %229 = vst.msk [vmem:[#allocation3 + $0x8] sm:$0xff] %vm228, 0.0
      %230 = vst [vmem:[#allocation3 + $0x10] sm:$0xff] 0.0
      %231 = vst.msk [vmem:[#allocation3 + $0x18] sm:$0xff] %vm228, 0.0
      %232 = vst [vmem:[#allocation3 + $0x20] sm:$0xff] 0.0
      %233 = vst.msk [vmem:[#allocation3 + $0x28] sm:$0xff] %vm228, 0.0
      %234 = vst [vmem:[#allocation3 + $0x30] sm:$0xff] 0.0
      %235 = vst.msk [vmem:[#allocation3 + $0x38] sm:$0xff] %vm228, 0.0
      %236 = vst [vmem:[#allocation3 + $0x40] sm:$0xff] 0.0
      %237 = vst.msk [vmem:[#allocation3 + $0x48] sm:$0xff] %vm228, 0.0
      %238 = vst [vmem:[#allocation3 + $0x50] sm:$0xff] 0.0
      %239 = vst.msk [vmem:[#allocation3 + $0x58] sm:$0xff] %vm228, 0.0
      %240 = vst [vmem:[#allocation3 + $0x60] sm:$0xff] 0.0
      %241 = vst.msk [vmem:[#allocation3 + $0x68] sm:$0xff] %vm228, 0.0
      %242 = vst [vmem:[#allocation3 + $0x70] sm:$0xff] 0.0
      %243 = vst.msk [vmem:[#allocation3 + $0x78] sm:$0xff] %vm228, 0.0
      %244 = vst [vmem:[#allocation3 + $0x80] sm:$0xff] 0.0
      %245 = vst.msk [vmem:[#allocation3 + $0x88] sm:$0xff] %vm228, 0.0
      %246 = vst [vmem:[#allocation3 + $0x90] sm:$0xff] 0.0
      %247 = vst.msk [vmem:[#allocation3 + $0x98] sm:$0xff] %vm228, 0.0
      %248 = vst [vmem:[#allocation3 + $0xa0] sm:$0xff] 0.0
      %249 = vst.msk [vmem:[#allocation3 + $0xa8] sm:$0xff] %vm228, 0.0
      %250 = vst [vmem:[#allocation3 + $0xb0] sm:$0xff] 0.0
      %251 = vst.msk [vmem:[#allocation3 + $0xb8] sm:$0xff] %vm228, 0.0
      %252 = vst [vmem:[#allocation3 + $0xc0] sm:$0xff] 0.0
      %253 = vst.msk [vmem:[#allocation3 + $0xc8] sm:$0xff] %vm228, 0.0
      %254 = vst [vmem:[#allocation3 + $0xd0] sm:$0xff] 0.0
      %255 = vst.msk [vmem:[#allocation3 + $0xd8] sm:$0xff] %vm228, 0.0
      %256 = vst [vmem:[#allocation3 + $0xe0] sm:$0xff] 0.0
      %257 = vst.msk [vmem:[#allocation3 + $0xe8] sm:$0xff] %vm228, 0.0
      %258 = vst [vmem:[#allocation3 + $0xf0] sm:$0xff] 0.0
      %259 = vst.msk [vmem:[#allocation3 + $0xf8] sm:$0xff] %vm228, 0.0
      %260 = vst [vmem:[#allocation3 + $0x100] sm:$0xff] 0.0
      %261 = vst.msk [vmem:[#allocation3 + $0x108] sm:$0xff] %vm228, 0.0
      %262 = vst [vmem:[#allocation3 + $0x110] sm:$0xff] 0.0
      %263 = vst.msk [vmem:[#allocation3 + $0x118] sm:$0xff] %vm228, 0.0
      %264 = vst [vmem:[#allocation3 + $0x120] sm:$0xff] 0.0
      %265 = vst.msk [vmem:[#allocation3 + $0x128] sm:$0xff] %vm228, 0.0
      %266 = vst [vmem:[#allocation3 + $0x130] sm:$0xff] 0.0
      %267 = vst.msk [vmem:[#allocation3 + $0x138] sm:$0xff] %vm228, 0.0
      %268 = vst [vmem:[#allocation3 + $0x140] sm:$0xff] 0.0
      %269 = vst.msk [vmem:[#allocation3 + $0x148] sm:$0xff] %vm228, 0.0
      %270 = vst [vmem:[#allocation3 + $0x150] sm:$0xff] 0.0
      %271 = vst.msk [vmem:[#allocation3 + $0x158] sm:$0xff] %vm228, 0.0
      %272 = vst [vmem:[#allocation3 + $0x160] sm:$0xff] 0.0
      %273 = vst.msk [vmem:[#allocation3 + $0x168] sm:$0xff] %vm228, 0.0
      %274 = vst [vmem:[#allocation3 + $0x170] sm:$0xff] 0.0
      %275 = vst.msk [vmem:[#allocation3 + $0x178] sm:$0xff] %vm228, 0.0
      %276 = vst [vmem:[#allocation3 + $0x180] sm:$0xff] 0.0
      %277 = vst.msk [vmem:[#allocation3 + $0x188] sm:$0xff] %vm228, 0.0
      %278 = vst [vmem:[#allocation3 + $0x190] sm:$0xff] 0.0
      %279 = vst.msk [vmem:[#allocation3 + $0x198] sm:$0xff] %vm228, 0.0
      %280 = vst [vmem:[#allocation3 + $0x1a0] sm:$0xff] 0.0
      %281 = vst.msk [vmem:[#allocation3 + $0x1a8] sm:$0xff] %vm228, 0.0
      %282 = vst [vmem:[#allocation3 + $0x1b0] sm:$0xff] 0.0
      %283 = vst.msk [vmem:[#allocation3 + $0x1b8] sm:$0xff] %vm228, 0.0
      %284 = vst [vmem:[#allocation3 + $0x1c0] sm:$0xff] 0.0
      %285 = vst.msk [vmem:[#allocation3 + $0x1c8] sm:$0xff] %vm228, 0.0
      %286 = vst [vmem:[#allocation3 + $0x1d0] sm:$0xff] 0.0
      %287 = vst.msk [vmem:[#allocation3 + $0x1d8] sm:$0xff] %vm228, 0.0
      %288 = vst [vmem:[#allocation3 + $0x1e0] sm:$0xff] 0.0
      %289 = vst.msk [vmem:[#allocation3 + $0x1e8] sm:$0xff] %vm228, 0.0
      %290 = vst [vmem:[#allocation3 + $0x1f0] sm:$0xff] 0.0
      %291 = vst.msk [vmem:[#allocation3 + $0x1f8] sm:$0xff] %vm228, 0.0
      %v292 = vld [vmem:[%s165] sm:$0xff]
      %v293 = vld [vmem:[%s165 + $0x8] sm:$0xff]
      %v294 = vld [vmem:[%s165 + $0x10] sm:$0xff]
      %v295 = vld [vmem:[%s165 + $0x18] sm:$0xff]
      %v296 = vld [vmem:[%s165 + $0x20] sm:$0xff]
      %v297 = vld [vmem:[%s165 + $0x28] sm:$0xff]
      %v298 = vld [vmem:[%s165 + $0x30] sm:$0xff]
      %v299 = vld [vmem:[%s165 + $0x38] sm:$0xff]
      %v300 = vld [vmem:[%s165 + $0x40] sm:$0xff]
      %v301 = vld [vmem:[%s165 + $0x48] sm:$0xff]
      %v302 = vld [vmem:[%s165 + $0x50] sm:$0xff]
      %v303 = vld [vmem:[%s165 + $0x58] sm:$0xff]
      %v304 = vld [vmem:[%s165 + $0x60] sm:$0xff]
      %v305 = vld [vmem:[%s165 + $0x68] sm:$0xff]
      %v306 = vld [vmem:[%s165 + $0x70] sm:$0xff]
      %v307 = vld [vmem:[%s165 + $0x78] sm:$0xff]
      %v308 = vld [vmem:[%s165 + $0x80] sm:$0xff]
      %v309 = vld [vmem:[%s165 + $0x88] sm:$0xff]
      %v310 = vld [vmem:[%s165 + $0x90] sm:$0xff]
      %v311 = vld [vmem:[%s165 + $0x98] sm:$0xff]
      %v312 = vld [vmem:[%s165 + $0xa0] sm:$0xff]
      %v313 = vld [vmem:[%s165 + $0xa8] sm:$0xff]
      %v314 = vld [vmem:[%s165 + $0xb0] sm:$0xff]
      %v315 = vld [vmem:[%s165 + $0xb8] sm:$0xff]
      %v316 = vld [vmem:[%s165 + $0xc0] sm:$0xff]
      %v317 = vld [vmem:[%s165 + $0xc8] sm:$0xff]
      %v318 = vld [vmem:[%s165 + $0xd0] sm:$0xff]
      %v319 = vld [vmem:[%s165 + $0xd8] sm:$0xff]
      %v320 = vld [vmem:[%s165 + $0xe0] sm:$0xff]
      %v321 = vld [vmem:[%s165 + $0xe8] sm:$0xff]
      %v322 = vld [vmem:[%s165 + $0xf0] sm:$0xff]
      %v323 = vld [vmem:[%s165 + $0xf8] sm:$0xff]
      %s324 = scalar_lea.vmem [#allocation2], 24
      %325 = vst.msk [vmem:[%s324 + $0x1] sm:$0xff] %vm171, %v292
      %326 = vst.msk [vmem:[%s324 + $0x9] sm:$0xff] %vm171, %v293
      %327 = vst.msk [vmem:[%s324 + $0x19] sm:$0xff] %vm171, %v294
      %328 = vst.msk [vmem:[%s324 + $0x21] sm:$0xff] %vm171, %v295
      %329 = vst.msk [vmem:[%s324 + $0x31] sm:$0xff] %vm171, %v296
      %330 = vst.msk [vmem:[%s324 + $0x39] sm:$0xff] %vm171, %v297
      %331 = vst.msk [vmem:[%s324 + $0x49] sm:$0xff] %vm171, %v298
      %332 = vst.msk [vmem:[%s324 + $0x51] sm:$0xff] %vm171, %v299
      %333 = vst.msk [vmem:[%s324 + $0x61] sm:$0xff] %vm171, %v300
      %334 = vst.msk [vmem:[%s324 + $0x69] sm:$0xff] %vm171, %v301
      %335 = vst.msk [vmem:[%s324 + $0x79] sm:$0xff] %vm171, %v302
      %336 = vst.msk [vmem:[%s324 + $0x81] sm:$0xff] %vm171, %v303
      %337 = vst.msk [vmem:[%s324 + $0x91] sm:$0xff] %vm171, %v304
      %338 = vst.msk [vmem:[%s324 + $0x99] sm:$0xff] %vm171, %v305
      %339 = vst.msk [vmem:[%s324 + $0xa9] sm:$0xff] %vm171, %v306
      %340 = vst.msk [vmem:[%s324 + $0xb1] sm:$0xff] %vm171, %v307
      %341 = vst.msk [vmem:[%s324 + $0xc1] sm:$0xff] %vm171, %v308
      %342 = vst.msk [vmem:[%s324 + $0xc9] sm:$0xff] %vm171, %v309
      %343 = vst.msk [vmem:[%s324 + $0xd9] sm:$0xff] %vm171, %v310
      %344 = vst.msk [vmem:[%s324 + $0xe1] sm:$0xff] %vm171, %v311
      %345 = vst.msk [vmem:[%s324 + $0xf1] sm:$0xff] %vm171, %v312
      %346 = vst.msk [vmem:[%s324 + $0xf9] sm:$0xff] %vm171, %v313
      %347 = vst.msk [vmem:[%s324 + $0x109] sm:$0xff] %vm171, %v314
      %348 = vst.msk [vmem:[%s324 + $0x111] sm:$0xff] %vm171, %v315
      %349 = vst.msk [vmem:[%s324 + $0x121] sm:$0xff] %vm171, %v316
      %350 = vst.msk [vmem:[%s324 + $0x129] sm:$0xff] %vm171, %v317
      %351 = vst.msk [vmem:[%s324 + $0x139] sm:$0xff] %vm171, %v318
      %352 = vst.msk [vmem:[%s324 + $0x141] sm:$0xff] %vm171, %v319
      %353 = vst.msk [vmem:[%s324 + $0x151] sm:$0xff] %vm171, %v320
      %354 = vst.msk [vmem:[%s324 + $0x159] sm:$0xff] %vm171, %v321
      %355 = vst.msk [vmem:[%s324 + $0x169] sm:$0xff] %vm171, %v322
      %356 = vst.msk [vmem:[%s324 + $0x171] sm:$0xff] %vm171, %v323
      %v357 = vld [vmem:[#allocation2] sm:$0xff]
      %v358 = vld [vmem:[#allocation2 + $0x8] sm:$0xff]
      %v359 = vld [vmem:[#allocation2 + $0x18] sm:$0xff]
      %v360 = vld [vmem:[#allocation2 + $0x20] sm:$0xff]
      %v361 = vld [vmem:[#allocation2 + $0x30] sm:$0xff]
      %v362 = vld [vmem:[#allocation2 + $0x38] sm:$0xff]
      %v363 = vld [vmem:[#allocation2 + $0x48] sm:$0xff]
      %v364 = vld [vmem:[#allocation2 + $0x50] sm:$0xff]
      %v365 = vld [vmem:[#allocation2 + $0x60] sm:$0xff]
      %v366 = vld [vmem:[#allocation2 + $0x68] sm:$0xff]
      %v367 = vld [vmem:[#allocation2 + $0x78] sm:$0xff]
      %v368 = vld [vmem:[#allocation2 + $0x80] sm:$0xff]
      %v369 = vld [vmem:[#allocation2 + $0x90] sm:$0xff]
      %v370 = vld [vmem:[#allocation2 + $0x98] sm:$0xff]
      %v371 = vld [vmem:[#allocation2 + $0xa8] sm:$0xff]
      %v372 = vld [vmem:[#allocation2 + $0xb0] sm:$0xff]
      %v373 = vld [vmem:[#allocation2 + $0xc0] sm:$0xff]
      %v374 = vld [vmem:[#allocation2 + $0xc8] sm:$0xff]
      %v375 = vld [vmem:[#allocation2 + $0xd8] sm:$0xff]
      %v376 = vld [vmem:[#allocation2 + $0xe0] sm:$0xff]
      %v377 = vld [vmem:[#allocation2 + $0xf0] sm:$0xff]
      %v378 = vld [vmem:[#allocation2 + $0xf8] sm:$0xff]
      %v379 = vld [vmem:[#allocation2 + $0x108] sm:$0xff]
      %v380 = vld [vmem:[#allocation2 + $0x110] sm:$0xff]
      %v381 = vld [vmem:[#allocation2 + $0x120] sm:$0xff]
      %v382 = vld [vmem:[#allocation2 + $0x128] sm:$0xff]
      %v383 = vld [vmem:[#allocation2 + $0x138] sm:$0xff]
      %v384 = vld [vmem:[#allocation2 + $0x140] sm:$0xff]
      %v385 = vld [vmem:[#allocation2 + $0x150] sm:$0xff]
      %v386 = vld [vmem:[#allocation2 + $0x158] sm:$0xff]
      %v387 = vld [vmem:[#allocation2 + $0x168] sm:$0xff]
      %v388 = vld [vmem:[#allocation2 + $0x170] sm:$0xff]
      %389 = vst.msk [vmem:[#allocation3] sm:$0xff] %vm171, %v357
      %390 = vst.msk [vmem:[#allocation3 + $0x10] sm:$0xff] %vm171, %v358
      %391 = vst.msk [vmem:[#allocation3 + $0x20] sm:$0xff] %vm171, %v359
      %392 = vst.msk [vmem:[#allocation3 + $0x30] sm:$0xff] %vm171, %v360
      %393 = vst.msk [vmem:[#allocation3 + $0x40] sm:$0xff] %vm171, %v361
      %394 = vst.msk [vmem:[#allocation3 + $0x50] sm:$0xff] %vm171, %v362
      %395 = vst.msk [vmem:[#allocation3 + $0x60] sm:$0xff] %vm171, %v363
      %396 = vst.msk [vmem:[#allocation3 + $0x70] sm:$0xff] %vm171, %v364
      %397 = vst.msk [vmem:[#allocation3 + $0x80] sm:$0xff] %vm171, %v365
      %398 = vst.msk [vmem:[#allocation3 + $0x90] sm:$0xff] %vm171, %v366
      %399 = vst.msk [vmem:[#allocation3 + $0xa0] sm:$0xff] %vm171, %v367
      %400 = vst.msk [vmem:[#allocation3 + $0xb0] sm:$0xff] %vm171, %v368
      %401 = vst.msk [vmem:[#allocation3 + $0xc0] sm:$0xff] %vm171, %v369
      %402 = vst.msk [vmem:[#allocation3 + $0xd0] sm:$0xff] %vm171, %v370
      %403 = vst.msk [vmem:[#allocation3 + $0xe0] sm:$0xff] %vm171, %v371
      %404 = vst.msk [vmem:[#allocation3 + $0xf0] sm:$0xff] %vm171, %v372
      %405 = vst.msk [vmem:[#allocation3 + $0x100] sm:$0xff] %vm171, %v373
      %406 = vst.msk [vmem:[#allocation3 + $0x110] sm:$0xff] %vm171, %v374
      %407 = vst.msk [vmem:[#allocation3 + $0x120] sm:$0xff] %vm171, %v375
      %408 = vst.msk [vmem:[#allocation3 + $0x130] sm:$0xff] %vm171, %v376
      %409 = vst.msk [vmem:[#allocation3 + $0x140] sm:$0xff] %vm171, %v377
      %410 = vst.msk [vmem:[#allocation3 + $0x150] sm:$0xff] %vm171, %v378
      %411 = vst.msk [vmem:[#allocation3 + $0x160] sm:$0xff] %vm171, %v379
      %412 = vst.msk [vmem:[#allocation3 + $0x170] sm:$0xff] %vm171, %v380
      %413 = vst.msk [vmem:[#allocation3 + $0x180] sm:$0xff] %vm171, %v381
      %414 = vst.msk [vmem:[#allocation3 + $0x190] sm:$0xff] %vm171, %v382
      %415 = vst.msk [vmem:[#allocation3 + $0x1a0] sm:$0xff] %vm171, %v383
      %416 = vst.msk [vmem:[#allocation3 + $0x1b0] sm:$0xff] %vm171, %v384
      %417 = vst.msk [vmem:[#allocation3 + $0x1c0] sm:$0xff] %vm171, %v385
      %418 = vst.msk [vmem:[#allocation3 + $0x1d0] sm:$0xff] %vm171, %v386
      %419 = vst.msk [vmem:[#allocation3 + $0x1e0] sm:$0xff] %vm171, %v387
      %420 = vst.msk [vmem:[#allocation3 + $0x1f0] sm:$0xff] %vm171, %v388
      %v421 = vld [vmem:[#allocation2 + $0x1] sm:$0xff]
      %v422 = vld [vmem:[#allocation2 + $0x9] sm:$0xff]
      %v423 = vld [vmem:[#allocation2 + $0x19] sm:$0xff]
      %v424 = vld [vmem:[#allocation2 + $0x21] sm:$0xff]
      %v425 = vld [vmem:[#allocation2 + $0x31] sm:$0xff]
      %v426 = vld [vmem:[#allocation2 + $0x39] sm:$0xff]
      %v427 = vld [vmem:[#allocation2 + $0x49] sm:$0xff]
      %v428 = vld [vmem:[#allocation2 + $0x51] sm:$0xff]
      %v429 = vld [vmem:[#allocation2 + $0x61] sm:$0xff]
      %v430 = vld [vmem:[#allocation2 + $0x69] sm:$0xff]
      %v431 = vld [vmem:[#allocation2 + $0x79] sm:$0xff]
      %v432 = vld [vmem:[#allocation2 + $0x81] sm:$0xff]
      %v433 = vld [vmem:[#allocation2 + $0x91] sm:$0xff]
      %v434 = vld [vmem:[#allocation2 + $0x99] sm:$0xff]
      %v435 = vld [vmem:[#allocation2 + $0xa9] sm:$0xff]
      %v436 = vld [vmem:[#allocation2 + $0xb1] sm:$0xff]
      %v437 = vld [vmem:[#allocation2 + $0xc1] sm:$0xff]
      %v438 = vld [vmem:[#allocation2 + $0xc9] sm:$0xff]
      %v439 = vld [vmem:[#allocation2 + $0xd9] sm:$0xff]
      %v440 = vld [vmem:[#allocation2 + $0xe1] sm:$0xff]
      %v441 = vld [vmem:[#allocation2 + $0xf1] sm:$0xff]
      %v442 = vld [vmem:[#allocation2 + $0xf9] sm:$0xff]
      %v443 = vld [vmem:[#allocation2 + $0x109] sm:$0xff]
      %v444 = vld [vmem:[#allocation2 + $0x111] sm:$0xff]
      %v445 = vld [vmem:[#allocation2 + $0x121] sm:$0xff]
      %v446 = vld [vmem:[#allocation2 + $0x129] sm:$0xff]
      %v447 = vld [vmem:[#allocation2 + $0x139] sm:$0xff]
      %v448 = vld [vmem:[#allocation2 + $0x141] sm:$0xff]
      %v449 = vld [vmem:[#allocation2 + $0x151] sm:$0xff]
      %v450 = vld [vmem:[#allocation2 + $0x159] sm:$0xff]
      %v451 = vld [vmem:[#allocation2 + $0x169] sm:$0xff]
      %v452 = vld [vmem:[#allocation2 + $0x171] sm:$0xff]
      %485 = vrot.lane.b32.xlu0 %v421, 4
      %v486 = vpop.permute.xlu0 %485
      %487 = vrot.lane.b32.xlu0 %v422, 4
      %v488 = vpop.permute.xlu0 %487
      %489 = vrot.lane.b32.xlu0 %v423, 4
      %v490 = vpop.permute.xlu0 %489
      %491 = vrot.lane.b32.xlu0 %v424, 4
      %v492 = vpop.permute.xlu0 %491
      %493 = vrot.lane.b32.xlu0 %v425, 4
      %v494 = vpop.permute.xlu0 %493
      %495 = vrot.lane.b32.xlu0 %v426, 4
      %v496 = vpop.permute.xlu0 %495
      %497 = vrot.lane.b32.xlu0 %v427, 4
      %v498 = vpop.permute.xlu0 %497
      %499 = vrot.lane.b32.xlu0 %v428, 4
      %v500 = vpop.permute.xlu0 %499
      %501 = vrot.lane.b32.xlu0 %v429, 4
      %v502 = vpop.permute.xlu0 %501
      %503 = vrot.lane.b32.xlu0 %v430, 4
      %v504 = vpop.permute.xlu0 %503
      %505 = vrot.lane.b32.xlu0 %v431, 4
      %v506 = vpop.permute.xlu0 %505
      %507 = vrot.lane.b32.xlu0 %v432, 4
      %v508 = vpop.permute.xlu0 %507
      %509 = vrot.lane.b32.xlu0 %v433, 4
      %v510 = vpop.permute.xlu0 %509
      %511 = vrot.lane.b32.xlu0 %v434, 4
      %v512 = vpop.permute.xlu0 %511
      %513 = vrot.lane.b32.xlu0 %v435, 4
      %v514 = vpop.permute.xlu0 %513
      %515 = vrot.lane.b32.xlu0 %v436, 4
      %v516 = vpop.permute.xlu0 %515
      %517 = vrot.lane.b32.xlu0 %v437, 4
      %v518 = vpop.permute.xlu0 %517
      %519 = vrot.lane.b32.xlu0 %v438, 4
      %v520 = vpop.permute.xlu0 %519
      %521 = vrot.lane.b32.xlu0 %v439, 4
      %v522 = vpop.permute.xlu0 %521
      %523 = vrot.lane.b32.xlu0 %v440, 4
      %v524 = vpop.permute.xlu0 %523
      %525 = vrot.lane.b32.xlu0 %v441, 4
      %v526 = vpop.permute.xlu0 %525
      %527 = vrot.lane.b32.xlu0 %v442, 4
      %v528 = vpop.permute.xlu0 %527
      %529 = vrot.lane.b32.xlu0 %v443, 4
      %v530 = vpop.permute.xlu0 %529
      %531 = vrot.lane.b32.xlu0 %v444, 4
      %v532 = vpop.permute.xlu0 %531
      %533 = vrot.lane.b32.xlu0 %v445, 4
      %v534 = vpop.permute.xlu0 %533
      %535 = vrot.lane.b32.xlu0 %v446, 4
      %v536 = vpop.permute.xlu0 %535
      %537 = vrot.lane.b32.xlu0 %v447, 4
      %v538 = vpop.permute.xlu0 %537
      %539 = vrot.lane.b32.xlu0 %v448, 4
      %v540 = vpop.permute.xlu0 %539
      %541 = vrot.lane.b32.xlu0 %v449, 4
      %v542 = vpop.permute.xlu0 %541
      %543 = vrot.lane.b32.xlu0 %v450, 4
      %v544 = vpop.permute.xlu0 %543
      %545 = vrot.lane.b32.xlu0 %v451, 4
      %v546 = vpop.permute.xlu0 %545
      %547 = vrot.lane.b32.xlu0 %v452, 4
      %v548 = vpop.permute.xlu0 %547
      %vm581 = vcmask 64544
      %582 = vst.msk [vmem:[#allocation3] sm:$0xff] %vm581, %v486
      %583 = vst.msk [vmem:[#allocation3 + $0x10] sm:$0xff] %vm581, %v488
      %584 = vst.msk [vmem:[#allocation3 + $0x20] sm:$0xff] %vm581, %v490
      %585 = vst.msk [vmem:[#allocation3 + $0x30] sm:$0xff] %vm581, %v492
      %586 = vst.msk [vmem:[#allocation3 + $0x40] sm:$0xff] %vm581, %v494
      %587 = vst.msk [vmem:[#allocation3 + $0x50] sm:$0xff] %vm581, %v496
      %588 = vst.msk [vmem:[#allocation3 + $0x60] sm:$0xff] %vm581, %v498
      %589 = vst.msk [vmem:[#allocation3 + $0x70] sm:$0xff] %vm581, %v500
      %590 = vst.msk [vmem:[#allocation3 + $0x80] sm:$0xff] %vm581, %v502
      %591 = vst.msk [vmem:[#allocation3 + $0x90] sm:$0xff] %vm581, %v504
      %592 = vst.msk [vmem:[#allocation3 + $0xa0] sm:$0xff] %vm581, %v506
      %593 = vst.msk [vmem:[#allocation3 + $0xb0] sm:$0xff] %vm581, %v508
      %594 = vst.msk [vmem:[#allocation3 + $0xc0] sm:$0xff] %vm581, %v510
      %595 = vst.msk [vmem:[#allocation3 + $0xd0] sm:$0xff] %vm581, %v512
      %596 = vst.msk [vmem:[#allocation3 + $0xe0] sm:$0xff] %vm581, %v514
      %597 = vst.msk [vmem:[#allocation3 + $0xf0] sm:$0xff] %vm581, %v516
      %598 = vst.msk [vmem:[#allocation3 + $0x100] sm:$0xff] %vm581, %v518
      %599 = vst.msk [vmem:[#allocation3 + $0x110] sm:$0xff] %vm581, %v520
      %600 = vst.msk [vmem:[#allocation3 + $0x120] sm:$0xff] %vm581, %v522
      %601 = vst.msk [vmem:[#allocation3 + $0x130] sm:$0xff] %vm581, %v524
      %602 = vst.msk [vmem:[#allocation3 + $0x140] sm:$0xff] %vm581, %v526
      %603 = vst.msk [vmem:[#allocation3 + $0x150] sm:$0xff] %vm581, %v528
      %604 = vst.msk [vmem:[#allocation3 + $0x160] sm:$0xff] %vm581, %v530
      %605 = vst.msk [vmem:[#allocation3 + $0x170] sm:$0xff] %vm581, %v532
      %606 = vst.msk [vmem:[#allocation3 + $0x180] sm:$0xff] %vm581, %v534
      %607 = vst.msk [vmem:[#allocation3 + $0x190] sm:$0xff] %vm581, %v536
      %608 = vst.msk [vmem:[#allocation3 + $0x1a0] sm:$0xff] %vm581, %v538
      %609 = vst.msk [vmem:[#allocation3 + $0x1b0] sm:$0xff] %vm581, %v540
      %610 = vst.msk [vmem:[#allocation3 + $0x1c0] sm:$0xff] %vm581, %v542
      %611 = vst.msk [vmem:[#allocation3 + $0x1d0] sm:$0xff] %vm581, %v544
      %612 = vst.msk [vmem:[#allocation3 + $0x1e0] sm:$0xff] %vm581, %v546
      %613 = vst.msk [vmem:[#allocation3 + $0x1f0] sm:$0xff] %vm581, %v548
      %v614 = vld [vmem:[#allocation2 + $0x2] sm:$0xff]
      %v615 = vld [vmem:[#allocation2 + $0xa] sm:$0xff]
      %v616 = vld [vmem:[#allocation2 + $0x1a] sm:$0xff]
      %v617 = vld [vmem:[#allocation2 + $0x22] sm:$0xff]
      %v618 = vld [vmem:[#allocation2 + $0x32] sm:$0xff]
      %v619 = vld [vmem:[#allocation2 + $0x3a] sm:$0xff]
      %v620 = vld [vmem:[#allocation2 + $0x4a] sm:$0xff]
      %v621 = vld [vmem:[#allocation2 + $0x52] sm:$0xff]
      %v622 = vld [vmem:[#allocation2 + $0x62] sm:$0xff]
      %v623 = vld [vmem:[#allocation2 + $0x6a] sm:$0xff]
      %v624 = vld [vmem:[#allocation2 + $0x7a] sm:$0xff]
      %v625 = vld [vmem:[#allocation2 + $0x82] sm:$0xff]
      %v626 = vld [vmem:[#allocation2 + $0x92] sm:$0xff]
      %v627 = vld [vmem:[#allocation2 + $0x9a] sm:$0xff]
      %v628 = vld [vmem:[#allocation2 + $0xaa] sm:$0xff]
      %v629 = vld [vmem:[#allocation2 + $0xb2] sm:$0xff]
      %v630 = vld [vmem:[#allocation2 + $0xc2] sm:$0xff]
      %v631 = vld [vmem:[#allocation2 + $0xca] sm:$0xff]
      %v632 = vld [vmem:[#allocation2 + $0xda] sm:$0xff]
      %v633 = vld [vmem:[#allocation2 + $0xe2] sm:$0xff]
      %v634 = vld [vmem:[#allocation2 + $0xf2] sm:$0xff]
      %v635 = vld [vmem:[#allocation2 + $0xfa] sm:$0xff]
      %v636 = vld [vmem:[#allocation2 + $0x10a] sm:$0xff]
      %v637 = vld [vmem:[#allocation2 + $0x112] sm:$0xff]
      %v638 = vld [vmem:[#allocation2 + $0x122] sm:$0xff]
      %v639 = vld [vmem:[#allocation2 + $0x12a] sm:$0xff]
      %v640 = vld [vmem:[#allocation2 + $0x13a] sm:$0xff]
      %v641 = vld [vmem:[#allocation2 + $0x142] sm:$0xff]
      %v642 = vld [vmem:[#allocation2 + $0x152] sm:$0xff]
      %v643 = vld [vmem:[#allocation2 + $0x15a] sm:$0xff]
      %v644 = vld [vmem:[#allocation2 + $0x16a] sm:$0xff]
      %v645 = vld [vmem:[#allocation2 + $0x172] sm:$0xff]
      %678 = vrot.lane.b32.xlu0 %v614, 8
      %v679 = vpop.permute.xlu0 %678
      %680 = vrot.lane.b32.xlu0 %v615, 8
      %v681 = vpop.permute.xlu0 %680
      %682 = vrot.lane.b32.xlu0 %v616, 8
      %v683 = vpop.permute.xlu0 %682
      %684 = vrot.lane.b32.xlu0 %v617, 8
      %v685 = vpop.permute.xlu0 %684
      %686 = vrot.lane.b32.xlu0 %v618, 8
      %v687 = vpop.permute.xlu0 %686
      %688 = vrot.lane.b32.xlu0 %v619, 8
      %v689 = vpop.permute.xlu0 %688
      %690 = vrot.lane.b32.xlu0 %v620, 8
      %v691 = vpop.permute.xlu0 %690
      %692 = vrot.lane.b32.xlu0 %v621, 8
      %v693 = vpop.permute.xlu0 %692
      %694 = vrot.lane.b32.xlu0 %v622, 8
      %v695 = vpop.permute.xlu0 %694
      %696 = vrot.lane.b32.xlu0 %v623, 8
      %v697 = vpop.permute.xlu0 %696
      %698 = vrot.lane.b32.xlu0 %v624, 8
      %v699 = vpop.permute.xlu0 %698
      %700 = vrot.lane.b32.xlu0 %v625, 8
      %v701 = vpop.permute.xlu0 %700
      %702 = vrot.lane.b32.xlu0 %v626, 8
      %v703 = vpop.permute.xlu0 %702
      %704 = vrot.lane.b32.xlu0 %v627, 8
      %v705 = vpop.permute.xlu0 %704
      %706 = vrot.lane.b32.xlu0 %v628, 8
      %v707 = vpop.permute.xlu0 %706
      %708 = vrot.lane.b32.xlu0 %v629, 8
      %v709 = vpop.permute.xlu0 %708
      %710 = vrot.lane.b32.xlu0 %v630, 8
      %v711 = vpop.permute.xlu0 %710
      %712 = vrot.lane.b32.xlu0 %v631, 8
      %v713 = vpop.permute.xlu0 %712
      %714 = vrot.lane.b32.xlu0 %v632, 8
      %v715 = vpop.permute.xlu0 %714
      %716 = vrot.lane.b32.xlu0 %v633, 8
      %v717 = vpop.permute.xlu0 %716
      %718 = vrot.lane.b32.xlu0 %v634, 8
      %v719 = vpop.permute.xlu0 %718
      %720 = vrot.lane.b32.xlu0 %v635, 8
      %v721 = vpop.permute.xlu0 %720
      %722 = vrot.lane.b32.xlu0 %v636, 8
      %v723 = vpop.permute.xlu0 %722
      %724 = vrot.lane.b32.xlu0 %v637, 8
      %v725 = vpop.permute.xlu0 %724
      %726 = vrot.lane.b32.xlu0 %v638, 8
      %v727 = vpop.permute.xlu0 %726
      %728 = vrot.lane.b32.xlu0 %v639, 8
      %v729 = vpop.permute.xlu0 %728
      %730 = vrot.lane.b32.xlu0 %v640, 8
      %v731 = vpop.permute.xlu0 %730
      %732 = vrot.lane.b32.xlu0 %v641, 8
      %v733 = vpop.permute.xlu0 %732
      %734 = vrot.lane.b32.xlu0 %v642, 8
      %v735 = vpop.permute.xlu0 %734
      %736 = vrot.lane.b32.xlu0 %v643, 8
      %v737 = vpop.permute.xlu0 %736
      %738 = vrot.lane.b32.xlu0 %v644, 8
      %v739 = vpop.permute.xlu0 %738
      %740 = vrot.lane.b32.xlu0 %v645, 8
      %v741 = vpop.permute.xlu0 %740
      %vm774 = vcmask 97344
      %775 = vst.msk [vmem:[#allocation3] sm:$0xff] %vm774, %v679
      %776 = vst.msk [vmem:[#allocation3 + $0x10] sm:$0xff] %vm774, %v681
      %777 = vst.msk [vmem:[#allocation3 + $0x20] sm:$0xff] %vm774, %v683
      %778 = vst.msk [vmem:[#allocation3 + $0x30] sm:$0xff] %vm774, %v685
      %779 = vst.msk [vmem:[#allocation3 + $0x40] sm:$0xff] %vm774, %v687
      %780 = vst.msk [vmem:[#allocation3 + $0x50] sm:$0xff] %vm774, %v689
      %781 = vst.msk [vmem:[#allocation3 + $0x60] sm:$0xff] %vm774, %v691
      %782 = vst.msk [vmem:[#allocation3 + $0x70] sm:$0xff] %vm774, %v693
      %783 = vst.msk [vmem:[#allocation3 + $0x80] sm:$0xff] %vm774, %v695
      %784 = vst.msk [vmem:[#allocation3 + $0x90] sm:$0xff] %vm774, %v697
      %785 = vst.msk [vmem:[#allocation3 + $0xa0] sm:$0xff] %vm774, %v699
      %786 = vst.msk [vmem:[#allocation3 + $0xb0] sm:$0xff] %vm774, %v701
      %787 = vst.msk [vmem:[#allocation3 + $0xc0] sm:$0xff] %vm774, %v703
      %788 = vst.msk [vmem:[#allocation3 + $0xd0] sm:$0xff] %vm774, %v705
      %789 = vst.msk [vmem:[#allocation3 + $0xe0] sm:$0xff] %vm774, %v707
      %790 = vst.msk [vmem:[#allocation3 + $0xf0] sm:$0xff] %vm774, %v709
      %791 = vst.msk [vmem:[#allocation3 + $0x100] sm:$0xff] %vm774, %v711
      %792 = vst.msk [vmem:[#allocation3 + $0x110] sm:$0xff] %vm774, %v713
      %793 = vst.msk [vmem:[#allocation3 + $0x120] sm:$0xff] %vm774, %v715
      %794 = vst.msk [vmem:[#allocation3 + $0x130] sm:$0xff] %vm774, %v717
      %795 = vst.msk [vmem:[#allocation3 + $0x140] sm:$0xff] %vm774, %v719
      %796 = vst.msk [vmem:[#allocation3 + $0x150] sm:$0xff] %vm774, %v721
      %797 = vst.msk [vmem:[#allocation3 + $0x160] sm:$0xff] %vm774, %v723
      %798 = vst.msk [vmem:[#allocation3 + $0x170] sm:$0xff] %vm774, %v725
      %799 = vst.msk [vmem:[#allocation3 + $0x180] sm:$0xff] %vm774, %v727
      %800 = vst.msk [vmem:[#allocation3 + $0x190] sm:$0xff] %vm774, %v729
      %801 = vst.msk [vmem:[#allocation3 + $0x1a0] sm:$0xff] %vm774, %v731
      %802 = vst.msk [vmem:[#allocation3 + $0x1b0] sm:$0xff] %vm774, %v733
      %803 = vst.msk [vmem:[#allocation3 + $0x1c0] sm:$0xff] %vm774, %v735
      %804 = vst.msk [vmem:[#allocation3 + $0x1d0] sm:$0xff] %vm774, %v737
      %805 = vst.msk [vmem:[#allocation3 + $0x1e0] sm:$0xff] %vm774, %v739
      %806 = vst.msk [vmem:[#allocation3 + $0x1f0] sm:$0xff] %vm774, %v741
      %v807 = vld [vmem:[%s324] sm:$0xff]
      %v808 = vld [vmem:[%s324 + $0x8] sm:$0xff]
      %v809 = vld [vmem:[%s324 + $0x18] sm:$0xff]
      %v810 = vld [vmem:[%s324 + $0x20] sm:$0xff]
      %v811 = vld [vmem:[%s324 + $0x30] sm:$0xff]
      %v812 = vld [vmem:[%s324 + $0x38] sm:$0xff]
      %v813 = vld [vmem:[%s324 + $0x48] sm:$0xff]
      %v814 = vld [vmem:[%s324 + $0x50] sm:$0xff]
      %v815 = vld [vmem:[%s324 + $0x60] sm:$0xff]
      %v816 = vld [vmem:[%s324 + $0x68] sm:$0xff]
      %v817 = vld [vmem:[%s324 + $0x78] sm:$0xff]
      %v818 = vld [vmem:[%s324 + $0x80] sm:$0xff]
      %v819 = vld [vmem:[%s324 + $0x90] sm:$0xff]
      %v820 = vld [vmem:[%s324 + $0x98] sm:$0xff]
      %v821 = vld [vmem:[%s324 + $0xa8] sm:$0xff]
      %v822 = vld [vmem:[%s324 + $0xb0] sm:$0xff]
      %v823 = vld [vmem:[%s324 + $0xc0] sm:$0xff]
      %v824 = vld [vmem:[%s324 + $0xc8] sm:$0xff]
      %v825 = vld [vmem:[%s324 + $0xd8] sm:$0xff]
      %v826 = vld [vmem:[%s324 + $0xe0] sm:$0xff]
      %v827 = vld [vmem:[%s324 + $0xf0] sm:$0xff]
      %v828 = vld [vmem:[%s324 + $0xf8] sm:$0xff]
      %v829 = vld [vmem:[%s324 + $0x108] sm:$0xff]
      %v830 = vld [vmem:[%s324 + $0x110] sm:$0xff]
      %v831 = vld [vmem:[%s324 + $0x120] sm:$0xff]
      %v832 = vld [vmem:[%s324 + $0x128] sm:$0xff]
      %v833 = vld [vmem:[%s324 + $0x138] sm:$0xff]
      %v834 = vld [vmem:[%s324 + $0x140] sm:$0xff]
      %v835 = vld [vmem:[%s324 + $0x150] sm:$0xff]
      %v836 = vld [vmem:[%s324 + $0x158] sm:$0xff]
      %v837 = vld [vmem:[%s324 + $0x168] sm:$0xff]
      %v838 = vld [vmem:[%s324 + $0x170] sm:$0xff]
      %871 = vrot.lane.b32.xlu0 %v807, 12
      %v872 = vpop.permute.xlu0 %871
      %873 = vrot.lane.b32.xlu0 %v808, 12
      %v874 = vpop.permute.xlu0 %873
      %875 = vrot.lane.b32.xlu0 %v809, 12
      %v876 = vpop.permute.xlu0 %875
      %877 = vrot.lane.b32.xlu0 %v810, 12
      %v878 = vpop.permute.xlu0 %877
      %879 = vrot.lane.b32.xlu0 %v811, 12
      %v880 = vpop.permute.xlu0 %879
      %881 = vrot.lane.b32.xlu0 %v812, 12
      %v882 = vpop.permute.xlu0 %881
      %883 = vrot.lane.b32.xlu0 %v813, 12
      %v884 = vpop.permute.xlu0 %883
      %885 = vrot.lane.b32.xlu0 %v814, 12
      %v886 = vpop.permute.xlu0 %885
      %887 = vrot.lane.b32.xlu0 %v815, 12
      %v888 = vpop.permute.xlu0 %887
      %889 = vrot.lane.b32.xlu0 %v816, 12
      %v890 = vpop.permute.xlu0 %889
      %891 = vrot.lane.b32.xlu0 %v817, 12
      %v892 = vpop.permute.xlu0 %891
      %893 = vrot.lane.b32.xlu0 %v818, 12
      %v894 = vpop.permute.xlu0 %893
      %895 = vrot.lane.b32.xlu0 %v819, 12
      %v896 = vpop.permute.xlu0 %895
      %897 = vrot.lane.b32.xlu0 %v820, 12
      %v898 = vpop.permute.xlu0 %897
      %899 = vrot.lane.b32.xlu0 %v821, 12
      %v900 = vpop.permute.xlu0 %899
      %901 = vrot.lane.b32.xlu0 %v822, 12
      %v902 = vpop.permute.xlu0 %901
      %903 = vrot.lane.b32.xlu0 %v823, 12
      %v904 = vpop.permute.xlu0 %903
      %905 = vrot.lane.b32.xlu0 %v824, 12
      %v906 = vpop.permute.xlu0 %905
      %907 = vrot.lane.b32.xlu0 %v825, 12
      %v908 = vpop.permute.xlu0 %907
      %909 = vrot.lane.b32.xlu0 %v826, 12
      %v910 = vpop.permute.xlu0 %909
      %911 = vrot.lane.b32.xlu0 %v827, 12
      %v912 = vpop.permute.xlu0 %911
      %913 = vrot.lane.b32.xlu0 %v828, 12
      %v914 = vpop.permute.xlu0 %913
      %915 = vrot.lane.b32.xlu0 %v829, 12
      %v916 = vpop.permute.xlu0 %915
      %917 = vrot.lane.b32.xlu0 %v830, 12
      %v918 = vpop.permute.xlu0 %917
      %919 = vrot.lane.b32.xlu0 %v831, 12
      %v920 = vpop.permute.xlu0 %919
      %921 = vrot.lane.b32.xlu0 %v832, 12
      %v922 = vpop.permute.xlu0 %921
      %923 = vrot.lane.b32.xlu0 %v833, 12
      %v924 = vpop.permute.xlu0 %923
      %925 = vrot.lane.b32.xlu0 %v834, 12
      %v926 = vpop.permute.xlu0 %925
      %927 = vrot.lane.b32.xlu0 %v835, 12
      %v928 = vpop.permute.xlu0 %927
      %929 = vrot.lane.b32.xlu0 %v836, 12
      %v930 = vpop.permute.xlu0 %929
      %931 = vrot.lane.b32.xlu0 %v837, 12
      %v932 = vpop.permute.xlu0 %931
      %933 = vrot.lane.b32.xlu0 %v838, 12
      %v934 = vpop.permute.xlu0 %933
      %vm967 = vcmask 130144
      %968 = vst.msk [vmem:[#allocation3] sm:$0xff] %vm967, %v872
      %969 = vst.msk [vmem:[#allocation3 + $0x10] sm:$0xff] %vm967, %v874
      %970 = vst.msk [vmem:[#allocation3 + $0x20] sm:$0xff] %vm967, %v876
      %971 = vst.msk [vmem:[#allocation3 + $0x30] sm:$0xff] %vm967, %v878
      %972 = vst.msk [vmem:[#allocation3 + $0x40] sm:$0xff] %vm967, %v880
      %973 = vst.msk [vmem:[#allocation3 + $0x50] sm:$0xff] %vm967, %v882
      %974 = vst.msk [vmem:[#allocation3 + $0x60] sm:$0xff] %vm967, %v884
      %975 = vst.msk [vmem:[#allocation3 + $0x70] sm:$0xff] %vm967, %v886
      %976 = vst.msk [vmem:[#allocation3 + $0x80] sm:$0xff] %vm967, %v888
      %977 = vst.msk [vmem:[#allocation3 + $0x90] sm:$0xff] %vm967, %v890
      %978 = vst.msk [vmem:[#allocation3 + $0xa0] sm:$0xff] %vm967, %v892
      %979 = vst.msk [vmem:[#allocation3 + $0xb0] sm:$0xff] %vm967, %v894
      %980 = vst.msk [vmem:[#allocation3 + $0xc0] sm:$0xff] %vm967, %v896
      %981 = vst.msk [vmem:[#allocation3 + $0xd0] sm:$0xff] %vm967, %v898
      %982 = vst.msk [vmem:[#allocation3 + $0xe0] sm:$0xff] %vm967, %v900
      %983 = vst.msk [vmem:[#allocation3 + $0xf0] sm:$0xff] %vm967, %v902
      %984 = vst.msk [vmem:[#allocation3 + $0x100] sm:$0xff] %vm967, %v904
      %985 = vst.msk [vmem:[#allocation3 + $0x110] sm:$0xff] %vm967, %v906
      %986 = vst.msk [vmem:[#allocation3 + $0x120] sm:$0xff] %vm967, %v908
      %987 = vst.msk [vmem:[#allocation3 + $0x130] sm:$0xff] %vm967, %v910
      %988 = vst.msk [vmem:[#allocation3 + $0x140] sm:$0xff] %vm967, %v912
      %989 = vst.msk [vmem:[#allocation3 + $0x150] sm:$0xff] %vm967, %v914
      %990 = vst.msk [vmem:[#allocation3 + $0x160] sm:$0xff] %vm967, %v916
      %991 = vst.msk [vmem:[#allocation3 + $0x170] sm:$0xff] %vm967, %v918
      %992 = vst.msk [vmem:[#allocation3 + $0x180] sm:$0xff] %vm967, %v920
      %993 = vst.msk [vmem:[#allocation3 + $0x190] sm:$0xff] %vm967, %v922
      %994 = vst.msk [vmem:[#allocation3 + $0x1a0] sm:$0xff] %vm967, %v924
      %995 = vst.msk [vmem:[#allocation3 + $0x1b0] sm:$0xff] %vm967, %v926
      %996 = vst.msk [vmem:[#allocation3 + $0x1c0] sm:$0xff] %vm967, %v928
      %997 = vst.msk [vmem:[#allocation3 + $0x1d0] sm:$0xff] %vm967, %v930
      %998 = vst.msk [vmem:[#allocation3 + $0x1e0] sm:$0xff] %vm967, %v932
      %999 = vst.msk [vmem:[#allocation3 + $0x1f0] sm:$0xff] %vm967, %v934
      %v1000 = vld [vmem:[%s324 + $0x1] sm:$0xff]
      %v1001 = vld [vmem:[%s324 + $0x9] sm:$0xff]
      %v1002 = vld [vmem:[%s324 + $0x19] sm:$0xff]
      %v1003 = vld [vmem:[%s324 + $0x21] sm:$0xff]
      %v1004 = vld [vmem:[%s324 + $0x31] sm:$0xff]
      %v1005 = vld [vmem:[%s324 + $0x39] sm:$0xff]
      %v1006 = vld [vmem:[%s324 + $0x49] sm:$0xff]
      %v1007 = vld [vmem:[%s324 + $0x51] sm:$0xff]
      %v1008 = vld [vmem:[%s324 + $0x61] sm:$0xff]
      %v1009 = vld [vmem:[%s324 + $0x69] sm:$0xff]
      %v1010 = vld [vmem:[%s324 + $0x79] sm:$0xff]
      %v1011 = vld [vmem:[%s324 + $0x81] sm:$0xff]
      %v1012 = vld [vmem:[%s324 + $0x91] sm:$0xff]
      %v1013 = vld [vmem:[%s324 + $0x99] sm:$0xff]
      %v1014 = vld [vmem:[%s324 + $0xa9] sm:$0xff]
      %v1015 = vld [vmem:[%s324 + $0xb1] sm:$0xff]
      %v1016 = vld [vmem:[%s324 + $0xc1] sm:$0xff]
      %v1017 = vld [vmem:[%s324 + $0xc9] sm:$0xff]
      %v1018 = vld [vmem:[%s324 + $0xd9] sm:$0xff]
      %v1019 = vld [vmem:[%s324 + $0xe1] sm:$0xff]
      %v1020 = vld [vmem:[%s324 + $0xf1] sm:$0xff]
      %v1021 = vld [vmem:[%s324 + $0xf9] sm:$0xff]
      %v1022 = vld [vmem:[%s324 + $0x109] sm:$0xff]
      %v1023 = vld [vmem:[%s324 + $0x111] sm:$0xff]
      %v1024 = vld [vmem:[%s324 + $0x121] sm:$0xff]
      %v1025 = vld [vmem:[%s324 + $0x129] sm:$0xff]
      %v1026 = vld [vmem:[%s324 + $0x139] sm:$0xff]
      %v1027 = vld [vmem:[%s324 + $0x141] sm:$0xff]
      %v1028 = vld [vmem:[%s324 + $0x151] sm:$0xff]
      %v1029 = vld [vmem:[%s324 + $0x159] sm:$0xff]
      %v1030 = vld [vmem:[%s324 + $0x169] sm:$0xff]
      %v1031 = vld [vmem:[%s324 + $0x171] sm:$0xff]
      %1064 = vrot.lane.b32.xlu0 %v1000, 16
      %v1065 = vpop.permute.xlu0 %1064
      %1066 = vrot.lane.b32.xlu0 %v1001, 16
      %v1067 = vpop.permute.xlu0 %1066
      %1068 = vrot.lane.b32.xlu0 %v1002, 16
      %v1069 = vpop.permute.xlu0 %1068
      %1070 = vrot.lane.b32.xlu0 %v1003, 16
      %v1071 = vpop.permute.xlu0 %1070
      %1072 = vrot.lane.b32.xlu0 %v1004, 16
      %v1073 = vpop.permute.xlu0 %1072
      %1074 = vrot.lane.b32.xlu0 %v1005, 16
      %v1075 = vpop.permute.xlu0 %1074
      %1076 = vrot.lane.b32.xlu0 %v1006, 16
      %v1077 = vpop.permute.xlu0 %1076
      %1078 = vrot.lane.b32.xlu0 %v1007, 16
      %v1079 = vpop.permute.xlu0 %1078
      %1080 = vrot.lane.b32.xlu0 %v1008, 16
      %v1081 = vpop.permute.xlu0 %1080
      %1082 = vrot.lane.b32.xlu0 %v1009, 16
      %v1083 = vpop.permute.xlu0 %1082
      %1084 = vrot.lane.b32.xlu0 %v1010, 16
      %v1085 = vpop.permute.xlu0 %1084
      %1086 = vrot.lane.b32.xlu0 %v1011, 16
      %v1087 = vpop.permute.xlu0 %1086
      %1088 = vrot.lane.b32.xlu0 %v1012, 16
      %v1089 = vpop.permute.xlu0 %1088
      %1090 = vrot.lane.b32.xlu0 %v1013, 16
      %v1091 = vpop.permute.xlu0 %1090
      %1092 = vrot.lane.b32.xlu0 %v1014, 16
      %v1093 = vpop.permute.xlu0 %1092
      %1094 = vrot.lane.b32.xlu0 %v1015, 16
      %v1095 = vpop.permute.xlu0 %1094
      %1096 = vrot.lane.b32.xlu0 %v1016, 16
      %v1097 = vpop.permute.xlu0 %1096
      %1098 = vrot.lane.b32.xlu0 %v1017, 16
      %v1099 = vpop.permute.xlu0 %1098
      %1100 = vrot.lane.b32.xlu0 %v1018, 16
      %v1101 = vpop.permute.xlu0 %1100
      %1102 = vrot.lane.b32.xlu0 %v1019, 16
      %v1103 = vpop.permute.xlu0 %1102
      %1104 = vrot.lane.b32.xlu0 %v1020, 16
      %v1105 = vpop.permute.xlu0 %1104
      %1106 = vrot.lane.b32.xlu0 %v1021, 16
      %v1107 = vpop.permute.xlu0 %1106
      %1108 = vrot.lane.b32.xlu0 %v1022, 16
      %v1109 = vpop.permute.xlu0 %1108
      %1110 = vrot.lane.b32.xlu0 %v1023, 16
      %v1111 = vpop.permute.xlu0 %1110
      %1112 = vrot.lane.b32.xlu0 %v1024, 16
      %v1113 = vpop.permute.xlu0 %1112
      %1114 = vrot.lane.b32.xlu0 %v1025, 16
      %v1115 = vpop.permute.xlu0 %1114
      %1116 = vrot.lane.b32.xlu0 %v1026, 16
      %v1117 = vpop.permute.xlu0 %1116
      %1118 = vrot.lane.b32.xlu0 %v1027, 16
      %v1119 = vpop.permute.xlu0 %1118
      %1120 = vrot.lane.b32.xlu0 %v1028, 16
      %v1121 = vpop.permute.xlu0 %1120
      %1122 = vrot.lane.b32.xlu0 %v1029, 16
      %v1123 = vpop.permute.xlu0 %1122
      %1124 = vrot.lane.b32.xlu0 %v1030, 16
      %v1125 = vpop.permute.xlu0 %1124
      %1126 = vrot.lane.b32.xlu0 %v1031, 16
      %v1127 = vpop.permute.xlu0 %1126
      %vm1160 = vcmask 162944
      %1161 = vst.msk [vmem:[#allocation3] sm:$0xff] %vm1160, %v1065
      %1162 = vst.msk [vmem:[#allocation3 + $0x10] sm:$0xff] %vm1160, %v1067
      %1163 = vst.msk [vmem:[#allocation3 + $0x20] sm:$0xff] %vm1160, %v1069
      %1164 = vst.msk [vmem:[#allocation3 + $0x30] sm:$0xff] %vm1160, %v1071
      %1165 = vst.msk [vmem:[#allocation3 + $0x40] sm:$0xff] %vm1160, %v1073
      %1166 = vst.msk [vmem:[#allocation3 + $0x50] sm:$0xff] %vm1160, %v1075
      %1167 = vst.msk [vmem:[#allocation3 + $0x60] sm:$0xff] %vm1160, %v1077
      %1168 = vst.msk [vmem:[#allocation3 + $0x70] sm:$0xff] %vm1160, %v1079
      %1169 = vst.msk [vmem:[#allocation3 + $0x80] sm:$0xff] %vm1160, %v1081
      %1170 = vst.msk [vmem:[#allocation3 + $0x90] sm:$0xff] %vm1160, %v1083
      %1171 = vst.msk [vmem:[#allocation3 + $0xa0] sm:$0xff] %vm1160, %v1085
      %1172 = vst.msk [vmem:[#allocation3 + $0xb0] sm:$0xff] %vm1160, %v1087
      %1173 = vst.msk [vmem:[#allocation3 + $0xc0] sm:$0xff] %vm1160, %v1089
      %1174 = vst.msk [vmem:[#allocation3 + $0xd0] sm:$0xff] %vm1160, %v1091
      %1175 = vst.msk [vmem:[#allocation3 + $0xe0] sm:$0xff] %vm1160, %v1093
      %1176 = vst.msk [vmem:[#allocation3 + $0xf0] sm:$0xff] %vm1160, %v1095
      %1177 = vst.msk [vmem:[#allocation3 + $0x100] sm:$0xff] %vm1160, %v1097
      %1178 = vst.msk [vmem:[#allocation3 + $0x110] sm:$0xff] %vm1160, %v1099
      %1179 = vst.msk [vmem:[#allocation3 + $0x120] sm:$0xff] %vm1160, %v1101
      %1180 = vst.msk [vmem:[#allocation3 + $0x130] sm:$0xff] %vm1160, %v1103
      %1181 = vst.msk [vmem:[#allocation3 + $0x140] sm:$0xff] %vm1160, %v1105
      %1182 = vst.msk [vmem:[#allocation3 + $0x150] sm:$0xff] %vm1160, %v1107
      %1183 = vst.msk [vmem:[#allocation3 + $0x160] sm:$0xff] %vm1160, %v1109
      %1184 = vst.msk [vmem:[#allocation3 + $0x170] sm:$0xff] %vm1160, %v1111
      %1185 = vst.msk [vmem:[#allocation3 + $0x180] sm:$0xff] %vm1160, %v1113
      %1186 = vst.msk [vmem:[#allocation3 + $0x190] sm:$0xff] %vm1160, %v1115
      %1187 = vst.msk [vmem:[#allocation3 + $0x1a0] sm:$0xff] %vm1160, %v1117
      %1188 = vst.msk [vmem:[#allocation3 + $0x1b0] sm:$0xff] %vm1160, %v1119
      %1189 = vst.msk [vmem:[#allocation3 + $0x1c0] sm:$0xff] %vm1160, %v1121
      %1190 = vst.msk [vmem:[#allocation3 + $0x1d0] sm:$0xff] %vm1160, %v1123
      %1191 = vst.msk [vmem:[#allocation3 + $0x1e0] sm:$0xff] %vm1160, %v1125
      %1192 = vst.msk [vmem:[#allocation3 + $0x1f0] sm:$0xff] %vm1160, %v1127
      %v1193 = vld [vmem:[%s324 + $0x2] sm:$0xff]
      %v1194 = vld [vmem:[%s324 + $0xa] sm:$0xff]
      %v1195 = vld [vmem:[%s324 + $0x1a] sm:$0xff]
      %v1196 = vld [vmem:[%s324 + $0x22] sm:$0xff]
      %v1197 = vld [vmem:[%s324 + $0x32] sm:$0xff]
      %v1198 = vld [vmem:[%s324 + $0x3a] sm:$0xff]
      %v1199 = vld [vmem:[%s324 + $0x4a] sm:$0xff]
      %v1200 = vld [vmem:[%s324 + $0x52] sm:$0xff]
      %v1201 = vld [vmem:[%s324 + $0x62] sm:$0xff]
      %v1202 = vld [vmem:[%s324 + $0x6a] sm:$0xff]
      %v1203 = vld [vmem:[%s324 + $0x7a] sm:$0xff]
      %v1204 = vld [vmem:[%s324 + $0x82] sm:$0xff]
      %v1205 = vld [vmem:[%s324 + $0x92] sm:$0xff]
      %v1206 = vld [vmem:[%s324 + $0x9a] sm:$0xff]
      %v1207 = vld [vmem:[%s324 + $0xaa] sm:$0xff]
      %v1208 = vld [vmem:[%s324 + $0xb2] sm:$0xff]
      %v1209 = vld [vmem:[%s324 + $0xc2] sm:$0xff]
      %v1210 = vld [vmem:[%s324 + $0xca] sm:$0xff]
      %v1211 = vld [vmem:[%s324 + $0xda] sm:$0xff]
      %v1212 = vld [vmem:[%s324 + $0xe2] sm:$0xff]
      %v1213 = vld [vmem:[%s324 + $0xf2] sm:$0xff]
      %v1214 = vld [vmem:[%s324 + $0xfa] sm:$0xff]
      %v1215 = vld [vmem:[%s324 + $0x10a] sm:$0xff]
      %v1216 = vld [vmem:[%s324 + $0x112] sm:$0xff]
      %v1217 = vld [vmem:[%s324 + $0x122] sm:$0xff]
      %v1218 = vld [vmem:[%s324 + $0x12a] sm:$0xff]
      %v1219 = vld [vmem:[%s324 + $0x13a] sm:$0xff]
      %v1220 = vld [vmem:[%s324 + $0x142] sm:$0xff]
      %v1221 = vld [vmem:[%s324 + $0x152] sm:$0xff]
      %v1222 = vld [vmem:[%s324 + $0x15a] sm:$0xff]
      %v1223 = vld [vmem:[%s324 + $0x16a] sm:$0xff]
      %v1224 = vld [vmem:[%s324 + $0x172] sm:$0xff]
      %1257 = vrot.lane.b32.xlu0 %v1193, 20
      %v1258 = vpop.permute.xlu0 %1257
      %1259 = vrot.lane.b32.xlu0 %v1194, 20
      %v1260 = vpop.permute.xlu0 %1259
      %1261 = vrot.lane.b32.xlu0 %v1195, 20
      %v1262 = vpop.permute.xlu0 %1261
      %1263 = vrot.lane.b32.xlu0 %v1196, 20
      %v1264 = vpop.permute.xlu0 %1263
      %1265 = vrot.lane.b32.xlu0 %v1197, 20
      %v1266 = vpop.permute.xlu0 %1265
      %1267 = vrot.lane.b32.xlu0 %v1198, 20
      %v1268 = vpop.permute.xlu0 %1267
      %1269 = vrot.lane.b32.xlu0 %v1199, 20
      %v1270 = vpop.permute.xlu0 %1269
      %1271 = vrot.lane.b32.xlu0 %v1200, 20
      %v1272 = vpop.permute.xlu0 %1271
      %1273 = vrot.lane.b32.xlu0 %v1201, 20
      %v1274 = vpop.permute.xlu0 %1273
      %1275 = vrot.lane.b32.xlu0 %v1202, 20
      %v1276 = vpop.permute.xlu0 %1275
      %1277 = vrot.lane.b32.xlu0 %v1203, 20
      %v1278 = vpop.permute.xlu0 %1277
      %1279 = vrot.lane.b32.xlu0 %v1204, 20
      %v1280 = vpop.permute.xlu0 %1279
      %1281 = vrot.lane.b32.xlu0 %v1205, 20
      %v1282 = vpop.permute.xlu0 %1281
      %1283 = vrot.lane.b32.xlu0 %v1206, 20
      %v1284 = vpop.permute.xlu0 %1283
      %1285 = vrot.lane.b32.xlu0 %v1207, 20
      %v1286 = vpop.permute.xlu0 %1285
      %1287 = vrot.lane.b32.xlu0 %v1208, 20
      %v1288 = vpop.permute.xlu0 %1287
      %1289 = vrot.lane.b32.xlu0 %v1209, 20
      %v1290 = vpop.permute.xlu0 %1289
      %1291 = vrot.lane.b32.xlu0 %v1210, 20
      %v1292 = vpop.permute.xlu0 %1291
      %1293 = vrot.lane.b32.xlu0 %v1211, 20
      %v1294 = vpop.permute.xlu0 %1293
      %1295 = vrot.lane.b32.xlu0 %v1212, 20
      %v1296 = vpop.permute.xlu0 %1295
      %1297 = vrot.lane.b32.xlu0 %v1213, 20
      %v1298 = vpop.permute.xlu0 %1297
      %1299 = vrot.lane.b32.xlu0 %v1214, 20
      %v1300 = vpop.permute.xlu0 %1299
      %1301 = vrot.lane.b32.xlu0 %v1215, 20
      %v1302 = vpop.permute.xlu0 %1301
      %1303 = vrot.lane.b32.xlu0 %v1216, 20
      %v1304 = vpop.permute.xlu0 %1303
      %1305 = vrot.lane.b32.xlu0 %v1217, 20
      %v1306 = vpop.permute.xlu0 %1305
      %1307 = vrot.lane.b32.xlu0 %v1218, 20
      %v1308 = vpop.permute.xlu0 %1307
      %1309 = vrot.lane.b32.xlu0 %v1219, 20
      %v1310 = vpop.permute.xlu0 %1309
      %1311 = vrot.lane.b32.xlu0 %v1220, 20
      %v1312 = vpop.permute.xlu0 %1311
      %1313 = vrot.lane.b32.xlu0 %v1221, 20
      %v1314 = vpop.permute.xlu0 %1313
      %1315 = vrot.lane.b32.xlu0 %v1222, 20
      %v1316 = vpop.permute.xlu0 %1315
      %1317 = vrot.lane.b32.xlu0 %v1223, 20
      %v1318 = vpop.permute.xlu0 %1317
      %1319 = vrot.lane.b32.xlu0 %v1224, 20
      %v1320 = vpop.permute.xlu0 %1319
      %vm1353 = vcmask 195744
      %1354 = vst.msk [vmem:[#allocation3] sm:$0xff] %vm1353, %v1258
      %1355 = vst.msk [vmem:[#allocation3 + $0x10] sm:$0xff] %vm1353, %v1260
      %1356 = vst.msk [vmem:[#allocation3 + $0x20] sm:$0xff] %vm1353, %v1262
      %1357 = vst.msk [vmem:[#allocation3 + $0x30] sm:$0xff] %vm1353, %v1264
      %1358 = vst.msk [vmem:[#allocation3 + $0x40] sm:$0xff] %vm1353, %v1266
      %1359 = vst.msk [vmem:[#allocation3 + $0x50] sm:$0xff] %vm1353, %v1268
      %1360 = vst.msk [vmem:[#allocation3 + $0x60] sm:$0xff] %vm1353, %v1270
      %1361 = vst.msk [vmem:[#allocation3 + $0x70] sm:$0xff] %vm1353, %v1272
      %1362 = vst.msk [vmem:[#allocation3 + $0x80] sm:$0xff] %vm1353, %v1274
      %1363 = vst.msk [vmem:[#allocation3 + $0x90] sm:$0xff] %vm1353, %v1276
      %1364 = vst.msk [vmem:[#allocation3 + $0xa0] sm:$0xff] %vm1353, %v1278
      %1365 = vst.msk [vmem:[#allocation3 + $0xb0] sm:$0xff] %vm1353, %v1280
      %1366 = vst.msk [vmem:[#allocation3 + $0xc0] sm:$0xff] %vm1353, %v1282
      %1367 = vst.msk [vmem:[#allocation3 + $0xd0] sm:$0xff] %vm1353, %v1284
      %1368 = vst.msk [vmem:[#allocation3 + $0xe0] sm:$0xff] %vm1353, %v1286
      %1369 = vst.msk [vmem:[#allocation3 + $0xf0] sm:$0xff] %vm1353, %v1288
      %1370 = vst.msk [vmem:[#allocation3 + $0x100] sm:$0xff] %vm1353, %v1290
      %1371 = vst.msk [vmem:[#allocation3 + $0x110] sm:$0xff] %vm1353, %v1292
      %1372 = vst.msk [vmem:[#allocation3 + $0x120] sm:$0xff] %vm1353, %v1294
      %1373 = vst.msk [vmem:[#allocation3 + $0x130] sm:$0xff] %vm1353, %v1296
      %1374 = vst.msk [vmem:[#allocation3 + $0x140] sm:$0xff] %vm1353, %v1298
      %1375 = vst.msk [vmem:[#allocation3 + $0x150] sm:$0xff] %vm1353, %v1300
      %1376 = vst.msk [vmem:[#allocation3 + $0x160] sm:$0xff] %vm1353, %v1302
      %1377 = vst.msk [vmem:[#allocation3 + $0x170] sm:$0xff] %vm1353, %v1304
      %1378 = vst.msk [vmem:[#allocation3 + $0x180] sm:$0xff] %vm1353, %v1306
      %1379 = vst.msk [vmem:[#allocation3 + $0x190] sm:$0xff] %vm1353, %v1308
      %1380 = vst.msk [vmem:[#allocation3 + $0x1a0] sm:$0xff] %vm1353, %v1310
      %1381 = vst.msk [vmem:[#allocation3 + $0x1b0] sm:$0xff] %vm1353, %v1312
      %1382 = vst.msk [vmem:[#allocation3 + $0x1c0] sm:$0xff] %vm1353, %v1314
      %1383 = vst.msk [vmem:[#allocation3 + $0x1d0] sm:$0xff] %vm1353, %v1316
      %1384 = vst.msk [vmem:[#allocation3 + $0x1e0] sm:$0xff] %vm1353, %v1318
      %1385 = vst.msk [vmem:[#allocation3 + $0x1f0] sm:$0xff] %vm1353, %v1320
      %s1386 = scalar_lea.vmem [#allocation2], 48
      %v1387 = vld [vmem:[%s1386] sm:$0xff]
      %v1388 = vld [vmem:[%s1386 + $0x8] sm:$0xff]
      %v1389 = vld [vmem:[%s1386 + $0x18] sm:$0xff]
      %v1390 = vld [vmem:[%s1386 + $0x20] sm:$0xff]
      %v1391 = vld [vmem:[%s1386 + $0x30] sm:$0xff]
      %v1392 = vld [vmem:[%s1386 + $0x38] sm:$0xff]
      %v1393 = vld [vmem:[%s1386 + $0x48] sm:$0xff]
      %v1394 = vld [vmem:[%s1386 + $0x50] sm:$0xff]
      %v1395 = vld [vmem:[%s1386 + $0x60] sm:$0xff]
      %v1396 = vld [vmem:[%s1386 + $0x68] sm:$0xff]
      %v1397 = vld [vmem:[%s1386 + $0x78] sm:$0xff]
      %v1398 = vld [vmem:[%s1386 + $0x80] sm:$0xff]
      %v1399 = vld [vmem:[%s1386 + $0x90] sm:$0xff]
      %v1400 = vld [vmem:[%s1386 + $0x98] sm:$0xff]
      %v1401 = vld [vmem:[%s1386 + $0xa8] sm:$0xff]
      %v1402 = vld [vmem:[%s1386 + $0xb0] sm:$0xff]
      %v1403 = vld [vmem:[%s1386 + $0xc0] sm:$0xff]
      %v1404 = vld [vmem:[%s1386 + $0xc8] sm:$0xff]
      %v1405 = vld [vmem:[%s1386 + $0xd8] sm:$0xff]
      %v1406 = vld [vmem:[%s1386 + $0xe0] sm:$0xff]
      %v1407 = vld [vmem:[%s1386 + $0xf0] sm:$0xff]
      %v1408 = vld [vmem:[%s1386 + $0xf8] sm:$0xff]
      %v1409 = vld [vmem:[%s1386 + $0x108] sm:$0xff]
      %v1410 = vld [vmem:[%s1386 + $0x110] sm:$0xff]
      %v1411 = vld [vmem:[%s1386 + $0x120] sm:$0xff]
      %v1412 = vld [vmem:[%s1386 + $0x128] sm:$0xff]
      %v1413 = vld [vmem:[%s1386 + $0x138] sm:$0xff]
      %v1414 = vld [vmem:[%s1386 + $0x140] sm:$0xff]
      %v1415 = vld [vmem:[%s1386 + $0x150] sm:$0xff]
      %v1416 = vld [vmem:[%s1386 + $0x158] sm:$0xff]
      %v1417 = vld [vmem:[%s1386 + $0x168] sm:$0xff]
      %v1418 = vld [vmem:[%s1386 + $0x170] sm:$0xff]
      %1451 = vrot.lane.b32.xlu0 %v1387, 24
      %v1452 = vpop.permute.xlu0 %1451
      %1453 = vrot.lane.b32.xlu0 %v1388, 24
      %v1454 = vpop.permute.xlu0 %1453
      %1455 = vrot.lane.b32.xlu0 %v1389, 24
      %v1456 = vpop.permute.xlu0 %1455
      %1457 = vrot.lane.b32.xlu0 %v1390, 24
      %v1458 = vpop.permute.xlu0 %1457
      %1459 = vrot.lane.b32.xlu0 %v1391, 24
      %v1460 = vpop.permute.xlu0 %1459
      %1461 = vrot.lane.b32.xlu0 %v1392, 24
      %v1462 = vpop.permute.xlu0 %1461
      %1463 = vrot.lane.b32.xlu0 %v1393, 24
      %v1464 = vpop.permute.xlu0 %1463
      %1465 = vrot.lane.b32.xlu0 %v1394, 24
      %v1466 = vpop.permute.xlu0 %1465
      %1467 = vrot.lane.b32.xlu0 %v1395, 24
      %v1468 = vpop.permute.xlu0 %1467
      %1469 = vrot.lane.b32.xlu0 %v1396, 24
      %v1470 = vpop.permute.xlu0 %1469
      %1471 = vrot.lane.b32.xlu0 %v1397, 24
      %v1472 = vpop.permute.xlu0 %1471
      %1473 = vrot.lane.b32.xlu0 %v1398, 24
      %v1474 = vpop.permute.xlu0 %1473
      %1475 = vrot.lane.b32.xlu0 %v1399, 24
      %v1476 = vpop.permute.xlu0 %1475
      %1477 = vrot.lane.b32.xlu0 %v1400, 24
      %v1478 = vpop.permute.xlu0 %1477
      %1479 = vrot.lane.b32.xlu0 %v1401, 24
      %v1480 = vpop.permute.xlu0 %1479
      %1481 = vrot.lane.b32.xlu0 %v1402, 24
      %v1482 = vpop.permute.xlu0 %1481
      %1483 = vrot.lane.b32.xlu0 %v1403, 24
      %v1484 = vpop.permute.xlu0 %1483
      %1485 = vrot.lane.b32.xlu0 %v1404, 24
      %v1486 = vpop.permute.xlu0 %1485
      %1487 = vrot.lane.b32.xlu0 %v1405, 24
      %v1488 = vpop.permute.xlu0 %1487
      %1489 = vrot.lane.b32.xlu0 %v1406, 24
      %v1490 = vpop.permute.xlu0 %1489
      %1491 = vrot.lane.b32.xlu0 %v1407, 24
      %v1492 = vpop.permute.xlu0 %1491
      %1493 = vrot.lane.b32.xlu0 %v1408, 24
      %v1494 = vpop.permute.xlu0 %1493
      %1495 = vrot.lane.b32.xlu0 %v1409, 24
      %v1496 = vpop.permute.xlu0 %1495
      %1497 = vrot.lane.b32.xlu0 %v1410, 24
      %v1498 = vpop.permute.xlu0 %1497
      %1499 = vrot.lane.b32.xlu0 %v1411, 24
      %v1500 = vpop.permute.xlu0 %1499
      %1501 = vrot.lane.b32.xlu0 %v1412, 24
      %v1502 = vpop.permute.xlu0 %1501
      %1503 = vrot.lane.b32.xlu0 %v1413, 24
      %v1504 = vpop.permute.xlu0 %1503
      %1505 = vrot.lane.b32.xlu0 %v1414, 24
      %v1506 = vpop.permute.xlu0 %1505
      %1507 = vrot.lane.b32.xlu0 %v1415, 24
      %v1508 = vpop.permute.xlu0 %1507
      %1509 = vrot.lane.b32.xlu0 %v1416, 24
      %v1510 = vpop.permute.xlu0 %1509
      %1511 = vrot.lane.b32.xlu0 %v1417, 24
      %v1512 = vpop.permute.xlu0 %1511
      %1513 = vrot.lane.b32.xlu0 %v1418, 24
      %v1514 = vpop.permute.xlu0 %1513
      %vm1547 = vcmask 228544
      %1548 = vst.msk [vmem:[#allocation3] sm:$0xff] %vm1547, %v1452
      %1549 = vst.msk [vmem:[#allocation3 + $0x10] sm:$0xff] %vm1547, %v1454
      %1550 = vst.msk [vmem:[#allocation3 + $0x20] sm:$0xff] %vm1547, %v1456
      %1551 = vst.msk [vmem:[#allocation3 + $0x30] sm:$0xff] %vm1547, %v1458
      %1552 = vst.msk [vmem:[#allocation3 + $0x40] sm:$0xff] %vm1547, %v1460
      %1553 = vst.msk [vmem:[#allocation3 + $0x50] sm:$0xff] %vm1547, %v1462
      %1554 = vst.msk [vmem:[#allocation3 + $0x60] sm:$0xff] %vm1547, %v1464
      %1555 = vst.msk [vmem:[#allocation3 + $0x70] sm:$0xff] %vm1547, %v1466
      %1556 = vst.msk [vmem:[#allocation3 + $0x80] sm:$0xff] %vm1547, %v1468
      %1557 = vst.msk [vmem:[#allocation3 + $0x90] sm:$0xff] %vm1547, %v1470
      %1558 = vst.msk [vmem:[#allocation3 + $0xa0] sm:$0xff] %vm1547, %v1472
      %1559 = vst.msk [vmem:[#allocation3 + $0xb0] sm:$0xff] %vm1547, %v1474
      %1560 = vst.msk [vmem:[#allocation3 + $0xc0] sm:$0xff] %vm1547, %v1476
      %1561 = vst.msk [vmem:[#allocation3 + $0xd0] sm:$0xff] %vm1547, %v1478
      %1562 = vst.msk [vmem:[#allocation3 + $0xe0] sm:$0xff] %vm1547, %v1480
      %1563 = vst.msk [vmem:[#allocation3 + $0xf0] sm:$0xff] %vm1547, %v1482
      %1564 = vst.msk [vmem:[#allocation3 + $0x100] sm:$0xff] %vm1547, %v1484
      %1565 = vst.msk [vmem:[#allocation3 + $0x110] sm:$0xff] %vm1547, %v1486
      %1566 = vst.msk [vmem:[#allocation3 + $0x120] sm:$0xff] %vm1547, %v1488
      %1567 = vst.msk [vmem:[#allocation3 + $0x130] sm:$0xff] %vm1547, %v1490
      %1568 = vst.msk [vmem:[#allocation3 + $0x140] sm:$0xff] %vm1547, %v1492
      %1569 = vst.msk [vmem:[#allocation3 + $0x150] sm:$0xff] %vm1547, %v1494
      %1570 = vst.msk [vmem:[#allocation3 + $0x160] sm:$0xff] %vm1547, %v1496
      %1571 = vst.msk [vmem:[#allocation3 + $0x170] sm:$0xff] %vm1547, %v1498
      %1572 = vst.msk [vmem:[#allocation3 + $0x180] sm:$0xff] %vm1547, %v1500
      %1573 = vst.msk [vmem:[#allocation3 + $0x190] sm:$0xff] %vm1547, %v1502
      %1574 = vst.msk [vmem:[#allocation3 + $0x1a0] sm:$0xff] %vm1547, %v1504
      %1575 = vst.msk [vmem:[#allocation3 + $0x1b0] sm:$0xff] %vm1547, %v1506
      %1576 = vst.msk [vmem:[#allocation3 + $0x1c0] sm:$0xff] %vm1547, %v1508
      %1577 = vst.msk [vmem:[#allocation3 + $0x1d0] sm:$0xff] %vm1547, %v1510
      %1578 = vst.msk [vmem:[#allocation3 + $0x1e0] sm:$0xff] %vm1547, %v1512
      %1579 = vst.msk [vmem:[#allocation3 + $0x1f0] sm:$0xff] %vm1547, %v1514
      %v1580 = vld [vmem:[%s1386 + $0x1] sm:$0xff]
      %v1581 = vld [vmem:[%s1386 + $0x9] sm:$0xff]
      %v1582 = vld [vmem:[%s1386 + $0x19] sm:$0xff]
      %v1583 = vld [vmem:[%s1386 + $0x21] sm:$0xff]
      %v1584 = vld [vmem:[%s1386 + $0x31] sm:$0xff]
      %v1585 = vld [vmem:[%s1386 + $0x39] sm:$0xff]
      %v1586 = vld [vmem:[%s1386 + $0x49] sm:$0xff]
      %v1587 = vld [vmem:[%s1386 + $0x51] sm:$0xff]
      %v1588 = vld [vmem:[%s1386 + $0x61] sm:$0xff]
      %v1589 = vld [vmem:[%s1386 + $0x69] sm:$0xff]
      %v1590 = vld [vmem:[%s1386 + $0x79] sm:$0xff]
      %v1591 = vld [vmem:[%s1386 + $0x81] sm:$0xff]
      %v1592 = vld [vmem:[%s1386 + $0x91] sm:$0xff]
      %v1593 = vld [vmem:[%s1386 + $0x99] sm:$0xff]
      %v1594 = vld [vmem:[%s1386 + $0xa9] sm:$0xff]
      %v1595 = vld [vmem:[%s1386 + $0xb1] sm:$0xff]
      %v1596 = vld [vmem:[%s1386 + $0xc1] sm:$0xff]
      %v1597 = vld [vmem:[%s1386 + $0xc9] sm:$0xff]
      %v1598 = vld [vmem:[%s1386 + $0xd9] sm:$0xff]
      %v1599 = vld [vmem:[%s1386 + $0xe1] sm:$0xff]
      %v1600 = vld [vmem:[%s1386 + $0xf1] sm:$0xff]
      %v1601 = vld [vmem:[%s1386 + $0xf9] sm:$0xff]
      %v1602 = vld [vmem:[%s1386 + $0x109] sm:$0xff]
      %v1603 = vld [vmem:[%s1386 + $0x111] sm:$0xff]
      %v1604 = vld [vmem:[%s1386 + $0x121] sm:$0xff]
      %v1605 = vld [vmem:[%s1386 + $0x129] sm:$0xff]
      %v1606 = vld [vmem:[%s1386 + $0x139] sm:$0xff]
      %v1607 = vld [vmem:[%s1386 + $0x141] sm:$0xff]
      %v1608 = vld [vmem:[%s1386 + $0x151] sm:$0xff]
      %v1609 = vld [vmem:[%s1386 + $0x159] sm:$0xff]
      %v1610 = vld [vmem:[%s1386 + $0x169] sm:$0xff]
      %v1611 = vld [vmem:[%s1386 + $0x171] sm:$0xff]
      %1644 = vrot.lane.b32.xlu0 %v1580, 28
      %v1645 = vpop.permute.xlu0 %1644
      %1646 = vrot.lane.b32.xlu0 %v1581, 28
      %v1647 = vpop.permute.xlu0 %1646
      %1648 = vrot.lane.b32.xlu0 %v1582, 28
      %v1649 = vpop.permute.xlu0 %1648
      %1650 = vrot.lane.b32.xlu0 %v1583, 28
      %v1651 = vpop.permute.xlu0 %1650
      %1652 = vrot.lane.b32.xlu0 %v1584, 28
      %v1653 = vpop.permute.xlu0 %1652
      %1654 = vrot.lane.b32.xlu0 %v1585, 28
      %v1655 = vpop.permute.xlu0 %1654
      %1656 = vrot.lane.b32.xlu0 %v1586, 28
      %v1657 = vpop.permute.xlu0 %1656
      %1658 = vrot.lane.b32.xlu0 %v1587, 28
      %v1659 = vpop.permute.xlu0 %1658
      %1660 = vrot.lane.b32.xlu0 %v1588, 28
      %v1661 = vpop.permute.xlu0 %1660
      %1662 = vrot.lane.b32.xlu0 %v1589, 28
      %v1663 = vpop.permute.xlu0 %1662
      %1664 = vrot.lane.b32.xlu0 %v1590, 28
      %v1665 = vpop.permute.xlu0 %1664
      %1666 = vrot.lane.b32.xlu0 %v1591, 28
      %v1667 = vpop.permute.xlu0 %1666
      %1668 = vrot.lane.b32.xlu0 %v1592, 28
      %v1669 = vpop.permute.xlu0 %1668
      %1670 = vrot.lane.b32.xlu0 %v1593, 28
      %v1671 = vpop.permute.xlu0 %1670
      %1672 = vrot.lane.b32.xlu0 %v1594, 28
      %v1673 = vpop.permute.xlu0 %1672
      %1674 = vrot.lane.b32.xlu0 %v1595, 28
      %v1675 = vpop.permute.xlu0 %1674
      %1676 = vrot.lane.b32.xlu0 %v1596, 28
      %v1677 = vpop.permute.xlu0 %1676
      %1678 = vrot.lane.b32.xlu0 %v1597, 28
      %v1679 = vpop.permute.xlu0 %1678
      %1680 = vrot.lane.b32.xlu0 %v1598, 28
      %v1681 = vpop.permute.xlu0 %1680
      %1682 = vrot.lane.b32.xlu0 %v1599, 28
      %v1683 = vpop.permute.xlu0 %1682
      %1684 = vrot.lane.b32.xlu0 %v1600, 28
      %v1685 = vpop.permute.xlu0 %1684
      %1686 = vrot.lane.b32.xlu0 %v1601, 28
      %v1687 = vpop.permute.xlu0 %1686
      %1688 = vrot.lane.b32.xlu0 %v1602, 28
      %v1689 = vpop.permute.xlu0 %1688
      %1690 = vrot.lane.b32.xlu0 %v1603, 28
      %v1691 = vpop.permute.xlu0 %1690
      %1692 = vrot.lane.b32.xlu0 %v1604, 28
      %v1693 = vpop.permute.xlu0 %1692
      %1694 = vrot.lane.b32.xlu0 %v1605, 28
      %v1695 = vpop.permute.xlu0 %1694
      %1696 = vrot.lane.b32.xlu0 %v1606, 28
      %v1697 = vpop.permute.xlu0 %1696
      %1698 = vrot.lane.b32.xlu0 %v1607, 28
      %v1699 = vpop.permute.xlu0 %1698
      %1700 = vrot.lane.b32.xlu0 %v1608, 28
      %v1701 = vpop.permute.xlu0 %1700
      %1702 = vrot.lane.b32.xlu0 %v1609, 28
      %v1703 = vpop.permute.xlu0 %1702
      %1704 = vrot.lane.b32.xlu0 %v1610, 28
      %v1705 = vpop.permute.xlu0 %1704
      %1706 = vrot.lane.b32.xlu0 %v1611, 28
      %v1707 = vpop.permute.xlu0 %1706
      %vm1740 = vcmask 261344
      %1741 = vst.msk [vmem:[#allocation3] sm:$0xff] %vm1740, %v1645
      %1742 = vst.msk [vmem:[#allocation3 + $0x10] sm:$0xff] %vm1740, %v1647
      %1743 = vst.msk [vmem:[#allocation3 + $0x20] sm:$0xff] %vm1740, %v1649
      %1744 = vst.msk [vmem:[#allocation3 + $0x30] sm:$0xff] %vm1740, %v1651
      %1745 = vst.msk [vmem:[#allocation3 + $0x40] sm:$0xff] %vm1740, %v1653
      %1746 = vst.msk [vmem:[#allocation3 + $0x50] sm:$0xff] %vm1740, %v1655
      %1747 = vst.msk [vmem:[#allocation3 + $0x60] sm:$0xff] %vm1740, %v1657
      %1748 = vst.msk [vmem:[#allocation3 + $0x70] sm:$0xff] %vm1740, %v1659
      %1749 = vst.msk [vmem:[#allocation3 + $0x80] sm:$0xff] %vm1740, %v1661
      %1750 = vst.msk [vmem:[#allocation3 + $0x90] sm:$0xff] %vm1740, %v1663
      %1751 = vst.msk [vmem:[#allocation3 + $0xa0] sm:$0xff] %vm1740, %v1665
      %1752 = vst.msk [vmem:[#allocation3 + $0xb0] sm:$0xff] %vm1740, %v1667
      %1753 = vst.msk [vmem:[#allocation3 + $0xc0] sm:$0xff] %vm1740, %v1669
      %1754 = vst.msk [vmem:[#allocation3 + $0xd0] sm:$0xff] %vm1740, %v1671
      %1755 = vst.msk [vmem:[#allocation3 + $0xe0] sm:$0xff] %vm1740, %v1673
      %1756 = vst.msk [vmem:[#allocation3 + $0xf0] sm:$0xff] %vm1740, %v1675
      %1757 = vst.msk [vmem:[#allocation3 + $0x100] sm:$0xff] %vm1740, %v1677
      %1758 = vst.msk [vmem:[#allocation3 + $0x110] sm:$0xff] %vm1740, %v1679
      %1759 = vst.msk [vmem:[#allocation3 + $0x120] sm:$0xff] %vm1740, %v1681
      %1760 = vst.msk [vmem:[#allocation3 + $0x130] sm:$0xff] %vm1740, %v1683
      %1761 = vst.msk [vmem:[#allocation3 + $0x140] sm:$0xff] %vm1740, %v1685
      %1762 = vst.msk [vmem:[#allocation3 + $0x150] sm:$0xff] %vm1740, %v1687
      %1763 = vst.msk [vmem:[#allocation3 + $0x160] sm:$0xff] %vm1740, %v1689
      %1764 = vst.msk [vmem:[#allocation3 + $0x170] sm:$0xff] %vm1740, %v1691
      %1765 = vst.msk [vmem:[#allocation3 + $0x180] sm:$0xff] %vm1740, %v1693
      %1766 = vst.msk [vmem:[#allocation3 + $0x190] sm:$0xff] %vm1740, %v1695
      %1767 = vst.msk [vmem:[#allocation3 + $0x1a0] sm:$0xff] %vm1740, %v1697
      %1768 = vst.msk [vmem:[#allocation3 + $0x1b0] sm:$0xff] %vm1740, %v1699
      %1769 = vst.msk [vmem:[#allocation3 + $0x1c0] sm:$0xff] %vm1740, %v1701
      %1770 = vst.msk [vmem:[#allocation3 + $0x1d0] sm:$0xff] %vm1740, %v1703
      %1771 = vst.msk [vmem:[#allocation3 + $0x1e0] sm:$0xff] %vm1740, %v1705
      %1772 = vst.msk [vmem:[#allocation3 + $0x1f0] sm:$0xff] %vm1740, %v1707
      %v1773 = vld [vmem:[%s1386 + $0x2] sm:$0xff]
      %v1774 = vld [vmem:[%s1386 + $0xa] sm:$0xff]
      %v1775 = vld [vmem:[%s1386 + $0x1a] sm:$0xff]
      %v1776 = vld [vmem:[%s1386 + $0x22] sm:$0xff]
      %v1777 = vld [vmem:[%s1386 + $0x32] sm:$0xff]
      %v1778 = vld [vmem:[%s1386 + $0x3a] sm:$0xff]
      %v1779 = vld [vmem:[%s1386 + $0x4a] sm:$0xff]
      %v1780 = vld [vmem:[%s1386 + $0x52] sm:$0xff]
      %v1781 = vld [vmem:[%s1386 + $0x62] sm:$0xff]
      %v1782 = vld [vmem:[%s1386 + $0x6a] sm:$0xff]
      %v1783 = vld [vmem:[%s1386 + $0x7a] sm:$0xff]
      %v1784 = vld [vmem:[%s1386 + $0x82] sm:$0xff]
      %v1785 = vld [vmem:[%s1386 + $0x92] sm:$0xff]
      %v1786 = vld [vmem:[%s1386 + $0x9a] sm:$0xff]
      %v1787 = vld [vmem:[%s1386 + $0xaa] sm:$0xff]
      %v1788 = vld [vmem:[%s1386 + $0xb2] sm:$0xff]
      %v1789 = vld [vmem:[%s1386 + $0xc2] sm:$0xff]
      %v1790 = vld [vmem:[%s1386 + $0xca] sm:$0xff]
      %v1791 = vld [vmem:[%s1386 + $0xda] sm:$0xff]
      %v1792 = vld [vmem:[%s1386 + $0xe2] sm:$0xff]
      %v1793 = vld [vmem:[%s1386 + $0xf2] sm:$0xff]
      %v1794 = vld [vmem:[%s1386 + $0xfa] sm:$0xff]
      %v1795 = vld [vmem:[%s1386 + $0x10a] sm:$0xff]
      %v1796 = vld [vmem:[%s1386 + $0x112] sm:$0xff]
      %v1797 = vld [vmem:[%s1386 + $0x122] sm:$0xff]
      %v1798 = vld [vmem:[%s1386 + $0x12a] sm:$0xff]
      %v1799 = vld [vmem:[%s1386 + $0x13a] sm:$0xff]
      %v1800 = vld [vmem:[%s1386 + $0x142] sm:$0xff]
      %v1801 = vld [vmem:[%s1386 + $0x152] sm:$0xff]
      %v1802 = vld [vmem:[%s1386 + $0x15a] sm:$0xff]
      %v1803 = vld [vmem:[%s1386 + $0x16a] sm:$0xff]
      %v1804 = vld [vmem:[%s1386 + $0x172] sm:$0xff]
      %1837 = vrot.lane.b32.xlu0 %v1773, 32
      %v1838 = vpop.permute.xlu0 %1837
      %1839 = vrot.lane.b32.xlu0 %v1774, 32
      %v1840 = vpop.permute.xlu0 %1839
      %1841 = vrot.lane.b32.xlu0 %v1775, 32
      %v1842 = vpop.permute.xlu0 %1841
      %1843 = vrot.lane.b32.xlu0 %v1776, 32
      %v1844 = vpop.permute.xlu0 %1843
      %1845 = vrot.lane.b32.xlu0 %v1777, 32
      %v1846 = vpop.permute.xlu0 %1845
      %1847 = vrot.lane.b32.xlu0 %v1778, 32
      %v1848 = vpop.permute.xlu0 %1847
      %1849 = vrot.lane.b32.xlu0 %v1779, 32
      %v1850 = vpop.permute.xlu0 %1849
      %1851 = vrot.lane.b32.xlu0 %v1780, 32
      %v1852 = vpop.permute.xlu0 %1851
      %1853 = vrot.lane.b32.xlu0 %v1781, 32
      %v1854 = vpop.permute.xlu0 %1853
      %1855 = vrot.lane.b32.xlu0 %v1782, 32
      %v1856 = vpop.permute.xlu0 %1855
      %1857 = vrot.lane.b32.xlu0 %v1783, 32
      %v1858 = vpop.permute.xlu0 %1857
      %1859 = vrot.lane.b32.xlu0 %v1784, 32
      %v1860 = vpop.permute.xlu0 %1859
      %1861 = vrot.lane.b32.xlu0 %v1785, 32
      %v1862 = vpop.permute.xlu0 %1861
      %1863 = vrot.lane.b32.xlu0 %v1786, 32
      %v1864 = vpop.permute.xlu0 %1863
      %1865 = vrot.lane.b32.xlu0 %v1787, 32
      %v1866 = vpop.permute.xlu0 %1865
      %1867 = vrot.lane.b32.xlu0 %v1788, 32
      %v1868 = vpop.permute.xlu0 %1867
      %1869 = vrot.lane.b32.xlu0 %v1789, 32
      %v1870 = vpop.permute.xlu0 %1869
      %1871 = vrot.lane.b32.xlu0 %v1790, 32
      %v1872 = vpop.permute.xlu0 %1871
      %1873 = vrot.lane.b32.xlu0 %v1791, 32
      %v1874 = vpop.permute.xlu0 %1873
      %1875 = vrot.lane.b32.xlu0 %v1792, 32
      %v1876 = vpop.permute.xlu0 %1875
      %1877 = vrot.lane.b32.xlu0 %v1793, 32
      %v1878 = vpop.permute.xlu0 %1877
      %1879 = vrot.lane.b32.xlu0 %v1794, 32
      %v1880 = vpop.permute.xlu0 %1879
      %1881 = vrot.lane.b32.xlu0 %v1795, 32
      %v1882 = vpop.permute.xlu0 %1881
      %1883 = vrot.lane.b32.xlu0 %v1796, 32
      %v1884 = vpop.permute.xlu0 %1883
      %1885 = vrot.lane.b32.xlu0 %v1797, 32
      %v1886 = vpop.permute.xlu0 %1885
      %1887 = vrot.lane.b32.xlu0 %v1798, 32
      %v1888 = vpop.permute.xlu0 %1887
      %1889 = vrot.lane.b32.xlu0 %v1799, 32
      %v1890 = vpop.permute.xlu0 %1889
      %1891 = vrot.lane.b32.xlu0 %v1800, 32
      %v1892 = vpop.permute.xlu0 %1891
      %1893 = vrot.lane.b32.xlu0 %v1801, 32
      %v1894 = vpop.permute.xlu0 %1893
      %1895 = vrot.lane.b32.xlu0 %v1802, 32
      %v1896 = vpop.permute.xlu0 %1895
      %1897 = vrot.lane.b32.xlu0 %v1803, 32
      %v1898 = vpop.permute.xlu0 %1897
      %1899 = vrot.lane.b32.xlu0 %v1804, 32
      %v1900 = vpop.permute.xlu0 %1899
      %vm1933 = vcmask 294144
      %1934 = vst.msk [vmem:[#allocation3] sm:$0xff] %vm1933, %v1838
      %1935 = vst.msk [vmem:[#allocation3 + $0x10] sm:$0xff] %vm1933, %v1840
      %1936 = vst.msk [vmem:[#allocation3 + $0x20] sm:$0xff] %vm1933, %v1842
      %1937 = vst.msk [vmem:[#allocation3 + $0x30] sm:$0xff] %vm1933, %v1844
      %1938 = vst.msk [vmem:[#allocation3 + $0x40] sm:$0xff] %vm1933, %v1846
      %1939 = vst.msk [vmem:[#allocation3 + $0x50] sm:$0xff] %vm1933, %v1848
      %1940 = vst.msk [vmem:[#allocation3 + $0x60] sm:$0xff] %vm1933, %v1850
      %1941 = vst.msk [vmem:[#allocation3 + $0x70] sm:$0xff] %vm1933, %v1852
      %1942 = vst.msk [vmem:[#allocation3 + $0x80] sm:$0xff] %vm1933, %v1854
      %1943 = vst.msk [vmem:[#allocation3 + $0x90] sm:$0xff] %vm1933, %v1856
      %1944 = vst.msk [vmem:[#allocation3 + $0xa0] sm:$0xff] %vm1933, %v1858
      %1945 = vst.msk [vmem:[#allocation3 + $0xb0] sm:$0xff] %vm1933, %v1860
      %1946 = vst.msk [vmem:[#allocation3 + $0xc0] sm:$0xff] %vm1933, %v1862
      %1947 = vst.msk [vmem:[#allocation3 + $0xd0] sm:$0xff] %vm1933, %v1864
      %1948 = vst.msk [vmem:[#allocation3 + $0xe0] sm:$0xff] %vm1933, %v1866
      %1949 = vst.msk [vmem:[#allocation3 + $0xf0] sm:$0xff] %vm1933, %v1868
      %1950 = vst.msk [vmem:[#allocation3 + $0x100] sm:$0xff] %vm1933, %v1870
      %1951 = vst.msk [vmem:[#allocation3 + $0x110] sm:$0xff] %vm1933, %v1872
      %1952 = vst.msk [vmem:[#allocation3 + $0x120] sm:$0xff] %vm1933, %v1874
      %1953 = vst.msk [vmem:[#allocation3 + $0x130] sm:$0xff] %vm1933, %v1876
      %1954 = vst.msk [vmem:[#allocation3 + $0x140] sm:$0xff] %vm1933, %v1878
      %1955 = vst.msk [vmem:[#allocation3 + $0x150] sm:$0xff] %vm1933, %v1880
      %1956 = vst.msk [vmem:[#allocation3 + $0x160] sm:$0xff] %vm1933, %v1882
      %1957 = vst.msk [vmem:[#allocation3 + $0x170] sm:$0xff] %vm1933, %v1884
      %1958 = vst.msk [vmem:[#allocation3 + $0x180] sm:$0xff] %vm1933, %v1886
      %1959 = vst.msk [vmem:[#allocation3 + $0x190] sm:$0xff] %vm1933, %v1888
      %1960 = vst.msk [vmem:[#allocation3 + $0x1a0] sm:$0xff] %vm1933, %v1890
      %1961 = vst.msk [vmem:[#allocation3 + $0x1b0] sm:$0xff] %vm1933, %v1892
      %1962 = vst.msk [vmem:[#allocation3 + $0x1c0] sm:$0xff] %vm1933, %v1894
      %1963 = vst.msk [vmem:[#allocation3 + $0x1d0] sm:$0xff] %vm1933, %v1896
      %1964 = vst.msk [vmem:[#allocation3 + $0x1e0] sm:$0xff] %vm1933, %v1898
      %1965 = vst.msk [vmem:[#allocation3 + $0x1f0] sm:$0xff] %vm1933, %v1900
      %v1966 = vld [vmem:[#allocation3] sm:$0xff]
      %v1967 = vld [vmem:[#allocation3 + $0x8] sm:$0xff]
      %v1968 = vld [vmem:[#allocation3 + $0x10] sm:$0xff]
      %v1969 = vld [vmem:[#allocation3 + $0x18] sm:$0xff]
      %v1970 = vld [vmem:[#allocation3 + $0x20] sm:$0xff]
      %v1971 = vld [vmem:[#allocation3 + $0x28] sm:$0xff]
      %v1972 = vld [vmem:[#allocation3 + $0x30] sm:$0xff]
      %v1973 = vld [vmem:[#allocation3 + $0x38] sm:$0xff]
      %v1974 = vld [vmem:[#allocation3 + $0x40] sm:$0xff]
      %v1975 = vld [vmem:[#allocation3 + $0x48] sm:$0xff]
      %v1976 = vld [vmem:[#allocation3 + $0x50] sm:$0xff]
      %v1977 = vld [vmem:[#allocation3 + $0x58] sm:$0xff]
      %v1978 = vld [vmem:[#allocation3 + $0x60] sm:$0xff]
      %v1979 = vld [vmem:[#allocation3 + $0x68] sm:$0xff]
      %v1980 = vld [vmem:[#allocation3 + $0x70] sm:$0xff]
      %v1981 = vld [vmem:[#allocation3 + $0x78] sm:$0xff]
      %v1982 = vld [vmem:[#allocation3 + $0x80] sm:$0xff]
      %v1983 = vld [vmem:[#allocation3 + $0x88] sm:$0xff]
      %v1984 = vld [vmem:[#allocation3 + $0x90] sm:$0xff]
      %v1985 = vld [vmem:[#allocation3 + $0x98] sm:$0xff]
      %v1986 = vld [vmem:[#allocation3 + $0xa0] sm:$0xff]
      %v1987 = vld [vmem:[#allocation3 + $0xa8] sm:$0xff]
      %v1988 = vld [vmem:[#allocation3 + $0xb0] sm:$0xff]
      %v1989 = vld [vmem:[#allocation3 + $0xb8] sm:$0xff]
      %v1990 = vld [vmem:[#allocation3 + $0xc0] sm:$0xff]
      %v1991 = vld [vmem:[#allocation3 + $0xc8] sm:$0xff]
      %v1992 = vld [vmem:[#allocation3 + $0xd0] sm:$0xff]
      %v1993 = vld [vmem:[#allocation3 + $0xd8] sm:$0xff]
      %v1994 = vld [vmem:[#allocation3 + $0xe0] sm:$0xff]
      %v1995 = vld [vmem:[#allocation3 + $0xe8] sm:$0xff]
      %v1996 = vld [vmem:[#allocation3 + $0xf0] sm:$0xff]
      %v1997 = vld [vmem:[#allocation3 + $0xf8] sm:$0xff]
      %v1998 = vld [vmem:[#allocation3 + $0x100] sm:$0xff]
      %v1999 = vld [vmem:[#allocation3 + $0x108] sm:$0xff]
      %v2000 = vld [vmem:[#allocation3 + $0x110] sm:$0xff]
      %v2001 = vld [vmem:[#allocation3 + $0x118] sm:$0xff]
      %v2002 = vld [vmem:[#allocation3 + $0x120] sm:$0xff]
      %v2003 = vld [vmem:[#allocation3 + $0x128] sm:$0xff]
      %v2004 = vld [vmem:[#allocation3 + $0x130] sm:$0xff]
      %v2005 = vld [vmem:[#allocation3 + $0x138] sm:$0xff]
      %v2006 = vld [vmem:[#allocation3 + $0x140] sm:$0xff]
      %v2007 = vld [vmem:[#allocation3 + $0x148] sm:$0xff]
      %v2008 = vld [vmem:[#allocation3 + $0x150] sm:$0xff]
      %v2009 = vld [vmem:[#allocation3 + $0x158] sm:$0xff]
      %v2010 = vld [vmem:[#allocation3 + $0x160] sm:$0xff]
      %v2011 = vld [vmem:[#allocation3 + $0x168] sm:$0xff]
      %v2012 = vld [vmem:[#allocation3 + $0x170] sm:$0xff]
      %v2013 = vld [vmem:[#allocation3 + $0x178] sm:$0xff]
      %v2014 = vld [vmem:[#allocation3 + $0x180] sm:$0xff]
      %v2015 = vld [vmem:[#allocation3 + $0x188] sm:$0xff]
      %v2016 = vld [vmem:[#allocation3 + $0x190] sm:$0xff]
      %v2017 = vld [vmem:[#allocation3 + $0x198] sm:$0xff]
      %v2018 = vld [vmem:[#allocation3 + $0x1a0] sm:$0xff]
      %v2019 = vld [vmem:[#allocation3 + $0x1a8] sm:$0xff]
      %v2020 = vld [vmem:[#allocation3 + $0x1b0] sm:$0xff]
      %v2021 = vld [vmem:[#allocation3 + $0x1b8] sm:$0xff]
      %v2022 = vld [vmem:[#allocation3 + $0x1c0] sm:$0xff]
      %v2023 = vld [vmem:[#allocation3 + $0x1c8] sm:$0xff]
      %v2024 = vld [vmem:[#allocation3 + $0x1d0] sm:$0xff]
      %v2025 = vld [vmem:[#allocation3 + $0x1d8] sm:$0xff]
      %v2026 = vld [vmem:[#allocation3 + $0x1e0] sm:$0xff]
      %v2027 = vld [vmem:[#allocation3 + $0x1e8] sm:$0xff]
      %v2028 = vld [vmem:[#allocation3 + $0x1f0] sm:$0xff]
      %v2029 = vld [vmem:[#allocation3 + $0x1f8] sm:$0xff]
      %v2030 = vld [vmem:[%s1] sm:$0xff]
      %v2031 = vld [vmem:[%s1 + $0x8] sm:$0xff]
      %v2032 = vld [vmem:[%s1 + $0x10] sm:$0xff]
      %v2033 = vld [vmem:[%s1 + $0x18] sm:$0xff]
      %v2034 = vld [vmem:[%s1 + $0x20] sm:$0xff]
      %v2035 = vld [vmem:[%s1 + $0x28] sm:$0xff]
      %v2036 = vld [vmem:[%s1 + $0x30] sm:$0xff]
      %v2037 = vld [vmem:[%s1 + $0x38] sm:$0xff]
      %v2038 = vld [vmem:[%s1 + $0x40] sm:$0xff]
      %v2039 = vld [vmem:[%s1 + $0x48] sm:$0xff]
      %v2040 = vld [vmem:[%s1 + $0x50] sm:$0xff]
      %v2041 = vld [vmem:[%s1 + $0x58] sm:$0xff]
      %v2042 = vld [vmem:[%s1 + $0x60] sm:$0xff]
      %v2043 = vld [vmem:[%s1 + $0x68] sm:$0xff]
      %v2044 = vld [vmem:[%s1 + $0x70] sm:$0xff]
      %v2045 = vld [vmem:[%s1 + $0x78] sm:$0xff]
      %v2046 = vld [vmem:[%s1 + $0x80] sm:$0xff]
      %v2047 = vld [vmem:[%s1 + $0x88] sm:$0xff]
      %v2048 = vld [vmem:[%s1 + $0x90] sm:$0xff]
      %v2049 = vld [vmem:[%s1 + $0x98] sm:$0xff]
      %v2050 = vld [vmem:[%s1 + $0xa0] sm:$0xff]
      %v2051 = vld [vmem:[%s1 + $0xa8] sm:$0xff]
      %v2052 = vld [vmem:[%s1 + $0xb0] sm:$0xf]
      %v2053 = vld [vmem:[%s2] sm:$0x1]
      %v2055 = vlaneseq
      %v2056 = vshrl.u32 %v2055, 7
      %v2057 = vsub.s32 0, %v2056
      %v2058 = vrot.slane %v2053, %v2057
      %v2061 = vsel %vm228, %v1967, 0
      %v2064 = vsel %vm228, %v1969, 0
      %v2067 = vsel %vm228, %v1971, 0
      %v2070 = vsel %vm228, %v1973, 0
      %v2073 = vsel %vm228, %v1975, 0
      %v2076 = vsel %vm228, %v1977, 0
      %v2079 = vsel %vm228, %v1979, 0
      %v2082 = vsel %vm228, %v1981, 0
      %v2085 = vsel %vm228, %v1983, 0
      %v2088 = vsel %vm228, %v1985, 0
      %v2091 = vsel %vm228, %v1987, 0
      %v2094 = vsel %vm228, %v1989, 0
      %v2097 = vsel %vm228, %v1991, 0
      %v2100 = vsel %vm228, %v1993, 0
      %v2103 = vsel %vm228, %v1995, 0
      %v2106 = vsel %vm228, %v1997, 0
      %v2109 = vsel %vm228, %v1999, 0
      %v2112 = vsel %vm228, %v2001, 0
      %v2115 = vsel %vm228, %v2003, 0
      %v2118 = vsel %vm228, %v2005, 0
      %v2121 = vsel %vm228, %v2007, 0
      %v2124 = vsel %vm228, %v2009, 0
      %v2127 = vsel %vm228, %v2011, 0
      %v2130 = vsel %vm228, %v2013, 0
      %v2133 = vsel %vm228, %v2015, 0
      %v2136 = vsel %vm228, %v2017, 0
      %v2139 = vsel %vm228, %v2019, 0
      %v2142 = vsel %vm228, %v2021, 0
      %v2145 = vsel %vm228, %v2023, 0
      %v2148 = vsel %vm228, %v2025, 0
      %v2151 = vsel %vm228, %v2027, 0
      %v2154 = vsel %vm228, %v2029, 0
      %vm2156 = vcmask 1043456
      %v2158 = vsel %vm2156, %v2052, 0
      %2160 = vmatprep.subr.mxu0 0.0
      %2161 = vmatpush1.msra.mxu0 %v2030
      %2162 = vmatprep.subr.mxu0 0.0
      %2163 = vmatpush1.msra.mxu0 %v2031
      %2164 = vmatprep.subr.mxu0 0.0
      %2165 = vmatpush1.msra.mxu0 %v2032
      %2166 = vmatprep.subr.mxu0 0.0
      %2167 = vmatpush1.msra.mxu0 %v2033
      %2168 = vmatprep.subr.mxu0 0.0
      %2169 = vmatpush1.msra.mxu0 %v2034
      %2170 = vmatprep.subr.mxu0 0.0
      %2171 = vmatpush1.msra.mxu0 %v2035
      %2172 = vmatprep.subr.mxu0 0.0
      %2173 = vmatpush1.msra.mxu0 %v2036
      %2174 = vmatprep.subr.mxu0 0.0
      %2175 = vmatpush1.msra.mxu0 %v2037
      %2176 = vmatprep.subr.mxu0 0.0
      %2177 = vmatpush1.msra.mxu0 %v2038
      %2178 = vmatprep.subr.mxu0 0.0
      %2179 = vmatpush1.msra.mxu0 %v2039
      %2180 = vmatprep.subr.mxu0 0.0
      %2181 = vmatpush1.msra.mxu0 %v2040
      %2182 = vmatprep.subr.mxu0 0.0
      %2183 = vmatpush1.msra.mxu0 %v2041
      %2184 = vmatprep.subr.mxu0 0.0
      %2185 = vmatpush1.msra.mxu0 %v2042
      %2186 = vmatprep.subr.mxu0 0.0
      %2187 = vmatpush1.msra.mxu0 %v2043
      %2188 = vmatprep.subr.mxu0 0.0
      %2189 = vmatpush1.msra.mxu0 %v2044
      %2190 = vmatprep.subr.mxu0 0.0
      %2191 = vmatpush1.msra.mxu0 %v2045
      %2192 = vmatprep.subr.mxu0 0.0
      %2193 = vmatpush1.msra.mxu0 %v2046
      %2194 = vmatprep.subr.mxu0 0.0
      %2195 = vmatpush1.msra.mxu0 %v2047
      %2196 = vmatprep.subr.mxu0 0.0
      %2197 = vmatpush1.msra.mxu0 %v2048
      %2198 = vmatprep.subr.mxu0 0.0
      %2199 = vmatpush1.msra.mxu0 %v2049
      %2200 = vmatprep.subr.mxu0 0.0
      %2201 = vmatpush1.msra.mxu0 %v2050
      %2202 = vmatprep.subr.mxu0 0.0
      %2203 = vmatpush1.msra.mxu0 %v2051
      %2204 = vmatprep.subr.mxu0 0.0
      %2205 = vmatpush1.msra.mxu0 %v2158
      %2206 = vmatprep.subr.mxu0 0.0
      %2207 = vmatpush1.msra.mxu0 0.0
      %2208 = vmatprep.subr.mxu0 0.0
      %2209 = vmatpush1.msra.mxu0 0.0
      %2210 = vmatprep.subr.mxu0 0.0
      %2211 = vmatpush1.msra.mxu0 0.0
      %2212 = vmatprep.subr.mxu0 0.0
      %2213 = vmatpush1.msra.mxu0 0.0
      %2214 = vmatprep.subr.mxu0 0.0
      %2215 = vmatpush1.msra.mxu0 0.0
      %2216 = vmatprep.subr.mxu0 0.0
      %2217 = vmatpush1.msra.mxu0 0.0
      %2218 = vmatprep.subr.mxu0 0.0
      %2219 = vmatpush1.msra.mxu0 0.0
      %2220 = vmatprep.subr.mxu0 0.0
      %2221 = vmatpush1.msra.mxu0 0.0
      %2222 = vmatprep.subr.mxu0 0.0
      %2223 = vmatpush1.msra.mxu0 0.0
      %2224 = vmatprep.mubr.f32.mxu0 %v2061
      %2225 = vmatmul.mubr.f32.gmra.mrb[0].mxu0 %v1966
      %v2226 = vpop.f32.mrb[0].mxu0
      %v2227 = vadd.f32 %v2058, %v2226
      %v2228 = vpop.f32.mrb[0].mxu0
      %2229 = vmatprep.mubr.f32.mxu0 %v2064
      %2230 = vmatmul.mubr.f32.gmra.mrb[0].mxu0 %v1968
      %v2231 = vpop.f32.mrb[0].mxu0
      %v2232 = vadd.f32 %v2058, %v2231
      %v2233 = vpop.f32.mrb[0].mxu0
      %2234 = vmatprep.mubr.f32.mxu0 %v2067
      %2235 = vmatmul.mubr.f32.gmra.mrb[0].mxu0 %v1970
      %v2236 = vpop.f32.mrb[0].mxu0
      %v2237 = vadd.f32 %v2058, %v2236
      %v2238 = vpop.f32.mrb[0].mxu0
      %2239 = vmatprep.mubr.f32.mxu0 %v2070
      %2240 = vmatmul.mubr.f32.gmra.mrb[0].mxu0 %v1972
      %v2241 = vpop.f32.mrb[0].mxu0
      %v2242 = vadd.f32 %v2058, %v2241
      %v2243 = vpop.f32.mrb[0].mxu0
      %2244 = vmatprep.mubr.f32.mxu0 %v2073
      %2245 = vmatmul.mubr.f32.gmra.mrb[0].mxu0 %v1974
      %v2246 = vpop.f32.mrb[0].mxu0
      %v2247 = vadd.f32 %v2058, %v2246
      %v2248 = vpop.f32.mrb[0].mxu0
      %2249 = vmatprep.mubr.f32.mxu0 %v2076
      %2250 = vmatmul.mubr.f32.gmra.mrb[0].mxu0 %v1976
      %v2251 = vpop.f32.mrb[0].mxu0
      %v2252 = vadd.f32 %v2058, %v2251
      %v2253 = vpop.f32.mrb[0].mxu0
      %2254 = vmatprep.mubr.f32.mxu0 %v2079
      %2255 = vmatmul.mubr.f32.gmra.mrb[0].mxu0 %v1978
      %v2256 = vpop.f32.mrb[0].mxu0
      %v2257 = vadd.f32 %v2058, %v2256
      %v2258 = vpop.f32.mrb[0].mxu0
      %2259 = vmatprep.mubr.f32.mxu0 %v2082
      %2260 = vmatmul.mubr.f32.gmra.mrb[0].mxu0 %v1980
      %v2261 = vpop.f32.mrb[0].mxu0
      %v2262 = vadd.f32 %v2058, %v2261
      %v2263 = vpop.f32.mrb[0].mxu0
      %2264 = vmatprep.mubr.f32.mxu0 %v2085
      %2265 = vmatmul.mubr.f32.gmra.mrb[0].mxu0 %v1982
      %v2266 = vpop.f32.mrb[0].mxu0
      %v2267 = vadd.f32 %v2058, %v2266
      %v2268 = vpop.f32.mrb[0].mxu0
      %2269 = vmatprep.mubr.f32.mxu0 %v2088
      %2270 = vmatmul.mubr.f32.gmra.mrb[0].mxu0 %v1984
      %v2271 = vpop.f32.mrb[0].mxu0
      %v2272 = vadd.f32 %v2058, %v2271
      %v2273 = vpop.f32.mrb[0].mxu0
      %2274 = vmatprep.mubr.f32.mxu0 %v2091
      %2275 = vmatmul.mubr.f32.gmra.mrb[0].mxu0 %v1986
      %v2276 = vpop.f32.mrb[0].mxu0
      %v2277 = vadd.f32 %v2058, %v2276
      %v2278 = vpop.f32.mrb[0].mxu0
      %2279 = vmatprep.mubr.f32.mxu0 %v2094
      %2280 = vmatmul.mubr.f32.gmra.mrb[0].mxu0 %v1988
      %v2281 = vpop.f32.mrb[0].mxu0
      %v2282 = vadd.f32 %v2058, %v2281
      %v2283 = vpop.f32.mrb[0].mxu0
      %2284 = vmatprep.mubr.f32.mxu0 %v2097
      %2285 = vmatmul.mubr.f32.gmra.mrb[0].mxu0 %v1990
      %v2286 = vpop.f32.mrb[0].mxu0
      %v2287 = vadd.f32 %v2058, %v2286
      %v2288 = vpop.f32.mrb[0].mxu0
      %2289 = vmatprep.mubr.f32.mxu0 %v2100
      %2290 = vmatmul.mubr.f32.gmra.mrb[0].mxu0 %v1992
      %v2291 = vpop.f32.mrb[0].mxu0
      %v2292 = vadd.f32 %v2058, %v2291
      %v2293 = vpop.f32.mrb[0].mxu0
      %2294 = vmatprep.mubr.f32.mxu0 %v2103
      %2295 = vmatmul.mubr.f32.gmra.mrb[0].mxu0 %v1994
      %v2296 = vpop.f32.mrb[0].mxu0
      %v2297 = vadd.f32 %v2058, %v2296
      %v2298 = vpop.f32.mrb[0].mxu0
      %2299 = vmatprep.mubr.f32.mxu0 %v2106
      %2300 = vmatmul.mubr.f32.gmra.mrb[0].mxu0 %v1996
      %v2301 = vpop.f32.mrb[0].mxu0
      %v2302 = vadd.f32 %v2058, %v2301
      %v2303 = vpop.f32.mrb[0].mxu0
      %2304 = vmatprep.mubr.f32.mxu0 %v2109
      %2305 = vmatmul.mubr.f32.gmra.mrb[0].mxu0 %v1998
      %v2306 = vpop.f32.mrb[0].mxu0
      %v2307 = vadd.f32 %v2058, %v2306
      %v2308 = vpop.f32.mrb[0].mxu0
      %2309 = vmatprep.mubr.f32.mxu0 %v2112
      %2310 = vmatmul.mubr.f32.gmra.mrb[0].mxu0 %v2000
      %v2311 = vpop.f32.mrb[0].mxu0
      %v2312 = vadd.f32 %v2058, %v2311
      %v2313 = vpop.f32.mrb[0].mxu0
      %2314 = vmatprep.mubr.f32.mxu0 %v2115
      %2315 = vmatmul.mubr.f32.gmra.mrb[0].mxu0 %v2002
      %v2316 = vpop.f32.mrb[0].mxu0
      %v2317 = vadd.f32 %v2058, %v2316
      %v2318 = vpop.f32.mrb[0].mxu0
      %2319 = vmatprep.mubr.f32.mxu0 %v2118
      %2320 = vmatmul.mubr.f32.gmra.mrb[0].mxu0 %v2004
      %v2321 = vpop.f32.mrb[0].mxu0
      %v2322 = vadd.f32 %v2058, %v2321
      %v2323 = vpop.f32.mrb[0].mxu0
      %2324 = vmatprep.mubr.f32.mxu0 %v2121
      %2325 = vmatmul.mubr.f32.gmra.mrb[0].mxu0 %v2006
      %v2326 = vpop.f32.mrb[0].mxu0
      %v2327 = vadd.f32 %v2058, %v2326
      %v2328 = vpop.f32.mrb[0].mxu0
      %2329 = vmatprep.mubr.f32.mxu0 %v2124
      %2330 = vmatmul.mubr.f32.gmra.mrb[0].mxu0 %v2008
      %v2331 = vpop.f32.mrb[0].mxu0
      %v2332 = vadd.f32 %v2058, %v2331
      %v2333 = vpop.f32.mrb[0].mxu0
      %2334 = vmatprep.mubr.f32.mxu0 %v2127
      %2335 = vmatmul.mubr.f32.gmra.mrb[0].mxu0 %v2010
      %v2336 = vpop.f32.mrb[0].mxu0
      %v2337 = vadd.f32 %v2058, %v2336
      %v2338 = vpop.f32.mrb[0].mxu0
      %2339 = vmatprep.mubr.f32.mxu0 %v2130
      %2340 = vmatmul.mubr.f32.gmra.mrb[0].mxu0 %v2012
      %v2341 = vpop.f32.mrb[0].mxu0
      %v2342 = vadd.f32 %v2058, %v2341
      %v2343 = vpop.f32.mrb[0].mxu0
      %2344 = vmatprep.mubr.f32.mxu0 %v2133
      %2345 = vmatmul.mubr.f32.gmra.mrb[0].mxu0 %v2014
      %v2346 = vpop.f32.mrb[0].mxu0
      %v2347 = vadd.f32 %v2058, %v2346
      %v2348 = vpop.f32.mrb[0].mxu0
      %2349 = vmatprep.mubr.f32.mxu0 %v2136
      %2350 = vmatmul.mubr.f32.gmra.mrb[0].mxu0 %v2016
      %v2351 = vpop.f32.mrb[0].mxu0
      %v2352 = vadd.f32 %v2058, %v2351
      %v2353 = vpop.f32.mrb[0].mxu0
      %2354 = vmatprep.mubr.f32.mxu0 %v2139
      %2355 = vmatmul.mubr.f32.gmra.mrb[0].mxu0 %v2018
      %v2356 = vpop.f32.mrb[0].mxu0
      %v2357 = vadd.f32 %v2058, %v2356
      %v2358 = vpop.f32.mrb[0].mxu0
      %2359 = vmatprep.mubr.f32.mxu0 %v2142
      %2360 = vmatmul.mubr.f32.gmra.mrb[0].mxu0 %v2020
      %v2361 = vpop.f32.mrb[0].mxu0
      %v2362 = vadd.f32 %v2058, %v2361
      %v2363 = vpop.f32.mrb[0].mxu0
      %2364 = vmatprep.mubr.f32.mxu0 %v2145
      %2365 = vmatmul.mubr.f32.gmra.mrb[0].mxu0 %v2022
      %v2366 = vpop.f32.mrb[0].mxu0
      %v2367 = vadd.f32 %v2058, %v2366
      %v2368 = vpop.f32.mrb[0].mxu0
      %2369 = vmatprep.mubr.f32.mxu0 %v2148
      %2370 = vmatmul.mubr.f32.gmra.mrb[0].mxu0 %v2024
      %v2371 = vpop.f32.mrb[0].mxu0
      %v2372 = vadd.f32 %v2058, %v2371
      %v2373 = vpop.f32.mrb[0].mxu0
      %2374 = vmatprep.mubr.f32.mxu0 %v2151
      %2375 = vmatmul.mubr.f32.gmra.mrb[0].mxu0 %v2026
      %v2376 = vpop.f32.mrb[0].mxu0
      %v2377 = vadd.f32 %v2058, %v2376
      %v2378 = vpop.f32.mrb[0].mxu0
      %2379 = vmatprep.mubr.f32.mxu0 %v2154
      %2380 = vmatmul.mubr.f32.gmra.mrb[0].mxu0 %v2028
      %v2381 = vpop.f32.mrb[0].mxu0
      %v2382 = vadd.f32 %v2058, %v2381
      %v2383 = vpop.f32.mrb[0].mxu0
      %2384 = vdwg.mxu0
      %vm2385 = vcmp.ge.f32.partialorder %v2227, 0.0
      %vm2386 = vcmp.ge.f32.partialorder %v2232, 0.0
      %vm2387 = vcmp.ge.f32.partialorder %v2237, 0.0
      %vm2388 = vcmp.ge.f32.partialorder %v2242, 0.0
      %vm2389 = vcmp.ge.f32.partialorder %v2247, 0.0
      %vm2390 = vcmp.ge.f32.partialorder %v2252, 0.0
      %vm2391 = vcmp.ge.f32.partialorder %v2257, 0.0
      %vm2392 = vcmp.ge.f32.partialorder %v2262, 0.0
      %vm2393 = vcmp.ge.f32.partialorder %v2267, 0.0
      %vm2394 = vcmp.ge.f32.partialorder %v2272, 0.0
      %vm2395 = vcmp.ge.f32.partialorder %v2277, 0.0
      %vm2396 = vcmp.ge.f32.partialorder %v2282, 0.0
      %vm2397 = vcmp.ge.f32.partialorder %v2287, 0.0
      %vm2398 = vcmp.ge.f32.partialorder %v2292, 0.0
      %vm2399 = vcmp.ge.f32.partialorder %v2297, 0.0
      %vm2400 = vcmp.ge.f32.partialorder %v2302, 0.0
      %vm2401 = vcmp.ge.f32.partialorder %v2307, 0.0
      %vm2402 = vcmp.ge.f32.partialorder %v2312, 0.0
      %vm2403 = vcmp.ge.f32.partialorder %v2317, 0.0
      %vm2404 = vcmp.ge.f32.partialorder %v2322, 0.0
      %vm2405 = vcmp.ge.f32.partialorder %v2327, 0.0
      %vm2406 = vcmp.ge.f32.partialorder %v2332, 0.0
      %vm2407 = vcmp.ge.f32.partialorder %v2337, 0.0
      %vm2408 = vcmp.ge.f32.partialorder %v2342, 0.0
      %vm2409 = vcmp.ge.f32.partialorder %v2347, 0.0
      %vm2410 = vcmp.ge.f32.partialorder %v2352, 0.0
      %vm2411 = vcmp.ge.f32.partialorder %v2357, 0.0
      %vm2412 = vcmp.ge.f32.partialorder %v2362, 0.0
      %vm2413 = vcmp.ge.f32.partialorder %v2367, 0.0
      %vm2414 = vcmp.ge.f32.partialorder %v2372, 0.0
      %vm2415 = vcmp.ge.f32.partialorder %v2377, 0.0
      %vm2416 = vcmp.ge.f32.partialorder %v2382, 0.0
      %v2417 = vmul.f32 %v2227, 0.2
      %v2418 = vmul.f32 %v2232, 0.2
      %v2419 = vmul.f32 %v2237, 0.2
      %v2420 = vmul.f32 %v2242, 0.2
      %v2421 = vmul.f32 %v2247, 0.2
      %v2422 = vmul.f32 %v2252, 0.2
      %v2423 = vmul.f32 %v2257, 0.2
      %v2424 = vmul.f32 %v2262, 0.2
      %v2425 = vmul.f32 %v2267, 0.2
      %v2426 = vmul.f32 %v2272, 0.2
      %v2427 = vmul.f32 %v2277, 0.2
      %v2428 = vmul.f32 %v2282, 0.2
      %v2429 = vmul.f32 %v2287, 0.2
      %v2430 = vmul.f32 %v2292, 0.2
      %v2431 = vmul.f32 %v2297, 0.2
      %v2432 = vmul.f32 %v2302, 0.2
      %v2433 = vmul.f32 %v2307, 0.2
      %v2434 = vmul.f32 %v2312, 0.2
      %v2435 = vmul.f32 %v2317, 0.2
      %v2436 = vmul.f32 %v2322, 0.2
      %v2437 = vmul.f32 %v2327, 0.2
      %v2438 = vmul.f32 %v2332, 0.2
      %v2439 = vmul.f32 %v2337, 0.2
      %v2440 = vmul.f32 %v2342, 0.2
      %v2441 = vmul.f32 %v2347, 0.2
      %v2442 = vmul.f32 %v2352, 0.2
      %v2443 = vmul.f32 %v2357, 0.2
      %v2444 = vmul.f32 %v2362, 0.2
      %v2445 = vmul.f32 %v2367, 0.2
      %v2446 = vmul.f32 %v2372, 0.2
      %v2447 = vmul.f32 %v2377, 0.2
      %v2448 = vmul.f32 %v2382, 0.2
      %v2449 = vsel %vm2385, %v2227, %v2417
      %v2450 = vsel %vm2386, %v2232, %v2418
      %v2451 = vsel %vm2387, %v2237, %v2419
      %v2452 = vsel %vm2388, %v2242, %v2420
      %v2453 = vsel %vm2389, %v2247, %v2421
      %v2454 = vsel %vm2390, %v2252, %v2422
      %v2455 = vsel %vm2391, %v2257, %v2423
      %v2456 = vsel %vm2392, %v2262, %v2424
      %v2457 = vsel %vm2393, %v2267, %v2425
      %v2458 = vsel %vm2394, %v2272, %v2426
      %v2459 = vsel %vm2395, %v2277, %v2427
      %v2460 = vsel %vm2396, %v2282, %v2428
      %v2461 = vsel %vm2397, %v2287, %v2429
      %v2462 = vsel %vm2398, %v2292, %v2430
      %v2463 = vsel %vm2399, %v2297, %v2431
      %v2464 = vsel %vm2400, %v2302, %v2432
      %v2465 = vsel %vm2401, %v2307, %v2433
      %v2466 = vsel %vm2402, %v2312, %v2434
      %v2467 = vsel %vm2403, %v2317, %v2435
      %v2468 = vsel %vm2404, %v2322, %v2436
      %v2469 = vsel %vm2405, %v2327, %v2437
      %v2470 = vsel %vm2406, %v2332, %v2438
      %v2471 = vsel %vm2407, %v2337, %v2439
      %v2472 = vsel %vm2408, %v2342, %v2440
      %v2473 = vsel %vm2409, %v2347, %v2441
      %v2474 = vsel %vm2410, %v2352, %v2442
      %v2475 = vsel %vm2411, %v2357, %v2443
      %v2476 = vsel %vm2412, %v2362, %v2444
      %v2477 = vsel %vm2413, %v2367, %v2445
      %v2478 = vsel %vm2414, %v2372, %v2446
      %v2479 = vsel %vm2415, %v2377, %v2447
      %v2480 = vsel %vm2416, %v2382, %v2448
      %2481 = vst.msk [vmem:[%s324 + $0x1] sm:$0xff] %vm171, %v2449
      %2482 = vst.msk [vmem:[%s324 + $0x9] sm:$0xff] %vm171, %v2450
      %2483 = vst.msk [vmem:[%s324 + $0x19] sm:$0xff] %vm171, %v2451
      %2484 = vst.msk [vmem:[%s324 + $0x21] sm:$0xff] %vm171, %v2452
      %2485 = vst.msk [vmem:[%s324 + $0x31] sm:$0xff] %vm171, %v2453
      %2486 = vst.msk [vmem:[%s324 + $0x39] sm:$0xff] %vm171, %v2454
      %2487 = vst.msk [vmem:[%s324 + $0x49] sm:$0xff] %vm171, %v2455
      %2488 = vst.msk [vmem:[%s324 + $0x51] sm:$0xff] %vm171, %v2456
      %2489 = vst.msk [vmem:[%s324 + $0x61] sm:$0xff] %vm171, %v2457
      %2490 = vst.msk [vmem:[%s324 + $0x69] sm:$0xff] %vm171, %v2458
      %2491 = vst.msk [vmem:[%s324 + $0x79] sm:$0xff] %vm171, %v2459
      %2492 = vst.msk [vmem:[%s324 + $0x81] sm:$0xff] %vm171, %v2460
      %2493 = vst.msk [vmem:[%s324 + $0x91] sm:$0xff] %vm171, %v2461
      %2494 = vst.msk [vmem:[%s324 + $0x99] sm:$0xff] %vm171, %v2462
      %2495 = vst.msk [vmem:[%s324 + $0xa9] sm:$0xff] %vm171, %v2463
      %2496 = vst.msk [vmem:[%s324 + $0xb1] sm:$0xff] %vm171, %v2464
      %2497 = vst.msk [vmem:[%s324 + $0xc1] sm:$0xff] %vm171, %v2465
      %2498 = vst.msk [vmem:[%s324 + $0xc9] sm:$0xff] %vm171, %v2466
      %2499 = vst.msk [vmem:[%s324 + $0xd9] sm:$0xff] %vm171, %v2467
      %2500 = vst.msk [vmem:[%s324 + $0xe1] sm:$0xff] %vm171, %v2468
      %2501 = vst.msk [vmem:[%s324 + $0xf1] sm:$0xff] %vm171, %v2469
      %2502 = vst.msk [vmem:[%s324 + $0xf9] sm:$0xff] %vm171, %v2470
      %2503 = vst.msk [vmem:[%s324 + $0x109] sm:$0xff] %vm171, %v2471
      %2504 = vst.msk [vmem:[%s324 + $0x111] sm:$0xff] %vm171, %v2472
      %2505 = vst.msk [vmem:[%s324 + $0x121] sm:$0xff] %vm171, %v2473
      %2506 = vst.msk [vmem:[%s324 + $0x129] sm:$0xff] %vm171, %v2474
      %2507 = vst.msk [vmem:[%s324 + $0x139] sm:$0xff] %vm171, %v2475
      %2508 = vst.msk [vmem:[%s324 + $0x141] sm:$0xff] %vm171, %v2476
      %2509 = vst.msk [vmem:[%s324 + $0x151] sm:$0xff] %vm171, %v2477
      %2510 = vst.msk [vmem:[%s324 + $0x159] sm:$0xff] %vm171, %v2478
      %2511 = vst.msk [vmem:[%s324 + $0x169] sm:$0xff] %vm171, %v2479
      %2512 = vst.msk [vmem:[%s324 + $0x171] sm:$0xff] %vm171, %v2480
      %v2513 = vld [vmem:[#allocation2] sm:$0xff]
      %v2514 = vld [vmem:[#allocation2 + $0x8] sm:$0xff]
      %v2515 = vld [vmem:[#allocation2 + $0x18] sm:$0xff]
      %v2516 = vld [vmem:[#allocation2 + $0x20] sm:$0xff]
      %v2517 = vld [vmem:[#allocation2 + $0x30] sm:$0xff]
      %v2518 = vld [vmem:[#allocation2 + $0x38] sm:$0xff]
      %v2519 = vld [vmem:[#allocation2 + $0x48] sm:$0xff]
      %v2520 = vld [vmem:[#allocation2 + $0x50] sm:$0xff]
      %v2521 = vld [vmem:[#allocation2 + $0x60] sm:$0xff]
      %v2522 = vld [vmem:[#allocation2 + $0x68] sm:$0xff]
      %v2523 = vld [vmem:[#allocation2 + $0x78] sm:$0xff]
      %v2524 = vld [vmem:[#allocation2 + $0x80] sm:$0xff]
      %v2525 = vld [vmem:[#allocation2 + $0x90] sm:$0xff]
      %v2526 = vld [vmem:[#allocation2 + $0x98] sm:$0xff]
      %v2527 = vld [vmem:[#allocation2 + $0xa8] sm:$0xff]
      %v2528 = vld [vmem:[#allocation2 + $0xb0] sm:$0xff]
      %v2529 = vld [vmem:[#allocation2 + $0xc0] sm:$0xff]
      %v2530 = vld [vmem:[#allocation2 + $0xc8] sm:$0xff]
      %v2531 = vld [vmem:[#allocation2 + $0xd8] sm:$0xff]
      %v2532 = vld [vmem:[#allocation2 + $0xe0] sm:$0xff]
      %v2533 = vld [vmem:[#allocation2 + $0xf0] sm:$0xff]
      %v2534 = vld [vmem:[#allocation2 + $0xf8] sm:$0xff]
      %v2535 = vld [vmem:[#allocation2 + $0x108] sm:$0xff]
      %v2536 = vld [vmem:[#allocation2 + $0x110] sm:$0xff]
      %v2537 = vld [vmem:[#allocation2 + $0x120] sm:$0xff]
      %v2538 = vld [vmem:[#allocation2 + $0x128] sm:$0xff]
      %v2539 = vld [vmem:[#allocation2 + $0x138] sm:$0xff]
      %v2540 = vld [vmem:[#allocation2 + $0x140] sm:$0xff]
      %v2541 = vld [vmem:[#allocation2 + $0x150] sm:$0xff]
      %v2542 = vld [vmem:[#allocation2 + $0x158] sm:$0xff]
      %v2543 = vld [vmem:[#allocation2 + $0x168] sm:$0xff]
      %v2544 = vld [vmem:[#allocation2 + $0x170] sm:$0xff]
      %2577 = vrot.lane.b32.xlu0 %v2513, 36
      %v2578 = vpop.permute.xlu0 %2577
      %2579 = vrot.lane.b32.xlu0 %v2514, 36
      %v2580 = vpop.permute.xlu0 %2579
      %2581 = vrot.lane.b32.xlu0 %v2515, 36
      %v2582 = vpop.permute.xlu0 %2581
      %2583 = vrot.lane.b32.xlu0 %v2516, 36
      %v2584 = vpop.permute.xlu0 %2583
      %2585 = vrot.lane.b32.xlu0 %v2517, 36
      %v2586 = vpop.permute.xlu0 %2585
      %2587 = vrot.lane.b32.xlu0 %v2518, 36
      %v2588 = vpop.permute.xlu0 %2587
      %2589 = vrot.lane.b32.xlu0 %v2519, 36
      %v2590 = vpop.permute.xlu0 %2589
      %2591 = vrot.lane.b32.xlu0 %v2520, 36
      %v2592 = vpop.permute.xlu0 %2591
      %2593 = vrot.lane.b32.xlu0 %v2521, 36
      %v2594 = vpop.permute.xlu0 %2593
      %2595 = vrot.lane.b32.xlu0 %v2522, 36
      %v2596 = vpop.permute.xlu0 %2595
      %2597 = vrot.lane.b32.xlu0 %v2523, 36
      %v2598 = vpop.permute.xlu0 %2597
      %2599 = vrot.lane.b32.xlu0 %v2524, 36
      %v2600 = vpop.permute.xlu0 %2599
      %2601 = vrot.lane.b32.xlu0 %v2525, 36
      %v2602 = vpop.permute.xlu0 %2601
      %2603 = vrot.lane.b32.xlu0 %v2526, 36
      %v2604 = vpop.permute.xlu0 %2603
      %2605 = vrot.lane.b32.xlu0 %v2527, 36
      %v2606 = vpop.permute.xlu0 %2605
      %2607 = vrot.lane.b32.xlu0 %v2528, 36
      %v2608 = vpop.permute.xlu0 %2607
      %2609 = vrot.lane.b32.xlu0 %v2529, 36
      %v2610 = vpop.permute.xlu0 %2609
      %2611 = vrot.lane.b32.xlu0 %v2530, 36
      %v2612 = vpop.permute.xlu0 %2611
      %2613 = vrot.lane.b32.xlu0 %v2531, 36
      %v2614 = vpop.permute.xlu0 %2613
      %2615 = vrot.lane.b32.xlu0 %v2532, 36
      %v2616 = vpop.permute.xlu0 %2615
      %2617 = vrot.lane.b32.xlu0 %v2533, 36
      %v2618 = vpop.permute.xlu0 %2617
      %2619 = vrot.lane.b32.xlu0 %v2534, 36
      %v2620 = vpop.permute.xlu0 %2619
      %2621 = vrot.lane.b32.xlu0 %v2535, 36
      %v2622 = vpop.permute.xlu0 %2621
      %2623 = vrot.lane.b32.xlu0 %v2536, 36
      %v2624 = vpop.permute.xlu0 %2623
      %2625 = vrot.lane.b32.xlu0 %v2537, 36
      %v2626 = vpop.permute.xlu0 %2625
      %2627 = vrot.lane.b32.xlu0 %v2538, 36
      %v2628 = vpop.permute.xlu0 %2627
      %2629 = vrot.lane.b32.xlu0 %v2539, 36
      %v2630 = vpop.permute.xlu0 %2629
      %2631 = vrot.lane.b32.xlu0 %v2540, 36
      %v2632 = vpop.permute.xlu0 %2631
      %2633 = vrot.lane.b32.xlu0 %v2541, 36
      %v2634 = vpop.permute.xlu0 %2633
      %2635 = vrot.lane.b32.xlu0 %v2542, 36
      %v2636 = vpop.permute.xlu0 %2635
      %2637 = vrot.lane.b32.xlu0 %v2543, 36
      %v2638 = vpop.permute.xlu0 %2637
      %2639 = vrot.lane.b32.xlu0 %v2544, 36
      %v2640 = vpop.permute.xlu0 %2639
      %vm2673 = vcmask 326944
      %2674 = vst.msk [vmem:[#allocation3] sm:$0xff] %vm2673, %v2578
      %2675 = vst.msk [vmem:[#allocation3 + $0x10] sm:$0xff] %vm2673, %v2580
      %2676 = vst.msk [vmem:[#allocation3 + $0x20] sm:$0xff] %vm2673, %v2582
      %2677 = vst.msk [vmem:[#allocation3 + $0x30] sm:$0xff] %vm2673, %v2584
      %2678 = vst.msk [vmem:[#allocation3 + $0x40] sm:$0xff] %vm2673, %v2586
      %2679 = vst.msk [vmem:[#allocation3 + $0x50] sm:$0xff] %vm2673, %v2588
      %2680 = vst.msk [vmem:[#allocation3 + $0x60] sm:$0xff] %vm2673, %v2590
      %2681 = vst.msk [vmem:[#allocation3 + $0x70] sm:$0xff] %vm2673, %v2592
      %2682 = vst.msk [vmem:[#allocation3 + $0x80] sm:$0xff] %vm2673, %v2594
      %2683 = vst.msk [vmem:[#allocation3 + $0x90] sm:$0xff] %vm2673, %v2596
      %2684 = vst.msk [vmem:[#allocation3 + $0xa0] sm:$0xff] %vm2673, %v2598
      %2685 = vst.msk [vmem:[#allocation3 + $0xb0] sm:$0xff] %vm2673, %v2600
      %2686 = vst.msk [vmem:[#allocation3 + $0xc0] sm:$0xff] %vm2673, %v2602
      %2687 = vst.msk [vmem:[#allocation3 + $0xd0] sm:$0xff] %vm2673, %v2604
      %2688 = vst.msk [vmem:[#allocation3 + $0xe0] sm:$0xff] %vm2673, %v2606
      %2689 = vst.msk [vmem:[#allocation3 + $0xf0] sm:$0xff] %vm2673, %v2608
      %2690 = vst.msk [vmem:[#allocation3 + $0x100] sm:$0xff] %vm2673, %v2610
      %2691 = vst.msk [vmem:[#allocation3 + $0x110] sm:$0xff] %vm2673, %v2612
      %2692 = vst.msk [vmem:[#allocation3 + $0x120] sm:$0xff] %vm2673, %v2614
      %2693 = vst.msk [vmem:[#allocation3 + $0x130] sm:$0xff] %vm2673, %v2616
      %2694 = vst.msk [vmem:[#allocation3 + $0x140] sm:$0xff] %vm2673, %v2618
      %2695 = vst.msk [vmem:[#allocation3 + $0x150] sm:$0xff] %vm2673, %v2620
      %2696 = vst.msk [vmem:[#allocation3 + $0x160] sm:$0xff] %vm2673, %v2622
      %2697 = vst.msk [vmem:[#allocation3 + $0x170] sm:$0xff] %vm2673, %v2624
      %2698 = vst.msk [vmem:[#allocation3 + $0x180] sm:$0xff] %vm2673, %v2626
      %2699 = vst.msk [vmem:[#allocation3 + $0x190] sm:$0xff] %vm2673, %v2628
      %2700 = vst.msk [vmem:[#allocation3 + $0x1a0] sm:$0xff] %vm2673, %v2630
      %2701 = vst.msk [vmem:[#allocation3 + $0x1b0] sm:$0xff] %vm2673, %v2632
      %2702 = vst.msk [vmem:[#allocation3 + $0x1c0] sm:$0xff] %vm2673, %v2634
      %2703 = vst.msk [vmem:[#allocation3 + $0x1d0] sm:$0xff] %vm2673, %v2636
      %2704 = vst.msk [vmem:[#allocation3 + $0x1e0] sm:$0xff] %vm2673, %v2638
      %2705 = vst.msk [vmem:[#allocation3 + $0x1f0] sm:$0xff] %vm2673, %v2640
      %v2706 = vld [vmem:[#allocation2 + $0x1] sm:$0xff]
      %v2707 = vld [vmem:[#allocation2 + $0x9] sm:$0xff]
      %v2708 = vld [vmem:[#allocation2 + $0x19] sm:$0xff]
      %v2709 = vld [vmem:[#allocation2 + $0x21] sm:$0xff]
      %v2710 = vld [vmem:[#allocation2 + $0x31] sm:$0xff]
      %v2711 = vld [vmem:[#allocation2 + $0x39] sm:$0xff]
      %v2712 = vld [vmem:[#allocation2 + $0x49] sm:$0xff]
      %v2713 = vld [vmem:[#allocation2 + $0x51] sm:$0xff]
      %v2714 = vld [vmem:[#allocation2 + $0x61] sm:$0xff]
      %v2715 = vld [vmem:[#allocation2 + $0x69] sm:$0xff]
      %v2716 = vld [vmem:[#allocation2 + $0x79] sm:$0xff]
      %v2717 = vld [vmem:[#allocation2 + $0x81] sm:$0xff]
      %v2718 = vld [vmem:[#allocation2 + $0x91] sm:$0xff]
      %v2719 = vld [vmem:[#allocation2 + $0x99] sm:$0xff]
      %v2720 = vld [vmem:[#allocation2 + $0xa9] sm:$0xff]
      %v2721 = vld [vmem:[#allocation2 + $0xb1] sm:$0xff]
      %v2722 = vld [vmem:[#allocation2 + $0xc1] sm:$0xff]
      %v2723 = vld [vmem:[#allocation2 + $0xc9] sm:$0xff]
      %v2724 = vld [vmem:[#allocation2 + $0xd9] sm:$0xff]
      %v2725 = vld [vmem:[#allocation2 + $0xe1] sm:$0xff]
      %v2726 = vld [vmem:[#allocation2 + $0xf1] sm:$0xff]
      %v2727 = vld [vmem:[#allocation2 + $0xf9] sm:$0xff]
      %v2728 = vld [vmem:[#allocation2 + $0x109] sm:$0xff]
      %v2729 = vld [vmem:[#allocation2 + $0x111] sm:$0xff]
      %v2730 = vld [vmem:[#allocation2 + $0x121] sm:$0xff]
      %v2731 = vld [vmem:[#allocation2 + $0x129] sm:$0xff]
      %v2732 = vld [vmem:[#allocation2 + $0x139] sm:$0xff]
      %v2733 = vld [vmem:[#allocation2 + $0x141] sm:$0xff]
      %v2734 = vld [vmem:[#allocation2 + $0x151] sm:$0xff]
      %v2735 = vld [vmem:[#allocation2 + $0x159] sm:$0xff]
      %v2736 = vld [vmem:[#allocation2 + $0x169] sm:$0xff]
      %v2737 = vld [vmem:[#allocation2 + $0x171] sm:$0xff]
      %2770 = vrot.lane.b32.xlu0 %v2706, 40
      %v2771 = vpop.permute.xlu0 %2770
      %2772 = vrot.lane.b32.xlu0 %v2707, 40
      %v2773 = vpop.permute.xlu0 %2772
      %2774 = vrot.lane.b32.xlu0 %v2708, 40
      %v2775 = vpop.permute.xlu0 %2774
      %2776 = vrot.lane.b32.xlu0 %v2709, 40
      %v2777 = vpop.permute.xlu0 %2776
      %2778 = vrot.lane.b32.xlu0 %v2710, 40
      %v2779 = vpop.permute.xlu0 %2778
      %2780 = vrot.lane.b32.xlu0 %v2711, 40
      %v2781 = vpop.permute.xlu0 %2780
      %2782 = vrot.lane.b32.xlu0 %v2712, 40
      %v2783 = vpop.permute.xlu0 %2782
      %2784 = vrot.lane.b32.xlu0 %v2713, 40
      %v2785 = vpop.permute.xlu0 %2784
      %2786 = vrot.lane.b32.xlu0 %v2714, 40
      %v2787 = vpop.permute.xlu0 %2786
      %2788 = vrot.lane.b32.xlu0 %v2715, 40
      %v2789 = vpop.permute.xlu0 %2788
      %2790 = vrot.lane.b32.xlu0 %v2716, 40
      %v2791 = vpop.permute.xlu0 %2790
      %2792 = vrot.lane.b32.xlu0 %v2717, 40
      %v2793 = vpop.permute.xlu0 %2792
      %2794 = vrot.lane.b32.xlu0 %v2718, 40
      %v2795 = vpop.permute.xlu0 %2794
      %2796 = vrot.lane.b32.xlu0 %v2719, 40
      %v2797 = vpop.permute.xlu0 %2796
      %2798 = vrot.lane.b32.xlu0 %v2720, 40
      %v2799 = vpop.permute.xlu0 %2798
      %2800 = vrot.lane.b32.xlu0 %v2721, 40
      %v2801 = vpop.permute.xlu0 %2800
      %2802 = vrot.lane.b32.xlu0 %v2722, 40
      %v2803 = vpop.permute.xlu0 %2802
      %2804 = vrot.lane.b32.xlu0 %v2723, 40
      %v2805 = vpop.permute.xlu0 %2804
      %2806 = vrot.lane.b32.xlu0 %v2724, 40
      %v2807 = vpop.permute.xlu0 %2806
      %2808 = vrot.lane.b32.xlu0 %v2725, 40
      %v2809 = vpop.permute.xlu0 %2808
      %2810 = vrot.lane.b32.xlu0 %v2726, 40
      %v2811 = vpop.permute.xlu0 %2810
      %2812 = vrot.lane.b32.xlu0 %v2727, 40
      %v2813 = vpop.permute.xlu0 %2812
      %2814 = vrot.lane.b32.xlu0 %v2728, 40
      %v2815 = vpop.permute.xlu0 %2814
      %2816 = vrot.lane.b32.xlu0 %v2729, 40
      %v2817 = vpop.permute.xlu0 %2816
      %2818 = vrot.lane.b32.xlu0 %v2730, 40
      %v2819 = vpop.permute.xlu0 %2818
      %2820 = vrot.lane.b32.xlu0 %v2731, 40
      %v2821 = vpop.permute.xlu0 %2820
      %2822 = vrot.lane.b32.xlu0 %v2732, 40
      %v2823 = vpop.permute.xlu0 %2822
      %2824 = vrot.lane.b32.xlu0 %v2733, 40
      %v2825 = vpop.permute.xlu0 %2824
      %2826 = vrot.lane.b32.xlu0 %v2734, 40
      %v2827 = vpop.permute.xlu0 %2826
      %2828 = vrot.lane.b32.xlu0 %v2735, 40
      %v2829 = vpop.permute.xlu0 %2828
      %2830 = vrot.lane.b32.xlu0 %v2736, 40
      %v2831 = vpop.permute.xlu0 %2830
      %2832 = vrot.lane.b32.xlu0 %v2737, 40
      %v2833 = vpop.permute.xlu0 %2832
      %vm2866 = vcmask 359744
      %2867 = vst.msk [vmem:[#allocation3] sm:$0xff] %vm2866, %v2771
      %2868 = vst.msk [vmem:[#allocation3 + $0x10] sm:$0xff] %vm2866, %v2773
      %2869 = vst.msk [vmem:[#allocation3 + $0x20] sm:$0xff] %vm2866, %v2775
      %2870 = vst.msk [vmem:[#allocation3 + $0x30] sm:$0xff] %vm2866, %v2777
      %2871 = vst.msk [vmem:[#allocation3 + $0x40] sm:$0xff] %vm2866, %v2779
      %2872 = vst.msk [vmem:[#allocation3 + $0x50] sm:$0xff] %vm2866, %v2781
      %2873 = vst.msk [vmem:[#allocation3 + $0x60] sm:$0xff] %vm2866, %v2783
      %2874 = vst.msk [vmem:[#allocation3 + $0x70] sm:$0xff] %vm2866, %v2785
      %2875 = vst.msk [vmem:[#allocation3 + $0x80] sm:$0xff] %vm2866, %v2787
      %2876 = vst.msk [vmem:[#allocation3 + $0x90] sm:$0xff] %vm2866, %v2789
      %2877 = vst.msk [vmem:[#allocation3 + $0xa0] sm:$0xff] %vm2866, %v2791
      %2878 = vst.msk [vmem:[#allocation3 + $0xb0] sm:$0xff] %vm2866, %v2793
      %2879 = vst.msk [vmem:[#allocation3 + $0xc0] sm:$0xff] %vm2866, %v2795
      %2880 = vst.msk [vmem:[#allocation3 + $0xd0] sm:$0xff] %vm2866, %v2797
      %2881 = vst.msk [vmem:[#allocation3 + $0xe0] sm:$0xff] %vm2866, %v2799
      %2882 = vst.msk [vmem:[#allocation3 + $0xf0] sm:$0xff] %vm2866, %v2801
      %2883 = vst.msk [vmem:[#allocation3 + $0x100] sm:$0xff] %vm2866, %v2803
      %2884 = vst.msk [vmem:[#allocation3 + $0x110] sm:$0xff] %vm2866, %v2805
      %2885 = vst.msk [vmem:[#allocation3 + $0x120] sm:$0xff] %vm2866, %v2807
      %2886 = vst.msk [vmem:[#allocation3 + $0x130] sm:$0xff] %vm2866, %v2809
      %2887 = vst.msk [vmem:[#allocation3 + $0x140] sm:$0xff] %vm2866, %v2811
      %2888 = vst.msk [vmem:[#allocation3 + $0x150] sm:$0xff] %vm2866, %v2813
      %2889 = vst.msk [vmem:[#allocation3 + $0x160] sm:$0xff] %vm2866, %v2815
      %2890 = vst.msk [vmem:[#allocation3 + $0x170] sm:$0xff] %vm2866, %v2817
      %2891 = vst.msk [vmem:[#allocation3 + $0x180] sm:$0xff] %vm2866, %v2819
      %2892 = vst.msk [vmem:[#allocation3 + $0x190] sm:$0xff] %vm2866, %v2821
      %2893 = vst.msk [vmem:[#allocation3 + $0x1a0] sm:$0xff] %vm2866, %v2823
      %2894 = vst.msk [vmem:[#allocation3 + $0x1b0] sm:$0xff] %vm2866, %v2825
      %2895 = vst.msk [vmem:[#allocation3 + $0x1c0] sm:$0xff] %vm2866, %v2827
      %2896 = vst.msk [vmem:[#allocation3 + $0x1d0] sm:$0xff] %vm2866, %v2829
      %2897 = vst.msk [vmem:[#allocation3 + $0x1e0] sm:$0xff] %vm2866, %v2831
      %2898 = vst.msk [vmem:[#allocation3 + $0x1f0] sm:$0xff] %vm2866, %v2833
      %v2899 = vld [vmem:[#allocation2 + $0x2] sm:$0xff]
      %v2900 = vld [vmem:[#allocation2 + $0xa] sm:$0xff]
      %v2901 = vld [vmem:[#allocation2 + $0x1a] sm:$0xff]
      %v2902 = vld [vmem:[#allocation2 + $0x22] sm:$0xff]
      %v2903 = vld [vmem:[#allocation2 + $0x32] sm:$0xff]
      %v2904 = vld [vmem:[#allocation2 + $0x3a] sm:$0xff]
      %v2905 = vld [vmem:[#allocation2 + $0x4a] sm:$0xff]
      %v2906 = vld [vmem:[#allocation2 + $0x52] sm:$0xff]
      %v2907 = vld [vmem:[#allocation2 + $0x62] sm:$0xff]
      %v2908 = vld [vmem:[#allocation2 + $0x6a] sm:$0xff]
      %v2909 = vld [vmem:[#allocation2 + $0x7a] sm:$0xff]
      %v2910 = vld [vmem:[#allocation2 + $0x82] sm:$0xff]
      %v2911 = vld [vmem:[#allocation2 + $0x92] sm:$0xff]
      %v2912 = vld [vmem:[#allocation2 + $0x9a] sm:$0xff]
      %v2913 = vld [vmem:[#allocation2 + $0xaa] sm:$0xff]
      %v2914 = vld [vmem:[#allocation2 + $0xb2] sm:$0xff]
      %v2915 = vld [vmem:[#allocation2 + $0xc2] sm:$0xff]
      %v2916 = vld [vmem:[#allocation2 + $0xca] sm:$0xff]
      %v2917 = vld [vmem:[#allocation2 + $0xda] sm:$0xff]
      %v2918 = vld [vmem:[#allocation2 + $0xe2] sm:$0xff]
      %v2919 = vld [vmem:[#allocation2 + $0xf2] sm:$0xff]
      %v2920 = vld [vmem:[#allocation2 + $0xfa] sm:$0xff]
      %v2921 = vld [vmem:[#allocation2 + $0x10a] sm:$0xff]
      %v2922 = vld [vmem:[#allocation2 + $0x112] sm:$0xff]
      %v2923 = vld [vmem:[#allocation2 + $0x122] sm:$0xff]
      %v2924 = vld [vmem:[#allocation2 + $0x12a] sm:$0xff]
      %v2925 = vld [vmem:[#allocation2 + $0x13a] sm:$0xff]
      %v2926 = vld [vmem:[#allocation2 + $0x142] sm:$0xff]
      %v2927 = vld [vmem:[#allocation2 + $0x152] sm:$0xff]
      %v2928 = vld [vmem:[#allocation2 + $0x15a] sm:$0xff]
      %v2929 = vld [vmem:[#allocation2 + $0x16a] sm:$0xff]
      %v2930 = vld [vmem:[#allocation2 + $0x172] sm:$0xff]
      %2963 = vrot.lane.b32.xlu0 %v2899, 44
      %v2964 = vpop.permute.xlu0 %2963
      %2965 = vrot.lane.b32.xlu0 %v2900, 44
      %v2966 = vpop.permute.xlu0 %2965
      %2967 = vrot.lane.b32.xlu0 %v2901, 44
      %v2968 = vpop.permute.xlu0 %2967
      %2969 = vrot.lane.b32.xlu0 %v2902, 44
      %v2970 = vpop.permute.xlu0 %2969
      %2971 = vrot.lane.b32.xlu0 %v2903, 44
      %v2972 = vpop.permute.xlu0 %2971
      %2973 = vrot.lane.b32.xlu0 %v2904, 44
      %v2974 = vpop.permute.xlu0 %2973
      %2975 = vrot.lane.b32.xlu0 %v2905, 44
      %v2976 = vpop.permute.xlu0 %2975
      %2977 = vrot.lane.b32.xlu0 %v2906, 44
      %v2978 = vpop.permute.xlu0 %2977
      %2979 = vrot.lane.b32.xlu0 %v2907, 44
      %v2980 = vpop.permute.xlu0 %2979
      %2981 = vrot.lane.b32.xlu0 %v2908, 44
      %v2982 = vpop.permute.xlu0 %2981
      %2983 = vrot.lane.b32.xlu0 %v2909, 44
      %v2984 = vpop.permute.xlu0 %2983
      %2985 = vrot.lane.b32.xlu0 %v2910, 44
      %v2986 = vpop.permute.xlu0 %2985
      %2987 = vrot.lane.b32.xlu0 %v2911, 44
      %v2988 = vpop.permute.xlu0 %2987
      %2989 = vrot.lane.b32.xlu0 %v2912, 44
      %v2990 = vpop.permute.xlu0 %2989
      %2991 = vrot.lane.b32.xlu0 %v2913, 44
      %v2992 = vpop.permute.xlu0 %2991
      %2993 = vrot.lane.b32.xlu0 %v2914, 44
      %v2994 = vpop.permute.xlu0 %2993
      %2995 = vrot.lane.b32.xlu0 %v2915, 44
      %v2996 = vpop.permute.xlu0 %2995
      %2997 = vrot.lane.b32.xlu0 %v2916, 44
      %v2998 = vpop.permute.xlu0 %2997
      %2999 = vrot.lane.b32.xlu0 %v2917, 44
      %v3000 = vpop.permute.xlu0 %2999
      %3001 = vrot.lane.b32.xlu0 %v2918, 44
      %v3002 = vpop.permute.xlu0 %3001
      %3003 = vrot.lane.b32.xlu0 %v2919, 44
      %v3004 = vpop.permute.xlu0 %3003
      %3005 = vrot.lane.b32.xlu0 %v2920, 44
      %v3006 = vpop.permute.xlu0 %3005
      %3007 = vrot.lane.b32.xlu0 %v2921, 44
      %v3008 = vpop.permute.xlu0 %3007
      %3009 = vrot.lane.b32.xlu0 %v2922, 44
      %v3010 = vpop.permute.xlu0 %3009
      %3011 = vrot.lane.b32.xlu0 %v2923, 44
      %v3012 = vpop.permute.xlu0 %3011
      %3013 = vrot.lane.b32.xlu0 %v2924, 44
      %v3014 = vpop.permute.xlu0 %3013
      %3015 = vrot.lane.b32.xlu0 %v2925, 44
      %v3016 = vpop.permute.xlu0 %3015
      %3017 = vrot.lane.b32.xlu0 %v2926, 44
      %v3018 = vpop.permute.xlu0 %3017
      %3019 = vrot.lane.b32.xlu0 %v2927, 44
      %v3020 = vpop.permute.xlu0 %3019
      %3021 = vrot.lane.b32.xlu0 %v2928, 44
      %v3022 = vpop.permute.xlu0 %3021
      %3023 = vrot.lane.b32.xlu0 %v2929, 44
      %v3024 = vpop.permute.xlu0 %3023
      %3025 = vrot.lane.b32.xlu0 %v2930, 44
      %v3026 = vpop.permute.xlu0 %3025
      %vm3059 = vcmask 392544
      %3060 = vst.msk [vmem:[#allocation3] sm:$0xff] %vm3059, %v2964
      %3061 = vst.msk [vmem:[#allocation3 + $0x10] sm:$0xff] %vm3059, %v2966
      %3062 = vst.msk [vmem:[#allocation3 + $0x20] sm:$0xff] %vm3059, %v2968
      %3063 = vst.msk [vmem:[#allocation3 + $0x30] sm:$0xff] %vm3059, %v2970
      %3064 = vst.msk [vmem:[#allocation3 + $0x40] sm:$0xff] %vm3059, %v2972
      %3065 = vst.msk [vmem:[#allocation3 + $0x50] sm:$0xff] %vm3059, %v2974
      %3066 = vst.msk [vmem:[#allocation3 + $0x60] sm:$0xff] %vm3059, %v2976
      %3067 = vst.msk [vmem:[#allocation3 + $0x70] sm:$0xff] %vm3059, %v2978
      %3068 = vst.msk [vmem:[#allocation3 + $0x80] sm:$0xff] %vm3059, %v2980
      %3069 = vst.msk [vmem:[#allocation3 + $0x90] sm:$0xff] %vm3059, %v2982
      %3070 = vst.msk [vmem:[#allocation3 + $0xa0] sm:$0xff] %vm3059, %v2984
      %3071 = vst.msk [vmem:[#allocation3 + $0xb0] sm:$0xff] %vm3059, %v2986
      %3072 = vst.msk [vmem:[#allocation3 + $0xc0] sm:$0xff] %vm3059, %v2988
      %3073 = vst.msk [vmem:[#allocation3 + $0xd0] sm:$0xff] %vm3059, %v2990
      %3074 = vst.msk [vmem:[#allocation3 + $0xe0] sm:$0xff] %vm3059, %v2992
      %3075 = vst.msk [vmem:[#allocation3 + $0xf0] sm:$0xff] %vm3059, %v2994
      %3076 = vst.msk [vmem:[#allocation3 + $0x100] sm:$0xff] %vm3059, %v2996
      %3077 = vst.msk [vmem:[#allocation3 + $0x110] sm:$0xff] %vm3059, %v2998
      %3078 = vst.msk [vmem:[#allocation3 + $0x120] sm:$0xff] %vm3059, %v3000
      %3079 = vst.msk [vmem:[#allocation3 + $0x130] sm:$0xff] %vm3059, %v3002
      %3080 = vst.msk [vmem:[#allocation3 + $0x140] sm:$0xff] %vm3059, %v3004
      %3081 = vst.msk [vmem:[#allocation3 + $0x150] sm:$0xff] %vm3059, %v3006
      %3082 = vst.msk [vmem:[#allocation3 + $0x160] sm:$0xff] %vm3059, %v3008
      %3083 = vst.msk [vmem:[#allocation3 + $0x170] sm:$0xff] %vm3059, %v3010
      %3084 = vst.msk [vmem:[#allocation3 + $0x180] sm:$0xff] %vm3059, %v3012
      %3085 = vst.msk [vmem:[#allocation3 + $0x190] sm:$0xff] %vm3059, %v3014
      %3086 = vst.msk [vmem:[#allocation3 + $0x1a0] sm:$0xff] %vm3059, %v3016
      %3087 = vst.msk [vmem:[#allocation3 + $0x1b0] sm:$0xff] %vm3059, %v3018
      %3088 = vst.msk [vmem:[#allocation3 + $0x1c0] sm:$0xff] %vm3059, %v3020
      %3089 = vst.msk [vmem:[#allocation3 + $0x1d0] sm:$0xff] %vm3059, %v3022
      %3090 = vst.msk [vmem:[#allocation3 + $0x1e0] sm:$0xff] %vm3059, %v3024
      %3091 = vst.msk [vmem:[#allocation3 + $0x1f0] sm:$0xff] %vm3059, %v3026
      %v3092 = vld [vmem:[%s324] sm:$0xff]
      %v3093 = vld [vmem:[%s324 + $0x8] sm:$0xff]
      %v3094 = vld [vmem:[%s324 + $0x18] sm:$0xff]
      %v3095 = vld [vmem:[%s324 + $0x20] sm:$0xff]
      %v3096 = vld [vmem:[%s324 + $0x30] sm:$0xff]
      %v3097 = vld [vmem:[%s324 + $0x38] sm:$0xff]
      %v3098 = vld [vmem:[%s324 + $0x48] sm:$0xff]
      %v3099 = vld [vmem:[%s324 + $0x50] sm:$0xff]
      %v3100 = vld [vmem:[%s324 + $0x60] sm:$0xff]
      %v3101 = vld [vmem:[%s324 + $0x68] sm:$0xff]
      %v3102 = vld [vmem:[%s324 + $0x78] sm:$0xff]
      %v3103 = vld [vmem:[%s324 + $0x80] sm:$0xff]
      %v3104 = vld [vmem:[%s324 + $0x90] sm:$0xff]
      %v3105 = vld [vmem:[%s324 + $0x98] sm:$0xff]
      %v3106 = vld [vmem:[%s324 + $0xa8] sm:$0xff]
      %v3107 = vld [vmem:[%s324 + $0xb0] sm:$0xff]
      %v3108 = vld [vmem:[%s324 + $0xc0] sm:$0xff]
      %v3109 = vld [vmem:[%s324 + $0xc8] sm:$0xff]
      %v3110 = vld [vmem:[%s324 + $0xd8] sm:$0xff]
      %v3111 = vld [vmem:[%s324 + $0xe0] sm:$0xff]
      %v3112 = vld [vmem:[%s324 + $0xf0] sm:$0xff]
      %v3113 = vld [vmem:[%s324 + $0xf8] sm:$0xff]
      %v3114 = vld [vmem:[%s324 + $0x108] sm:$0xff]
      %v3115 = vld [vmem:[%s324 + $0x110] sm:$0xff]
      %v3116 = vld [vmem:[%s324 + $0x120] sm:$0xff]
      %v3117 = vld [vmem:[%s324 + $0x128] sm:$0xff]
      %v3118 = vld [vmem:[%s324 + $0x138] sm:$0xff]
      %v3119 = vld [vmem:[%s324 + $0x140] sm:$0xff]
      %v3120 = vld [vmem:[%s324 + $0x150] sm:$0xff]
      %v3121 = vld [vmem:[%s324 + $0x158] sm:$0xff]
      %v3122 = vld [vmem:[%s324 + $0x168] sm:$0xff]
      %v3123 = vld [vmem:[%s324 + $0x170] sm:$0xff]
      %3156 = vrot.lane.b32.xlu0 %v3092, 48
      %v3157 = vpop.permute.xlu0 %3156
      %3158 = vrot.lane.b32.xlu0 %v3093, 48
      %v3159 = vpop.permute.xlu0 %3158
      %3160 = vrot.lane.b32.xlu0 %v3094, 48
      %v3161 = vpop.permute.xlu0 %3160
      %3162 = vrot.lane.b32.xlu0 %v3095, 48
      %v3163 = vpop.permute.xlu0 %3162
      %3164 = vrot.lane.b32.xlu0 %v3096, 48
      %v3165 = vpop.permute.xlu0 %3164
      %3166 = vrot.lane.b32.xlu0 %v3097, 48
      %v3167 = vpop.permute.xlu0 %3166
      %3168 = vrot.lane.b32.xlu0 %v3098, 48
      %v3169 = vpop.permute.xlu0 %3168
      %3170 = vrot.lane.b32.xlu0 %v3099, 48
      %v3171 = vpop.permute.xlu0 %3170
      %3172 = vrot.lane.b32.xlu0 %v3100, 48
      %v3173 = vpop.permute.xlu0 %3172
      %3174 = vrot.lane.b32.xlu0 %v3101, 48
      %v3175 = vpop.permute.xlu0 %3174
      %3176 = vrot.lane.b32.xlu0 %v3102, 48
      %v3177 = vpop.permute.xlu0 %3176
      %3178 = vrot.lane.b32.xlu0 %v3103, 48
      %v3179 = vpop.permute.xlu0 %3178
      %3180 = vrot.lane.b32.xlu0 %v3104, 48
      %v3181 = vpop.permute.xlu0 %3180
      %3182 = vrot.lane.b32.xlu0 %v3105, 48
      %v3183 = vpop.permute.xlu0 %3182
      %3184 = vrot.lane.b32.xlu0 %v3106, 48
      %v3185 = vpop.permute.xlu0 %3184
      %3186 = vrot.lane.b32.xlu0 %v3107, 48
      %v3187 = vpop.permute.xlu0 %3186
      %3188 = vrot.lane.b32.xlu0 %v3108, 48
      %v3189 = vpop.permute.xlu0 %3188
      %3190 = vrot.lane.b32.xlu0 %v3109, 48
      %v3191 = vpop.permute.xlu0 %3190
      %3192 = vrot.lane.b32.xlu0 %v3110, 48
      %v3193 = vpop.permute.xlu0 %3192
      %3194 = vrot.lane.b32.xlu0 %v3111, 48
      %v3195 = vpop.permute.xlu0 %3194
      %3196 = vrot.lane.b32.xlu0 %v3112, 48
      %v3197 = vpop.permute.xlu0 %3196
      %3198 = vrot.lane.b32.xlu0 %v3113, 48
      %v3199 = vpop.permute.xlu0 %3198
      %3200 = vrot.lane.b32.xlu0 %v3114, 48
      %v3201 = vpop.permute.xlu0 %3200
      %3202 = vrot.lane.b32.xlu0 %v3115, 48
      %v3203 = vpop.permute.xlu0 %3202
      %3204 = vrot.lane.b32.xlu0 %v3116, 48
      %v3205 = vpop.permute.xlu0 %3204
      %3206 = vrot.lane.b32.xlu0 %v3117, 48
      %v3207 = vpop.permute.xlu0 %3206
      %3208 = vrot.lane.b32.xlu0 %v3118, 48
      %v3209 = vpop.permute.xlu0 %3208
      %3210 = vrot.lane.b32.xlu0 %v3119, 48
      %v3211 = vpop.permute.xlu0 %3210
      %3212 = vrot.lane.b32.xlu0 %v3120, 48
      %v3213 = vpop.permute.xlu0 %3212
      %3214 = vrot.lane.b32.xlu0 %v3121, 48
      %v3215 = vpop.permute.xlu0 %3214
      %3216 = vrot.lane.b32.xlu0 %v3122, 48
      %v3217 = vpop.permute.xlu0 %3216
      %3218 = vrot.lane.b32.xlu0 %v3123, 48
      %v3219 = vpop.permute.xlu0 %3218
      %vm3252 = vcmask 425344
      %3253 = vst.msk [vmem:[#allocation3] sm:$0xff] %vm3252, %v3157
      %3254 = vst.msk [vmem:[#allocation3 + $0x10] sm:$0xff] %vm3252, %v3159
      %3255 = vst.msk [vmem:[#allocation3 + $0x20] sm:$0xff] %vm3252, %v3161
      %3256 = vst.msk [vmem:[#allocation3 + $0x30] sm:$0xff] %vm3252, %v3163
      %3257 = vst.msk [vmem:[#allocation3 + $0x40] sm:$0xff] %vm3252, %v3165
      %3258 = vst.msk [vmem:[#allocation3 + $0x50] sm:$0xff] %vm3252, %v3167
      %3259 = vst.msk [vmem:[#allocation3 + $0x60] sm:$0xff] %vm3252, %v3169
      %3260 = vst.msk [vmem:[#allocation3 + $0x70] sm:$0xff] %vm3252, %v3171
      %3261 = vst.msk [vmem:[#allocation3 + $0x80] sm:$0xff] %vm3252, %v3173
      %3262 = vst.msk [vmem:[#allocation3 + $0x90] sm:$0xff] %vm3252, %v3175
      %3263 = vst.msk [vmem:[#allocation3 + $0xa0] sm:$0xff] %vm3252, %v3177
      %3264 = vst.msk [vmem:[#allocation3 + $0xb0] sm:$0xff] %vm3252, %v3179
      %3265 = vst.msk [vmem:[#allocation3 + $0xc0] sm:$0xff] %vm3252, %v3181
      %3266 = vst.msk [vmem:[#allocation3 + $0xd0] sm:$0xff] %vm3252, %v3183
      %3267 = vst.msk [vmem:[#allocation3 + $0xe0] sm:$0xff] %vm3252, %v3185
      %3268 = vst.msk [vmem:[#allocation3 + $0xf0] sm:$0xff] %vm3252, %v3187
      %3269 = vst.msk [vmem:[#allocation3 + $0x100] sm:$0xff] %vm3252, %v3189
      %3270 = vst.msk [vmem:[#allocation3 + $0x110] sm:$0xff] %vm3252, %v3191
      %3271 = vst.msk [vmem:[#allocation3 + $0x120] sm:$0xff] %vm3252, %v3193
      %3272 = vst.msk [vmem:[#allocation3 + $0x130] sm:$0xff] %vm3252, %v3195
      %3273 = vst.msk [vmem:[#allocation3 + $0x140] sm:$0xff] %vm3252, %v3197
      %3274 = vst.msk [vmem:[#allocation3 + $0x150] sm:$0xff] %vm3252, %v3199
      %3275 = vst.msk [vmem:[#allocation3 + $0x160] sm:$0xff] %vm3252, %v3201
      %3276 = vst.msk [vmem:[#allocation3 + $0x170] sm:$0xff] %vm3252, %v3203
      %3277 = vst.msk [vmem:[#allocation3 + $0x180] sm:$0xff] %vm3252, %v3205
      %3278 = vst.msk [vmem:[#allocation3 + $0x190] sm:$0xff] %vm3252, %v3207
      %3279 = vst.msk [vmem:[#allocation3 + $0x1a0] sm:$0xff] %vm3252, %v3209
      %3280 = vst.msk [vmem:[#allocation3 + $0x1b0] sm:$0xff] %vm3252, %v3211
      %3281 = vst.msk [vmem:[#allocation3 + $0x1c0] sm:$0xff] %vm3252, %v3213
      %3282 = vst.msk [vmem:[#allocation3 + $0x1d0] sm:$0xff] %vm3252, %v3215
      %3283 = vst.msk [vmem:[#allocation3 + $0x1e0] sm:$0xff] %vm3252, %v3217
      %3284 = vst.msk [vmem:[#allocation3 + $0x1f0] sm:$0xff] %vm3252, %v3219
      %v3285 = vld [vmem:[%s324 + $0x1] sm:$0xff]
      %v3286 = vld [vmem:[%s324 + $0x9] sm:$0xff]
      %v3287 = vld [vmem:[%s324 + $0x19] sm:$0xff]
      %v3288 = vld [vmem:[%s324 + $0x21] sm:$0xff]
      %v3289 = vld [vmem:[%s324 + $0x31] sm:$0xff]
      %v3290 = vld [vmem:[%s324 + $0x39] sm:$0xff]
      %v3291 = vld [vmem:[%s324 + $0x49] sm:$0xff]
      %v3292 = vld [vmem:[%s324 + $0x51] sm:$0xff]
      %v3293 = vld [vmem:[%s324 + $0x61] sm:$0xff]
      %v3294 = vld [vmem:[%s324 + $0x69] sm:$0xff]
      %v3295 = vld [vmem:[%s324 + $0x79] sm:$0xff]
      %v3296 = vld [vmem:[%s324 + $0x81] sm:$0xff]
      %v3297 = vld [vmem:[%s324 + $0x91] sm:$0xff]
      %v3298 = vld [vmem:[%s324 + $0x99] sm:$0xff]
      %v3299 = vld [vmem:[%s324 + $0xa9] sm:$0xff]
      %v3300 = vld [vmem:[%s324 + $0xb1] sm:$0xff]
      %v3301 = vld [vmem:[%s324 + $0xc1] sm:$0xff]
      %v3302 = vld [vmem:[%s324 + $0xc9] sm:$0xff]
      %v3303 = vld [vmem:[%s324 + $0xd9] sm:$0xff]
      %v3304 = vld [vmem:[%s324 + $0xe1] sm:$0xff]
      %v3305 = vld [vmem:[%s324 + $0xf1] sm:$0xff]
      %v3306 = vld [vmem:[%s324 + $0xf9] sm:$0xff]
      %v3307 = vld [vmem:[%s324 + $0x109] sm:$0xff]
      %v3308 = vld [vmem:[%s324 + $0x111] sm:$0xff]
      %v3309 = vld [vmem:[%s324 + $0x121] sm:$0xff]
      %v3310 = vld [vmem:[%s324 + $0x129] sm:$0xff]
      %v3311 = vld [vmem:[%s324 + $0x139] sm:$0xff]
      %v3312 = vld [vmem:[%s324 + $0x141] sm:$0xff]
      %v3313 = vld [vmem:[%s324 + $0x151] sm:$0xff]
      %v3314 = vld [vmem:[%s324 + $0x159] sm:$0xff]
      %v3315 = vld [vmem:[%s324 + $0x169] sm:$0xff]
      %v3316 = vld [vmem:[%s324 + $0x171] sm:$0xff]
      %3349 = vrot.lane.b32.xlu0 %v3285, 52
      %v3350 = vpop.permute.xlu0 %3349
      %3351 = vrot.lane.b32.xlu0 %v3286, 52
      %v3352 = vpop.permute.xlu0 %3351
      %3353 = vrot.lane.b32.xlu0 %v3287, 52
      %v3354 = vpop.permute.xlu0 %3353
      %3355 = vrot.lane.b32.xlu0 %v3288, 52
      %v3356 = vpop.permute.xlu0 %3355
      %3357 = vrot.lane.b32.xlu0 %v3289, 52
      %v3358 = vpop.permute.xlu0 %3357
      %3359 = vrot.lane.b32.xlu0 %v3290, 52
      %v3360 = vpop.permute.xlu0 %3359
      %3361 = vrot.lane.b32.xlu0 %v3291, 52
      %v3362 = vpop.permute.xlu0 %3361
      %3363 = vrot.lane.b32.xlu0 %v3292, 52
      %v3364 = vpop.permute.xlu0 %3363
      %3365 = vrot.lane.b32.xlu0 %v3293, 52
      %v3366 = vpop.permute.xlu0 %3365
      %3367 = vrot.lane.b32.xlu0 %v3294, 52
      %v3368 = vpop.permute.xlu0 %3367
      %3369 = vrot.lane.b32.xlu0 %v3295, 52
      %v3370 = vpop.permute.xlu0 %3369
      %3371 = vrot.lane.b32.xlu0 %v3296, 52
      %v3372 = vpop.permute.xlu0 %3371
      %3373 = vrot.lane.b32.xlu0 %v3297, 52
      %v3374 = vpop.permute.xlu0 %3373
      %3375 = vrot.lane.b32.xlu0 %v3298, 52
      %v3376 = vpop.permute.xlu0 %3375
      %3377 = vrot.lane.b32.xlu0 %v3299, 52
      %v3378 = vpop.permute.xlu0 %3377
      %3379 = vrot.lane.b32.xlu0 %v3300, 52
      %v3380 = vpop.permute.xlu0 %3379
      %3381 = vrot.lane.b32.xlu0 %v3301, 52
      %v3382 = vpop.permute.xlu0 %3381
      %3383 = vrot.lane.b32.xlu0 %v3302, 52
      %v3384 = vpop.permute.xlu0 %3383
      %3385 = vrot.lane.b32.xlu0 %v3303, 52
      %v3386 = vpop.permute.xlu0 %3385
      %3387 = vrot.lane.b32.xlu0 %v3304, 52
      %v3388 = vpop.permute.xlu0 %3387
      %3389 = vrot.lane.b32.xlu0 %v3305, 52
      %v3390 = vpop.permute.xlu0 %3389
      %3391 = vrot.lane.b32.xlu0 %v3306, 52
      %v3392 = vpop.permute.xlu0 %3391
      %3393 = vrot.lane.b32.xlu0 %v3307, 52
      %v3394 = vpop.permute.xlu0 %3393
      %3395 = vrot.lane.b32.xlu0 %v3308, 52
      %v3396 = vpop.permute.xlu0 %3395
      %3397 = vrot.lane.b32.xlu0 %v3309, 52
      %v3398 = vpop.permute.xlu0 %3397
      %3399 = vrot.lane.b32.xlu0 %v3310, 52
      %v3400 = vpop.permute.xlu0 %3399
      %3401 = vrot.lane.b32.xlu0 %v3311, 52
      %v3402 = vpop.permute.xlu0 %3401
      %3403 = vrot.lane.b32.xlu0 %v3312, 52
      %v3404 = vpop.permute.xlu0 %3403
      %3405 = vrot.lane.b32.xlu0 %v3313, 52
      %v3406 = vpop.permute.xlu0 %3405
      %3407 = vrot.lane.b32.xlu0 %v3314, 52
      %v3408 = vpop.permute.xlu0 %3407
      %3409 = vrot.lane.b32.xlu0 %v3315, 52
      %v3410 = vpop.permute.xlu0 %3409
      %3411 = vrot.lane.b32.xlu0 %v3316, 52
      %v3412 = vpop.permute.xlu0 %3411
      %vm3445 = vcmask 458144
      %3446 = vst.msk [vmem:[#allocation3] sm:$0xff] %vm3445, %v3350
      %3447 = vst.msk [vmem:[#allocation3 + $0x10] sm:$0xff] %vm3445, %v3352
      %3448 = vst.msk [vmem:[#allocation3 + $0x20] sm:$0xff] %vm3445, %v3354
      %3449 = vst.msk [vmem:[#allocation3 + $0x30] sm:$0xff] %vm3445, %v3356
      %3450 = vst.msk [vmem:[#allocation3 + $0x40] sm:$0xff] %vm3445, %v3358
      %3451 = vst.msk [vmem:[#allocation3 + $0x50] sm:$0xff] %vm3445, %v3360
      %3452 = vst.msk [vmem:[#allocation3 + $0x60] sm:$0xff] %vm3445, %v3362
      %3453 = vst.msk [vmem:[#allocation3 + $0x70] sm:$0xff] %vm3445, %v3364
      %3454 = vst.msk [vmem:[#allocation3 + $0x80] sm:$0xff] %vm3445, %v3366
      %3455 = vst.msk [vmem:[#allocation3 + $0x90] sm:$0xff] %vm3445, %v3368
      %3456 = vst.msk [vmem:[#allocation3 + $0xa0] sm:$0xff] %vm3445, %v3370
      %3457 = vst.msk [vmem:[#allocation3 + $0xb0] sm:$0xff] %vm3445, %v3372
      %3458 = vst.msk [vmem:[#allocation3 + $0xc0] sm:$0xff] %vm3445, %v3374
      %3459 = vst.msk [vmem:[#allocation3 + $0xd0] sm:$0xff] %vm3445, %v3376
      %3460 = vst.msk [vmem:[#allocation3 + $0xe0] sm:$0xff] %vm3445, %v3378
      %3461 = vst.msk [vmem:[#allocation3 + $0xf0] sm:$0xff] %vm3445, %v3380
      %3462 = vst.msk [vmem:[#allocation3 + $0x100] sm:$0xff] %vm3445, %v3382
      %3463 = vst.msk [vmem:[#allocation3 + $0x110] sm:$0xff] %vm3445, %v3384
      %3464 = vst.msk [vmem:[#allocation3 + $0x120] sm:$0xff] %vm3445, %v3386
      %3465 = vst.msk [vmem:[#allocation3 + $0x130] sm:$0xff] %vm3445, %v3388
      %3466 = vst.msk [vmem:[#allocation3 + $0x140] sm:$0xff] %vm3445, %v3390
      %3467 = vst.msk [vmem:[#allocation3 + $0x150] sm:$0xff] %vm3445, %v3392
      %3468 = vst.msk [vmem:[#allocation3 + $0x160] sm:$0xff] %vm3445, %v3394
      %3469 = vst.msk [vmem:[#allocation3 + $0x170] sm:$0xff] %vm3445, %v3396
      %3470 = vst.msk [vmem:[#allocation3 + $0x180] sm:$0xff] %vm3445, %v3398
      %3471 = vst.msk [vmem:[#allocation3 + $0x190] sm:$0xff] %vm3445, %v3400
      %3472 = vst.msk [vmem:[#allocation3 + $0x1a0] sm:$0xff] %vm3445, %v3402
      %3473 = vst.msk [vmem:[#allocation3 + $0x1b0] sm:$0xff] %vm3445, %v3404
      %3474 = vst.msk [vmem:[#allocation3 + $0x1c0] sm:$0xff] %vm3445, %v3406
      %3475 = vst.msk [vmem:[#allocation3 + $0x1d0] sm:$0xff] %vm3445, %v3408
      %3476 = vst.msk [vmem:[#allocation3 + $0x1e0] sm:$0xff] %vm3445, %v3410
      %3477 = vst.msk [vmem:[#allocation3 + $0x1f0] sm:$0xff] %vm3445, %v3412
      %v3478 = vld [vmem:[%s324 + $0x2] sm:$0xff]
      %v3479 = vld [vmem:[%s324 + $0xa] sm:$0xff]
      %v3480 = vld [vmem:[%s324 + $0x1a] sm:$0xff]
      %v3481 = vld [vmem:[%s324 + $0x22] sm:$0xff]
      %v3482 = vld [vmem:[%s324 + $0x32] sm:$0xff]
      %v3483 = vld [vmem:[%s324 + $0x3a] sm:$0xff]
      %v3484 = vld [vmem:[%s324 + $0x4a] sm:$0xff]
      %v3485 = vld [vmem:[%s324 + $0x52] sm:$0xff]
      %v3486 = vld [vmem:[%s324 + $0x62] sm:$0xff]
      %v3487 = vld [vmem:[%s324 + $0x6a] sm:$0xff]
      %v3488 = vld [vmem:[%s324 + $0x7a] sm:$0xff]
      %v3489 = vld [vmem:[%s324 + $0x82] sm:$0xff]
      %v3490 = vld [vmem:[%s324 + $0x92] sm:$0xff]
      %v3491 = vld [vmem:[%s324 + $0x9a] sm:$0xff]
      %v3492 = vld [vmem:[%s324 + $0xaa] sm:$0xff]
      %v3493 = vld [vmem:[%s324 + $0xb2] sm:$0xff]
      %v3494 = vld [vmem:[%s324 + $0xc2] sm:$0xff]
      %v3495 = vld [vmem:[%s324 + $0xca] sm:$0xff]
      %v3496 = vld [vmem:[%s324 + $0xda] sm:$0xff]
      %v3497 = vld [vmem:[%s324 + $0xe2] sm:$0xff]
      %v3498 = vld [vmem:[%s324 + $0xf2] sm:$0xff]
      %v3499 = vld [vmem:[%s324 + $0xfa] sm:$0xff]
      %v3500 = vld [vmem:[%s324 + $0x10a] sm:$0xff]
      %v3501 = vld [vmem:[%s324 + $0x112] sm:$0xff]
      %v3502 = vld [vmem:[%s324 + $0x122] sm:$0xff]
      %v3503 = vld [vmem:[%s324 + $0x12a] sm:$0xff]
      %v3504 = vld [vmem:[%s324 + $0x13a] sm:$0xff]
      %v3505 = vld [vmem:[%s324 + $0x142] sm:$0xff]
      %v3506 = vld [vmem:[%s324 + $0x152] sm:$0xff]
      %v3507 = vld [vmem:[%s324 + $0x15a] sm:$0xff]
      %v3508 = vld [vmem:[%s324 + $0x16a] sm:$0xff]
      %v3509 = vld [vmem:[%s324 + $0x172] sm:$0xff]
      %3542 = vrot.lane.b32.xlu0 %v3478, 56
      %v3543 = vpop.permute.xlu0 %3542
      %3544 = vrot.lane.b32.xlu0 %v3479, 56
      %v3545 = vpop.permute.xlu0 %3544
      %3546 = vrot.lane.b32.xlu0 %v3480, 56
      %v3547 = vpop.permute.xlu0 %3546
      %3548 = vrot.lane.b32.xlu0 %v3481, 56
      %v3549 = vpop.permute.xlu0 %3548
      %3550 = vrot.lane.b32.xlu0 %v3482, 56
      %v3551 = vpop.permute.xlu0 %3550
      %3552 = vrot.lane.b32.xlu0 %v3483, 56
      %v3553 = vpop.permute.xlu0 %3552
      %3554 = vrot.lane.b32.xlu0 %v3484, 56
      %v3555 = vpop.permute.xlu0 %3554
      %3556 = vrot.lane.b32.xlu0 %v3485, 56
      %v3557 = vpop.permute.xlu0 %3556
      %3558 = vrot.lane.b32.xlu0 %v3486, 56
      %v3559 = vpop.permute.xlu0 %3558
      %3560 = vrot.lane.b32.xlu0 %v3487, 56
      %v3561 = vpop.permute.xlu0 %3560
      %3562 = vrot.lane.b32.xlu0 %v3488, 56
      %v3563 = vpop.permute.xlu0 %3562
      %3564 = vrot.lane.b32.xlu0 %v3489, 56
      %v3565 = vpop.permute.xlu0 %3564
      %3566 = vrot.lane.b32.xlu0 %v3490, 56
      %v3567 = vpop.permute.xlu0 %3566
      %3568 = vrot.lane.b32.xlu0 %v3491, 56
      %v3569 = vpop.permute.xlu0 %3568
      %3570 = vrot.lane.b32.xlu0 %v3492, 56
      %v3571 = vpop.permute.xlu0 %3570
      %3572 = vrot.lane.b32.xlu0 %v3493, 56
      %v3573 = vpop.permute.xlu0 %3572
      %3574 = vrot.lane.b32.xlu0 %v3494, 56
      %v3575 = vpop.permute.xlu0 %3574
      %3576 = vrot.lane.b32.xlu0 %v3495, 56
      %v3577 = vpop.permute.xlu0 %3576
      %3578 = vrot.lane.b32.xlu0 %v3496, 56
      %v3579 = vpop.permute.xlu0 %3578
      %3580 = vrot.lane.b32.xlu0 %v3497, 56
      %v3581 = vpop.permute.xlu0 %3580
      %3582 = vrot.lane.b32.xlu0 %v3498, 56
      %v3583 = vpop.permute.xlu0 %3582
      %3584 = vrot.lane.b32.xlu0 %v3499, 56
      %v3585 = vpop.permute.xlu0 %3584
      %3586 = vrot.lane.b32.xlu0 %v3500, 56
      %v3587 = vpop.permute.xlu0 %3586
      %3588 = vrot.lane.b32.xlu0 %v3501, 56
      %v3589 = vpop.permute.xlu0 %3588
      %3590 = vrot.lane.b32.xlu0 %v3502, 56
      %v3591 = vpop.permute.xlu0 %3590
      %3592 = vrot.lane.b32.xlu0 %v3503, 56
      %v3593 = vpop.permute.xlu0 %3592
      %3594 = vrot.lane.b32.xlu0 %v3504, 56
      %v3595 = vpop.permute.xlu0 %3594
      %3596 = vrot.lane.b32.xlu0 %v3505, 56
      %v3597 = vpop.permute.xlu0 %3596
      %3598 = vrot.lane.b32.xlu0 %v3506, 56
      %v3599 = vpop.permute.xlu0 %3598
      %3600 = vrot.lane.b32.xlu0 %v3507, 56
      %v3601 = vpop.permute.xlu0 %3600
      %3602 = vrot.lane.b32.xlu0 %v3508, 56
      %v3603 = vpop.permute.xlu0 %3602
      %3604 = vrot.lane.b32.xlu0 %v3509, 56
      %v3605 = vpop.permute.xlu0 %3604
      %vm3638 = vcmask 490944
      %3639 = vst.msk [vmem:[#allocation3] sm:$0xff] %vm3638, %v3543
      %3640 = vst.msk [vmem:[#allocation3 + $0x10] sm:$0xff] %vm3638, %v3545
      %3641 = vst.msk [vmem:[#allocation3 + $0x20] sm:$0xff] %vm3638, %v3547
      %3642 = vst.msk [vmem:[#allocation3 + $0x30] sm:$0xff] %vm3638, %v3549
      %3643 = vst.msk [vmem:[#allocation3 + $0x40] sm:$0xff] %vm3638, %v3551
      %3644 = vst.msk [vmem:[#allocation3 + $0x50] sm:$0xff] %vm3638, %v3553
      %3645 = vst.msk [vmem:[#allocation3 + $0x60] sm:$0xff] %vm3638, %v3555
      %3646 = vst.msk [vmem:[#allocation3 + $0x70] sm:$0xff] %vm3638, %v3557
      %3647 = vst.msk [vmem:[#allocation3 + $0x80] sm:$0xff] %vm3638, %v3559
      %3648 = vst.msk [vmem:[#allocation3 + $0x90] sm:$0xff] %vm3638, %v3561
      %3649 = vst.msk [vmem:[#allocation3 + $0xa0] sm:$0xff] %vm3638, %v3563
      %3650 = vst.msk [vmem:[#allocation3 + $0xb0] sm:$0xff] %vm3638, %v3565
      %3651 = vst.msk [vmem:[#allocation3 + $0xc0] sm:$0xff] %vm3638, %v3567
      %3652 = vst.msk [vmem:[#allocation3 + $0xd0] sm:$0xff] %vm3638, %v3569
      %3653 = vst.msk [vmem:[#allocation3 + $0xe0] sm:$0xff] %vm3638, %v3571
      %3654 = vst.msk [vmem:[#allocation3 + $0xf0] sm:$0xff] %vm3638, %v3573
      %3655 = vst.msk [vmem:[#allocation3 + $0x100] sm:$0xff] %vm3638, %v3575
      %3656 = vst.msk [vmem:[#allocation3 + $0x110] sm:$0xff] %vm3638, %v3577
      %3657 = vst.msk [vmem:[#allocation3 + $0x120] sm:$0xff] %vm3638, %v3579
      %3658 = vst.msk [vmem:[#allocation3 + $0x130] sm:$0xff] %vm3638, %v3581
      %3659 = vst.msk [vmem:[#allocation3 + $0x140] sm:$0xff] %vm3638, %v3583
      %3660 = vst.msk [vmem:[#allocation3 + $0x150] sm:$0xff] %vm3638, %v3585
      %3661 = vst.msk [vmem:[#allocation3 + $0x160] sm:$0xff] %vm3638, %v3587
      %3662 = vst.msk [vmem:[#allocation3 + $0x170] sm:$0xff] %vm3638, %v3589
      %3663 = vst.msk [vmem:[#allocation3 + $0x180] sm:$0xff] %vm3638, %v3591
      %3664 = vst.msk [vmem:[#allocation3 + $0x190] sm:$0xff] %vm3638, %v3593
      %3665 = vst.msk [vmem:[#allocation3 + $0x1a0] sm:$0xff] %vm3638, %v3595
      %3666 = vst.msk [vmem:[#allocation3 + $0x1b0] sm:$0xff] %vm3638, %v3597
      %3667 = vst.msk [vmem:[#allocation3 + $0x1c0] sm:$0xff] %vm3638, %v3599
      %3668 = vst.msk [vmem:[#allocation3 + $0x1d0] sm:$0xff] %vm3638, %v3601
      %3669 = vst.msk [vmem:[#allocation3 + $0x1e0] sm:$0xff] %vm3638, %v3603
      %3670 = vst.msk [vmem:[#allocation3 + $0x1f0] sm:$0xff] %vm3638, %v3605
      %v3671 = vld [vmem:[%s1386] sm:$0xff]
      %v3672 = vld [vmem:[%s1386 + $0x8] sm:$0xff]
      %v3673 = vld [vmem:[%s1386 + $0x18] sm:$0xff]
      %v3674 = vld [vmem:[%s1386 + $0x20] sm:$0xff]
      %v3675 = vld [vmem:[%s1386 + $0x30] sm:$0xff]
      %v3676 = vld [vmem:[%s1386 + $0x38] sm:$0xff]
      %v3677 = vld [vmem:[%s1386 + $0x48] sm:$0xff]
      %v3678 = vld [vmem:[%s1386 + $0x50] sm:$0xff]
      %v3679 = vld [vmem:[%s1386 + $0x60] sm:$0xff]
      %v3680 = vld [vmem:[%s1386 + $0x68] sm:$0xff]
      %v3681 = vld [vmem:[%s1386 + $0x78] sm:$0xff]
      %v3682 = vld [vmem:[%s1386 + $0x80] sm:$0xff]
      %v3683 = vld [vmem:[%s1386 + $0x90] sm:$0xff]
      %v3684 = vld [vmem:[%s1386 + $0x98] sm:$0xff]
      %v3685 = vld [vmem:[%s1386 + $0xa8] sm:$0xff]
      %v3686 = vld [vmem:[%s1386 + $0xb0] sm:$0xff]
      %v3687 = vld [vmem:[%s1386 + $0xc0] sm:$0xff]
      %v3688 = vld [vmem:[%s1386 + $0xc8] sm:$0xff]
      %v3689 = vld [vmem:[%s1386 + $0xd8] sm:$0xff]
      %v3690 = vld [vmem:[%s1386 + $0xe0] sm:$0xff]
      %v3691 = vld [vmem:[%s1386 + $0xf0] sm:$0xff]
      %v3692 = vld [vmem:[%s1386 + $0xf8] sm:$0xff]
      %v3693 = vld [vmem:[%s1386 + $0x108] sm:$0xff]
      %v3694 = vld [vmem:[%s1386 + $0x110] sm:$0xff]
      %v3695 = vld [vmem:[%s1386 + $0x120] sm:$0xff]
      %v3696 = vld [vmem:[%s1386 + $0x128] sm:$0xff]
      %v3697 = vld [vmem:[%s1386 + $0x138] sm:$0xff]
      %v3698 = vld [vmem:[%s1386 + $0x140] sm:$0xff]
      %v3699 = vld [vmem:[%s1386 + $0x150] sm:$0xff]
      %v3700 = vld [vmem:[%s1386 + $0x158] sm:$0xff]
      %v3701 = vld [vmem:[%s1386 + $0x168] sm:$0xff]
      %v3702 = vld [vmem:[%s1386 + $0x170] sm:$0xff]
      %3735 = vrot.lane.b32.xlu0 %v3671, 60
      %v3736 = vpop.permute.xlu0 %3735
      %3737 = vrot.lane.b32.xlu0 %v3672, 60
      %v3738 = vpop.permute.xlu0 %3737
      %3739 = vrot.lane.b32.xlu0 %v3673, 60
      %v3740 = vpop.permute.xlu0 %3739
      %3741 = vrot.lane.b32.xlu0 %v3674, 60
      %v3742 = vpop.permute.xlu0 %3741
      %3743 = vrot.lane.b32.xlu0 %v3675, 60
      %v3744 = vpop.permute.xlu0 %3743
      %3745 = vrot.lane.b32.xlu0 %v3676, 60
      %v3746 = vpop.permute.xlu0 %3745
      %3747 = vrot.lane.b32.xlu0 %v3677, 60
      %v3748 = vpop.permute.xlu0 %3747
      %3749 = vrot.lane.b32.xlu0 %v3678, 60
      %v3750 = vpop.permute.xlu0 %3749
      %3751 = vrot.lane.b32.xlu0 %v3679, 60
      %v3752 = vpop.permute.xlu0 %3751
      %3753 = vrot.lane.b32.xlu0 %v3680, 60
      %v3754 = vpop.permute.xlu0 %3753
      %3755 = vrot.lane.b32.xlu0 %v3681, 60
      %v3756 = vpop.permute.xlu0 %3755
      %3757 = vrot.lane.b32.xlu0 %v3682, 60
      %v3758 = vpop.permute.xlu0 %3757
      %3759 = vrot.lane.b32.xlu0 %v3683, 60
      %v3760 = vpop.permute.xlu0 %3759
      %3761 = vrot.lane.b32.xlu0 %v3684, 60
      %v3762 = vpop.permute.xlu0 %3761
      %3763 = vrot.lane.b32.xlu0 %v3685, 60
      %v3764 = vpop.permute.xlu0 %3763
      %3765 = vrot.lane.b32.xlu0 %v3686, 60
      %v3766 = vpop.permute.xlu0 %3765
      %3767 = vrot.lane.b32.xlu0 %v3687, 60
      %v3768 = vpop.permute.xlu0 %3767
      %3769 = vrot.lane.b32.xlu0 %v3688, 60
      %v3770 = vpop.permute.xlu0 %3769
      %3771 = vrot.lane.b32.xlu0 %v3689, 60
      %v3772 = vpop.permute.xlu0 %3771
      %3773 = vrot.lane.b32.xlu0 %v3690, 60
      %v3774 = vpop.permute.xlu0 %3773
      %3775 = vrot.lane.b32.xlu0 %v3691, 60
      %v3776 = vpop.permute.xlu0 %3775
      %3777 = vrot.lane.b32.xlu0 %v3692, 60
      %v3778 = vpop.permute.xlu0 %3777
      %3779 = vrot.lane.b32.xlu0 %v3693, 60
      %v3780 = vpop.permute.xlu0 %3779
      %3781 = vrot.lane.b32.xlu0 %v3694, 60
      %v3782 = vpop.permute.xlu0 %3781
      %3783 = vrot.lane.b32.xlu0 %v3695, 60
      %v3784 = vpop.permute.xlu0 %3783
      %3785 = vrot.lane.b32.xlu0 %v3696, 60
      %v3786 = vpop.permute.xlu0 %3785
      %3787 = vrot.lane.b32.xlu0 %v3697, 60
      %v3788 = vpop.permute.xlu0 %3787
      %3789 = vrot.lane.b32.xlu0 %v3698, 60
      %v3790 = vpop.permute.xlu0 %3789
      %3791 = vrot.lane.b32.xlu0 %v3699, 60
      %v3792 = vpop.permute.xlu0 %3791
      %3793 = vrot.lane.b32.xlu0 %v3700, 60
      %v3794 = vpop.permute.xlu0 %3793
      %3795 = vrot.lane.b32.xlu0 %v3701, 60
      %v3796 = vpop.permute.xlu0 %3795
      %3797 = vrot.lane.b32.xlu0 %v3702, 60
      %v3798 = vpop.permute.xlu0 %3797
      %vm3831 = vcmask 523744
      %3832 = vst.msk [vmem:[#allocation3] sm:$0xff] %vm3831, %v3736
      %3833 = vst.msk [vmem:[#allocation3 + $0x10] sm:$0xff] %vm3831, %v3738
      %3834 = vst.msk [vmem:[#allocation3 + $0x20] sm:$0xff] %vm3831, %v3740
      %3835 = vst.msk [vmem:[#allocation3 + $0x30] sm:$0xff] %vm3831, %v3742
      %3836 = vst.msk [vmem:[#allocation3 + $0x40] sm:$0xff] %vm3831, %v3744
      %3837 = vst.msk [vmem:[#allocation3 + $0x50] sm:$0xff] %vm3831, %v3746
      %3838 = vst.msk [vmem:[#allocation3 + $0x60] sm:$0xff] %vm3831, %v3748
      %3839 = vst.msk [vmem:[#allocation3 + $0x70] sm:$0xff] %vm3831, %v3750
      %3840 = vst.msk [vmem:[#allocation3 + $0x80] sm:$0xff] %vm3831, %v3752
      %3841 = vst.msk [vmem:[#allocation3 + $0x90] sm:$0xff] %vm3831, %v3754
      %3842 = vst.msk [vmem:[#allocation3 + $0xa0] sm:$0xff] %vm3831, %v3756
      %3843 = vst.msk [vmem:[#allocation3 + $0xb0] sm:$0xff] %vm3831, %v3758
      %3844 = vst.msk [vmem:[#allocation3 + $0xc0] sm:$0xff] %vm3831, %v3760
      %3845 = vst.msk [vmem:[#allocation3 + $0xd0] sm:$0xff] %vm3831, %v3762
      %3846 = vst.msk [vmem:[#allocation3 + $0xe0] sm:$0xff] %vm3831, %v3764
      %3847 = vst.msk [vmem:[#allocation3 + $0xf0] sm:$0xff] %vm3831, %v3766
      %3848 = vst.msk [vmem:[#allocation3 + $0x100] sm:$0xff] %vm3831, %v3768
      %3849 = vst.msk [vmem:[#allocation3 + $0x110] sm:$0xff] %vm3831, %v3770
      %3850 = vst.msk [vmem:[#allocation3 + $0x120] sm:$0xff] %vm3831, %v3772
      %3851 = vst.msk [vmem:[#allocation3 + $0x130] sm:$0xff] %vm3831, %v3774
      %3852 = vst.msk [vmem:[#allocation3 + $0x140] sm:$0xff] %vm3831, %v3776
      %3853 = vst.msk [vmem:[#allocation3 + $0x150] sm:$0xff] %vm3831, %v3778
      %3854 = vst.msk [vmem:[#allocation3 + $0x160] sm:$0xff] %vm3831, %v3780
      %3855 = vst.msk [vmem:[#allocation3 + $0x170] sm:$0xff] %vm3831, %v3782
      %3856 = vst.msk [vmem:[#allocation3 + $0x180] sm:$0xff] %vm3831, %v3784
      %3857 = vst.msk [vmem:[#allocation3 + $0x190] sm:$0xff] %vm3831, %v3786
      %3858 = vst.msk [vmem:[#allocation3 + $0x1a0] sm:$0xff] %vm3831, %v3788
      %3859 = vst.msk [vmem:[#allocation3 + $0x1b0] sm:$0xff] %vm3831, %v3790
      %3860 = vst.msk [vmem:[#allocation3 + $0x1c0] sm:$0xff] %vm3831, %v3792
      %3861 = vst.msk [vmem:[#allocation3 + $0x1d0] sm:$0xff] %vm3831, %v3794
      %3862 = vst.msk [vmem:[#allocation3 + $0x1e0] sm:$0xff] %vm3831, %v3796
      %3863 = vst.msk [vmem:[#allocation3 + $0x1f0] sm:$0xff] %vm3831, %v3798
      %v3864 = vld [vmem:[%s1386 + $0x1] sm:$0xff]
      %v3865 = vld [vmem:[%s1386 + $0x9] sm:$0xff]
      %v3866 = vld [vmem:[%s1386 + $0x19] sm:$0xff]
      %v3867 = vld [vmem:[%s1386 + $0x21] sm:$0xff]
      %v3868 = vld [vmem:[%s1386 + $0x31] sm:$0xff]
      %v3869 = vld [vmem:[%s1386 + $0x39] sm:$0xff]
      %v3870 = vld [vmem:[%s1386 + $0x49] sm:$0xff]
      %v3871 = vld [vmem:[%s1386 + $0x51] sm:$0xff]
      %v3872 = vld [vmem:[%s1386 + $0x61] sm:$0xff]
      %v3873 = vld [vmem:[%s1386 + $0x69] sm:$0xff]
      %v3874 = vld [vmem:[%s1386 + $0x79] sm:$0xff]
      %v3875 = vld [vmem:[%s1386 + $0x81] sm:$0xff]
      %v3876 = vld [vmem:[%s1386 + $0x91] sm:$0xff]
      %v3877 = vld [vmem:[%s1386 + $0x99] sm:$0xff]
      %v3878 = vld [vmem:[%s1386 + $0xa9] sm:$0xff]
      %v3879 = vld [vmem:[%s1386 + $0xb1] sm:$0xff]
      %v3880 = vld [vmem:[%s1386 + $0xc1] sm:$0xff]
      %v3881 = vld [vmem:[%s1386 + $0xc9] sm:$0xff]
      %v3882 = vld [vmem:[%s1386 + $0xd9] sm:$0xff]
      %v3883 = vld [vmem:[%s1386 + $0xe1] sm:$0xff]
      %v3884 = vld [vmem:[%s1386 + $0xf1] sm:$0xff]
      %v3885 = vld [vmem:[%s1386 + $0xf9] sm:$0xff]
      %v3886 = vld [vmem:[%s1386 + $0x109] sm:$0xff]
      %v3887 = vld [vmem:[%s1386 + $0x111] sm:$0xff]
      %v3888 = vld [vmem:[%s1386 + $0x121] sm:$0xff]
      %v3889 = vld [vmem:[%s1386 + $0x129] sm:$0xff]
      %v3890 = vld [vmem:[%s1386 + $0x139] sm:$0xff]
      %v3891 = vld [vmem:[%s1386 + $0x141] sm:$0xff]
      %v3892 = vld [vmem:[%s1386 + $0x151] sm:$0xff]
      %v3893 = vld [vmem:[%s1386 + $0x159] sm:$0xff]
      %v3894 = vld [vmem:[%s1386 + $0x169] sm:$0xff]
      %v3895 = vld [vmem:[%s1386 + $0x171] sm:$0xff]
      %3928 = vrot.lane.b32.xlu0 %v3864, 64
      %v3929 = vpop.permute.xlu0 %3928
      %3930 = vrot.lane.b32.xlu0 %v3865, 64
      %v3931 = vpop.permute.xlu0 %3930
      %3932 = vrot.lane.b32.xlu0 %v3866, 64
      %v3933 = vpop.permute.xlu0 %3932
      %3934 = vrot.lane.b32.xlu0 %v3867, 64
      %v3935 = vpop.permute.xlu0 %3934
      %3936 = vrot.lane.b32.xlu0 %v3868, 64
      %v3937 = vpop.permute.xlu0 %3936
      %3938 = vrot.lane.b32.xlu0 %v3869, 64
      %v3939 = vpop.permute.xlu0 %3938
      %3940 = vrot.lane.b32.xlu0 %v3870, 64
      %v3941 = vpop.permute.xlu0 %3940
      %3942 = vrot.lane.b32.xlu0 %v3871, 64
      %v3943 = vpop.permute.xlu0 %3942
      %3944 = vrot.lane.b32.xlu0 %v3872, 64
      %v3945 = vpop.permute.xlu0 %3944
      %3946 = vrot.lane.b32.xlu0 %v3873, 64
      %v3947 = vpop.permute.xlu0 %3946
      %3948 = vrot.lane.b32.xlu0 %v3874, 64
      %v3949 = vpop.permute.xlu0 %3948
      %3950 = vrot.lane.b32.xlu0 %v3875, 64
      %v3951 = vpop.permute.xlu0 %3950
      %3952 = vrot.lane.b32.xlu0 %v3876, 64
      %v3953 = vpop.permute.xlu0 %3952
      %3954 = vrot.lane.b32.xlu0 %v3877, 64
      %v3955 = vpop.permute.xlu0 %3954
      %3956 = vrot.lane.b32.xlu0 %v3878, 64
      %v3957 = vpop.permute.xlu0 %3956
      %3958 = vrot.lane.b32.xlu0 %v3879, 64
      %v3959 = vpop.permute.xlu0 %3958
      %3960 = vrot.lane.b32.xlu0 %v3880, 64
      %v3961 = vpop.permute.xlu0 %3960
      %3962 = vrot.lane.b32.xlu0 %v3881, 64
      %v3963 = vpop.permute.xlu0 %3962
      %3964 = vrot.lane.b32.xlu0 %v3882, 64
      %v3965 = vpop.permute.xlu0 %3964
      %3966 = vrot.lane.b32.xlu0 %v3883, 64
      %v3967 = vpop.permute.xlu0 %3966
      %3968 = vrot.lane.b32.xlu0 %v3884, 64
      %v3969 = vpop.permute.xlu0 %3968
      %3970 = vrot.lane.b32.xlu0 %v3885, 64
      %v3971 = vpop.permute.xlu0 %3970
      %3972 = vrot.lane.b32.xlu0 %v3886, 64
      %v3973 = vpop.permute.xlu0 %3972
      %3974 = vrot.lane.b32.xlu0 %v3887, 64
      %v3975 = vpop.permute.xlu0 %3974
      %3976 = vrot.lane.b32.xlu0 %v3888, 64
      %v3977 = vpop.permute.xlu0 %3976
      %3978 = vrot.lane.b32.xlu0 %v3889, 64
      %v3979 = vpop.permute.xlu0 %3978
      %3980 = vrot.lane.b32.xlu0 %v3890, 64
      %v3981 = vpop.permute.xlu0 %3980
      %3982 = vrot.lane.b32.xlu0 %v3891, 64
      %v3983 = vpop.permute.xlu0 %3982
      %3984 = vrot.lane.b32.xlu0 %v3892, 64
      %v3985 = vpop.permute.xlu0 %3984
      %3986 = vrot.lane.b32.xlu0 %v3893, 64
      %v3987 = vpop.permute.xlu0 %3986
      %3988 = vrot.lane.b32.xlu0 %v3894, 64
      %v3989 = vpop.permute.xlu0 %3988
      %3990 = vrot.lane.b32.xlu0 %v3895, 64
      %v3991 = vpop.permute.xlu0 %3990
      %vm4024 = vcmask 556544
      %4025 = vst.msk [vmem:[#allocation3] sm:$0xff] %vm4024, %v3929
      %4026 = vst.msk [vmem:[#allocation3 + $0x10] sm:$0xff] %vm4024, %v3931
      %4027 = vst.msk [vmem:[#allocation3 + $0x20] sm:$0xff] %vm4024, %v3933
      %4028 = vst.msk [vmem:[#allocation3 + $0x30] sm:$0xff] %vm4024, %v3935
      %4029 = vst.msk [vmem:[#allocation3 + $0x40] sm:$0xff] %vm4024, %v3937
      %4030 = vst.msk [vmem:[#allocation3 + $0x50] sm:$0xff] %vm4024, %v3939
      %4031 = vst.msk [vmem:[#allocation3 + $0x60] sm:$0xff] %vm4024, %v3941
      %4032 = vst.msk [vmem:[#allocation3 + $0x70] sm:$0xff] %vm4024, %v3943
      %4033 = vst.msk [vmem:[#allocation3 + $0x80] sm:$0xff] %vm4024, %v3945
      %4034 = vst.msk [vmem:[#allocation3 + $0x90] sm:$0xff] %vm4024, %v3947
      %4035 = vst.msk [vmem:[#allocation3 + $0xa0] sm:$0xff] %vm4024, %v3949
      %4036 = vst.msk [vmem:[#allocation3 + $0xb0] sm:$0xff] %vm4024, %v3951
      %4037 = vst.msk [vmem:[#allocation3 + $0xc0] sm:$0xff] %vm4024, %v3953
      %4038 = vst.msk [vmem:[#allocation3 + $0xd0] sm:$0xff] %vm4024, %v3955
      %4039 = vst.msk [vmem:[#allocation3 + $0xe0] sm:$0xff] %vm4024, %v3957
      %4040 = vst.msk [vmem:[#allocation3 + $0xf0] sm:$0xff] %vm4024, %v3959
      %4041 = vst.msk [vmem:[#allocation3 + $0x100] sm:$0xff] %vm4024, %v3961
      %4042 = vst.msk [vmem:[#allocation3 + $0x110] sm:$0xff] %vm4024, %v3963
      %4043 = vst.msk [vmem:[#allocation3 + $0x120] sm:$0xff] %vm4024, %v3965
      %4044 = vst.msk [vmem:[#allocation3 + $0x130] sm:$0xff] %vm4024, %v3967
      %4045 = vst.msk [vmem:[#allocation3 + $0x140] sm:$0xff] %vm4024, %v3969
      %4046 = vst.msk [vmem:[#allocation3 + $0x150] sm:$0xff] %vm4024, %v3971
      %4047 = vst.msk [vmem:[#allocation3 + $0x160] sm:$0xff] %vm4024, %v3973
      %4048 = vst.msk [vmem:[#allocation3 + $0x170] sm:$0xff] %vm4024, %v3975
      %4049 = vst.msk [vmem:[#allocation3 + $0x180] sm:$0xff] %vm4024, %v3977
      %4050 = vst.msk [vmem:[#allocation3 + $0x190] sm:$0xff] %vm4024, %v3979
      %4051 = vst.msk [vmem:[#allocation3 + $0x1a0] sm:$0xff] %vm4024, %v3981
      %4052 = vst.msk [vmem:[#allocation3 + $0x1b0] sm:$0xff] %vm4024, %v3983
      %4053 = vst.msk [vmem:[#allocation3 + $0x1c0] sm:$0xff] %vm4024, %v3985
      %4054 = vst.msk [vmem:[#allocation3 + $0x1d0] sm:$0xff] %vm4024, %v3987
      %4055 = vst.msk [vmem:[#allocation3 + $0x1e0] sm:$0xff] %vm4024, %v3989
      %4056 = vst.msk [vmem:[#allocation3 + $0x1f0] sm:$0xff] %vm4024, %v3991
      %v4057 = vld [vmem:[%s1386 + $0x2] sm:$0xff]
      %v4058 = vld [vmem:[%s1386 + $0xa] sm:$0xff]
      %v4059 = vld [vmem:[%s1386 + $0x1a] sm:$0xff]
      %v4060 = vld [vmem:[%s1386 + $0x22] sm:$0xff]
      %v4061 = vld [vmem:[%s1386 + $0x32] sm:$0xff]
      %v4062 = vld [vmem:[%s1386 + $0x3a] sm:$0xff]
      %v4063 = vld [vmem:[%s1386 + $0x4a] sm:$0xff]
      %v4064 = vld [vmem:[%s1386 + $0x52] sm:$0xff]
      %v4065 = vld [vmem:[%s1386 + $0x62] sm:$0xff]
      %v4066 = vld [vmem:[%s1386 + $0x6a] sm:$0xff]
      %v4067 = vld [vmem:[%s1386 + $0x7a] sm:$0xff]
      %v4068 = vld [vmem:[%s1386 + $0x82] sm:$0xff]
      %v4069 = vld [vmem:[%s1386 + $0x92] sm:$0xff]
      %v4070 = vld [vmem:[%s1386 + $0x9a] sm:$0xff]
      %v4071 = vld [vmem:[%s1386 + $0xaa] sm:$0xff]
      %v4072 = vld [vmem:[%s1386 + $0xb2] sm:$0xff]
      %v4073 = vld [vmem:[%s1386 + $0xc2] sm:$0xff]
      %v4074 = vld [vmem:[%s1386 + $0xca] sm:$0xff]
      %v4075 = vld [vmem:[%s1386 + $0xda] sm:$0xff]
      %v4076 = vld [vmem:[%s1386 + $0xe2] sm:$0xff]
      %v4077 = vld [vmem:[%s1386 + $0xf2] sm:$0xff]
      %v4078 = vld [vmem:[%s1386 + $0xfa] sm:$0xff]
      %v4079 = vld [vmem:[%s1386 + $0x10a] sm:$0xff]
      %v4080 = vld [vmem:[%s1386 + $0x112] sm:$0xff]
      %v4081 = vld [vmem:[%s1386 + $0x122] sm:$0xff]
      %v4082 = vld [vmem:[%s1386 + $0x12a] sm:$0xff]
      %v4083 = vld [vmem:[%s1386 + $0x13a] sm:$0xff]
      %v4084 = vld [vmem:[%s1386 + $0x142] sm:$0xff]
      %v4085 = vld [vmem:[%s1386 + $0x152] sm:$0xff]
      %v4086 = vld [vmem:[%s1386 + $0x15a] sm:$0xff]
      %v4087 = vld [vmem:[%s1386 + $0x16a] sm:$0xff]
      %v4088 = vld [vmem:[%s1386 + $0x172] sm:$0xff]
      %4121 = vrot.lane.b32.xlu0 %v4057, 68
      %v4122 = vpop.permute.xlu0 %4121
      %4123 = vrot.lane.b32.xlu0 %v4058, 68
      %v4124 = vpop.permute.xlu0 %4123
      %4125 = vrot.lane.b32.xlu0 %v4059, 68
      %v4126 = vpop.permute.xlu0 %4125
      %4127 = vrot.lane.b32.xlu0 %v4060, 68
      %v4128 = vpop.permute.xlu0 %4127
      %4129 = vrot.lane.b32.xlu0 %v4061, 68
      %v4130 = vpop.permute.xlu0 %4129
      %4131 = vrot.lane.b32.xlu0 %v4062, 68
      %v4132 = vpop.permute.xlu0 %4131
      %4133 = vrot.lane.b32.xlu0 %v4063, 68
      %v4134 = vpop.permute.xlu0 %4133
      %4135 = vrot.lane.b32.xlu0 %v4064, 68
      %v4136 = vpop.permute.xlu0 %4135
      %4137 = vrot.lane.b32.xlu0 %v4065, 68
      %v4138 = vpop.permute.xlu0 %4137
      %4139 = vrot.lane.b32.xlu0 %v4066, 68
      %v4140 = vpop.permute.xlu0 %4139
      %4141 = vrot.lane.b32.xlu0 %v4067, 68
      %v4142 = vpop.permute.xlu0 %4141
      %4143 = vrot.lane.b32.xlu0 %v4068, 68
      %v4144 = vpop.permute.xlu0 %4143
      %4145 = vrot.lane.b32.xlu0 %v4069, 68
      %v4146 = vpop.permute.xlu0 %4145
      %4147 = vrot.lane.b32.xlu0 %v4070, 68
      %v4148 = vpop.permute.xlu0 %4147
      %4149 = vrot.lane.b32.xlu0 %v4071, 68
      %v4150 = vpop.permute.xlu0 %4149
      %4151 = vrot.lane.b32.xlu0 %v4072, 68
      %v4152 = vpop.permute.xlu0 %4151
      %4153 = vrot.lane.b32.xlu0 %v4073, 68
      %v4154 = vpop.permute.xlu0 %4153
      %4155 = vrot.lane.b32.xlu0 %v4074, 68
      %v4156 = vpop.permute.xlu0 %4155
      %4157 = vrot.lane.b32.xlu0 %v4075, 68
      %v4158 = vpop.permute.xlu0 %4157
      %4159 = vrot.lane.b32.xlu0 %v4076, 68
      %v4160 = vpop.permute.xlu0 %4159
      %4161 = vrot.lane.b32.xlu0 %v4077, 68
      %v4162 = vpop.permute.xlu0 %4161
      %4163 = vrot.lane.b32.xlu0 %v4078, 68
      %v4164 = vpop.permute.xlu0 %4163
      %4165 = vrot.lane.b32.xlu0 %v4079, 68
      %v4166 = vpop.permute.xlu0 %4165
      %4167 = vrot.lane.b32.xlu0 %v4080, 68
      %v4168 = vpop.permute.xlu0 %4167
      %4169 = vrot.lane.b32.xlu0 %v4081, 68
      %v4170 = vpop.permute.xlu0 %4169
      %4171 = vrot.lane.b32.xlu0 %v4082, 68
      %v4172 = vpop.permute.xlu0 %4171
      %4173 = vrot.lane.b32.xlu0 %v4083, 68
      %v4174 = vpop.permute.xlu0 %4173
      %4175 = vrot.lane.b32.xlu0 %v4084, 68
      %v4176 = vpop.permute.xlu0 %4175
      %4177 = vrot.lane.b32.xlu0 %v4085, 68
      %v4178 = vpop.permute.xlu0 %4177
      %4179 = vrot.lane.b32.xlu0 %v4086, 68
      %v4180 = vpop.permute.xlu0 %4179
      %4181 = vrot.lane.b32.xlu0 %v4087, 68
      %v4182 = vpop.permute.xlu0 %4181
      %4183 = vrot.lane.b32.xlu0 %v4088, 68
      %v4184 = vpop.permute.xlu0 %4183
      %vm4217 = vcmask 589344
      %4218 = vst.msk [vmem:[#allocation3] sm:$0xff] %vm4217, %v4122
      %4219 = vst.msk [vmem:[#allocation3 + $0x10] sm:$0xff] %vm4217, %v4124
      %4220 = vst.msk [vmem:[#allocation3 + $0x20] sm:$0xff] %vm4217, %v4126
      %4221 = vst.msk [vmem:[#allocation3 + $0x30] sm:$0xff] %vm4217, %v4128
      %4222 = vst.msk [vmem:[#allocation3 + $0x40] sm:$0xff] %vm4217, %v4130
      %4223 = vst.msk [vmem:[#allocation3 + $0x50] sm:$0xff] %vm4217, %v4132
      %4224 = vst.msk [vmem:[#allocation3 + $0x60] sm:$0xff] %vm4217, %v4134
      %4225 = vst.msk [vmem:[#allocation3 + $0x70] sm:$0xff] %vm4217, %v4136
      %4226 = vst.msk [vmem:[#allocation3 + $0x80] sm:$0xff] %vm4217, %v4138
      %4227 = vst.msk [vmem:[#allocation3 + $0x90] sm:$0xff] %vm4217, %v4140
      %4228 = vst.msk [vmem:[#allocation3 + $0xa0] sm:$0xff] %vm4217, %v4142
      %4229 = vst.msk [vmem:[#allocation3 + $0xb0] sm:$0xff] %vm4217, %v4144
      %4230 = vst.msk [vmem:[#allocation3 + $0xc0] sm:$0xff] %vm4217, %v4146
      %4231 = vst.msk [vmem:[#allocation3 + $0xd0] sm:$0xff] %vm4217, %v4148
      %4232 = vst.msk [vmem:[#allocation3 + $0xe0] sm:$0xff] %vm4217, %v4150
      %4233 = vst.msk [vmem:[#allocation3 + $0xf0] sm:$0xff] %vm4217, %v4152
      %4234 = vst.msk [vmem:[#allocation3 + $0x100] sm:$0xff] %vm4217, %v4154
      %4235 = vst.msk [vmem:[#allocation3 + $0x110] sm:$0xff] %vm4217, %v4156
      %4236 = vst.msk [vmem:[#allocation3 + $0x120] sm:$0xff] %vm4217, %v4158
      %4237 = vst.msk [vmem:[#allocation3 + $0x130] sm:$0xff] %vm4217, %v4160
      %4238 = vst.msk [vmem:[#allocation3 + $0x140] sm:$0xff] %vm4217, %v4162
      %4239 = vst.msk [vmem:[#allocation3 + $0x150] sm:$0xff] %vm4217, %v4164
      %4240 = vst.msk [vmem:[#allocation3 + $0x160] sm:$0xff] %vm4217, %v4166
      %4241 = vst.msk [vmem:[#allocation3 + $0x170] sm:$0xff] %vm4217, %v4168
      %4242 = vst.msk [vmem:[#allocation3 + $0x180] sm:$0xff] %vm4217, %v4170
      %4243 = vst.msk [vmem:[#allocation3 + $0x190] sm:$0xff] %vm4217, %v4172
      %4244 = vst.msk [vmem:[#allocation3 + $0x1a0] sm:$0xff] %vm4217, %v4174
      %4245 = vst.msk [vmem:[#allocation3 + $0x1b0] sm:$0xff] %vm4217, %v4176
      %4246 = vst.msk [vmem:[#allocation3 + $0x1c0] sm:$0xff] %vm4217, %v4178
      %4247 = vst.msk [vmem:[#allocation3 + $0x1d0] sm:$0xff] %vm4217, %v4180
      %4248 = vst.msk [vmem:[#allocation3 + $0x1e0] sm:$0xff] %vm4217, %v4182
      %4249 = vst.msk [vmem:[#allocation3 + $0x1f0] sm:$0xff] %vm4217, %v4184
      %v4250 = vld [vmem:[#allocation3] sm:$0xff]
      %v4251 = vld [vmem:[#allocation3 + $0x8] sm:$0xff]
      %v4252 = vld [vmem:[#allocation3 + $0x10] sm:$0xff]
      %v4253 = vld [vmem:[#allocation3 + $0x18] sm:$0xff]
      %v4254 = vld [vmem:[#allocation3 + $0x20] sm:$0xff]
      %v4255 = vld [vmem:[#allocation3 + $0x28] sm:$0xff]
      %v4256 = vld [vmem:[#allocation3 + $0x30] sm:$0xff]
      %v4257 = vld [vmem:[#allocation3 + $0x38] sm:$0xff]
      %v4258 = vld [vmem:[#allocation3 + $0x40] sm:$0xff]
      %v4259 = vld [vmem:[#allocation3 + $0x48] sm:$0xff]
      %v4260 = vld [vmem:[#allocation3 + $0x50] sm:$0xff]
      %v4261 = vld [vmem:[#allocation3 + $0x58] sm:$0xff]
      %v4262 = vld [vmem:[#allocation3 + $0x60] sm:$0xff]
      %v4263 = vld [vmem:[#allocation3 + $0x68] sm:$0xff]
      %v4264 = vld [vmem:[#allocation3 + $0x70] sm:$0xff]
      %v4265 = vld [vmem:[#allocation3 + $0x78] sm:$0xff]
      %v4266 = vld [vmem:[#allocation3 + $0x80] sm:$0xff]
      %v4267 = vld [vmem:[#allocation3 + $0x88] sm:$0xff]
      %v4268 = vld [vmem:[#allocation3 + $0x90] sm:$0xff]
      %v4269 = vld [vmem:[#allocation3 + $0x98] sm:$0xff]
      %v4270 = vld [vmem:[#allocation3 + $0xa0] sm:$0xff]
      %v4271 = vld [vmem:[#allocation3 + $0xa8] sm:$0xff]
      %v4272 = vld [vmem:[#allocation3 + $0xb0] sm:$0xff]
      %v4273 = vld [vmem:[#allocation3 + $0xb8] sm:$0xff]
      %v4274 = vld [vmem:[#allocation3 + $0xc0] sm:$0xff]
      %v4275 = vld [vmem:[#allocation3 + $0xc8] sm:$0xff]
      %v4276 = vld [vmem:[#allocation3 + $0xd0] sm:$0xff]
      %v4277 = vld [vmem:[#allocation3 + $0xd8] sm:$0xff]
      %v4278 = vld [vmem:[#allocation3 + $0xe0] sm:$0xff]
      %v4279 = vld [vmem:[#allocation3 + $0xe8] sm:$0xff]
      %v4280 = vld [vmem:[#allocation3 + $0xf0] sm:$0xff]
      %v4281 = vld [vmem:[#allocation3 + $0xf8] sm:$0xff]
      %v4282 = vld [vmem:[#allocation3 + $0x100] sm:$0xff]
      %v4283 = vld [vmem:[#allocation3 + $0x108] sm:$0xff]
      %v4284 = vld [vmem:[#allocation3 + $0x110] sm:$0xff]
      %v4285 = vld [vmem:[#allocation3 + $0x118] sm:$0xff]
      %v4286 = vld [vmem:[#allocation3 + $0x120] sm:$0xff]
      %v4287 = vld [vmem:[#allocation3 + $0x128] sm:$0xff]
      %v4288 = vld [vmem:[#allocation3 + $0x130] sm:$0xff]
      %v4289 = vld [vmem:[#allocation3 + $0x138] sm:$0xff]
      %v4290 = vld [vmem:[#allocation3 + $0x140] sm:$0xff]
      %v4291 = vld [vmem:[#allocation3 + $0x148] sm:$0xff]
      %v4292 = vld [vmem:[#allocation3 + $0x150] sm:$0xff]
      %v4293 = vld [vmem:[#allocation3 + $0x158] sm:$0xff]
      %v4294 = vld [vmem:[#allocation3 + $0x160] sm:$0xff]
      %v4295 = vld [vmem:[#allocation3 + $0x168] sm:$0xff]
      %v4296 = vld [vmem:[#allocation3 + $0x170] sm:$0xff]
      %v4297 = vld [vmem:[#allocation3 + $0x178] sm:$0xff]
      %v4298 = vld [vmem:[#allocation3 + $0x180] sm:$0xff]
      %v4299 = vld [vmem:[#allocation3 + $0x188] sm:$0xff]
      %v4300 = vld [vmem:[#allocation3 + $0x190] sm:$0xff]
      %v4301 = vld [vmem:[#allocation3 + $0x198] sm:$0xff]
      %v4302 = vld [vmem:[#allocation3 + $0x1a0] sm:$0xff]
      %v4303 = vld [vmem:[#allocation3 + $0x1a8] sm:$0xff]
      %v4304 = vld [vmem:[#allocation3 + $0x1b0] sm:$0xff]
      %v4305 = vld [vmem:[#allocation3 + $0x1b8] sm:$0xff]
      %v4306 = vld [vmem:[#allocation3 + $0x1c0] sm:$0xff]
      %v4307 = vld [vmem:[#allocation3 + $0x1c8] sm:$0xff]
      %v4308 = vld [vmem:[#allocation3 + $0x1d0] sm:$0xff]
      %v4309 = vld [vmem:[#allocation3 + $0x1d8] sm:$0xff]
      %v4310 = vld [vmem:[#allocation3 + $0x1e0] sm:$0xff]
      %v4311 = vld [vmem:[#allocation3 + $0x1e8] sm:$0xff]
      %v4312 = vld [vmem:[#allocation3 + $0x1f0] sm:$0xff]
      %v4313 = vld [vmem:[#allocation3 + $0x1f8] sm:$0xff]
      %s4314 = scalar_lea.vmem %s1, 184
      %v4315 = vld [vmem:[%s4314] sm:$0xff]
      %v4316 = vld [vmem:[%s4314 + $0x8] sm:$0xff]
      %v4317 = vld [vmem:[%s4314 + $0x10] sm:$0xff]
      %v4318 = vld [vmem:[%s4314 + $0x18] sm:$0xff]
      %v4319 = vld [vmem:[%s4314 + $0x20] sm:$0xff]
      %v4320 = vld [vmem:[%s4314 + $0x28] sm:$0xff]
      %v4321 = vld [vmem:[%s4314 + $0x30] sm:$0xff]
      %v4322 = vld [vmem:[%s4314 + $0x38] sm:$0xff]
      %v4323 = vld [vmem:[%s4314 + $0x40] sm:$0xff]
      %v4324 = vld [vmem:[%s4314 + $0x48] sm:$0xff]
      %v4325 = vld [vmem:[%s4314 + $0x50] sm:$0xff]
      %v4326 = vld [vmem:[%s4314 + $0x58] sm:$0xff]
      %v4327 = vld [vmem:[%s4314 + $0x60] sm:$0xff]
      %v4328 = vld [vmem:[%s4314 + $0x68] sm:$0xff]
      %v4329 = vld [vmem:[%s4314 + $0x70] sm:$0xff]
      %v4330 = vld [vmem:[%s4314 + $0x78] sm:$0xff]
      %v4331 = vld [vmem:[%s4314 + $0x80] sm:$0xff]
      %v4332 = vld [vmem:[%s4314 + $0x88] sm:$0xff]
      %v4333 = vld [vmem:[%s4314 + $0x90] sm:$0xff]
      %v4334 = vld [vmem:[%s4314 + $0x98] sm:$0xff]
      %v4335 = vld [vmem:[%s4314 + $0xa0] sm:$0xff]
      %v4336 = vld [vmem:[%s4314 + $0xa8] sm:$0xff]
      %v4337 = vld [vmem:[%s4314 + $0xb0] sm:$0xf]
      %s4338 = scalar_lea.vmem %s2, 1
      %v4339 = vld [vmem:[%s4338] sm:$0x1]
      %v4341 = vlaneseq
      %v4342 = vshrl.u32 %v4341, 7
      %v4343 = vsub.s32 0, %v4342
      %v4344 = vrot.slane %v4339, %v4343
      %v4347 = vsel %vm228, %v4251, 0
      %v4350 = vsel %vm228, %v4253, 0
      %v4353 = vsel %vm228, %v4255, 0
      %v4356 = vsel %vm228, %v4257, 0
      %v4359 = vsel %vm228, %v4259, 0
      %v4362 = vsel %vm228, %v4261, 0
      %v4365 = vsel %vm228, %v4263, 0
      %v4368 = vsel %vm228, %v4265, 0
      %v4371 = vsel %vm228, %v4267, 0
      %v4374 = vsel %vm228, %v4269, 0
      %v4377 = vsel %vm228, %v4271, 0
      %v4380 = vsel %vm228, %v4273, 0
      %v4383 = vsel %vm228, %v4275, 0
      %v4386 = vsel %vm228, %v4277, 0
      %v4389 = vsel %vm228, %v4279, 0
      %v4392 = vsel %vm228, %v4281, 0
      %v4395 = vsel %vm228, %v4283, 0
      %v4398 = vsel %vm228, %v4285, 0
      %v4401 = vsel %vm228, %v4287, 0
      %v4404 = vsel %vm228, %v4289, 0
      %v4407 = vsel %vm228, %v4291, 0
      %v4410 = vsel %vm228, %v4293, 0
      %v4413 = vsel %vm228, %v4295, 0
      %v4416 = vsel %vm228, %v4297, 0
      %v4419 = vsel %vm228, %v4299, 0
      %v4422 = vsel %vm228, %v4301, 0
      %v4425 = vsel %vm228, %v4303, 0
      %v4428 = vsel %vm228, %v4305, 0
      %v4431 = vsel %vm228, %v4307, 0
      %v4434 = vsel %vm228, %v4309, 0
      %v4437 = vsel %vm228, %v4311, 0
      %v4440 = vsel %vm228, %v4313, 0
      %v4443 = vsel %vm2156, %v4337, 0
      %4445 = vmatprep.subr.mxu0 0.0
      %4446 = vmatpush1.msra.mxu0 %v4315
      %4447 = vmatprep.subr.mxu0 0.0
      %4448 = vmatpush1.msra.mxu0 %v4316
      %4449 = vmatprep.subr.mxu0 0.0
      %4450 = vmatpush1.msra.mxu0 %v4317
      %4451 = vmatprep.subr.mxu0 0.0
      %4452 = vmatpush1.msra.mxu0 %v4318
      %4453 = vmatprep.subr.mxu0 0.0
      %4454 = vmatpush1.msra.mxu0 %v4319
      %4455 = vmatprep.subr.mxu0 0.0
      %4456 = vmatpush1.msra.mxu0 %v4320
      %4457 = vmatprep.subr.mxu0 0.0
      %4458 = vmatpush1.msra.mxu0 %v4321
      %4459 = vmatprep.subr.mxu0 0.0
      %4460 = vmatpush1.msra.mxu0 %v4322
      %4461 = vmatprep.subr.mxu0 0.0
      %4462 = vmatpush1.msra.mxu0 %v4323
      %4463 = vmatprep.subr.mxu0 0.0
      %4464 = vmatpush1.msra.mxu0 %v4324
      %4465 = vmatprep.subr.mxu0 0.0
      %4466 = vmatpush1.msra.mxu0 %v4325
      %4467 = vmatprep.subr.mxu0 0.0
      %4468 = vmatpush1.msra.mxu0 %v4326
      %4469 = vmatprep.subr.mxu0 0.0
      %4470 = vmatpush1.msra.mxu0 %v4327
      %4471 = vmatprep.subr.mxu0 0.0
      %4472 = vmatpush1.msra.mxu0 %v4328
      %4473 = vmatprep.subr.mxu0 0.0
      %4474 = vmatpush1.msra.mxu0 %v4329
      %4475 = vmatprep.subr.mxu0 0.0
      %4476 = vmatpush1.msra.mxu0 %v4330
      %4477 = vmatprep.subr.mxu0 0.0
      %4478 = vmatpush1.msra.mxu0 %v4331
      %4479 = vmatprep.subr.mxu0 0.0
      %4480 = vmatpush1.msra.mxu0 %v4332
      %4481 = vmatprep.subr.mxu0 0.0
      %4482 = vmatpush1.msra.mxu0 %v4333
      %4483 = vmatprep.subr.mxu0 0.0
      %4484 = vmatpush1.msra.mxu0 %v4334
      %4485 = vmatprep.subr.mxu0 0.0
      %4486 = vmatpush1.msra.mxu0 %v4335
      %4487 = vmatprep.subr.mxu0 0.0
      %4488 = vmatpush1.msra.mxu0 %v4336
      %4489 = vmatprep.subr.mxu0 0.0
      %4490 = vmatpush1.msra.mxu0 %v4443
      %4491 = vmatprep.subr.mxu0 0.0
      %4492 = vmatpush1.msra.mxu0 0.0
      %4493 = vmatprep.subr.mxu0 0.0
      %4494 = vmatpush1.msra.mxu0 0.0
      %4495 = vmatprep.subr.mxu0 0.0
      %4496 = vmatpush1.msra.mxu0 0.0
      %4497 = vmatprep.subr.mxu0 0.0
      %4498 = vmatpush1.msra.mxu0 0.0
      %4499 = vmatprep.subr.mxu0 0.0
      %4500 = vmatpush1.msra.mxu0 0.0
      %4501 = vmatprep.subr.mxu0 0.0
      %4502 = vmatpush1.msra.mxu0 0.0
      %4503 = vmatprep.subr.mxu0 0.0
      %4504 = vmatpush1.msra.mxu0 0.0
      %4505 = vmatprep.subr.mxu0 0.0
      %4506 = vmatpush1.msra.mxu0 0.0
      %4507 = vmatprep.subr.mxu0 0.0
      %4508 = vmatpush1.msra.mxu0 0.0
      %4509 = vmatprep.mubr.f32.mxu0 %v4347
      %4510 = vmatmul.mubr.f32.gmra.mrb[0].mxu0 %v4250
      %v4511 = vpop.f32.mrb[0].mxu0
      %v4512 = vadd.f32 %v4344, %v4511
      %v4513 = vpop.f32.mrb[0].mxu0
      %4514 = vmatprep.mubr.f32.mxu0 %v4350
      %4515 = vmatmul.mubr.f32.gmra.mrb[0].mxu0 %v4252
      %v4516 = vpop.f32.mrb[0].mxu0
      %v4517 = vadd.f32 %v4344, %v4516
      %v4518 = vpop.f32.mrb[0].mxu0
      %4519 = vmatprep.mubr.f32.mxu0 %v4353
      %4520 = vmatmul.mubr.f32.gmra.mrb[0].mxu0 %v4254
      %v4521 = vpop.f32.mrb[0].mxu0
      %v4522 = vadd.f32 %v4344, %v4521
      %v4523 = vpop.f32.mrb[0].mxu0
      %4524 = vmatprep.mubr.f32.mxu0 %v4356
      %4525 = vmatmul.mubr.f32.gmra.mrb[0].mxu0 %v4256
      %v4526 = vpop.f32.mrb[0].mxu0
      %v4527 = vadd.f32 %v4344, %v4526
      %v4528 = vpop.f32.mrb[0].mxu0
      %4529 = vmatprep.mubr.f32.mxu0 %v4359
      %4530 = vmatmul.mubr.f32.gmra.mrb[0].mxu0 %v4258
      %v4531 = vpop.f32.mrb[0].mxu0
      %v4532 = vadd.f32 %v4344, %v4531
      %v4533 = vpop.f32.mrb[0].mxu0
      %4534 = vmatprep.mubr.f32.mxu0 %v4362
      %4535 = vmatmul.mubr.f32.gmra.mrb[0].mxu0 %v4260
      %v4536 = vpop.f32.mrb[0].mxu0
      %v4537 = vadd.f32 %v4344, %v4536
      %v4538 = vpop.f32.mrb[0].mxu0
      %4539 = vmatprep.mubr.f32.mxu0 %v4365
      %4540 = vmatmul.mubr.f32.gmra.mrb[0].mxu0 %v4262
      %v4541 = vpop.f32.mrb[0].mxu0
      %v4542 = vadd.f32 %v4344, %v4541
      %v4543 = vpop.f32.mrb[0].mxu0
      %4544 = vmatprep.mubr.f32.mxu0 %v4368
      %4545 = vmatmul.mubr.f32.gmra.mrb[0].mxu0 %v4264
      %v4546 = vpop.f32.mrb[0].mxu0
      %v4547 = vadd.f32 %v4344, %v4546
      %v4548 = vpop.f32.mrb[0].mxu0
      %4549 = vmatprep.mubr.f32.mxu0 %v4371
      %4550 = vmatmul.mubr.f32.gmra.mrb[0].mxu0 %v4266
      %v4551 = vpop.f32.mrb[0].mxu0
      %v4552 = vadd.f32 %v4344, %v4551
      %v4553 = vpop.f32.mrb[0].mxu0
      %4554 = vmatprep.mubr.f32.mxu0 %v4374
      %4555 = vmatmul.mubr.f32.gmra.mrb[0].mxu0 %v4268
      %v4556 = vpop.f32.mrb[0].mxu0
      %v4557 = vadd.f32 %v4344, %v4556
      %v4558 = vpop.f32.mrb[0].mxu0
      %4559 = vmatprep.mubr.f32.mxu0 %v4377
      %4560 = vmatmul.mubr.f32.gmra.mrb[0].mxu0 %v4270
      %v4561 = vpop.f32.mrb[0].mxu0
      %v4562 = vadd.f32 %v4344, %v4561
      %v4563 = vpop.f32.mrb[0].mxu0
      %4564 = vmatprep.mubr.f32.mxu0 %v4380
      %4565 = vmatmul.mubr.f32.gmra.mrb[0].mxu0 %v4272
      %v4566 = vpop.f32.mrb[0].mxu0
      %v4567 = vadd.f32 %v4344, %v4566
      %v4568 = vpop.f32.mrb[0].mxu0
      %4569 = vmatprep.mubr.f32.mxu0 %v4383
      %4570 = vmatmul.mubr.f32.gmra.mrb[0].mxu0 %v4274
      %v4571 = vpop.f32.mrb[0].mxu0
      %v4572 = vadd.f32 %v4344, %v4571
      %v4573 = vpop.f32.mrb[0].mxu0
      %4574 = vmatprep.mubr.f32.mxu0 %v4386
      %4575 = vmatmul.mubr.f32.gmra.mrb[0].mxu0 %v4276
      %v4576 = vpop.f32.mrb[0].mxu0
      %v4577 = vadd.f32 %v4344, %v4576
      %v4578 = vpop.f32.mrb[0].mxu0
      %4579 = vmatprep.mubr.f32.mxu0 %v4389
      %4580 = vmatmul.mubr.f32.gmra.mrb[0].mxu0 %v4278
      %v4581 = vpop.f32.mrb[0].mxu0
      %v4582 = vadd.f32 %v4344, %v4581
      %v4583 = vpop.f32.mrb[0].mxu0
      %4584 = vmatprep.mubr.f32.mxu0 %v4392
      %4585 = vmatmul.mubr.f32.gmra.mrb[0].mxu0 %v4280
      %v4586 = vpop.f32.mrb[0].mxu0
      %v4587 = vadd.f32 %v4344, %v4586
      %v4588 = vpop.f32.mrb[0].mxu0
      %4589 = vmatprep.mubr.f32.mxu0 %v4395
      %4590 = vmatmul.mubr.f32.gmra.mrb[0].mxu0 %v4282
      %v4591 = vpop.f32.mrb[0].mxu0
      %v4592 = vadd.f32 %v4344, %v4591
      %v4593 = vpop.f32.mrb[0].mxu0
      %4594 = vmatprep.mubr.f32.mxu0 %v4398
      %4595 = vmatmul.mubr.f32.gmra.mrb[0].mxu0 %v4284
      %v4596 = vpop.f32.mrb[0].mxu0
      %v4597 = vadd.f32 %v4344, %v4596
      %v4598 = vpop.f32.mrb[0].mxu0
      %4599 = vmatprep.mubr.f32.mxu0 %v4401
      %4600 = vmatmul.mubr.f32.gmra.mrb[0].mxu0 %v4286
      %v4601 = vpop.f32.mrb[0].mxu0
      %v4602 = vadd.f32 %v4344, %v4601
      %v4603 = vpop.f32.mrb[0].mxu0
      %4604 = vmatprep.mubr.f32.mxu0 %v4404
      %4605 = vmatmul.mubr.f32.gmra.mrb[0].mxu0 %v4288
      %v4606 = vpop.f32.mrb[0].mxu0
      %v4607 = vadd.f32 %v4344, %v4606
      %v4608 = vpop.f32.mrb[0].mxu0
      %4609 = vmatprep.mubr.f32.mxu0 %v4407
      %4610 = vmatmul.mubr.f32.gmra.mrb[0].mxu0 %v4290
      %v4611 = vpop.f32.mrb[0].mxu0
      %v4612 = vadd.f32 %v4344, %v4611
      %v4613 = vpop.f32.mrb[0].mxu0
      %4614 = vmatprep.mubr.f32.mxu0 %v4410
      %4615 = vmatmul.mubr.f32.gmra.mrb[0].mxu0 %v4292
      %v4616 = vpop.f32.mrb[0].mxu0
      %v4617 = vadd.f32 %v4344, %v4616
      %v4618 = vpop.f32.mrb[0].mxu0
      %4619 = vmatprep.mubr.f32.mxu0 %v4413
      %4620 = vmatmul.mubr.f32.gmra.mrb[0].mxu0 %v4294
      %v4621 = vpop.f32.mrb[0].mxu0
      %v4622 = vadd.f32 %v4344, %v4621
      %v4623 = vpop.f32.mrb[0].mxu0
      %4624 = vmatprep.mubr.f32.mxu0 %v4416
      %4625 = vmatmul.mubr.f32.gmra.mrb[0].mxu0 %v4296
      %v4626 = vpop.f32.mrb[0].mxu0
      %v4627 = vadd.f32 %v4344, %v4626
      %v4628 = vpop.f32.mrb[0].mxu0
      %4629 = vmatprep.mubr.f32.mxu0 %v4419
      %4630 = vmatmul.mubr.f32.gmra.mrb[0].mxu0 %v4298
      %v4631 = vpop.f32.mrb[0].mxu0
      %v4632 = vadd.f32 %v4344, %v4631
      %v4633 = vpop.f32.mrb[0].mxu0
      %4634 = vmatprep.mubr.f32.mxu0 %v4422
      %4635 = vmatmul.mubr.f32.gmra.mrb[0].mxu0 %v4300
      %v4636 = vpop.f32.mrb[0].mxu0
      %v4637 = vadd.f32 %v4344, %v4636
      %v4638 = vpop.f32.mrb[0].mxu0
      %4639 = vmatprep.mubr.f32.mxu0 %v4425
      %4640 = vmatmul.mubr.f32.gmra.mrb[0].mxu0 %v4302
      %v4641 = vpop.f32.mrb[0].mxu0
      %v4642 = vadd.f32 %v4344, %v4641
      %v4643 = vpop.f32.mrb[0].mxu0
      %4644 = vmatprep.mubr.f32.mxu0 %v4428
      %4645 = vmatmul.mubr.f32.gmra.mrb[0].mxu0 %v4304
      %v4646 = vpop.f32.mrb[0].mxu0
      %v4647 = vadd.f32 %v4344, %v4646
      %v4648 = vpop.f32.mrb[0].mxu0
      %4649 = vmatprep.mubr.f32.mxu0 %v4431
      %4650 = vmatmul.mubr.f32.gmra.mrb[0].mxu0 %v4306
      %v4651 = vpop.f32.mrb[0].mxu0
      %v4652 = vadd.f32 %v4344, %v4651
      %v4653 = vpop.f32.mrb[0].mxu0
      %4654 = vmatprep.mubr.f32.mxu0 %v4434
      %4655 = vmatmul.mubr.f32.gmra.mrb[0].mxu0 %v4308
      %v4656 = vpop.f32.mrb[0].mxu0
      %v4657 = vadd.f32 %v4344, %v4656
      %v4658 = vpop.f32.mrb[0].mxu0
      %4659 = vmatprep.mubr.f32.mxu0 %v4437
      %4660 = vmatmul.mubr.f32.gmra.mrb[0].mxu0 %v4310
      %v4661 = vpop.f32.mrb[0].mxu0
      %v4662 = vadd.f32 %v4344, %v4661
      %v4663 = vpop.f32.mrb[0].mxu0
      %4664 = vmatprep.mubr.f32.mxu0 %v4440
      %4665 = vmatmul.mubr.f32.gmra.mrb[0].mxu0 %v4312
      %v4666 = vpop.f32.mrb[0].mxu0
      %v4667 = vadd.f32 %v4344, %v4666
      %v4668 = vpop.f32.mrb[0].mxu0
      %4669 = vdwg.mxu0
      %vm4670 = vcmp.ge.f32.partialorder %v4512, 0.0
      %vm4671 = vcmp.ge.f32.partialorder %v4517, 0.0
      %vm4672 = vcmp.ge.f32.partialorder %v4522, 0.0
      %vm4673 = vcmp.ge.f32.partialorder %v4527, 0.0
      %vm4674 = vcmp.ge.f32.partialorder %v4532, 0.0
      %vm4675 = vcmp.ge.f32.partialorder %v4537, 0.0
      %vm4676 = vcmp.ge.f32.partialorder %v4542, 0.0
      %vm4677 = vcmp.ge.f32.partialorder %v4547, 0.0
      %vm4678 = vcmp.ge.f32.partialorder %v4552, 0.0
      %vm4679 = vcmp.ge.f32.partialorder %v4557, 0.0
      %vm4680 = vcmp.ge.f32.partialorder %v4562, 0.0
      %vm4681 = vcmp.ge.f32.partialorder %v4567, 0.0
      %vm4682 = vcmp.ge.f32.partialorder %v4572, 0.0
      %vm4683 = vcmp.ge.f32.partialorder %v4577, 0.0
      %vm4684 = vcmp.ge.f32.partialorder %v4582, 0.0
      %vm4685 = vcmp.ge.f32.partialorder %v4587, 0.0
      %vm4686 = vcmp.ge.f32.partialorder %v4592, 0.0
      %vm4687 = vcmp.ge.f32.partialorder %v4597, 0.0
      %vm4688 = vcmp.ge.f32.partialorder %v4602, 0.0
      %vm4689 = vcmp.ge.f32.partialorder %v4607, 0.0
      %vm4690 = vcmp.ge.f32.partialorder %v4612, 0.0
      %vm4691 = vcmp.ge.f32.partialorder %v4617, 0.0
      %vm4692 = vcmp.ge.f32.partialorder %v4622, 0.0
      %vm4693 = vcmp.ge.f32.partialorder %v4627, 0.0
      %vm4694 = vcmp.ge.f32.partialorder %v4632, 0.0
      %vm4695 = vcmp.ge.f32.partialorder %v4637, 0.0
      %vm4696 = vcmp.ge.f32.partialorder %v4642, 0.0
      %vm4697 = vcmp.ge.f32.partialorder %v4647, 0.0
      %vm4698 = vcmp.ge.f32.partialorder %v4652, 0.0
      %vm4699 = vcmp.ge.f32.partialorder %v4657, 0.0
      %vm4700 = vcmp.ge.f32.partialorder %v4662, 0.0
      %vm4701 = vcmp.ge.f32.partialorder %v4667, 0.0
      %v4702 = vmul.f32 %v4512, 0.2
      %v4703 = vmul.f32 %v4517, 0.2
      %v4704 = vmul.f32 %v4522, 0.2
      %v4705 = vmul.f32 %v4527, 0.2
      %v4706 = vmul.f32 %v4532, 0.2
      %v4707 = vmul.f32 %v4537, 0.2
      %v4708 = vmul.f32 %v4542, 0.2
      %v4709 = vmul.f32 %v4547, 0.2
      %v4710 = vmul.f32 %v4552, 0.2
      %v4711 = vmul.f32 %v4557, 0.2
      %v4712 = vmul.f32 %v4562, 0.2
      %v4713 = vmul.f32 %v4567, 0.2
      %v4714 = vmul.f32 %v4572, 0.2
      %v4715 = vmul.f32 %v4577, 0.2
      %v4716 = vmul.f32 %v4582, 0.2
      %v4717 = vmul.f32 %v4587, 0.2
      %v4718 = vmul.f32 %v4592, 0.2
      %v4719 = vmul.f32 %v4597, 0.2
      %v4720 = vmul.f32 %v4602, 0.2
      %v4721 = vmul.f32 %v4607, 0.2
      %v4722 = vmul.f32 %v4612, 0.2
      %v4723 = vmul.f32 %v4617, 0.2
      %v4724 = vmul.f32 %v4622, 0.2
      %v4725 = vmul.f32 %v4627, 0.2
      %v4726 = vmul.f32 %v4632, 0.2
      %v4727 = vmul.f32 %v4637, 0.2
      %v4728 = vmul.f32 %v4642, 0.2
      %v4729 = vmul.f32 %v4647, 0.2
      %v4730 = vmul.f32 %v4652, 0.2
      %v4731 = vmul.f32 %v4657, 0.2
      %v4732 = vmul.f32 %v4662, 0.2
      %v4733 = vmul.f32 %v4667, 0.2
      %v4734 = vsel %vm4670, %v4512, %v4702
      %v4735 = vsel %vm4671, %v4517, %v4703
      %v4736 = vsel %vm4672, %v4522, %v4704
      %v4737 = vsel %vm4673, %v4527, %v4705
      %v4738 = vsel %vm4674, %v4532, %v4706
      %v4739 = vsel %vm4675, %v4537, %v4707
      %v4740 = vsel %vm4676, %v4542, %v4708
      %v4741 = vsel %vm4677, %v4547, %v4709
      %v4742 = vsel %vm4678, %v4552, %v4710
      %v4743 = vsel %vm4679, %v4557, %v4711
      %v4744 = vsel %vm4680, %v4562, %v4712
      %v4745 = vsel %vm4681, %v4567, %v4713
      %v4746 = vsel %vm4682, %v4572, %v4714
      %v4747 = vsel %vm4683, %v4577, %v4715
      %v4748 = vsel %vm4684, %v4582, %v4716
      %v4749 = vsel %vm4685, %v4587, %v4717
      %v4750 = vsel %vm4686, %v4592, %v4718
      %v4751 = vsel %vm4687, %v4597, %v4719
      %v4752 = vsel %vm4688, %v4602, %v4720
      %v4753 = vsel %vm4689, %v4607, %v4721
      %v4754 = vsel %vm4690, %v4612, %v4722
      %v4755 = vsel %vm4691, %v4617, %v4723
      %v4756 = vsel %vm4692, %v4622, %v4724
      %v4757 = vsel %vm4693, %v4627, %v4725
      %v4758 = vsel %vm4694, %v4632, %v4726
      %v4759 = vsel %vm4695, %v4637, %v4727
      %v4760 = vsel %vm4696, %v4642, %v4728
      %v4761 = vsel %vm4697, %v4647, %v4729
      %v4762 = vsel %vm4698, %v4652, %v4730
      %v4763 = vsel %vm4699, %v4657, %v4731
      %v4764 = vsel %vm4700, %v4662, %v4732
      %v4765 = vsel %vm4701, %v4667, %v4733
      %4766 = vst.msk [vmem:[%s324 + $0x1] sm:$0xff] %vm171, %v4734
      %4767 = vst.msk [vmem:[%s324 + $0x9] sm:$0xff] %vm171, %v4735
      %4768 = vst.msk [vmem:[%s324 + $0x19] sm:$0xff] %vm171, %v4736
      %4769 = vst.msk [vmem:[%s324 + $0x21] sm:$0xff] %vm171, %v4737
      %4770 = vst.msk [vmem:[%s324 + $0x31] sm:$0xff] %vm171, %v4738
      %4771 = vst.msk [vmem:[%s324 + $0x39] sm:$0xff] %vm171, %v4739
      %4772 = vst.msk [vmem:[%s324 + $0x49] sm:$0xff] %vm171, %v4740
      %4773 = vst.msk [vmem:[%s324 + $0x51] sm:$0xff] %vm171, %v4741
      %4774 = vst.msk [vmem:[%s324 + $0x61] sm:$0xff] %vm171, %v4742
      %4775 = vst.msk [vmem:[%s324 + $0x69] sm:$0xff] %vm171, %v4743
      %4776 = vst.msk [vmem:[%s324 + $0x79] sm:$0xff] %vm171, %v4744
      %4777 = vst.msk [vmem:[%s324 + $0x81] sm:$0xff] %vm171, %v4745
      %4778 = vst.msk [vmem:[%s324 + $0x91] sm:$0xff] %vm171, %v4746
      %4779 = vst.msk [vmem:[%s324 + $0x99] sm:$0xff] %vm171, %v4747
      %4780 = vst.msk [vmem:[%s324 + $0xa9] sm:$0xff] %vm171, %v4748
      %4781 = vst.msk [vmem:[%s324 + $0xb1] sm:$0xff] %vm171, %v4749
      %4782 = vst.msk [vmem:[%s324 + $0xc1] sm:$0xff] %vm171, %v4750
      %4783 = vst.msk [vmem:[%s324 + $0xc9] sm:$0xff] %vm171, %v4751
      %4784 = vst.msk [vmem:[%s324 + $0xd9] sm:$0xff] %vm171, %v4752
      %4785 = vst.msk [vmem:[%s324 + $0xe1] sm:$0xff] %vm171, %v4753
      %4786 = vst.msk [vmem:[%s324 + $0xf1] sm:$0xff] %vm171, %v4754
      %4787 = vst.msk [vmem:[%s324 + $0xf9] sm:$0xff] %vm171, %v4755
      %4788 = vst.msk [vmem:[%s324 + $0x109] sm:$0xff] %vm171, %v4756
      %4789 = vst.msk [vmem:[%s324 + $0x111] sm:$0xff] %vm171, %v4757
      %4790 = vst.msk [vmem:[%s324 + $0x121] sm:$0xff] %vm171, %v4758
      %4791 = vst.msk [vmem:[%s324 + $0x129] sm:$0xff] %vm171, %v4759
      %4792 = vst.msk [vmem:[%s324 + $0x139] sm:$0xff] %vm171, %v4760
      %4793 = vst.msk [vmem:[%s324 + $0x141] sm:$0xff] %vm171, %v4761
      %4794 = vst.msk [vmem:[%s324 + $0x151] sm:$0xff] %vm171, %v4762
      %4795 = vst.msk [vmem:[%s324 + $0x159] sm:$0xff] %vm171, %v4763
      %4796 = vst.msk [vmem:[%s324 + $0x169] sm:$0xff] %vm171, %v4764
      %4797 = vst.msk [vmem:[%s324 + $0x171] sm:$0xff] %vm171, %v4765
      %v4798 = vld [vmem:[#allocation2] sm:$0xff]
      %v4799 = vld [vmem:[#allocation2 + $0x8] sm:$0xff]
      %v4800 = vld [vmem:[#allocation2 + $0x18] sm:$0xff]
      %v4801 = vld [vmem:[#allocation2 + $0x20] sm:$0xff]
      %v4802 = vld [vmem:[#allocation2 + $0x30] sm:$0xff]
      %v4803 = vld [vmem:[#allocation2 + $0x38] sm:$0xff]
      %v4804 = vld [vmem:[#allocation2 + $0x48] sm:$0xff]
      %v4805 = vld [vmem:[#allocation2 + $0x50] sm:$0xff]
      %v4806 = vld [vmem:[#allocation2 + $0x60] sm:$0xff]
      %v4807 = vld [vmem:[#allocation2 + $0x68] sm:$0xff]
      %v4808 = vld [vmem:[#allocation2 + $0x78] sm:$0xff]
      %v4809 = vld [vmem:[#allocation2 + $0x80] sm:$0xff]
      %v4810 = vld [vmem:[#allocation2 + $0x90] sm:$0xff]
      %v4811 = vld [vmem:[#allocation2 + $0x98] sm:$0xff]
      %v4812 = vld [vmem:[#allocation2 + $0xa8] sm:$0xff]
      %v4813 = vld [vmem:[#allocation2 + $0xb0] sm:$0xff]
      %v4814 = vld [vmem:[#allocation2 + $0xc0] sm:$0xff]
      %v4815 = vld [vmem:[#allocation2 + $0xc8] sm:$0xff]
      %v4816 = vld [vmem:[#allocation2 + $0xd8] sm:$0xff]
      %v4817 = vld [vmem:[#allocation2 + $0xe0] sm:$0xff]
      %v4818 = vld [vmem:[#allocation2 + $0xf0] sm:$0xff]
      %v4819 = vld [vmem:[#allocation2 + $0xf8] sm:$0xff]
      %v4820 = vld [vmem:[#allocation2 + $0x108] sm:$0xff]
      %v4821 = vld [vmem:[#allocation2 + $0x110] sm:$0xff]
      %v4822 = vld [vmem:[#allocation2 + $0x120] sm:$0xff]
      %v4823 = vld [vmem:[#allocation2 + $0x128] sm:$0xff]
      %v4824 = vld [vmem:[#allocation2 + $0x138] sm:$0xff]
      %v4825 = vld [vmem:[#allocation2 + $0x140] sm:$0xff]
      %v4826 = vld [vmem:[#allocation2 + $0x150] sm:$0xff]
      %v4827 = vld [vmem:[#allocation2 + $0x158] sm:$0xff]
      %v4828 = vld [vmem:[#allocation2 + $0x168] sm:$0xff]
      %v4829 = vld [vmem:[#allocation2 + $0x170] sm:$0xff]
      %4862 = vrot.lane.b32.xlu0 %v4798, 72
      %v4863 = vpop.permute.xlu0 %4862
      %4864 = vrot.lane.b32.xlu0 %v4799, 72
      %v4865 = vpop.permute.xlu0 %4864
      %4866 = vrot.lane.b32.xlu0 %v4800, 72
      %v4867 = vpop.permute.xlu0 %4866
      %4868 = vrot.lane.b32.xlu0 %v4801, 72
      %v4869 = vpop.permute.xlu0 %4868
      %4870 = vrot.lane.b32.xlu0 %v4802, 72
      %v4871 = vpop.permute.xlu0 %4870
      %4872 = vrot.lane.b32.xlu0 %v4803, 72
      %v4873 = vpop.permute.xlu0 %4872
      %4874 = vrot.lane.b32.xlu0 %v4804, 72
      %v4875 = vpop.permute.xlu0 %4874
      %4876 = vrot.lane.b32.xlu0 %v4805, 72
      %v4877 = vpop.permute.xlu0 %4876
      %4878 = vrot.lane.b32.xlu0 %v4806, 72
      %v4879 = vpop.permute.xlu0 %4878
      %4880 = vrot.lane.b32.xlu0 %v4807, 72
      %v4881 = vpop.permute.xlu0 %4880
      %4882 = vrot.lane.b32.xlu0 %v4808, 72
      %v4883 = vpop.permute.xlu0 %4882
      %4884 = vrot.lane.b32.xlu0 %v4809, 72
      %v4885 = vpop.permute.xlu0 %4884
      %4886 = vrot.lane.b32.xlu0 %v4810, 72
      %v4887 = vpop.permute.xlu0 %4886
      %4888 = vrot.lane.b32.xlu0 %v4811, 72
      %v4889 = vpop.permute.xlu0 %4888
      %4890 = vrot.lane.b32.xlu0 %v4812, 72
      %v4891 = vpop.permute.xlu0 %4890
      %4892 = vrot.lane.b32.xlu0 %v4813, 72
      %v4893 = vpop.permute.xlu0 %4892
      %4894 = vrot.lane.b32.xlu0 %v4814, 72
      %v4895 = vpop.permute.xlu0 %4894
      %4896 = vrot.lane.b32.xlu0 %v4815, 72
      %v4897 = vpop.permute.xlu0 %4896
      %4898 = vrot.lane.b32.xlu0 %v4816, 72
      %v4899 = vpop.permute.xlu0 %4898
      %4900 = vrot.lane.b32.xlu0 %v4817, 72
      %v4901 = vpop.permute.xlu0 %4900
      %4902 = vrot.lane.b32.xlu0 %v4818, 72
      %v4903 = vpop.permute.xlu0 %4902
      %4904 = vrot.lane.b32.xlu0 %v4819, 72
      %v4905 = vpop.permute.xlu0 %4904
      %4906 = vrot.lane.b32.xlu0 %v4820, 72
      %v4907 = vpop.permute.xlu0 %4906
      %4908 = vrot.lane.b32.xlu0 %v4821, 72
      %v4909 = vpop.permute.xlu0 %4908
      %4910 = vrot.lane.b32.xlu0 %v4822, 72
      %v4911 = vpop.permute.xlu0 %4910
      %4912 = vrot.lane.b32.xlu0 %v4823, 72
      %v4913 = vpop.permute.xlu0 %4912
      %4914 = vrot.lane.b32.xlu0 %v4824, 72
      %v4915 = vpop.permute.xlu0 %4914
      %4916 = vrot.lane.b32.xlu0 %v4825, 72
      %v4917 = vpop.permute.xlu0 %4916
      %4918 = vrot.lane.b32.xlu0 %v4826, 72
      %v4919 = vpop.permute.xlu0 %4918
      %4920 = vrot.lane.b32.xlu0 %v4827, 72
      %v4921 = vpop.permute.xlu0 %4920
      %4922 = vrot.lane.b32.xlu0 %v4828, 72
      %v4923 = vpop.permute.xlu0 %4922
      %4924 = vrot.lane.b32.xlu0 %v4829, 72
      %v4925 = vpop.permute.xlu0 %4924
      %vm4958 = vcmask 622144
      %4959 = vst.msk [vmem:[#allocation3] sm:$0xff] %vm4958, %v4863
      %4960 = vst.msk [vmem:[#allocation3 + $0x10] sm:$0xff] %vm4958, %v4865
      %4961 = vst.msk [vmem:[#allocation3 + $0x20] sm:$0xff] %vm4958, %v4867
      %4962 = vst.msk [vmem:[#allocation3 + $0x30] sm:$0xff] %vm4958, %v4869
      %4963 = vst.msk [vmem:[#allocation3 + $0x40] sm:$0xff] %vm4958, %v4871
      %4964 = vst.msk [vmem:[#allocation3 + $0x50] sm:$0xff] %vm4958, %v4873
      %4965 = vst.msk [vmem:[#allocation3 + $0x60] sm:$0xff] %vm4958, %v4875
      %4966 = vst.msk [vmem:[#allocation3 + $0x70] sm:$0xff] %vm4958, %v4877
      %4967 = vst.msk [vmem:[#allocation3 + $0x80] sm:$0xff] %vm4958, %v4879
      %4968 = vst.msk [vmem:[#allocation3 + $0x90] sm:$0xff] %vm4958, %v4881
      %4969 = vst.msk [vmem:[#allocation3 + $0xa0] sm:$0xff] %vm4958, %v4883
      %4970 = vst.msk [vmem:[#allocation3 + $0xb0] sm:$0xff] %vm4958, %v4885
      %4971 = vst.msk [vmem:[#allocation3 + $0xc0] sm:$0xff] %vm4958, %v4887
      %4972 = vst.msk [vmem:[#allocation3 + $0xd0] sm:$0xff] %vm4958, %v4889
      %4973 = vst.msk [vmem:[#allocation3 + $0xe0] sm:$0xff] %vm4958, %v4891
      %4974 = vst.msk [vmem:[#allocation3 + $0xf0] sm:$0xff] %vm4958, %v4893
      %4975 = vst.msk [vmem:[#allocation3 + $0x100] sm:$0xff] %vm4958, %v4895
      %4976 = vst.msk [vmem:[#allocation3 + $0x110] sm:$0xff] %vm4958, %v4897
      %4977 = vst.msk [vmem:[#allocation3 + $0x120] sm:$0xff] %vm4958, %v4899
      %4978 = vst.msk [vmem:[#allocation3 + $0x130] sm:$0xff] %vm4958, %v4901
      %4979 = vst.msk [vmem:[#allocation3 + $0x140] sm:$0xff] %vm4958, %v4903
      %4980 = vst.msk [vmem:[#allocation3 + $0x150] sm:$0xff] %vm4958, %v4905
      %4981 = vst.msk [vmem:[#allocation3 + $0x160] sm:$0xff] %vm4958, %v4907
      %4982 = vst.msk [vmem:[#allocation3 + $0x170] sm:$0xff] %vm4958, %v4909
      %4983 = vst.msk [vmem:[#allocation3 + $0x180] sm:$0xff] %vm4958, %v4911
      %4984 = vst.msk [vmem:[#allocation3 + $0x190] sm:$0xff] %vm4958, %v4913
      %4985 = vst.msk [vmem:[#allocation3 + $0x1a0] sm:$0xff] %vm4958, %v4915
      %4986 = vst.msk [vmem:[#allocation3 + $0x1b0] sm:$0xff] %vm4958, %v4917
      %4987 = vst.msk [vmem:[#allocation3 + $0x1c0] sm:$0xff] %vm4958, %v4919
      %4988 = vst.msk [vmem:[#allocation3 + $0x1d0] sm:$0xff] %vm4958, %v4921
      %4989 = vst.msk [vmem:[#allocation3 + $0x1e0] sm:$0xff] %vm4958, %v4923
      %4990 = vst.msk [vmem:[#allocation3 + $0x1f0] sm:$0xff] %vm4958, %v4925
      %v4991 = vld [vmem:[#allocation2 + $0x1] sm:$0xff]
      %v4992 = vld [vmem:[#allocation2 + $0x9] sm:$0xff]
      %v4993 = vld [vmem:[#allocation2 + $0x19] sm:$0xff]
      %v4994 = vld [vmem:[#allocation2 + $0x21] sm:$0xff]
      %v4995 = vld [vmem:[#allocation2 + $0x31] sm:$0xff]
      %v4996 = vld [vmem:[#allocation2 + $0x39] sm:$0xff]
      %v4997 = vld [vmem:[#allocation2 + $0x49] sm:$0xff]
      %v4998 = vld [vmem:[#allocation2 + $0x51] sm:$0xff]
      %v4999 = vld [vmem:[#allocation2 + $0x61] sm:$0xff]
      %v5000 = vld [vmem:[#allocation2 + $0x69] sm:$0xff]
      %v5001 = vld [vmem:[#allocation2 + $0x79] sm:$0xff]
      %v5002 = vld [vmem:[#allocation2 + $0x81] sm:$0xff]
      %v5003 = vld [vmem:[#allocation2 + $0x91] sm:$0xff]
      %v5004 = vld [vmem:[#allocation2 + $0x99] sm:$0xff]
      %v5005 = vld [vmem:[#allocation2 + $0xa9] sm:$0xff]
      %v5006 = vld [vmem:[#allocation2 + $0xb1] sm:$0xff]
      %v5007 = vld [vmem:[#allocation2 + $0xc1] sm:$0xff]
      %v5008 = vld [vmem:[#allocation2 + $0xc9] sm:$0xff]
      %v5009 = vld [vmem:[#allocation2 + $0xd9] sm:$0xff]
      %v5010 = vld [vmem:[#allocation2 + $0xe1] sm:$0xff]
      %v5011 = vld [vmem:[#allocation2 + $0xf1] sm:$0xff]
      %v5012 = vld [vmem:[#allocation2 + $0xf9] sm:$0xff]
      %v5013 = vld [vmem:[#allocation2 + $0x109] sm:$0xff]
      %v5014 = vld [vmem:[#allocation2 + $0x111] sm:$0xff]
      %v5015 = vld [vmem:[#allocation2 + $0x121] sm:$0xff]
      %v5016 = vld [vmem:[#allocation2 + $0x129] sm:$0xff]
      %v5017 = vld [vmem:[#allocation2 + $0x139] sm:$0xff]
      %v5018 = vld [vmem:[#allocation2 + $0x141] sm:$0xff]
      %v5019 = vld [vmem:[#allocation2 + $0x151] sm:$0xff]
      %v5020 = vld [vmem:[#allocation2 + $0x159] sm:$0xff]
      %v5021 = vld [vmem:[#allocation2 + $0x169] sm:$0xff]
      %v5022 = vld [vmem:[#allocation2 + $0x171] sm:$0xff]
      %5055 = vrot.lane.b32.xlu0 %v4991, 76
      %v5056 = vpop.permute.xlu0 %5055
      %5057 = vrot.lane.b32.xlu0 %v4992, 76
      %v5058 = vpop.permute.xlu0 %5057
      %5059 = vrot.lane.b32.xlu0 %v4993, 76
      %v5060 = vpop.permute.xlu0 %5059
      %5061 = vrot.lane.b32.xlu0 %v4994, 76
      %v5062 = vpop.permute.xlu0 %5061
      %5063 = vrot.lane.b32.xlu0 %v4995, 76
      %v5064 = vpop.permute.xlu0 %5063
      %5065 = vrot.lane.b32.xlu0 %v4996, 76
      %v5066 = vpop.permute.xlu0 %5065
      %5067 = vrot.lane.b32.xlu0 %v4997, 76
      %v5068 = vpop.permute.xlu0 %5067
      %5069 = vrot.lane.b32.xlu0 %v4998, 76
      %v5070 = vpop.permute.xlu0 %5069
      %5071 = vrot.lane.b32.xlu0 %v4999, 76
      %v5072 = vpop.permute.xlu0 %5071
      %5073 = vrot.lane.b32.xlu0 %v5000, 76
      %v5074 = vpop.permute.xlu0 %5073
      %5075 = vrot.lane.b32.xlu0 %v5001, 76
      %v5076 = vpop.permute.xlu0 %5075
      %5077 = vrot.lane.b32.xlu0 %v5002, 76
      %v5078 = vpop.permute.xlu0 %5077
      %5079 = vrot.lane.b32.xlu0 %v5003, 76
      %v5080 = vpop.permute.xlu0 %5079
      %5081 = vrot.lane.b32.xlu0 %v5004, 76
      %v5082 = vpop.permute.xlu0 %5081
      %5083 = vrot.lane.b32.xlu0 %v5005, 76
      %v5084 = vpop.permute.xlu0 %5083
      %5085 = vrot.lane.b32.xlu0 %v5006, 76
      %v5086 = vpop.permute.xlu0 %5085
      %5087 = vrot.lane.b32.xlu0 %v5007, 76
      %v5088 = vpop.permute.xlu0 %5087
      %5089 = vrot.lane.b32.xlu0 %v5008, 76
      %v5090 = vpop.permute.xlu0 %5089
      %5091 = vrot.lane.b32.xlu0 %v5009, 76
      %v5092 = vpop.permute.xlu0 %5091
      %5093 = vrot.lane.b32.xlu0 %v5010, 76
      %v5094 = vpop.permute.xlu0 %5093
      %5095 = vrot.lane.b32.xlu0 %v5011, 76
      %v5096 = vpop.permute.xlu0 %5095
      %5097 = vrot.lane.b32.xlu0 %v5012, 76
      %v5098 = vpop.permute.xlu0 %5097
      %5099 = vrot.lane.b32.xlu0 %v5013, 76
      %v5100 = vpop.permute.xlu0 %5099
      %5101 = vrot.lane.b32.xlu0 %v5014, 76
      %v5102 = vpop.permute.xlu0 %5101
      %5103 = vrot.lane.b32.xlu0 %v5015, 76
      %v5104 = vpop.permute.xlu0 %5103
      %5105 = vrot.lane.b32.xlu0 %v5016, 76
      %v5106 = vpop.permute.xlu0 %5105
      %5107 = vrot.lane.b32.xlu0 %v5017, 76
      %v5108 = vpop.permute.xlu0 %5107
      %5109 = vrot.lane.b32.xlu0 %v5018, 76
      %v5110 = vpop.permute.xlu0 %5109
      %5111 = vrot.lane.b32.xlu0 %v5019, 76
      %v5112 = vpop.permute.xlu0 %5111
      %5113 = vrot.lane.b32.xlu0 %v5020, 76
      %v5114 = vpop.permute.xlu0 %5113
      %5115 = vrot.lane.b32.xlu0 %v5021, 76
      %v5116 = vpop.permute.xlu0 %5115
      %5117 = vrot.lane.b32.xlu0 %v5022, 76
      %v5118 = vpop.permute.xlu0 %5117
      %vm5151 = vcmask 654944
      %5152 = vst.msk [vmem:[#allocation3] sm:$0xff] %vm5151, %v5056
      %5153 = vst.msk [vmem:[#allocation3 + $0x10] sm:$0xff] %vm5151, %v5058
      %5154 = vst.msk [vmem:[#allocation3 + $0x20] sm:$0xff] %vm5151, %v5060
      %5155 = vst.msk [vmem:[#allocation3 + $0x30] sm:$0xff] %vm5151, %v5062
      %5156 = vst.msk [vmem:[#allocation3 + $0x40] sm:$0xff] %vm5151, %v5064
      %5157 = vst.msk [vmem:[#allocation3 + $0x50] sm:$0xff] %vm5151, %v5066
      %5158 = vst.msk [vmem:[#allocation3 + $0x60] sm:$0xff] %vm5151, %v5068
      %5159 = vst.msk [vmem:[#allocation3 + $0x70] sm:$0xff] %vm5151, %v5070
      %5160 = vst.msk [vmem:[#allocation3 + $0x80] sm:$0xff] %vm5151, %v5072
      %5161 = vst.msk [vmem:[#allocation3 + $0x90] sm:$0xff] %vm5151, %v5074
      %5162 = vst.msk [vmem:[#allocation3 + $0xa0] sm:$0xff] %vm5151, %v5076
      %5163 = vst.msk [vmem:[#allocation3 + $0xb0] sm:$0xff] %vm5151, %v5078
      %5164 = vst.msk [vmem:[#allocation3 + $0xc0] sm:$0xff] %vm5151, %v5080
      %5165 = vst.msk [vmem:[#allocation3 + $0xd0] sm:$0xff] %vm5151, %v5082
      %5166 = vst.msk [vmem:[#allocation3 + $0xe0] sm:$0xff] %vm5151, %v5084
      %5167 = vst.msk [vmem:[#allocation3 + $0xf0] sm:$0xff] %vm5151, %v5086
      %5168 = vst.msk [vmem:[#allocation3 + $0x100] sm:$0xff] %vm5151, %v5088
      %5169 = vst.msk [vmem:[#allocation3 + $0x110] sm:$0xff] %vm5151, %v5090
      %5170 = vst.msk [vmem:[#allocation3 + $0x120] sm:$0xff] %vm5151, %v5092
      %5171 = vst.msk [vmem:[#allocation3 + $0x130] sm:$0xff] %vm5151, %v5094
      %5172 = vst.msk [vmem:[#allocation3 + $0x140] sm:$0xff] %vm5151, %v5096
      %5173 = vst.msk [vmem:[#allocation3 + $0x150] sm:$0xff] %vm5151, %v5098
      %5174 = vst.msk [vmem:[#allocation3 + $0x160] sm:$0xff] %vm5151, %v5100
      %5175 = vst.msk [vmem:[#allocation3 + $0x170] sm:$0xff] %vm5151, %v5102
      %5176 = vst.msk [vmem:[#allocation3 + $0x180] sm:$0xff] %vm5151, %v5104
      %5177 = vst.msk [vmem:[#allocation3 + $0x190] sm:$0xff] %vm5151, %v5106
      %5178 = vst.msk [vmem:[#allocation3 + $0x1a0] sm:$0xff] %vm5151, %v5108
      %5179 = vst.msk [vmem:[#allocation3 + $0x1b0] sm:$0xff] %vm5151, %v5110
      %5180 = vst.msk [vmem:[#allocation3 + $0x1c0] sm:$0xff] %vm5151, %v5112
      %5181 = vst.msk [vmem:[#allocation3 + $0x1d0] sm:$0xff] %vm5151, %v5114
      %5182 = vst.msk [vmem:[#allocation3 + $0x1e0] sm:$0xff] %vm5151, %v5116
      %5183 = vst.msk [vmem:[#allocation3 + $0x1f0] sm:$0xff] %vm5151, %v5118
      %v5184 = vld [vmem:[#allocation2 + $0x2] sm:$0xff]
      %v5185 = vld [vmem:[#allocation2 + $0xa] sm:$0xff]
      %v5186 = vld [vmem:[#allocation2 + $0x1a] sm:$0xff]
      %v5187 = vld [vmem:[#allocation2 + $0x22] sm:$0xff]
      %v5188 = vld [vmem:[#allocation2 + $0x32] sm:$0xff]
      %v5189 = vld [vmem:[#allocation2 + $0x3a] sm:$0xff]
      %v5190 = vld [vmem:[#allocation2 + $0x4a] sm:$0xff]
      %v5191 = vld [vmem:[#allocation2 + $0x52] sm:$0xff]
      %v5192 = vld [vmem:[#allocation2 + $0x62] sm:$0xff]
      %v5193 = vld [vmem:[#allocation2 + $0x6a] sm:$0xff]
      %v5194 = vld [vmem:[#allocation2 + $0x7a] sm:$0xff]
      %v5195 = vld [vmem:[#allocation2 + $0x82] sm:$0xff]
      %v5196 = vld [vmem:[#allocation2 + $0x92] sm:$0xff]
      %v5197 = vld [vmem:[#allocation2 + $0x9a] sm:$0xff]
      %v5198 = vld [vmem:[#allocation2 + $0xaa] sm:$0xff]
      %v5199 = vld [vmem:[#allocation2 + $0xb2] sm:$0xff]
      %v5200 = vld [vmem:[#allocation2 + $0xc2] sm:$0xff]
      %v5201 = vld [vmem:[#allocation2 + $0xca] sm:$0xff]
      %v5202 = vld [vmem:[#allocation2 + $0xda] sm:$0xff]
      %v5203 = vld [vmem:[#allocation2 + $0xe2] sm:$0xff]
      %v5204 = vld [vmem:[#allocation2 + $0xf2] sm:$0xff]
      %v5205 = vld [vmem:[#allocation2 + $0xfa] sm:$0xff]
      %v5206 = vld [vmem:[#allocation2 + $0x10a] sm:$0xff]
      %v5207 = vld [vmem:[#allocation2 + $0x112] sm:$0xff]
      %v5208 = vld [vmem:[#allocation2 + $0x122] sm:$0xff]
      %v5209 = vld [vmem:[#allocation2 + $0x12a] sm:$0xff]
      %v5210 = vld [vmem:[#allocation2 + $0x13a] sm:$0xff]
      %v5211 = vld [vmem:[#allocation2 + $0x142] sm:$0xff]
      %v5212 = vld [vmem:[#allocation2 + $0x152] sm:$0xff]
      %v5213 = vld [vmem:[#allocation2 + $0x15a] sm:$0xff]
      %v5214 = vld [vmem:[#allocation2 + $0x16a] sm:$0xff]
      %v5215 = vld [vmem:[#allocation2 + $0x172] sm:$0xff]
      %5248 = vrot.lane.b32.xlu0 %v5184, 80
      %v5249 = vpop.permute.xlu0 %5248
      %5250 = vrot.lane.b32.xlu0 %v5185, 80
      %v5251 = vpop.permute.xlu0 %5250
      %5252 = vrot.lane.b32.xlu0 %v5186, 80
      %v5253 = vpop.permute.xlu0 %5252
      %5254 = vrot.lane.b32.xlu0 %v5187, 80
      %v5255 = vpop.permute.xlu0 %5254
      %5256 = vrot.lane.b32.xlu0 %v5188, 80
      %v5257 = vpop.permute.xlu0 %5256
      %5258 = vrot.lane.b32.xlu0 %v5189, 80
      %v5259 = vpop.permute.xlu0 %5258
      %5260 = vrot.lane.b32.xlu0 %v5190, 80
      %v5261 = vpop.permute.xlu0 %5260
      %5262 = vrot.lane.b32.xlu0 %v5191, 80
      %v5263 = vpop.permute.xlu0 %5262
      %5264 = vrot.lane.b32.xlu0 %v5192, 80
      %v5265 = vpop.permute.xlu0 %5264
      %5266 = vrot.lane.b32.xlu0 %v5193, 80
      %v5267 = vpop.permute.xlu0 %5266
      %5268 = vrot.lane.b32.xlu0 %v5194, 80
      %v5269 = vpop.permute.xlu0 %5268
      %5270 = vrot.lane.b32.xlu0 %v5195, 80
      %v5271 = vpop.permute.xlu0 %5270
      %5272 = vrot.lane.b32.xlu0 %v5196, 80
      %v5273 = vpop.permute.xlu0 %5272
      %5274 = vrot.lane.b32.xlu0 %v5197, 80
      %v5275 = vpop.permute.xlu0 %5274
      %5276 = vrot.lane.b32.xlu0 %v5198, 80
      %v5277 = vpop.permute.xlu0 %5276
      %5278 = vrot.lane.b32.xlu0 %v5199, 80
      %v5279 = vpop.permute.xlu0 %5278
      %5280 = vrot.lane.b32.xlu0 %v5200, 80
      %v5281 = vpop.permute.xlu0 %5280
      %5282 = vrot.lane.b32.xlu0 %v5201, 80
      %v5283 = vpop.permute.xlu0 %5282
      %5284 = vrot.lane.b32.xlu0 %v5202, 80
      %v5285 = vpop.permute.xlu0 %5284
      %5286 = vrot.lane.b32.xlu0 %v5203, 80
      %v5287 = vpop.permute.xlu0 %5286
      %5288 = vrot.lane.b32.xlu0 %v5204, 80
      %v5289 = vpop.permute.xlu0 %5288
      %5290 = vrot.lane.b32.xlu0 %v5205, 80
      %v5291 = vpop.permute.xlu0 %5290
      %5292 = vrot.lane.b32.xlu0 %v5206, 80
      %v5293 = vpop.permute.xlu0 %5292
      %5294 = vrot.lane.b32.xlu0 %v5207, 80
      %v5295 = vpop.permute.xlu0 %5294
      %5296 = vrot.lane.b32.xlu0 %v5208, 80
      %v5297 = vpop.permute.xlu0 %5296
      %5298 = vrot.lane.b32.xlu0 %v5209, 80
      %v5299 = vpop.permute.xlu0 %5298
      %5300 = vrot.lane.b32.xlu0 %v5210, 80
      %v5301 = vpop.permute.xlu0 %5300
      %5302 = vrot.lane.b32.xlu0 %v5211, 80
      %v5303 = vpop.permute.xlu0 %5302
      %5304 = vrot.lane.b32.xlu0 %v5212, 80
      %v5305 = vpop.permute.xlu0 %5304
      %5306 = vrot.lane.b32.xlu0 %v5213, 80
      %v5307 = vpop.permute.xlu0 %5306
      %5308 = vrot.lane.b32.xlu0 %v5214, 80
      %v5309 = vpop.permute.xlu0 %5308
      %5310 = vrot.lane.b32.xlu0 %v5215, 80
      %v5311 = vpop.permute.xlu0 %5310
      %vm5344 = vcmask 687744
      %5345 = vst.msk [vmem:[#allocation3] sm:$0xff] %vm5344, %v5249
      %5346 = vst.msk [vmem:[#allocation3 + $0x10] sm:$0xff] %vm5344, %v5251
      %5347 = vst.msk [vmem:[#allocation3 + $0x20] sm:$0xff] %vm5344, %v5253
      %5348 = vst.msk [vmem:[#allocation3 + $0x30] sm:$0xff] %vm5344, %v5255
      %5349 = vst.msk [vmem:[#allocation3 + $0x40] sm:$0xff] %vm5344, %v5257
      %5350 = vst.msk [vmem:[#allocation3 + $0x50] sm:$0xff] %vm5344, %v5259
      %5351 = vst.msk [vmem:[#allocation3 + $0x60] sm:$0xff] %vm5344, %v5261
      %5352 = vst.msk [vmem:[#allocation3 + $0x70] sm:$0xff] %vm5344, %v5263
      %5353 = vst.msk [vmem:[#allocation3 + $0x80] sm:$0xff] %vm5344, %v5265
      %5354 = vst.msk [vmem:[#allocation3 + $0x90] sm:$0xff] %vm5344, %v5267
      %5355 = vst.msk [vmem:[#allocation3 + $0xa0] sm:$0xff] %vm5344, %v5269
      %5356 = vst.msk [vmem:[#allocation3 + $0xb0] sm:$0xff] %vm5344, %v5271
      %5357 = vst.msk [vmem:[#allocation3 + $0xc0] sm:$0xff] %vm5344, %v5273
      %5358 = vst.msk [vmem:[#allocation3 + $0xd0] sm:$0xff] %vm5344, %v5275
      %5359 = vst.msk [vmem:[#allocation3 + $0xe0] sm:$0xff] %vm5344, %v5277
      %5360 = vst.msk [vmem:[#allocation3 + $0xf0] sm:$0xff] %vm5344, %v5279
      %5361 = vst.msk [vmem:[#allocation3 + $0x100] sm:$0xff] %vm5344, %v5281
      %5362 = vst.msk [vmem:[#allocation3 + $0x110] sm:$0xff] %vm5344, %v5283
      %5363 = vst.msk [vmem:[#allocation3 + $0x120] sm:$0xff] %vm5344, %v5285
      %5364 = vst.msk [vmem:[#allocation3 + $0x130] sm:$0xff] %vm5344, %v5287
      %5365 = vst.msk [vmem:[#allocation3 + $0x140] sm:$0xff] %vm5344, %v5289
      %5366 = vst.msk [vmem:[#allocation3 + $0x150] sm:$0xff] %vm5344, %v5291
      %5367 = vst.msk [vmem:[#allocation3 + $0x160] sm:$0xff] %vm5344, %v5293
      %5368 = vst.msk [vmem:[#allocation3 + $0x170] sm:$0xff] %vm5344, %v5295
      %5369 = vst.msk [vmem:[#allocation3 + $0x180] sm:$0xff] %vm5344, %v5297
      %5370 = vst.msk [vmem:[#allocation3 + $0x190] sm:$0xff] %vm5344, %v5299
      %5371 = vst.msk [vmem:[#allocation3 + $0x1a0] sm:$0xff] %vm5344, %v5301
      %5372 = vst.msk [vmem:[#allocation3 + $0x1b0] sm:$0xff] %vm5344, %v5303
      %5373 = vst.msk [vmem:[#allocation3 + $0x1c0] sm:$0xff] %vm5344, %v5305
      %5374 = vst.msk [vmem:[#allocation3 + $0x1d0] sm:$0xff] %vm5344, %v5307
      %5375 = vst.msk [vmem:[#allocation3 + $0x1e0] sm:$0xff] %vm5344, %v5309
      %5376 = vst.msk [vmem:[#allocation3 + $0x1f0] sm:$0xff] %vm5344, %v5311
      %v5377 = vld [vmem:[%s324] sm:$0xff]
      %v5378 = vld [vmem:[%s324 + $0x8] sm:$0xff]
      %v5379 = vld [vmem:[%s324 + $0x18] sm:$0xff]
      %v5380 = vld [vmem:[%s324 + $0x20] sm:$0xff]
      %v5381 = vld [vmem:[%s324 + $0x30] sm:$0xff]
      %v5382 = vld [vmem:[%s324 + $0x38] sm:$0xff]
      %v5383 = vld [vmem:[%s324 + $0x48] sm:$0xff]
      %v5384 = vld [vmem:[%s324 + $0x50] sm:$0xff]
      %v5385 = vld [vmem:[%s324 + $0x60] sm:$0xff]
      %v5386 = vld [vmem:[%s324 + $0x68] sm:$0xff]
      %v5387 = vld [vmem:[%s324 + $0x78] sm:$0xff]
      %v5388 = vld [vmem:[%s324 + $0x80] sm:$0xff]
      %v5389 = vld [vmem:[%s324 + $0x90] sm:$0xff]
      %v5390 = vld [vmem:[%s324 + $0x98] sm:$0xff]
      %v5391 = vld [vmem:[%s324 + $0xa8] sm:$0xff]
      %v5392 = vld [vmem:[%s324 + $0xb0] sm:$0xff]
      %v5393 = vld [vmem:[%s324 + $0xc0] sm:$0xff]
      %v5394 = vld [vmem:[%s324 + $0xc8] sm:$0xff]
      %v5395 = vld [vmem:[%s324 + $0xd8] sm:$0xff]
      %v5396 = vld [vmem:[%s324 + $0xe0] sm:$0xff]
      %v5397 = vld [vmem:[%s324 + $0xf0] sm:$0xff]
      %v5398 = vld [vmem:[%s324 + $0xf8] sm:$0xff]
      %v5399 = vld [vmem:[%s324 + $0x108] sm:$0xff]
      %v5400 = vld [vmem:[%s324 + $0x110] sm:$0xff]
      %v5401 = vld [vmem:[%s324 + $0x120] sm:$0xff]
      %v5402 = vld [vmem:[%s324 + $0x128] sm:$0xff]
      %v5403 = vld [vmem:[%s324 + $0x138] sm:$0xff]
      %v5404 = vld [vmem:[%s324 + $0x140] sm:$0xff]
      %v5405 = vld [vmem:[%s324 + $0x150] sm:$0xff]
      %v5406 = vld [vmem:[%s324 + $0x158] sm:$0xff]
      %v5407 = vld [vmem:[%s324 + $0x168] sm:$0xff]
      %v5408 = vld [vmem:[%s324 + $0x170] sm:$0xff]
      %5441 = vrot.lane.b32.xlu0 %v5377, 84
      %v5442 = vpop.permute.xlu0 %5441
      %5443 = vrot.lane.b32.xlu0 %v5378, 84
      %v5444 = vpop.permute.xlu0 %5443
      %5445 = vrot.lane.b32.xlu0 %v5379, 84
      %v5446 = vpop.permute.xlu0 %5445
      %5447 = vrot.lane.b32.xlu0 %v5380, 84
      %v5448 = vpop.permute.xlu0 %5447
      %5449 = vrot.lane.b32.xlu0 %v5381, 84
      %v5450 = vpop.permute.xlu0 %5449
      %5451 = vrot.lane.b32.xlu0 %v5382, 84
      %v5452 = vpop.permute.xlu0 %5451
      %5453 = vrot.lane.b32.xlu0 %v5383, 84
      %v5454 = vpop.permute.xlu0 %5453
      %5455 = vrot.lane.b32.xlu0 %v5384, 84
      %v5456 = vpop.permute.xlu0 %5455
      %5457 = vrot.lane.b32.xlu0 %v5385, 84
      %v5458 = vpop.permute.xlu0 %5457
      %5459 = vrot.lane.b32.xlu0 %v5386, 84
      %v5460 = vpop.permute.xlu0 %5459
      %5461 = vrot.lane.b32.xlu0 %v5387, 84
      %v5462 = vpop.permute.xlu0 %5461
      %5463 = vrot.lane.b32.xlu0 %v5388, 84
      %v5464 = vpop.permute.xlu0 %5463
      %5465 = vrot.lane.b32.xlu0 %v5389, 84
      %v5466 = vpop.permute.xlu0 %5465
      %5467 = vrot.lane.b32.xlu0 %v5390, 84
      %v5468 = vpop.permute.xlu0 %5467
      %5469 = vrot.lane.b32.xlu0 %v5391, 84
      %v5470 = vpop.permute.xlu0 %5469
      %5471 = vrot.lane.b32.xlu0 %v5392, 84
      %v5472 = vpop.permute.xlu0 %5471
      %5473 = vrot.lane.b32.xlu0 %v5393, 84
      %v5474 = vpop.permute.xlu0 %5473
      %5475 = vrot.lane.b32.xlu0 %v5394, 84
      %v5476 = vpop.permute.xlu0 %5475
      %5477 = vrot.lane.b32.xlu0 %v5395, 84
      %v5478 = vpop.permute.xlu0 %5477
      %5479 = vrot.lane.b32.xlu0 %v5396, 84
      %v5480 = vpop.permute.xlu0 %5479
      %5481 = vrot.lane.b32.xlu0 %v5397, 84
      %v5482 = vpop.permute.xlu0 %5481
      %5483 = vrot.lane.b32.xlu0 %v5398, 84
      %v5484 = vpop.permute.xlu0 %5483
      %5485 = vrot.lane.b32.xlu0 %v5399, 84
      %v5486 = vpop.permute.xlu0 %5485
      %5487 = vrot.lane.b32.xlu0 %v5400, 84
      %v5488 = vpop.permute.xlu0 %5487
      %5489 = vrot.lane.b32.xlu0 %v5401, 84
      %v5490 = vpop.permute.xlu0 %5489
      %5491 = vrot.lane.b32.xlu0 %v5402, 84
      %v5492 = vpop.permute.xlu0 %5491
      %5493 = vrot.lane.b32.xlu0 %v5403, 84
      %v5494 = vpop.permute.xlu0 %5493
      %5495 = vrot.lane.b32.xlu0 %v5404, 84
      %v5496 = vpop.permute.xlu0 %5495
      %5497 = vrot.lane.b32.xlu0 %v5405, 84
      %v5498 = vpop.permute.xlu0 %5497
      %5499 = vrot.lane.b32.xlu0 %v5406, 84
      %v5500 = vpop.permute.xlu0 %5499
      %5501 = vrot.lane.b32.xlu0 %v5407, 84
      %v5502 = vpop.permute.xlu0 %5501
      %5503 = vrot.lane.b32.xlu0 %v5408, 84
      %v5504 = vpop.permute.xlu0 %5503
      %vm5537 = vcmask 720544
      %5538 = vst.msk [vmem:[#allocation3] sm:$0xff] %vm5537, %v5442
      %5539 = vst.msk [vmem:[#allocation3 + $0x10] sm:$0xff] %vm5537, %v5444
      %5540 = vst.msk [vmem:[#allocation3 + $0x20] sm:$0xff] %vm5537, %v5446
      %5541 = vst.msk [vmem:[#allocation3 + $0x30] sm:$0xff] %vm5537, %v5448
      %5542 = vst.msk [vmem:[#allocation3 + $0x40] sm:$0xff] %vm5537, %v5450
      %5543 = vst.msk [vmem:[#allocation3 + $0x50] sm:$0xff] %vm5537, %v5452
      %5544 = vst.msk [vmem:[#allocation3 + $0x60] sm:$0xff] %vm5537, %v5454
      %5545 = vst.msk [vmem:[#allocation3 + $0x70] sm:$0xff] %vm5537, %v5456
      %5546 = vst.msk [vmem:[#allocation3 + $0x80] sm:$0xff] %vm5537, %v5458
      %5547 = vst.msk [vmem:[#allocation3 + $0x90] sm:$0xff] %vm5537, %v5460
      %5548 = vst.msk [vmem:[#allocation3 + $0xa0] sm:$0xff] %vm5537, %v5462
      %5549 = vst.msk [vmem:[#allocation3 + $0xb0] sm:$0xff] %vm5537, %v5464
      %5550 = vst.msk [vmem:[#allocation3 + $0xc0] sm:$0xff] %vm5537, %v5466
      %5551 = vst.msk [vmem:[#allocation3 + $0xd0] sm:$0xff] %vm5537, %v5468
      %5552 = vst.msk [vmem:[#allocation3 + $0xe0] sm:$0xff] %vm5537, %v5470
      %5553 = vst.msk [vmem:[#allocation3 + $0xf0] sm:$0xff] %vm5537, %v5472
      %5554 = vst.msk [vmem:[#allocation3 + $0x100] sm:$0xff] %vm5537, %v5474
      %5555 = vst.msk [vmem:[#allocation3 + $0x110] sm:$0xff] %vm5537, %v5476
      %5556 = vst.msk [vmem:[#allocation3 + $0x120] sm:$0xff] %vm5537, %v5478
      %5557 = vst.msk [vmem:[#allocation3 + $0x130] sm:$0xff] %vm5537, %v5480
      %5558 = vst.msk [vmem:[#allocation3 + $0x140] sm:$0xff] %vm5537, %v5482
      %5559 = vst.msk [vmem:[#allocation3 + $0x150] sm:$0xff] %vm5537, %v5484
      %5560 = vst.msk [vmem:[#allocation3 + $0x160] sm:$0xff] %vm5537, %v5486
      %5561 = vst.msk [vmem:[#allocation3 + $0x170] sm:$0xff] %vm5537, %v5488
      %5562 = vst.msk [vmem:[#allocation3 + $0x180] sm:$0xff] %vm5537, %v5490
      %5563 = vst.msk [vmem:[#allocation3 + $0x190] sm:$0xff] %vm5537, %v5492
      %5564 = vst.msk [vmem:[#allocation3 + $0x1a0] sm:$0xff] %vm5537, %v5494
      %5565 = vst.msk [vmem:[#allocation3 + $0x1b0] sm:$0xff] %vm5537, %v5496
      %5566 = vst.msk [vmem:[#allocation3 + $0x1c0] sm:$0xff] %vm5537, %v5498
      %5567 = vst.msk [vmem:[#allocation3 + $0x1d0] sm:$0xff] %vm5537, %v5500
      %5568 = vst.msk [vmem:[#allocation3 + $0x1e0] sm:$0xff] %vm5537, %v5502
      %5569 = vst.msk [vmem:[#allocation3 + $0x1f0] sm:$0xff] %vm5537, %v5504
      %v5570 = vld [vmem:[%s324 + $0x1] sm:$0xff]
      %v5571 = vld [vmem:[%s324 + $0x9] sm:$0xff]
      %v5572 = vld [vmem:[%s324 + $0x19] sm:$0xff]
      %v5573 = vld [vmem:[%s324 + $0x21] sm:$0xff]
      %v5574 = vld [vmem:[%s324 + $0x31] sm:$0xff]
      %v5575 = vld [vmem:[%s324 + $0x39] sm:$0xff]
      %v5576 = vld [vmem:[%s324 + $0x49] sm:$0xff]
      %v5577 = vld [vmem:[%s324 + $0x51] sm:$0xff]
      %v5578 = vld [vmem:[%s324 + $0x61] sm:$0xff]
      %v5579 = vld [vmem:[%s324 + $0x69] sm:$0xff]
      %v5580 = vld [vmem:[%s324 + $0x79] sm:$0xff]
      %v5581 = vld [vmem:[%s324 + $0x81] sm:$0xff]
      %v5582 = vld [vmem:[%s324 + $0x91] sm:$0xff]
      %v5583 = vld [vmem:[%s324 + $0x99] sm:$0xff]
      %v5584 = vld [vmem:[%s324 + $0xa9] sm:$0xff]
      %v5585 = vld [vmem:[%s324 + $0xb1] sm:$0xff]
      %v5586 = vld [vmem:[%s324 + $0xc1] sm:$0xff]
      %v5587 = vld [vmem:[%s324 + $0xc9] sm:$0xff]
      %v5588 = vld [vmem:[%s324 + $0xd9] sm:$0xff]
      %v5589 = vld [vmem:[%s324 + $0xe1] sm:$0xff]
      %v5590 = vld [vmem:[%s324 + $0xf1] sm:$0xff]
      %v5591 = vld [vmem:[%s324 + $0xf9] sm:$0xff]
      %v5592 = vld [vmem:[%s324 + $0x109] sm:$0xff]
      %v5593 = vld [vmem:[%s324 + $0x111] sm:$0xff]
      %v5594 = vld [vmem:[%s324 + $0x121] sm:$0xff]
      %v5595 = vld [vmem:[%s324 + $0x129] sm:$0xff]
      %v5596 = vld [vmem:[%s324 + $0x139] sm:$0xff]
      %v5597 = vld [vmem:[%s324 + $0x141] sm:$0xff]
      %v5598 = vld [vmem:[%s324 + $0x151] sm:$0xff]
      %v5599 = vld [vmem:[%s324 + $0x159] sm:$0xff]
      %v5600 = vld [vmem:[%s324 + $0x169] sm:$0xff]
      %v5601 = vld [vmem:[%s324 + $0x171] sm:$0xff]
      %5634 = vrot.lane.b32.xlu0 %v5570, 88
      %v5635 = vpop.permute.xlu0 %5634
      %5636 = vrot.lane.b32.xlu0 %v5571, 88
      %v5637 = vpop.permute.xlu0 %5636
      %5638 = vrot.lane.b32.xlu0 %v5572, 88
      %v5639 = vpop.permute.xlu0 %5638
      %5640 = vrot.lane.b32.xlu0 %v5573, 88
      %v5641 = vpop.permute.xlu0 %5640
      %5642 = vrot.lane.b32.xlu0 %v5574, 88
      %v5643 = vpop.permute.xlu0 %5642
      %5644 = vrot.lane.b32.xlu0 %v5575, 88
      %v5645 = vpop.permute.xlu0 %5644
      %5646 = vrot.lane.b32.xlu0 %v5576, 88
      %v5647 = vpop.permute.xlu0 %5646
      %5648 = vrot.lane.b32.xlu0 %v5577, 88
      %v5649 = vpop.permute.xlu0 %5648
      %5650 = vrot.lane.b32.xlu0 %v5578, 88
      %v5651 = vpop.permute.xlu0 %5650
      %5652 = vrot.lane.b32.xlu0 %v5579, 88
      %v5653 = vpop.permute.xlu0 %5652
      %5654 = vrot.lane.b32.xlu0 %v5580, 88
      %v5655 = vpop.permute.xlu0 %5654
      %5656 = vrot.lane.b32.xlu0 %v5581, 88
      %v5657 = vpop.permute.xlu0 %5656
      %5658 = vrot.lane.b32.xlu0 %v5582, 88
      %v5659 = vpop.permute.xlu0 %5658
      %5660 = vrot.lane.b32.xlu0 %v5583, 88
      %v5661 = vpop.permute.xlu0 %5660
      %5662 = vrot.lane.b32.xlu0 %v5584, 88
      %v5663 = vpop.permute.xlu0 %5662
      %5664 = vrot.lane.b32.xlu0 %v5585, 88
      %v5665 = vpop.permute.xlu0 %5664
      %5666 = vrot.lane.b32.xlu0 %v5586, 88
      %v5667 = vpop.permute.xlu0 %5666
      %5668 = vrot.lane.b32.xlu0 %v5587, 88
      %v5669 = vpop.permute.xlu0 %5668
      %5670 = vrot.lane.b32.xlu0 %v5588, 88
      %v5671 = vpop.permute.xlu0 %5670
      %5672 = vrot.lane.b32.xlu0 %v5589, 88
      %v5673 = vpop.permute.xlu0 %5672
      %5674 = vrot.lane.b32.xlu0 %v5590, 88
      %v5675 = vpop.permute.xlu0 %5674
      %5676 = vrot.lane.b32.xlu0 %v5591, 88
      %v5677 = vpop.permute.xlu0 %5676
      %5678 = vrot.lane.b32.xlu0 %v5592, 88
      %v5679 = vpop.permute.xlu0 %5678
      %5680 = vrot.lane.b32.xlu0 %v5593, 88
      %v5681 = vpop.permute.xlu0 %5680
      %5682 = vrot.lane.b32.xlu0 %v5594, 88
      %v5683 = vpop.permute.xlu0 %5682
      %5684 = vrot.lane.b32.xlu0 %v5595, 88
      %v5685 = vpop.permute.xlu0 %5684
      %5686 = vrot.lane.b32.xlu0 %v5596, 88
      %v5687 = vpop.permute.xlu0 %5686
      %5688 = vrot.lane.b32.xlu0 %v5597, 88
      %v5689 = vpop.permute.xlu0 %5688
      %5690 = vrot.lane.b32.xlu0 %v5598, 88
      %v5691 = vpop.permute.xlu0 %5690
      %5692 = vrot.lane.b32.xlu0 %v5599, 88
      %v5693 = vpop.permute.xlu0 %5692
      %5694 = vrot.lane.b32.xlu0 %v5600, 88
      %v5695 = vpop.permute.xlu0 %5694
      %5696 = vrot.lane.b32.xlu0 %v5601, 88
      %v5697 = vpop.permute.xlu0 %5696
      %vm5730 = vcmask 753344
      %5731 = vst.msk [vmem:[#allocation3] sm:$0xff] %vm5730, %v5635
      %5732 = vst.msk [vmem:[#allocation3 + $0x10] sm:$0xff] %vm5730, %v5637
      %5733 = vst.msk [vmem:[#allocation3 + $0x20] sm:$0xff] %vm5730, %v5639
      %5734 = vst.msk [vmem:[#allocation3 + $0x30] sm:$0xff] %vm5730, %v5641
      %5735 = vst.msk [vmem:[#allocation3 + $0x40] sm:$0xff] %vm5730, %v5643
      %5736 = vst.msk [vmem:[#allocation3 + $0x50] sm:$0xff] %vm5730, %v5645
      %5737 = vst.msk [vmem:[#allocation3 + $0x60] sm:$0xff] %vm5730, %v5647
      %5738 = vst.msk [vmem:[#allocation3 + $0x70] sm:$0xff] %vm5730, %v5649
      %5739 = vst.msk [vmem:[#allocation3 + $0x80] sm:$0xff] %vm5730, %v5651
      %5740 = vst.msk [vmem:[#allocation3 + $0x90] sm:$0xff] %vm5730, %v5653
      %5741 = vst.msk [vmem:[#allocation3 + $0xa0] sm:$0xff] %vm5730, %v5655
      %5742 = vst.msk [vmem:[#allocation3 + $0xb0] sm:$0xff] %vm5730, %v5657
      %5743 = vst.msk [vmem:[#allocation3 + $0xc0] sm:$0xff] %vm5730, %v5659
      %5744 = vst.msk [vmem:[#allocation3 + $0xd0] sm:$0xff] %vm5730, %v5661
      %5745 = vst.msk [vmem:[#allocation3 + $0xe0] sm:$0xff] %vm5730, %v5663
      %5746 = vst.msk [vmem:[#allocation3 + $0xf0] sm:$0xff] %vm5730, %v5665
      %5747 = vst.msk [vmem:[#allocation3 + $0x100] sm:$0xff] %vm5730, %v5667
      %5748 = vst.msk [vmem:[#allocation3 + $0x110] sm:$0xff] %vm5730, %v5669
      %5749 = vst.msk [vmem:[#allocation3 + $0x120] sm:$0xff] %vm5730, %v5671
      %5750 = vst.msk [vmem:[#allocation3 + $0x130] sm:$0xff] %vm5730, %v5673
      %5751 = vst.msk [vmem:[#allocation3 + $0x140] sm:$0xff] %vm5730, %v5675
      %5752 = vst.msk [vmem:[#allocation3 + $0x150] sm:$0xff] %vm5730, %v5677
      %5753 = vst.msk [vmem:[#allocation3 + $0x160] sm:$0xff] %vm5730, %v5679
      %5754 = vst.msk [vmem:[#allocation3 + $0x170] sm:$0xff] %vm5730, %v5681
      %5755 = vst.msk [vmem:[#allocation3 + $0x180] sm:$0xff] %vm5730, %v5683
      %5756 = vst.msk [vmem:[#allocation3 + $0x190] sm:$0xff] %vm5730, %v5685
      %5757 = vst.msk [vmem:[#allocation3 + $0x1a0] sm:$0xff] %vm5730, %v5687
      %5758 = vst.msk [vmem:[#allocation3 + $0x1b0] sm:$0xff] %vm5730, %v5689
      %5759 = vst.msk [vmem:[#allocation3 + $0x1c0] sm:$0xff] %vm5730, %v5691
      %5760 = vst.msk [vmem:[#allocation3 + $0x1d0] sm:$0xff] %vm5730, %v5693
      %5761 = vst.msk [vmem:[#allocation3 + $0x1e0] sm:$0xff] %vm5730, %v5695
      %5762 = vst.msk [vmem:[#allocation3 + $0x1f0] sm:$0xff] %vm5730, %v5697
      %v5763 = vld [vmem:[%s324 + $0x2] sm:$0xff]
      %v5764 = vld [vmem:[%s324 + $0xa] sm:$0xff]
      %v5765 = vld [vmem:[%s324 + $0x1a] sm:$0xff]
      %v5766 = vld [vmem:[%s324 + $0x22] sm:$0xff]
      %v5767 = vld [vmem:[%s324 + $0x32] sm:$0xff]
      %v5768 = vld [vmem:[%s324 + $0x3a] sm:$0xff]
      %v5769 = vld [vmem:[%s324 + $0x4a] sm:$0xff]
      %v5770 = vld [vmem:[%s324 + $0x52] sm:$0xff]
      %v5771 = vld [vmem:[%s324 + $0x62] sm:$0xff]
      %v5772 = vld [vmem:[%s324 + $0x6a] sm:$0xff]
      %v5773 = vld [vmem:[%s324 + $0x7a] sm:$0xff]
      %v5774 = vld [vmem:[%s324 + $0x82] sm:$0xff]
      %v5775 = vld [vmem:[%s324 + $0x92] sm:$0xff]
      %v5776 = vld [vmem:[%s324 + $0x9a] sm:$0xff]
      %v5777 = vld [vmem:[%s324 + $0xaa] sm:$0xff]
      %v5778 = vld [vmem:[%s324 + $0xb2] sm:$0xff]
      %v5779 = vld [vmem:[%s324 + $0xc2] sm:$0xff]
      %v5780 = vld [vmem:[%s324 + $0xca] sm:$0xff]
      %v5781 = vld [vmem:[%s324 + $0xda] sm:$0xff]
      %v5782 = vld [vmem:[%s324 + $0xe2] sm:$0xff]
      %v5783 = vld [vmem:[%s324 + $0xf2] sm:$0xff]
      %v5784 = vld [vmem:[%s324 + $0xfa] sm:$0xff]
      %v5785 = vld [vmem:[%s324 + $0x10a] sm:$0xff]
      %v5786 = vld [vmem:[%s324 + $0x112] sm:$0xff]
      %v5787 = vld [vmem:[%s324 + $0x122] sm:$0xff]
      %v5788 = vld [vmem:[%s324 + $0x12a] sm:$0xff]
      %v5789 = vld [vmem:[%s324 + $0x13a] sm:$0xff]
      %v5790 = vld [vmem:[%s324 + $0x142] sm:$0xff]
      %v5791 = vld [vmem:[%s324 + $0x152] sm:$0xff]
      %v5792 = vld [vmem:[%s324 + $0x15a] sm:$0xff]
      %v5793 = vld [vmem:[%s324 + $0x16a] sm:$0xff]
      %v5794 = vld [vmem:[%s324 + $0x172] sm:$0xff]
      %5827 = vrot.lane.b32.xlu0 %v5763, 92
      %v5828 = vpop.permute.xlu0 %5827
      %5829 = vrot.lane.b32.xlu0 %v5764, 92
      %v5830 = vpop.permute.xlu0 %5829
      %5831 = vrot.lane.b32.xlu0 %v5765, 92
      %v5832 = vpop.permute.xlu0 %5831
      %5833 = vrot.lane.b32.xlu0 %v5766, 92
      %v5834 = vpop.permute.xlu0 %5833
      %5835 = vrot.lane.b32.xlu0 %v5767, 92
      %v5836 = vpop.permute.xlu0 %5835
      %5837 = vrot.lane.b32.xlu0 %v5768, 92
      %v5838 = vpop.permute.xlu0 %5837
      %5839 = vrot.lane.b32.xlu0 %v5769, 92
      %v5840 = vpop.permute.xlu0 %5839
      %5841 = vrot.lane.b32.xlu0 %v5770, 92
      %v5842 = vpop.permute.xlu0 %5841
      %5843 = vrot.lane.b32.xlu0 %v5771, 92
      %v5844 = vpop.permute.xlu0 %5843
      %5845 = vrot.lane.b32.xlu0 %v5772, 92
      %v5846 = vpop.permute.xlu0 %5845
      %5847 = vrot.lane.b32.xlu0 %v5773, 92
      %v5848 = vpop.permute.xlu0 %5847
      %5849 = vrot.lane.b32.xlu0 %v5774, 92
      %v5850 = vpop.permute.xlu0 %5849
      %5851 = vrot.lane.b32.xlu0 %v5775, 92
      %v5852 = vpop.permute.xlu0 %5851
      %5853 = vrot.lane.b32.xlu0 %v5776, 92
      %v5854 = vpop.permute.xlu0 %5853
      %5855 = vrot.lane.b32.xlu0 %v5777, 92
      %v5856 = vpop.permute.xlu0 %5855
      %5857 = vrot.lane.b32.xlu0 %v5778, 92
      %v5858 = vpop.permute.xlu0 %5857
      %5859 = vrot.lane.b32.xlu0 %v5779, 92
      %v5860 = vpop.permute.xlu0 %5859
      %5861 = vrot.lane.b32.xlu0 %v5780, 92
      %v5862 = vpop.permute.xlu0 %5861
      %5863 = vrot.lane.b32.xlu0 %v5781, 92
      %v5864 = vpop.permute.xlu0 %5863
      %5865 = vrot.lane.b32.xlu0 %v5782, 92
      %v5866 = vpop.permute.xlu0 %5865
      %5867 = vrot.lane.b32.xlu0 %v5783, 92
      %v5868 = vpop.permute.xlu0 %5867
      %5869 = vrot.lane.b32.xlu0 %v5784, 92
      %v5870 = vpop.permute.xlu0 %5869
      %5871 = vrot.lane.b32.xlu0 %v5785, 92
      %v5872 = vpop.permute.xlu0 %5871
      %5873 = vrot.lane.b32.xlu0 %v5786, 92
      %v5874 = vpop.permute.xlu0 %5873
      %5875 = vrot.lane.b32.xlu0 %v5787, 92
      %v5876 = vpop.permute.xlu0 %5875
      %5877 = vrot.lane.b32.xlu0 %v5788, 92
      %v5878 = vpop.permute.xlu0 %5877
      %5879 = vrot.lane.b32.xlu0 %v5789, 92
      %v5880 = vpop.permute.xlu0 %5879
      %5881 = vrot.lane.b32.xlu0 %v5790, 92
      %v5882 = vpop.permute.xlu0 %5881
      %5883 = vrot.lane.b32.xlu0 %v5791, 92
      %v5884 = vpop.permute.xlu0 %5883
      %5885 = vrot.lane.b32.xlu0 %v5792, 92
      %v5886 = vpop.permute.xlu0 %5885
      %5887 = vrot.lane.b32.xlu0 %v5793, 92
      %v5888 = vpop.permute.xlu0 %5887
      %5889 = vrot.lane.b32.xlu0 %v5794, 92
      %v5890 = vpop.permute.xlu0 %5889
      %vm5923 = vcmask 786144
      %5924 = vst.msk [vmem:[#allocation3] sm:$0xff] %vm5923, %v5828
      %5925 = vst.msk [vmem:[#allocation3 + $0x10] sm:$0xff] %vm5923, %v5830
      %5926 = vst.msk [vmem:[#allocation3 + $0x20] sm:$0xff] %vm5923, %v5832
      %5927 = vst.msk [vmem:[#allocation3 + $0x30] sm:$0xff] %vm5923, %v5834
      %5928 = vst.msk [vmem:[#allocation3 + $0x40] sm:$0xff] %vm5923, %v5836
      %5929 = vst.msk [vmem:[#allocation3 + $0x50] sm:$0xff] %vm5923, %v5838
      %5930 = vst.msk [vmem:[#allocation3 + $0x60] sm:$0xff] %vm5923, %v5840
      %5931 = vst.msk [vmem:[#allocation3 + $0x70] sm:$0xff] %vm5923, %v5842
      %5932 = vst.msk [vmem:[#allocation3 + $0x80] sm:$0xff] %vm5923, %v5844
      %5933 = vst.msk [vmem:[#allocation3 + $0x90] sm:$0xff] %vm5923, %v5846
      %5934 = vst.msk [vmem:[#allocation3 + $0xa0] sm:$0xff] %vm5923, %v5848
      %5935 = vst.msk [vmem:[#allocation3 + $0xb0] sm:$0xff] %vm5923, %v5850
      %5936 = vst.msk [vmem:[#allocation3 + $0xc0] sm:$0xff] %vm5923, %v5852
      %5937 = vst.msk [vmem:[#allocation3 + $0xd0] sm:$0xff] %vm5923, %v5854
      %5938 = vst.msk [vmem:[#allocation3 + $0xe0] sm:$0xff] %vm5923, %v5856
      %5939 = vst.msk [vmem:[#allocation3 + $0xf0] sm:$0xff] %vm5923, %v5858
      %5940 = vst.msk [vmem:[#allocation3 + $0x100] sm:$0xff] %vm5923, %v5860
      %5941 = vst.msk [vmem:[#allocation3 + $0x110] sm:$0xff] %vm5923, %v5862
      %5942 = vst.msk [vmem:[#allocation3 + $0x120] sm:$0xff] %vm5923, %v5864
      %5943 = vst.msk [vmem:[#allocation3 + $0x130] sm:$0xff] %vm5923, %v5866
      %5944 = vst.msk [vmem:[#allocation3 + $0x140] sm:$0xff] %vm5923, %v5868
      %5945 = vst.msk [vmem:[#allocation3 + $0x150] sm:$0xff] %vm5923, %v5870
      %5946 = vst.msk [vmem:[#allocation3 + $0x160] sm:$0xff] %vm5923, %v5872
      %5947 = vst.msk [vmem:[#allocation3 + $0x170] sm:$0xff] %vm5923, %v5874
      %5948 = vst.msk [vmem:[#allocation3 + $0x180] sm:$0xff] %vm5923, %v5876
      %5949 = vst.msk [vmem:[#allocation3 + $0x190] sm:$0xff] %vm5923, %v5878
      %5950 = vst.msk [vmem:[#allocation3 + $0x1a0] sm:$0xff] %vm5923, %v5880
      %5951 = vst.msk [vmem:[#allocation3 + $0x1b0] sm:$0xff] %vm5923, %v5882
      %5952 = vst.msk [vmem:[#allocation3 + $0x1c0] sm:$0xff] %vm5923, %v5884
      %5953 = vst.msk [vmem:[#allocation3 + $0x1d0] sm:$0xff] %vm5923, %v5886
      %5954 = vst.msk [vmem:[#allocation3 + $0x1e0] sm:$0xff] %vm5923, %v5888
      %5955 = vst.msk [vmem:[#allocation3 + $0x1f0] sm:$0xff] %vm5923, %v5890
      %v5956 = vld [vmem:[%s1386] sm:$0xff]
      %v5957 = vld [vmem:[%s1386 + $0x8] sm:$0xff]
      %v5958 = vld [vmem:[%s1386 + $0x18] sm:$0xff]
      %v5959 = vld [vmem:[%s1386 + $0x20] sm:$0xff]
      %v5960 = vld [vmem:[%s1386 + $0x30] sm:$0xff]
      %v5961 = vld [vmem:[%s1386 + $0x38] sm:$0xff]
      %v5962 = vld [vmem:[%s1386 + $0x48] sm:$0xff]
      %v5963 = vld [vmem:[%s1386 + $0x50] sm:$0xff]
      %v5964 = vld [vmem:[%s1386 + $0x60] sm:$0xff]
      %v5965 = vld [vmem:[%s1386 + $0x68] sm:$0xff]
      %v5966 = vld [vmem:[%s1386 + $0x78] sm:$0xff]
      %v5967 = vld [vmem:[%s1386 + $0x80] sm:$0xff]
      %v5968 = vld [vmem:[%s1386 + $0x90] sm:$0xff]
      %v5969 = vld [vmem:[%s1386 + $0x98] sm:$0xff]
      %v5970 = vld [vmem:[%s1386 + $0xa8] sm:$0xff]
      %v5971 = vld [vmem:[%s1386 + $0xb0] sm:$0xff]
      %v5972 = vld [vmem:[%s1386 + $0xc0] sm:$0xff]
      %v5973 = vld [vmem:[%s1386 + $0xc8] sm:$0xff]
      %v5974 = vld [vmem:[%s1386 + $0xd8] sm:$0xff]
      %v5975 = vld [vmem:[%s1386 + $0xe0] sm:$0xff]
      %v5976 = vld [vmem:[%s1386 + $0xf0] sm:$0xff]
      %v5977 = vld [vmem:[%s1386 + $0xf8] sm:$0xff]
      %v5978 = vld [vmem:[%s1386 + $0x108] sm:$0xff]
      %v5979 = vld [vmem:[%s1386 + $0x110] sm:$0xff]
      %v5980 = vld [vmem:[%s1386 + $0x120] sm:$0xff]
      %v5981 = vld [vmem:[%s1386 + $0x128] sm:$0xff]
      %v5982 = vld [vmem:[%s1386 + $0x138] sm:$0xff]
      %v5983 = vld [vmem:[%s1386 + $0x140] sm:$0xff]
      %v5984 = vld [vmem:[%s1386 + $0x150] sm:$0xff]
      %v5985 = vld [vmem:[%s1386 + $0x158] sm:$0xff]
      %v5986 = vld [vmem:[%s1386 + $0x168] sm:$0xff]
      %v5987 = vld [vmem:[%s1386 + $0x170] sm:$0xff]
      %6020 = vrot.lane.b32.xlu0 %v5956, 96
      %v6021 = vpop.permute.xlu0 %6020
      %6022 = vrot.lane.b32.xlu0 %v5957, 96
      %v6023 = vpop.permute.xlu0 %6022
      %6024 = vrot.lane.b32.xlu0 %v5958, 96
      %v6025 = vpop.permute.xlu0 %6024
      %6026 = vrot.lane.b32.xlu0 %v5959, 96
      %v6027 = vpop.permute.xlu0 %6026
      %6028 = vrot.lane.b32.xlu0 %v5960, 96
      %v6029 = vpop.permute.xlu0 %6028
      %6030 = vrot.lane.b32.xlu0 %v5961, 96
      %v6031 = vpop.permute.xlu0 %6030
      %6032 = vrot.lane.b32.xlu0 %v5962, 96
      %v6033 = vpop.permute.xlu0 %6032
      %6034 = vrot.lane.b32.xlu0 %v5963, 96
      %v6035 = vpop.permute.xlu0 %6034
      %6036 = vrot.lane.b32.xlu0 %v5964, 96
      %v6037 = vpop.permute.xlu0 %6036
      %6038 = vrot.lane.b32.xlu0 %v5965, 96
      %v6039 = vpop.permute.xlu0 %6038
      %6040 = vrot.lane.b32.xlu0 %v5966, 96
      %v6041 = vpop.permute.xlu0 %6040
      %6042 = vrot.lane.b32.xlu0 %v5967, 96
      %v6043 = vpop.permute.xlu0 %6042
      %6044 = vrot.lane.b32.xlu0 %v5968, 96
      %v6045 = vpop.permute.xlu0 %6044
      %6046 = vrot.lane.b32.xlu0 %v5969, 96
      %v6047 = vpop.permute.xlu0 %6046
      %6048 = vrot.lane.b32.xlu0 %v5970, 96
      %v6049 = vpop.permute.xlu0 %6048
      %6050 = vrot.lane.b32.xlu0 %v5971, 96
      %v6051 = vpop.permute.xlu0 %6050
      %6052 = vrot.lane.b32.xlu0 %v5972, 96
      %v6053 = vpop.permute.xlu0 %6052
      %6054 = vrot.lane.b32.xlu0 %v5973, 96
      %v6055 = vpop.permute.xlu0 %6054
      %6056 = vrot.lane.b32.xlu0 %v5974, 96
      %v6057 = vpop.permute.xlu0 %6056
      %6058 = vrot.lane.b32.xlu0 %v5975, 96
      %v6059 = vpop.permute.xlu0 %6058
      %6060 = vrot.lane.b32.xlu0 %v5976, 96
      %v6061 = vpop.permute.xlu0 %6060
      %6062 = vrot.lane.b32.xlu0 %v5977, 96
      %v6063 = vpop.permute.xlu0 %6062
      %6064 = vrot.lane.b32.xlu0 %v5978, 96
      %v6065 = vpop.permute.xlu0 %6064
      %6066 = vrot.lane.b32.xlu0 %v5979, 96
      %v6067 = vpop.permute.xlu0 %6066
      %6068 = vrot.lane.b32.xlu0 %v5980, 96
      %v6069 = vpop.permute.xlu0 %6068
      %6070 = vrot.lane.b32.xlu0 %v5981, 96
      %v6071 = vpop.permute.xlu0 %6070
      %6072 = vrot.lane.b32.xlu0 %v5982, 96
      %v6073 = vpop.permute.xlu0 %6072
      %6074 = vrot.lane.b32.xlu0 %v5983, 96
      %v6075 = vpop.permute.xlu0 %6074
      %6076 = vrot.lane.b32.xlu0 %v5984, 96
      %v6077 = vpop.permute.xlu0 %6076
      %6078 = vrot.lane.b32.xlu0 %v5985, 96
      %v6079 = vpop.permute.xlu0 %6078
      %6080 = vrot.lane.b32.xlu0 %v5986, 96
      %v6081 = vpop.permute.xlu0 %6080
      %6082 = vrot.lane.b32.xlu0 %v5987, 96
      %v6083 = vpop.permute.xlu0 %6082
      %vm6116 = vcmask 818944
      %6117 = vst.msk [vmem:[#allocation3] sm:$0xff] %vm6116, %v6021
      %6118 = vst.msk [vmem:[#allocation3 + $0x10] sm:$0xff] %vm6116, %v6023
      %6119 = vst.msk [vmem:[#allocation3 + $0x20] sm:$0xff] %vm6116, %v6025
      %6120 = vst.msk [vmem:[#allocation3 + $0x30] sm:$0xff] %vm6116, %v6027
      %6121 = vst.msk [vmem:[#allocation3 + $0x40] sm:$0xff] %vm6116, %v6029
      %6122 = vst.msk [vmem:[#allocation3 + $0x50] sm:$0xff] %vm6116, %v6031
      %6123 = vst.msk [vmem:[#allocation3 + $0x60] sm:$0xff] %vm6116, %v6033
      %6124 = vst.msk [vmem:[#allocation3 + $0x70] sm:$0xff] %vm6116, %v6035
      %6125 = vst.msk [vmem:[#allocation3 + $0x80] sm:$0xff] %vm6116, %v6037
      %6126 = vst.msk [vmem:[#allocation3 + $0x90] sm:$0xff] %vm6116, %v6039
      %6127 = vst.msk [vmem:[#allocation3 + $0xa0] sm:$0xff] %vm6116, %v6041
      %6128 = vst.msk [vmem:[#allocation3 + $0xb0] sm:$0xff] %vm6116, %v6043
      %6129 = vst.msk [vmem:[#allocation3 + $0xc0] sm:$0xff] %vm6116, %v6045
      %6130 = vst.msk [vmem:[#allocation3 + $0xd0] sm:$0xff] %vm6116, %v6047
      %6131 = vst.msk [vmem:[#allocation3 + $0xe0] sm:$0xff] %vm6116, %v6049
      %6132 = vst.msk [vmem:[#allocation3 + $0xf0] sm:$0xff] %vm6116, %v6051
      %6133 = vst.msk [vmem:[#allocation3 + $0x100] sm:$0xff] %vm6116, %v6053
      %6134 = vst.msk [vmem:[#allocation3 + $0x110] sm:$0xff] %vm6116, %v6055
      %6135 = vst.msk [vmem:[#allocation3 + $0x120] sm:$0xff] %vm6116, %v6057
      %6136 = vst.msk [vmem:[#allocation3 + $0x130] sm:$0xff] %vm6116, %v6059
      %6137 = vst.msk [vmem:[#allocation3 + $0x140] sm:$0xff] %vm6116, %v6061
      %6138 = vst.msk [vmem:[#allocation3 + $0x150] sm:$0xff] %vm6116, %v6063
      %6139 = vst.msk [vmem:[#allocation3 + $0x160] sm:$0xff] %vm6116, %v6065
      %6140 = vst.msk [vmem:[#allocation3 + $0x170] sm:$0xff] %vm6116, %v6067
      %6141 = vst.msk [vmem:[#allocation3 + $0x180] sm:$0xff] %vm6116, %v6069
      %6142 = vst.msk [vmem:[#allocation3 + $0x190] sm:$0xff] %vm6116, %v6071
      %6143 = vst.msk [vmem:[#allocation3 + $0x1a0] sm:$0xff] %vm6116, %v6073
      %6144 = vst.msk [vmem:[#allocation3 + $0x1b0] sm:$0xff] %vm6116, %v6075
      %6145 = vst.msk [vmem:[#allocation3 + $0x1c0] sm:$0xff] %vm6116, %v6077
      %6146 = vst.msk [vmem:[#allocation3 + $0x1d0] sm:$0xff] %vm6116, %v6079
      %6147 = vst.msk [vmem:[#allocation3 + $0x1e0] sm:$0xff] %vm6116, %v6081
      %6148 = vst.msk [vmem:[#allocation3 + $0x1f0] sm:$0xff] %vm6116, %v6083
      %v6149 = vld [vmem:[%s1386 + $0x1] sm:$0xff]
      %v6150 = vld [vmem:[%s1386 + $0x9] sm:$0xff]
      %v6151 = vld [vmem:[%s1386 + $0x19] sm:$0xff]
      %v6152 = vld [vmem:[%s1386 + $0x21] sm:$0xff]
      %v6153 = vld [vmem:[%s1386 + $0x31] sm:$0xff]
      %v6154 = vld [vmem:[%s1386 + $0x39] sm:$0xff]
      %v6155 = vld [vmem:[%s1386 + $0x49] sm:$0xff]
      %v6156 = vld [vmem:[%s1386 + $0x51] sm:$0xff]
      %v6157 = vld [vmem:[%s1386 + $0x61] sm:$0xff]
      %v6158 = vld [vmem:[%s1386 + $0x69] sm:$0xff]
      %v6159 = vld [vmem:[%s1386 + $0x79] sm:$0xff]
      %v6160 = vld [vmem:[%s1386 + $0x81] sm:$0xff]
      %v6161 = vld [vmem:[%s1386 + $0x91] sm:$0xff]
      %v6162 = vld [vmem:[%s1386 + $0x99] sm:$0xff]
      %v6163 = vld [vmem:[%s1386 + $0xa9] sm:$0xff]
      %v6164 = vld [vmem:[%s1386 + $0xb1] sm:$0xff]
      %v6165 = vld [vmem:[%s1386 + $0xc1] sm:$0xff]
      %v6166 = vld [vmem:[%s1386 + $0xc9] sm:$0xff]
      %v6167 = vld [vmem:[%s1386 + $0xd9] sm:$0xff]
      %v6168 = vld [vmem:[%s1386 + $0xe1] sm:$0xff]
      %v6169 = vld [vmem:[%s1386 + $0xf1] sm:$0xff]
      %v6170 = vld [vmem:[%s1386 + $0xf9] sm:$0xff]
      %v6171 = vld [vmem:[%s1386 + $0x109] sm:$0xff]
      %v6172 = vld [vmem:[%s1386 + $0x111] sm:$0xff]
      %v6173 = vld [vmem:[%s1386 + $0x121] sm:$0xff]
      %v6174 = vld [vmem:[%s1386 + $0x129] sm:$0xff]
      %v6175 = vld [vmem:[%s1386 + $0x139] sm:$0xff]
      %v6176 = vld [vmem:[%s1386 + $0x141] sm:$0xff]
      %v6177 = vld [vmem:[%s1386 + $0x151] sm:$0xff]
      %v6178 = vld [vmem:[%s1386 + $0x159] sm:$0xff]
      %v6179 = vld [vmem:[%s1386 + $0x169] sm:$0xff]
      %v6180 = vld [vmem:[%s1386 + $0x171] sm:$0xff]
      %6213 = vrot.lane.b32.xlu0 %v6149, 100
      %v6214 = vpop.permute.xlu0 %6213
      %6215 = vrot.lane.b32.xlu0 %v6150, 100
      %v6216 = vpop.permute.xlu0 %6215
      %6217 = vrot.lane.b32.xlu0 %v6151, 100
      %v6218 = vpop.permute.xlu0 %6217
      %6219 = vrot.lane.b32.xlu0 %v6152, 100
      %v6220 = vpop.permute.xlu0 %6219
      %6221 = vrot.lane.b32.xlu0 %v6153, 100
      %v6222 = vpop.permute.xlu0 %6221
      %6223 = vrot.lane.b32.xlu0 %v6154, 100
      %v6224 = vpop.permute.xlu0 %6223
      %6225 = vrot.lane.b32.xlu0 %v6155, 100
      %v6226 = vpop.permute.xlu0 %6225
      %6227 = vrot.lane.b32.xlu0 %v6156, 100
      %v6228 = vpop.permute.xlu0 %6227
      %6229 = vrot.lane.b32.xlu0 %v6157, 100
      %v6230 = vpop.permute.xlu0 %6229
      %6231 = vrot.lane.b32.xlu0 %v6158, 100
      %v6232 = vpop.permute.xlu0 %6231
      %6233 = vrot.lane.b32.xlu0 %v6159, 100
      %v6234 = vpop.permute.xlu0 %6233
      %6235 = vrot.lane.b32.xlu0 %v6160, 100
      %v6236 = vpop.permute.xlu0 %6235
      %6237 = vrot.lane.b32.xlu0 %v6161, 100
      %v6238 = vpop.permute.xlu0 %6237
      %6239 = vrot.lane.b32.xlu0 %v6162, 100
      %v6240 = vpop.permute.xlu0 %6239
      %6241 = vrot.lane.b32.xlu0 %v6163, 100
      %v6242 = vpop.permute.xlu0 %6241
      %6243 = vrot.lane.b32.xlu0 %v6164, 100
      %v6244 = vpop.permute.xlu0 %6243
      %6245 = vrot.lane.b32.xlu0 %v6165, 100
      %v6246 = vpop.permute.xlu0 %6245
      %6247 = vrot.lane.b32.xlu0 %v6166, 100
      %v6248 = vpop.permute.xlu0 %6247
      %6249 = vrot.lane.b32.xlu0 %v6167, 100
      %v6250 = vpop.permute.xlu0 %6249
      %6251 = vrot.lane.b32.xlu0 %v6168, 100
      %v6252 = vpop.permute.xlu0 %6251
      %6253 = vrot.lane.b32.xlu0 %v6169, 100
      %v6254 = vpop.permute.xlu0 %6253
      %6255 = vrot.lane.b32.xlu0 %v6170, 100
      %v6256 = vpop.permute.xlu0 %6255
      %6257 = vrot.lane.b32.xlu0 %v6171, 100
      %v6258 = vpop.permute.xlu0 %6257
      %6259 = vrot.lane.b32.xlu0 %v6172, 100
      %v6260 = vpop.permute.xlu0 %6259
      %6261 = vrot.lane.b32.xlu0 %v6173, 100
      %v6262 = vpop.permute.xlu0 %6261
      %6263 = vrot.lane.b32.xlu0 %v6174, 100
      %v6264 = vpop.permute.xlu0 %6263
      %6265 = vrot.lane.b32.xlu0 %v6175, 100
      %v6266 = vpop.permute.xlu0 %6265
      %6267 = vrot.lane.b32.xlu0 %v6176, 100
      %v6268 = vpop.permute.xlu0 %6267
      %6269 = vrot.lane.b32.xlu0 %v6177, 100
      %v6270 = vpop.permute.xlu0 %6269
      %6271 = vrot.lane.b32.xlu0 %v6178, 100
      %v6272 = vpop.permute.xlu0 %6271
      %6273 = vrot.lane.b32.xlu0 %v6179, 100
      %v6274 = vpop.permute.xlu0 %6273
      %6275 = vrot.lane.b32.xlu0 %v6180, 100
      %v6276 = vpop.permute.xlu0 %6275
      %vm6309 = vcmask 851744
      %6310 = vst.msk [vmem:[#allocation3] sm:$0xff] %vm6309, %v6214
      %6311 = vst.msk [vmem:[#allocation3 + $0x10] sm:$0xff] %vm6309, %v6216
      %6312 = vst.msk [vmem:[#allocation3 + $0x20] sm:$0xff] %vm6309, %v6218
      %6313 = vst.msk [vmem:[#allocation3 + $0x30] sm:$0xff] %vm6309, %v6220
      %6314 = vst.msk [vmem:[#allocation3 + $0x40] sm:$0xff] %vm6309, %v6222
      %6315 = vst.msk [vmem:[#allocation3 + $0x50] sm:$0xff] %vm6309, %v6224
      %6316 = vst.msk [vmem:[#allocation3 + $0x60] sm:$0xff] %vm6309, %v6226
      %6317 = vst.msk [vmem:[#allocation3 + $0x70] sm:$0xff] %vm6309, %v6228
      %6318 = vst.msk [vmem:[#allocation3 + $0x80] sm:$0xff] %vm6309, %v6230
      %6319 = vst.msk [vmem:[#allocation3 + $0x90] sm:$0xff] %vm6309, %v6232
      %6320 = vst.msk [vmem:[#allocation3 + $0xa0] sm:$0xff] %vm6309, %v6234
      %6321 = vst.msk [vmem:[#allocation3 + $0xb0] sm:$0xff] %vm6309, %v6236
      %6322 = vst.msk [vmem:[#allocation3 + $0xc0] sm:$0xff] %vm6309, %v6238
      %6323 = vst.msk [vmem:[#allocation3 + $0xd0] sm:$0xff] %vm6309, %v6240
      %6324 = vst.msk [vmem:[#allocation3 + $0xe0] sm:$0xff] %vm6309, %v6242
      %6325 = vst.msk [vmem:[#allocation3 + $0xf0] sm:$0xff] %vm6309, %v6244
      %6326 = vst.msk [vmem:[#allocation3 + $0x100] sm:$0xff] %vm6309, %v6246
      %6327 = vst.msk [vmem:[#allocation3 + $0x110] sm:$0xff] %vm6309, %v6248
      %6328 = vst.msk [vmem:[#allocation3 + $0x120] sm:$0xff] %vm6309, %v6250
      %6329 = vst.msk [vmem:[#allocation3 + $0x130] sm:$0xff] %vm6309, %v6252
      %6330 = vst.msk [vmem:[#allocation3 + $0x140] sm:$0xff] %vm6309, %v6254
      %6331 = vst.msk [vmem:[#allocation3 + $0x150] sm:$0xff] %vm6309, %v6256
      %6332 = vst.msk [vmem:[#allocation3 + $0x160] sm:$0xff] %vm6309, %v6258
      %6333 = vst.msk [vmem:[#allocation3 + $0x170] sm:$0xff] %vm6309, %v6260
      %6334 = vst.msk [vmem:[#allocation3 + $0x180] sm:$0xff] %vm6309, %v6262
      %6335 = vst.msk [vmem:[#allocation3 + $0x190] sm:$0xff] %vm6309, %v6264
      %6336 = vst.msk [vmem:[#allocation3 + $0x1a0] sm:$0xff] %vm6309, %v6266
      %6337 = vst.msk [vmem:[#allocation3 + $0x1b0] sm:$0xff] %vm6309, %v6268
      %6338 = vst.msk [vmem:[#allocation3 + $0x1c0] sm:$0xff] %vm6309, %v6270
      %6339 = vst.msk [vmem:[#allocation3 + $0x1d0] sm:$0xff] %vm6309, %v6272
      %6340 = vst.msk [vmem:[#allocation3 + $0x1e0] sm:$0xff] %vm6309, %v6274
      %6341 = vst.msk [vmem:[#allocation3 + $0x1f0] sm:$0xff] %vm6309, %v6276
      %v6342 = vld [vmem:[%s1386 + $0x2] sm:$0xff]
      %v6343 = vld [vmem:[%s1386 + $0xa] sm:$0xff]
      %v6344 = vld [vmem:[%s1386 + $0x1a] sm:$0xff]
      %v6345 = vld [vmem:[%s1386 + $0x22] sm:$0xff]
      %v6346 = vld [vmem:[%s1386 + $0x32] sm:$0xff]
      %v6347 = vld [vmem:[%s1386 + $0x3a] sm:$0xff]
      %v6348 = vld [vmem:[%s1386 + $0x4a] sm:$0xff]
      %v6349 = vld [vmem:[%s1386 + $0x52] sm:$0xff]
      %v6350 = vld [vmem:[%s1386 + $0x62] sm:$0xff]
      %v6351 = vld [vmem:[%s1386 + $0x6a] sm:$0xff]
      %v6352 = vld [vmem:[%s1386 + $0x7a] sm:$0xff]
      %v6353 = vld [vmem:[%s1386 + $0x82] sm:$0xff]
      %v6354 = vld [vmem:[%s1386 + $0x92] sm:$0xff]
      %v6355 = vld [vmem:[%s1386 + $0x9a] sm:$0xff]
      %v6356 = vld [vmem:[%s1386 + $0xaa] sm:$0xff]
      %v6357 = vld [vmem:[%s1386 + $0xb2] sm:$0xff]
      %v6358 = vld [vmem:[%s1386 + $0xc2] sm:$0xff]
      %v6359 = vld [vmem:[%s1386 + $0xca] sm:$0xff]
      %v6360 = vld [vmem:[%s1386 + $0xda] sm:$0xff]
      %v6361 = vld [vmem:[%s1386 + $0xe2] sm:$0xff]
      %v6362 = vld [vmem:[%s1386 + $0xf2] sm:$0xff]
      %v6363 = vld [vmem:[%s1386 + $0xfa] sm:$0xff]
      %v6364 = vld [vmem:[%s1386 + $0x10a] sm:$0xff]
      %v6365 = vld [vmem:[%s1386 + $0x112] sm:$0xff]
      %v6366 = vld [vmem:[%s1386 + $0x122] sm:$0xff]
      %v6367 = vld [vmem:[%s1386 + $0x12a] sm:$0xff]
      %v6368 = vld [vmem:[%s1386 + $0x13a] sm:$0xff]
      %v6369 = vld [vmem:[%s1386 + $0x142] sm:$0xff]
      %v6370 = vld [vmem:[%s1386 + $0x152] sm:$0xff]
      %v6371 = vld [vmem:[%s1386 + $0x15a] sm:$0xff]
      %v6372 = vld [vmem:[%s1386 + $0x16a] sm:$0xff]
      %v6373 = vld [vmem:[%s1386 + $0x172] sm:$0xff]
      %6406 = vrot.lane.b32.xlu0 %v6342, 104
      %v6407 = vpop.permute.xlu0 %6406
      %6408 = vrot.lane.b32.xlu0 %v6343, 104
      %v6409 = vpop.permute.xlu0 %6408
      %6410 = vrot.lane.b32.xlu0 %v6344, 104
      %v6411 = vpop.permute.xlu0 %6410
      %6412 = vrot.lane.b32.xlu0 %v6345, 104
      %v6413 = vpop.permute.xlu0 %6412
      %6414 = vrot.lane.b32.xlu0 %v6346, 104
      %v6415 = vpop.permute.xlu0 %6414
      %6416 = vrot.lane.b32.xlu0 %v6347, 104
      %v6417 = vpop.permute.xlu0 %6416
      %6418 = vrot.lane.b32.xlu0 %v6348, 104
      %v6419 = vpop.permute.xlu0 %6418
      %6420 = vrot.lane.b32.xlu0 %v6349, 104
      %v6421 = vpop.permute.xlu0 %6420
      %6422 = vrot.lane.b32.xlu0 %v6350, 104
      %v6423 = vpop.permute.xlu0 %6422
      %6424 = vrot.lane.b32.xlu0 %v6351, 104
      %v6425 = vpop.permute.xlu0 %6424
      %6426 = vrot.lane.b32.xlu0 %v6352, 104
      %v6427 = vpop.permute.xlu0 %6426
      %6428 = vrot.lane.b32.xlu0 %v6353, 104
      %v6429 = vpop.permute.xlu0 %6428
      %6430 = vrot.lane.b32.xlu0 %v6354, 104
      %v6431 = vpop.permute.xlu0 %6430
      %6432 = vrot.lane.b32.xlu0 %v6355, 104
      %v6433 = vpop.permute.xlu0 %6432
      %6434 = vrot.lane.b32.xlu0 %v6356, 104
      %v6435 = vpop.permute.xlu0 %6434
      %6436 = vrot.lane.b32.xlu0 %v6357, 104
      %v6437 = vpop.permute.xlu0 %6436
      %6438 = vrot.lane.b32.xlu0 %v6358, 104
      %v6439 = vpop.permute.xlu0 %6438
      %6440 = vrot.lane.b32.xlu0 %v6359, 104
      %v6441 = vpop.permute.xlu0 %6440
      %6442 = vrot.lane.b32.xlu0 %v6360, 104
      %v6443 = vpop.permute.xlu0 %6442
      %6444 = vrot.lane.b32.xlu0 %v6361, 104
      %v6445 = vpop.permute.xlu0 %6444
      %6446 = vrot.lane.b32.xlu0 %v6362, 104
      %v6447 = vpop.permute.xlu0 %6446
      %6448 = vrot.lane.b32.xlu0 %v6363, 104
      %v6449 = vpop.permute.xlu0 %6448
      %6450 = vrot.lane.b32.xlu0 %v6364, 104
      %v6451 = vpop.permute.xlu0 %6450
      %6452 = vrot.lane.b32.xlu0 %v6365, 104
      %v6453 = vpop.permute.xlu0 %6452
      %6454 = vrot.lane.b32.xlu0 %v6366, 104
      %v6455 = vpop.permute.xlu0 %6454
      %6456 = vrot.lane.b32.xlu0 %v6367, 104
      %v6457 = vpop.permute.xlu0 %6456
      %6458 = vrot.lane.b32.xlu0 %v6368, 104
      %v6459 = vpop.permute.xlu0 %6458
      %6460 = vrot.lane.b32.xlu0 %v6369, 104
      %v6461 = vpop.permute.xlu0 %6460
      %6462 = vrot.lane.b32.xlu0 %v6370, 104
      %v6463 = vpop.permute.xlu0 %6462
      %6464 = vrot.lane.b32.xlu0 %v6371, 104
      %v6465 = vpop.permute.xlu0 %6464
      %6466 = vrot.lane.b32.xlu0 %v6372, 104
      %v6467 = vpop.permute.xlu0 %6466
      %6468 = vrot.lane.b32.xlu0 %v6373, 104
      %v6469 = vpop.permute.xlu0 %6468
      %vm6502 = vcmask 884544
      %6503 = vst.msk [vmem:[#allocation3] sm:$0xff] %vm6502, %v6407
      %6504 = vst.msk [vmem:[#allocation3 + $0x10] sm:$0xff] %vm6502, %v6409
      %6505 = vst.msk [vmem:[#allocation3 + $0x20] sm:$0xff] %vm6502, %v6411
      %6506 = vst.msk [vmem:[#allocation3 + $0x30] sm:$0xff] %vm6502, %v6413
      %6507 = vst.msk [vmem:[#allocation3 + $0x40] sm:$0xff] %vm6502, %v6415
      %6508 = vst.msk [vmem:[#allocation3 + $0x50] sm:$0xff] %vm6502, %v6417
      %6509 = vst.msk [vmem:[#allocation3 + $0x60] sm:$0xff] %vm6502, %v6419
      %6510 = vst.msk [vmem:[#allocation3 + $0x70] sm:$0xff] %vm6502, %v6421
      %6511 = vst.msk [vmem:[#allocation3 + $0x80] sm:$0xff] %vm6502, %v6423
      %6512 = vst.msk [vmem:[#allocation3 + $0x90] sm:$0xff] %vm6502, %v6425
      %6513 = vst.msk [vmem:[#allocation3 + $0xa0] sm:$0xff] %vm6502, %v6427
      %6514 = vst.msk [vmem:[#allocation3 + $0xb0] sm:$0xff] %vm6502, %v6429
      %6515 = vst.msk [vmem:[#allocation3 + $0xc0] sm:$0xff] %vm6502, %v6431
      %6516 = vst.msk [vmem:[#allocation3 + $0xd0] sm:$0xff] %vm6502, %v6433
      %6517 = vst.msk [vmem:[#allocation3 + $0xe0] sm:$0xff] %vm6502, %v6435
      %6518 = vst.msk [vmem:[#allocation3 + $0xf0] sm:$0xff] %vm6502, %v6437
      %6519 = vst.msk [vmem:[#allocation3 + $0x100] sm:$0xff] %vm6502, %v6439
      %6520 = vst.msk [vmem:[#allocation3 + $0x110] sm:$0xff] %vm6502, %v6441
      %6521 = vst.msk [vmem:[#allocation3 + $0x120] sm:$0xff] %vm6502, %v6443
      %6522 = vst.msk [vmem:[#allocation3 + $0x130] sm:$0xff] %vm6502, %v6445
      %6523 = vst.msk [vmem:[#allocation3 + $0x140] sm:$0xff] %vm6502, %v6447
      %6524 = vst.msk [vmem:[#allocation3 + $0x150] sm:$0xff] %vm6502, %v6449
      %6525 = vst.msk [vmem:[#allocation3 + $0x160] sm:$0xff] %vm6502, %v6451
      %6526 = vst.msk [vmem:[#allocation3 + $0x170] sm:$0xff] %vm6502, %v6453
      %6527 = vst.msk [vmem:[#allocation3 + $0x180] sm:$0xff] %vm6502, %v6455
      %6528 = vst.msk [vmem:[#allocation3 + $0x190] sm:$0xff] %vm6502, %v6457
      %6529 = vst.msk [vmem:[#allocation3 + $0x1a0] sm:$0xff] %vm6502, %v6459
      %6530 = vst.msk [vmem:[#allocation3 + $0x1b0] sm:$0xff] %vm6502, %v6461
      %6531 = vst.msk [vmem:[#allocation3 + $0x1c0] sm:$0xff] %vm6502, %v6463
      %6532 = vst.msk [vmem:[#allocation3 + $0x1d0] sm:$0xff] %vm6502, %v6465
      %6533 = vst.msk [vmem:[#allocation3 + $0x1e0] sm:$0xff] %vm6502, %v6467
      %6534 = vst.msk [vmem:[#allocation3 + $0x1f0] sm:$0xff] %vm6502, %v6469
      %v6535 = vld [vmem:[#allocation3] sm:$0xff]
      %v6536 = vld [vmem:[#allocation3 + $0x8] sm:$0xff]
      %v6537 = vld [vmem:[#allocation3 + $0x10] sm:$0xff]
      %v6538 = vld [vmem:[#allocation3 + $0x18] sm:$0xff]
      %v6539 = vld [vmem:[#allocation3 + $0x20] sm:$0xff]
      %v6540 = vld [vmem:[#allocation3 + $0x28] sm:$0xff]
      %v6541 = vld [vmem:[#allocation3 + $0x30] sm:$0xff]
      %v6542 = vld [vmem:[#allocation3 + $0x38] sm:$0xff]
      %v6543 = vld [vmem:[#allocation3 + $0x40] sm:$0xff]
      %v6544 = vld [vmem:[#allocation3 + $0x48] sm:$0xff]
      %v6545 = vld [vmem:[#allocation3 + $0x50] sm:$0xff]
      %v6546 = vld [vmem:[#allocation3 + $0x58] sm:$0xff]
      %v6547 = vld [vmem:[#allocation3 + $0x60] sm:$0xff]
      %v6548 = vld [vmem:[#allocation3 + $0x68] sm:$0xff]
      %v6549 = vld [vmem:[#allocation3 + $0x70] sm:$0xff]
      %v6550 = vld [vmem:[#allocation3 + $0x78] sm:$0xff]
      %v6551 = vld [vmem:[#allocation3 + $0x80] sm:$0xff]
      %v6552 = vld [vmem:[#allocation3 + $0x88] sm:$0xff]
      %v6553 = vld [vmem:[#allocation3 + $0x90] sm:$0xff]
      %v6554 = vld [vmem:[#allocation3 + $0x98] sm:$0xff]
      %v6555 = vld [vmem:[#allocation3 + $0xa0] sm:$0xff]
      %v6556 = vld [vmem:[#allocation3 + $0xa8] sm:$0xff]
      %v6557 = vld [vmem:[#allocation3 + $0xb0] sm:$0xff]
      %v6558 = vld [vmem:[#allocation3 + $0xb8] sm:$0xff]
      %v6559 = vld [vmem:[#allocation3 + $0xc0] sm:$0xff]
      %v6560 = vld [vmem:[#allocation3 + $0xc8] sm:$0xff]
      %v6561 = vld [vmem:[#allocation3 + $0xd0] sm:$0xff]
      %v6562 = vld [vmem:[#allocation3 + $0xd8] sm:$0xff]
      %v6563 = vld [vmem:[#allocation3 + $0xe0] sm:$0xff]
      %v6564 = vld [vmem:[#allocation3 + $0xe8] sm:$0xff]
      %v6565 = vld [vmem:[#allocation3 + $0xf0] sm:$0xff]
      %v6566 = vld [vmem:[#allocation3 + $0xf8] sm:$0xff]
      %v6567 = vld [vmem:[#allocation3 + $0x100] sm:$0xff]
      %v6568 = vld [vmem:[#allocation3 + $0x108] sm:$0xff]
      %v6569 = vld [vmem:[#allocation3 + $0x110] sm:$0xff]
      %v6570 = vld [vmem:[#allocation3 + $0x118] sm:$0xff]
      %v6571 = vld [vmem:[#allocation3 + $0x120] sm:$0xff]
      %v6572 = vld [vmem:[#allocation3 + $0x128] sm:$0xff]
      %v6573 = vld [vmem:[#allocation3 + $0x130] sm:$0xff]
      %v6574 = vld [vmem:[#allocation3 + $0x138] sm:$0xff]
      %v6575 = vld [vmem:[#allocation3 + $0x140] sm:$0xff]
      %v6576 = vld [vmem:[#allocation3 + $0x148] sm:$0xff]
      %v6577 = vld [vmem:[#allocation3 + $0x150] sm:$0xff]
      %v6578 = vld [vmem:[#allocation3 + $0x158] sm:$0xff]
      %v6579 = vld [vmem:[#allocation3 + $0x160] sm:$0xff]
      %v6580 = vld [vmem:[#allocation3 + $0x168] sm:$0xff]
      %v6581 = vld [vmem:[#allocation3 + $0x170] sm:$0xff]
      %v6582 = vld [vmem:[#allocation3 + $0x178] sm:$0xff]
      %v6583 = vld [vmem:[#allocation3 + $0x180] sm:$0xff]
      %v6584 = vld [vmem:[#allocation3 + $0x188] sm:$0xff]
      %v6585 = vld [vmem:[#allocation3 + $0x190] sm:$0xff]
      %v6586 = vld [vmem:[#allocation3 + $0x198] sm:$0xff]
      %v6587 = vld [vmem:[#allocation3 + $0x1a0] sm:$0xff]
      %v6588 = vld [vmem:[#allocation3 + $0x1a8] sm:$0xff]
      %v6589 = vld [vmem:[#allocation3 + $0x1b0] sm:$0xff]
      %v6590 = vld [vmem:[#allocation3 + $0x1b8] sm:$0xff]
      %v6591 = vld [vmem:[#allocation3 + $0x1c0] sm:$0xff]
      %v6592 = vld [vmem:[#allocation3 + $0x1c8] sm:$0xff]
      %v6593 = vld [vmem:[#allocation3 + $0x1d0] sm:$0xff]
      %v6594 = vld [vmem:[#allocation3 + $0x1d8] sm:$0xff]
      %v6595 = vld [vmem:[#allocation3 + $0x1e0] sm:$0xff]
      %v6596 = vld [vmem:[#allocation3 + $0x1e8] sm:$0xff]
      %v6597 = vld [vmem:[#allocation3 + $0x1f0] sm:$0xff]
      %v6598 = vld [vmem:[#allocation3 + $0x1f8] sm:$0xff]
      %s6599 = scalar_lea.vmem %s1, 368
      %v6600 = vld [vmem:[%s6599] sm:$0xff]
      %v6601 = vld [vmem:[%s6599 + $0x8] sm:$0xff]
      %v6602 = vld [vmem:[%s6599 + $0x10] sm:$0xff]
      %v6603 = vld [vmem:[%s6599 + $0x18] sm:$0xff]
      %v6604 = vld [vmem:[%s6599 + $0x20] sm:$0xff]
      %v6605 = vld [vmem:[%s6599 + $0x28] sm:$0xff]
      %v6606 = vld [vmem:[%s6599 + $0x30] sm:$0xff]
      %v6607 = vld [vmem:[%s6599 + $0x38] sm:$0xff]
      %v6608 = vld [vmem:[%s6599 + $0x40] sm:$0xff]
      %v6609 = vld [vmem:[%s6599 + $0x48] sm:$0xff]
      %v6610 = vld [vmem:[%s6599 + $0x50] sm:$0xff]
      %v6611 = vld [vmem:[%s6599 + $0x58] sm:$0xff]
      %v6612 = vld [vmem:[%s6599 + $0x60] sm:$0xff]
      %v6613 = vld [vmem:[%s6599 + $0x68] sm:$0xff]
      %v6614 = vld [vmem:[%s6599 + $0x70] sm:$0xff]
      %v6615 = vld [vmem:[%s6599 + $0x78] sm:$0xff]
      %v6616 = vld [vmem:[%s6599 + $0x80] sm:$0xff]
      %v6617 = vld [vmem:[%s6599 + $0x88] sm:$0xff]
      %v6618 = vld [vmem:[%s6599 + $0x90] sm:$0xff]
      %v6619 = vld [vmem:[%s6599 + $0x98] sm:$0xff]
      %v6620 = vld [vmem:[%s6599 + $0xa0] sm:$0xff]
      %v6621 = vld [vmem:[%s6599 + $0xa8] sm:$0xff]
      %v6622 = vld [vmem:[%s6599 + $0xb0] sm:$0xf]
      %s6623 = scalar_lea.vmem %s2, 2
      %v6624 = vld [vmem:[%s6623] sm:$0x1]
      %v6626 = vlaneseq
      %v6627 = vshrl.u32 %v6626, 7
      %v6628 = vsub.s32 0, %v6627
      %v6629 = vrot.slane %v6624, %v6628
      %v6632 = vsel %vm228, %v6536, 0
      %v6635 = vsel %vm228, %v6538, 0
      %v6638 = vsel %vm228, %v6540, 0
      %v6641 = vsel %vm228, %v6542, 0
      %v6644 = vsel %vm228, %v6544, 0
      %v6647 = vsel %vm228, %v6546, 0
      %v6650 = vsel %vm228, %v6548, 0
      %v6653 = vsel %vm228, %v6550, 0
      %v6656 = vsel %vm228, %v6552, 0
      %v6659 = vsel %vm228, %v6554, 0
      %v6662 = vsel %vm228, %v6556, 0
      %v6665 = vsel %vm228, %v6558, 0
      %v6668 = vsel %vm228, %v6560, 0
      %v6671 = vsel %vm228, %v6562, 0
      %v6674 = vsel %vm228, %v6564, 0
      %v6677 = vsel %vm228, %v6566, 0
      %v6680 = vsel %vm228, %v6568, 0
      %v6683 = vsel %vm228, %v6570, 0
      %v6686 = vsel %vm228, %v6572, 0
      %v6689 = vsel %vm228, %v6574, 0
      %v6692 = vsel %vm228, %v6576, 0
      %v6695 = vsel %vm228, %v6578, 0
      %v6698 = vsel %vm228, %v6580, 0
      %v6701 = vsel %vm228, %v6582, 0
      %v6704 = vsel %vm228, %v6584, 0
      %v6707 = vsel %vm228, %v6586, 0
      %v6710 = vsel %vm228, %v6588, 0
      %v6713 = vsel %vm228, %v6590, 0
      %v6716 = vsel %vm228, %v6592, 0
      %v6719 = vsel %vm228, %v6594, 0
      %v6722 = vsel %vm228, %v6596, 0
      %v6725 = vsel %vm228, %v6598, 0
      %v6728 = vsel %vm2156, %v6622, 0
      %6730 = vmatprep.subr.mxu0 0.0
      %6731 = vmatpush1.msra.mxu0 %v6600
      %6732 = vmatprep.subr.mxu0 0.0
      %6733 = vmatpush1.msra.mxu0 %v6601
      %6734 = vmatprep.subr.mxu0 0.0
      %6735 = vmatpush1.msra.mxu0 %v6602
      %6736 = vmatprep.subr.mxu0 0.0
      %6737 = vmatpush1.msra.mxu0 %v6603
      %6738 = vmatprep.subr.mxu0 0.0
      %6739 = vmatpush1.msra.mxu0 %v6604
      %6740 = vmatprep.subr.mxu0 0.0
      %6741 = vmatpush1.msra.mxu0 %v6605
      %6742 = vmatprep.subr.mxu0 0.0
      %6743 = vmatpush1.msra.mxu0 %v6606
      %6744 = vmatprep.subr.mxu0 0.0
      %6745 = vmatpush1.msra.mxu0 %v6607
      %6746 = vmatprep.subr.mxu0 0.0
      %6747 = vmatpush1.msra.mxu0 %v6608
      %6748 = vmatprep.subr.mxu0 0.0
      %6749 = vmatpush1.msra.mxu0 %v6609
      %6750 = vmatprep.subr.mxu0 0.0
      %6751 = vmatpush1.msra.mxu0 %v6610
      %6752 = vmatprep.subr.mxu0 0.0
      %6753 = vmatpush1.msra.mxu0 %v6611
      %6754 = vmatprep.subr.mxu0 0.0
      %6755 = vmatpush1.msra.mxu0 %v6612
      %6756 = vmatprep.subr.mxu0 0.0
      %6757 = vmatpush1.msra.mxu0 %v6613
      %6758 = vmatprep.subr.mxu0 0.0
      %6759 = vmatpush1.msra.mxu0 %v6614
      %6760 = vmatprep.subr.mxu0 0.0
      %6761 = vmatpush1.msra.mxu0 %v6615
      %6762 = vmatprep.subr.mxu0 0.0
      %6763 = vmatpush1.msra.mxu0 %v6616
      %6764 = vmatprep.subr.mxu0 0.0
      %6765 = vmatpush1.msra.mxu0 %v6617
      %6766 = vmatprep.subr.mxu0 0.0
      %6767 = vmatpush1.msra.mxu0 %v6618
      %6768 = vmatprep.subr.mxu0 0.0
      %6769 = vmatpush1.msra.mxu0 %v6619
      %6770 = vmatprep.subr.mxu0 0.0
      %6771 = vmatpush1.msra.mxu0 %v6620
      %6772 = vmatprep.subr.mxu0 0.0
      %6773 = vmatpush1.msra.mxu0 %v6621
      %6774 = vmatprep.subr.mxu0 0.0
      %6775 = vmatpush1.msra.mxu0 %v6728
      %6776 = vmatprep.subr.mxu0 0.0
      %6777 = vmatpush1.msra.mxu0 0.0
      %6778 = vmatprep.subr.mxu0 0.0
      %6779 = vmatpush1.msra.mxu0 0.0
      %6780 = vmatprep.subr.mxu0 0.0
      %6781 = vmatpush1.msra.mxu0 0.0
      %6782 = vmatprep.subr.mxu0 0.0
      %6783 = vmatpush1.msra.mxu0 0.0
      %6784 = vmatprep.subr.mxu0 0.0
      %6785 = vmatpush1.msra.mxu0 0.0
      %6786 = vmatprep.subr.mxu0 0.0
      %6787 = vmatpush1.msra.mxu0 0.0
      %6788 = vmatprep.subr.mxu0 0.0
      %6789 = vmatpush1.msra.mxu0 0.0
      %6790 = vmatprep.subr.mxu0 0.0
      %6791 = vmatpush1.msra.mxu0 0.0
      %6792 = vmatprep.subr.mxu0 0.0
      %6793 = vmatpush1.msra.mxu0 0.0
      %6794 = vmatprep.mubr.f32.mxu0 %v6632
      %6795 = vmatmul.mubr.f32.gmra.mrb[0].mxu0 %v6535
      %v6796 = vpop.f32.mrb[0].mxu0
      %v6797 = vadd.f32 %v6629, %v6796
      %v6798 = vpop.f32.mrb[0].mxu0
      %6799 = vmatprep.mubr.f32.mxu0 %v6635
      %6800 = vmatmul.mubr.f32.gmra.mrb[0].mxu0 %v6537
      %v6801 = vpop.f32.mrb[0].mxu0
      %v6802 = vadd.f32 %v6629, %v6801
      %v6803 = vpop.f32.mrb[0].mxu0
      %6804 = vmatprep.mubr.f32.mxu0 %v6638
      %6805 = vmatmul.mubr.f32.gmra.mrb[0].mxu0 %v6539
      %v6806 = vpop.f32.mrb[0].mxu0
      %v6807 = vadd.f32 %v6629, %v6806
      %v6808 = vpop.f32.mrb[0].mxu0
      %6809 = vmatprep.mubr.f32.mxu0 %v6641
      %6810 = vmatmul.mubr.f32.gmra.mrb[0].mxu0 %v6541
      %v6811 = vpop.f32.mrb[0].mxu0
      %v6812 = vadd.f32 %v6629, %v6811
      %v6813 = vpop.f32.mrb[0].mxu0
      %6814 = vmatprep.mubr.f32.mxu0 %v6644
      %6815 = vmatmul.mubr.f32.gmra.mrb[0].mxu0 %v6543
      %v6816 = vpop.f32.mrb[0].mxu0
      %v6817 = vadd.f32 %v6629, %v6816
      %v6818 = vpop.f32.mrb[0].mxu0
      %6819 = vmatprep.mubr.f32.mxu0 %v6647
      %6820 = vmatmul.mubr.f32.gmra.mrb[0].mxu0 %v6545
      %v6821 = vpop.f32.mrb[0].mxu0
      %v6822 = vadd.f32 %v6629, %v6821
      %v6823 = vpop.f32.mrb[0].mxu0
      %6824 = vmatprep.mubr.f32.mxu0 %v6650
      %6825 = vmatmul.mubr.f32.gmra.mrb[0].mxu0 %v6547
      %v6826 = vpop.f32.mrb[0].mxu0
      %v6827 = vadd.f32 %v6629, %v6826
      %v6828 = vpop.f32.mrb[0].mxu0
      %6829 = vmatprep.mubr.f32.mxu0 %v6653
      %6830 = vmatmul.mubr.f32.gmra.mrb[0].mxu0 %v6549
      %v6831 = vpop.f32.mrb[0].mxu0
      %v6832 = vadd.f32 %v6629, %v6831
      %v6833 = vpop.f32.mrb[0].mxu0
      %6834 = vmatprep.mubr.f32.mxu0 %v6656
      %6835 = vmatmul.mubr.f32.gmra.mrb[0].mxu0 %v6551
      %v6836 = vpop.f32.mrb[0].mxu0
      %v6837 = vadd.f32 %v6629, %v6836
      %v6838 = vpop.f32.mrb[0].mxu0
      %6839 = vmatprep.mubr.f32.mxu0 %v6659
      %6840 = vmatmul.mubr.f32.gmra.mrb[0].mxu0 %v6553
      %v6841 = vpop.f32.mrb[0].mxu0
      %v6842 = vadd.f32 %v6629, %v6841
      %v6843 = vpop.f32.mrb[0].mxu0
      %6844 = vmatprep.mubr.f32.mxu0 %v6662
      %6845 = vmatmul.mubr.f32.gmra.mrb[0].mxu0 %v6555
      %v6846 = vpop.f32.mrb[0].mxu0
      %v6847 = vadd.f32 %v6629, %v6846
      %v6848 = vpop.f32.mrb[0].mxu0
      %6849 = vmatprep.mubr.f32.mxu0 %v6665
      %6850 = vmatmul.mubr.f32.gmra.mrb[0].mxu0 %v6557
      %v6851 = vpop.f32.mrb[0].mxu0
      %v6852 = vadd.f32 %v6629, %v6851
      %v6853 = vpop.f32.mrb[0].mxu0
      %6854 = vmatprep.mubr.f32.mxu0 %v6668
      %6855 = vmatmul.mubr.f32.gmra.mrb[0].mxu0 %v6559
      %v6856 = vpop.f32.mrb[0].mxu0
      %v6857 = vadd.f32 %v6629, %v6856
      %v6858 = vpop.f32.mrb[0].mxu0
      %6859 = vmatprep.mubr.f32.mxu0 %v6671
      %6860 = vmatmul.mubr.f32.gmra.mrb[0].mxu0 %v6561
      %v6861 = vpop.f32.mrb[0].mxu0
      %v6862 = vadd.f32 %v6629, %v6861
      %v6863 = vpop.f32.mrb[0].mxu0
      %6864 = vmatprep.mubr.f32.mxu0 %v6674
      %6865 = vmatmul.mubr.f32.gmra.mrb[0].mxu0 %v6563
      %v6866 = vpop.f32.mrb[0].mxu0
      %v6867 = vadd.f32 %v6629, %v6866
      %v6868 = vpop.f32.mrb[0].mxu0
      %6869 = vmatprep.mubr.f32.mxu0 %v6677
      %6870 = vmatmul.mubr.f32.gmra.mrb[0].mxu0 %v6565
      %v6871 = vpop.f32.mrb[0].mxu0
      %v6872 = vadd.f32 %v6629, %v6871
      %v6873 = vpop.f32.mrb[0].mxu0
      %6874 = vmatprep.mubr.f32.mxu0 %v6680
      %6875 = vmatmul.mubr.f32.gmra.mrb[0].mxu0 %v6567
      %v6876 = vpop.f32.mrb[0].mxu0
      %v6877 = vadd.f32 %v6629, %v6876
      %v6878 = vpop.f32.mrb[0].mxu0
      %6879 = vmatprep.mubr.f32.mxu0 %v6683
      %6880 = vmatmul.mubr.f32.gmra.mrb[0].mxu0 %v6569
      %v6881 = vpop.f32.mrb[0].mxu0
      %v6882 = vadd.f32 %v6629, %v6881
      %v6883 = vpop.f32.mrb[0].mxu0
      %6884 = vmatprep.mubr.f32.mxu0 %v6686
      %6885 = vmatmul.mubr.f32.gmra.mrb[0].mxu0 %v6571
      %v6886 = vpop.f32.mrb[0].mxu0
      %v6887 = vadd.f32 %v6629, %v6886
      %v6888 = vpop.f32.mrb[0].mxu0
      %6889 = vmatprep.mubr.f32.mxu0 %v6689
      %6890 = vmatmul.mubr.f32.gmra.mrb[0].mxu0 %v6573
      %v6891 = vpop.f32.mrb[0].mxu0
      %v6892 = vadd.f32 %v6629, %v6891
      %v6893 = vpop.f32.mrb[0].mxu0
      %6894 = vmatprep.mubr.f32.mxu0 %v6692
      %6895 = vmatmul.mubr.f32.gmra.mrb[0].mxu0 %v6575
      %v6896 = vpop.f32.mrb[0].mxu0
      %v6897 = vadd.f32 %v6629, %v6896
      %v6898 = vpop.f32.mrb[0].mxu0
      %6899 = vmatprep.mubr.f32.mxu0 %v6695
      %6900 = vmatmul.mubr.f32.gmra.mrb[0].mxu0 %v6577
      %v6901 = vpop.f32.mrb[0].mxu0
      %v6902 = vadd.f32 %v6629, %v6901
      %v6903 = vpop.f32.mrb[0].mxu0
      %6904 = vmatprep.mubr.f32.mxu0 %v6698
      %6905 = vmatmul.mubr.f32.gmra.mrb[0].mxu0 %v6579
      %v6906 = vpop.f32.mrb[0].mxu0
      %v6907 = vadd.f32 %v6629, %v6906
      %v6908 = vpop.f32.mrb[0].mxu0
      %6909 = vmatprep.mubr.f32.mxu0 %v6701
      %6910 = vmatmul.mubr.f32.gmra.mrb[0].mxu0 %v6581
      %v6911 = vpop.f32.mrb[0].mxu0
      %v6912 = vadd.f32 %v6629, %v6911
      %v6913 = vpop.f32.mrb[0].mxu0
      %6914 = vmatprep.mubr.f32.mxu0 %v6704
      %6915 = vmatmul.mubr.f32.gmra.mrb[0].mxu0 %v6583
      %v6916 = vpop.f32.mrb[0].mxu0
      %v6917 = vadd.f32 %v6629, %v6916
      %v6918 = vpop.f32.mrb[0].mxu0
      %6919 = vmatprep.mubr.f32.mxu0 %v6707
      %6920 = vmatmul.mubr.f32.gmra.mrb[0].mxu0 %v6585
      %v6921 = vpop.f32.mrb[0].mxu0
      %v6922 = vadd.f32 %v6629, %v6921
      %v6923 = vpop.f32.mrb[0].mxu0
      %6924 = vmatprep.mubr.f32.mxu0 %v6710
      %6925 = vmatmul.mubr.f32.gmra.mrb[0].mxu0 %v6587
      %v6926 = vpop.f32.mrb[0].mxu0
      %v6927 = vadd.f32 %v6629, %v6926
      %v6928 = vpop.f32.mrb[0].mxu0
      %6929 = vmatprep.mubr.f32.mxu0 %v6713
      %6930 = vmatmul.mubr.f32.gmra.mrb[0].mxu0 %v6589
      %v6931 = vpop.f32.mrb[0].mxu0
      %v6932 = vadd.f32 %v6629, %v6931
      %v6933 = vpop.f32.mrb[0].mxu0
      %6934 = vmatprep.mubr.f32.mxu0 %v6716
      %6935 = vmatmul.mubr.f32.gmra.mrb[0].mxu0 %v6591
      %v6936 = vpop.f32.mrb[0].mxu0
      %v6937 = vadd.f32 %v6629, %v6936
      %v6938 = vpop.f32.mrb[0].mxu0
      %6939 = vmatprep.mubr.f32.mxu0 %v6719
      %6940 = vmatmul.mubr.f32.gmra.mrb[0].mxu0 %v6593
      %v6941 = vpop.f32.mrb[0].mxu0
      %v6942 = vadd.f32 %v6629, %v6941
      %v6943 = vpop.f32.mrb[0].mxu0
      %6944 = vmatprep.mubr.f32.mxu0 %v6722
      %6945 = vmatmul.mubr.f32.gmra.mrb[0].mxu0 %v6595
      %v6946 = vpop.f32.mrb[0].mxu0
      %v6947 = vadd.f32 %v6629, %v6946
      %v6948 = vpop.f32.mrb[0].mxu0
      %6949 = vmatprep.mubr.f32.mxu0 %v6725
      %6950 = vmatmul.mubr.f32.gmra.mrb[0].mxu0 %v6597
      %v6951 = vpop.f32.mrb[0].mxu0
      %v6952 = vadd.f32 %v6629, %v6951
      %v6953 = vpop.f32.mrb[0].mxu0
      %6954 = vdwg.mxu0
      %vm6955 = vcmp.ge.f32.partialorder %v6797, 0.0
      %vm6956 = vcmp.ge.f32.partialorder %v6802, 0.0
      %vm6957 = vcmp.ge.f32.partialorder %v6807, 0.0
      %vm6958 = vcmp.ge.f32.partialorder %v6812, 0.0
      %vm6959 = vcmp.ge.f32.partialorder %v6817, 0.0
      %vm6960 = vcmp.ge.f32.partialorder %v6822, 0.0
      %vm6961 = vcmp.ge.f32.partialorder %v6827, 0.0
      %vm6962 = vcmp.ge.f32.partialorder %v6832, 0.0
      %vm6963 = vcmp.ge.f32.partialorder %v6837, 0.0
      %vm6964 = vcmp.ge.f32.partialorder %v6842, 0.0
      %vm6965 = vcmp.ge.f32.partialorder %v6847, 0.0
      %vm6966 = vcmp.ge.f32.partialorder %v6852, 0.0
      %vm6967 = vcmp.ge.f32.partialorder %v6857, 0.0
      %vm6968 = vcmp.ge.f32.partialorder %v6862, 0.0
      %vm6969 = vcmp.ge.f32.partialorder %v6867, 0.0
      %vm6970 = vcmp.ge.f32.partialorder %v6872, 0.0
      %vm6971 = vcmp.ge.f32.partialorder %v6877, 0.0
      %vm6972 = vcmp.ge.f32.partialorder %v6882, 0.0
      %vm6973 = vcmp.ge.f32.partialorder %v6887, 0.0
      %vm6974 = vcmp.ge.f32.partialorder %v6892, 0.0
      %vm6975 = vcmp.ge.f32.partialorder %v6897, 0.0
      %vm6976 = vcmp.ge.f32.partialorder %v6902, 0.0
      %vm6977 = vcmp.ge.f32.partialorder %v6907, 0.0
      %vm6978 = vcmp.ge.f32.partialorder %v6912, 0.0
      %vm6979 = vcmp.ge.f32.partialorder %v6917, 0.0
      %vm6980 = vcmp.ge.f32.partialorder %v6922, 0.0
      %vm6981 = vcmp.ge.f32.partialorder %v6927, 0.0
      %vm6982 = vcmp.ge.f32.partialorder %v6932, 0.0
      %vm6983 = vcmp.ge.f32.partialorder %v6937, 0.0
      %vm6984 = vcmp.ge.f32.partialorder %v6942, 0.0
      %vm6985 = vcmp.ge.f32.partialorder %v6947, 0.0
      %vm6986 = vcmp.ge.f32.partialorder %v6952, 0.0
      %v6987 = vmul.f32 %v6797, 0.2
      %v6988 = vmul.f32 %v6802, 0.2
      %v6989 = vmul.f32 %v6807, 0.2
      %v6990 = vmul.f32 %v6812, 0.2
      %v6991 = vmul.f32 %v6817, 0.2
      %v6992 = vmul.f32 %v6822, 0.2
      %v6993 = vmul.f32 %v6827, 0.2
      %v6994 = vmul.f32 %v6832, 0.2
      %v6995 = vmul.f32 %v6837, 0.2
      %v6996 = vmul.f32 %v6842, 0.2
      %v6997 = vmul.f32 %v6847, 0.2
      %v6998 = vmul.f32 %v6852, 0.2
      %v6999 = vmul.f32 %v6857, 0.2
      %v7000 = vmul.f32 %v6862, 0.2
      %v7001 = vmul.f32 %v6867, 0.2
      %v7002 = vmul.f32 %v6872, 0.2
      %v7003 = vmul.f32 %v6877, 0.2
      %v7004 = vmul.f32 %v6882, 0.2
      %v7005 = vmul.f32 %v6887, 0.2
      %v7006 = vmul.f32 %v6892, 0.2
      %v7007 = vmul.f32 %v6897, 0.2
      %v7008 = vmul.f32 %v6902, 0.2
      %v7009 = vmul.f32 %v6907, 0.2
      %v7010 = vmul.f32 %v6912, 0.2
      %v7011 = vmul.f32 %v6917, 0.2
      %v7012 = vmul.f32 %v6922, 0.2
      %v7013 = vmul.f32 %v6927, 0.2
      %v7014 = vmul.f32 %v6932, 0.2
      %v7015 = vmul.f32 %v6937, 0.2
      %v7016 = vmul.f32 %v6942, 0.2
      %v7017 = vmul.f32 %v6947, 0.2
      %v7018 = vmul.f32 %v6952, 0.2
      %v7019 = vsel %vm6955, %v6797, %v6987
      %v7020 = vsel %vm6956, %v6802, %v6988
      %v7021 = vsel %vm6957, %v6807, %v6989
      %v7022 = vsel %vm6958, %v6812, %v6990
      %v7023 = vsel %vm6959, %v6817, %v6991
      %v7024 = vsel %vm6960, %v6822, %v6992
      %v7025 = vsel %vm6961, %v6827, %v6993
      %v7026 = vsel %vm6962, %v6832, %v6994
      %v7027 = vsel %vm6963, %v6837, %v6995
      %v7028 = vsel %vm6964, %v6842, %v6996
      %v7029 = vsel %vm6965, %v6847, %v6997
      %v7030 = vsel %vm6966, %v6852, %v6998
      %v7031 = vsel %vm6967, %v6857, %v6999
      %v7032 = vsel %vm6968, %v6862, %v7000
      %v7033 = vsel %vm6969, %v6867, %v7001
      %v7034 = vsel %vm6970, %v6872, %v7002
      %v7035 = vsel %vm6971, %v6877, %v7003
      %v7036 = vsel %vm6972, %v6882, %v7004
      %v7037 = vsel %vm6973, %v6887, %v7005
      %v7038 = vsel %vm6974, %v6892, %v7006
      %v7039 = vsel %vm6975, %v6897, %v7007
      %v7040 = vsel %vm6976, %v6902, %v7008
      %v7041 = vsel %vm6977, %v6907, %v7009
      %v7042 = vsel %vm6978, %v6912, %v7010
      %v7043 = vsel %vm6979, %v6917, %v7011
      %v7044 = vsel %vm6980, %v6922, %v7012
      %v7045 = vsel %vm6981, %v6927, %v7013
      %v7046 = vsel %vm6982, %v6932, %v7014
      %v7047 = vsel %vm6983, %v6937, %v7015
      %v7048 = vsel %vm6984, %v6942, %v7016
      %v7049 = vsel %vm6985, %v6947, %v7017
      %v7050 = vsel %vm6986, %v6952, %v7018
      %7051 = vst.msk [vmem:[%s324 + $0x1] sm:$0xff] %vm171, %v7019
      %7052 = vst.msk [vmem:[%s324 + $0x9] sm:$0xff] %vm171, %v7020
      %7053 = vst.msk [vmem:[%s324 + $0x19] sm:$0xff] %vm171, %v7021
      %7054 = vst.msk [vmem:[%s324 + $0x21] sm:$0xff] %vm171, %v7022
      %7055 = vst.msk [vmem:[%s324 + $0x31] sm:$0xff] %vm171, %v7023
      %7056 = vst.msk [vmem:[%s324 + $0x39] sm:$0xff] %vm171, %v7024
      %7057 = vst.msk [vmem:[%s324 + $0x49] sm:$0xff] %vm171, %v7025
      %7058 = vst.msk [vmem:[%s324 + $0x51] sm:$0xff] %vm171, %v7026
      %7059 = vst.msk [vmem:[%s324 + $0x61] sm:$0xff] %vm171, %v7027
      %7060 = vst.msk [vmem:[%s324 + $0x69] sm:$0xff] %vm171, %v7028
      %7061 = vst.msk [vmem:[%s324 + $0x79] sm:$0xff] %vm171, %v7029
      %7062 = vst.msk [vmem:[%s324 + $0x81] sm:$0xff] %vm171, %v7030
      %7063 = vst.msk [vmem:[%s324 + $0x91] sm:$0xff] %vm171, %v7031
      %7064 = vst.msk [vmem:[%s324 + $0x99] sm:$0xff] %vm171, %v7032
      %7065 = vst.msk [vmem:[%s324 + $0xa9] sm:$0xff] %vm171, %v7033
      %7066 = vst.msk [vmem:[%s324 + $0xb1] sm:$0xff] %vm171, %v7034
      %7067 = vst.msk [vmem:[%s324 + $0xc1] sm:$0xff] %vm171, %v7035
      %7068 = vst.msk [vmem:[%s324 + $0xc9] sm:$0xff] %vm171, %v7036
      %7069 = vst.msk [vmem:[%s324 + $0xd9] sm:$0xff] %vm171, %v7037
      %7070 = vst.msk [vmem:[%s324 + $0xe1] sm:$0xff] %vm171, %v7038
      %7071 = vst.msk [vmem:[%s324 + $0xf1] sm:$0xff] %vm171, %v7039
      %7072 = vst.msk [vmem:[%s324 + $0xf9] sm:$0xff] %vm171, %v7040
      %7073 = vst.msk [vmem:[%s324 + $0x109] sm:$0xff] %vm171, %v7041
      %7074 = vst.msk [vmem:[%s324 + $0x111] sm:$0xff] %vm171, %v7042
      %7075 = vst.msk [vmem:[%s324 + $0x121] sm:$0xff] %vm171, %v7043
      %7076 = vst.msk [vmem:[%s324 + $0x129] sm:$0xff] %vm171, %v7044
      %7077 = vst.msk [vmem:[%s324 + $0x139] sm:$0xff] %vm171, %v7045
      %7078 = vst.msk [vmem:[%s324 + $0x141] sm:$0xff] %vm171, %v7046
      %7079 = vst.msk [vmem:[%s324 + $0x151] sm:$0xff] %vm171, %v7047
      %7080 = vst.msk [vmem:[%s324 + $0x159] sm:$0xff] %vm171, %v7048
      %7081 = vst.msk [vmem:[%s324 + $0x169] sm:$0xff] %vm171, %v7049
      %7082 = vst.msk [vmem:[%s324 + $0x171] sm:$0xff] %vm171, %v7050
      %v7083 = vld [vmem:[#allocation2] sm:$0xff]
      %v7084 = vld [vmem:[#allocation2 + $0x8] sm:$0xff]
      %v7085 = vld [vmem:[#allocation2 + $0x18] sm:$0xff]
      %v7086 = vld [vmem:[#allocation2 + $0x20] sm:$0xff]
      %v7087 = vld [vmem:[#allocation2 + $0x30] sm:$0xff]
      %v7088 = vld [vmem:[#allocation2 + $0x38] sm:$0xff]
      %v7089 = vld [vmem:[#allocation2 + $0x48] sm:$0xff]
      %v7090 = vld [vmem:[#allocation2 + $0x50] sm:$0xff]
      %v7091 = vld [vmem:[#allocation2 + $0x60] sm:$0xff]
      %v7092 = vld [vmem:[#allocation2 + $0x68] sm:$0xff]
      %v7093 = vld [vmem:[#allocation2 + $0x78] sm:$0xff]
      %v7094 = vld [vmem:[#allocation2 + $0x80] sm:$0xff]
      %v7095 = vld [vmem:[#allocation2 + $0x90] sm:$0xff]
      %v7096 = vld [vmem:[#allocation2 + $0x98] sm:$0xff]
      %v7097 = vld [vmem:[#allocation2 + $0xa8] sm:$0xff]
      %v7098 = vld [vmem:[#allocation2 + $0xb0] sm:$0xff]
      %v7099 = vld [vmem:[#allocation2 + $0xc0] sm:$0xff]
      %v7100 = vld [vmem:[#allocation2 + $0xc8] sm:$0xff]
      %v7101 = vld [vmem:[#allocation2 + $0xd8] sm:$0xff]
      %v7102 = vld [vmem:[#allocation2 + $0xe0] sm:$0xff]
      %v7103 = vld [vmem:[#allocation2 + $0xf0] sm:$0xff]
      %v7104 = vld [vmem:[#allocation2 + $0xf8] sm:$0xff]
      %v7105 = vld [vmem:[#allocation2 + $0x108] sm:$0xff]
      %v7106 = vld [vmem:[#allocation2 + $0x110] sm:$0xff]
      %v7107 = vld [vmem:[#allocation2 + $0x120] sm:$0xff]
      %v7108 = vld [vmem:[#allocation2 + $0x128] sm:$0xff]
      %v7109 = vld [vmem:[#allocation2 + $0x138] sm:$0xff]
      %v7110 = vld [vmem:[#allocation2 + $0x140] sm:$0xff]
      %v7111 = vld [vmem:[#allocation2 + $0x150] sm:$0xff]
      %v7112 = vld [vmem:[#allocation2 + $0x158] sm:$0xff]
      %v7113 = vld [vmem:[#allocation2 + $0x168] sm:$0xff]
      %v7114 = vld [vmem:[#allocation2 + $0x170] sm:$0xff]
      %7147 = vrot.lane.b32.xlu0 %v7083, 108
      %v7148 = vpop.permute.xlu0 %7147
      %7149 = vrot.lane.b32.xlu0 %v7084, 108
      %v7150 = vpop.permute.xlu0 %7149
      %7151 = vrot.lane.b32.xlu0 %v7085, 108
      %v7152 = vpop.permute.xlu0 %7151
      %7153 = vrot.lane.b32.xlu0 %v7086, 108
      %v7154 = vpop.permute.xlu0 %7153
      %7155 = vrot.lane.b32.xlu0 %v7087, 108
      %v7156 = vpop.permute.xlu0 %7155
      %7157 = vrot.lane.b32.xlu0 %v7088, 108
      %v7158 = vpop.permute.xlu0 %7157
      %7159 = vrot.lane.b32.xlu0 %v7089, 108
      %v7160 = vpop.permute.xlu0 %7159
      %7161 = vrot.lane.b32.xlu0 %v7090, 108
      %v7162 = vpop.permute.xlu0 %7161
      %7163 = vrot.lane.b32.xlu0 %v7091, 108
      %v7164 = vpop.permute.xlu0 %7163
      %7165 = vrot.lane.b32.xlu0 %v7092, 108
      %v7166 = vpop.permute.xlu0 %7165
      %7167 = vrot.lane.b32.xlu0 %v7093, 108
      %v7168 = vpop.permute.xlu0 %7167
      %7169 = vrot.lane.b32.xlu0 %v7094, 108
      %v7170 = vpop.permute.xlu0 %7169
      %7171 = vrot.lane.b32.xlu0 %v7095, 108
      %v7172 = vpop.permute.xlu0 %7171
      %7173 = vrot.lane.b32.xlu0 %v7096, 108
      %v7174 = vpop.permute.xlu0 %7173
      %7175 = vrot.lane.b32.xlu0 %v7097, 108
      %v7176 = vpop.permute.xlu0 %7175
      %7177 = vrot.lane.b32.xlu0 %v7098, 108
      %v7178 = vpop.permute.xlu0 %7177
      %7179 = vrot.lane.b32.xlu0 %v7099, 108
      %v7180 = vpop.permute.xlu0 %7179
      %7181 = vrot.lane.b32.xlu0 %v7100, 108
      %v7182 = vpop.permute.xlu0 %7181
      %7183 = vrot.lane.b32.xlu0 %v7101, 108
      %v7184 = vpop.permute.xlu0 %7183
      %7185 = vrot.lane.b32.xlu0 %v7102, 108
      %v7186 = vpop.permute.xlu0 %7185
      %7187 = vrot.lane.b32.xlu0 %v7103, 108
      %v7188 = vpop.permute.xlu0 %7187
      %7189 = vrot.lane.b32.xlu0 %v7104, 108
      %v7190 = vpop.permute.xlu0 %7189
      %7191 = vrot.lane.b32.xlu0 %v7105, 108
      %v7192 = vpop.permute.xlu0 %7191
      %7193 = vrot.lane.b32.xlu0 %v7106, 108
      %v7194 = vpop.permute.xlu0 %7193
      %7195 = vrot.lane.b32.xlu0 %v7107, 108
      %v7196 = vpop.permute.xlu0 %7195
      %7197 = vrot.lane.b32.xlu0 %v7108, 108
      %v7198 = vpop.permute.xlu0 %7197
      %7199 = vrot.lane.b32.xlu0 %v7109, 108
      %v7200 = vpop.permute.xlu0 %7199
      %7201 = vrot.lane.b32.xlu0 %v7110, 108
      %v7202 = vpop.permute.xlu0 %7201
      %7203 = vrot.lane.b32.xlu0 %v7111, 108
      %v7204 = vpop.permute.xlu0 %7203
      %7205 = vrot.lane.b32.xlu0 %v7112, 108
      %v7206 = vpop.permute.xlu0 %7205
      %7207 = vrot.lane.b32.xlu0 %v7113, 108
      %v7208 = vpop.permute.xlu0 %7207
      %7209 = vrot.lane.b32.xlu0 %v7114, 108
      %v7210 = vpop.permute.xlu0 %7209
      %vm7243 = vcmask 917344
      %7244 = vst.msk [vmem:[#allocation3] sm:$0xff] %vm7243, %v7148
      %7245 = vst.msk [vmem:[#allocation3 + $0x10] sm:$0xff] %vm7243, %v7150
      %7246 = vst.msk [vmem:[#allocation3 + $0x20] sm:$0xff] %vm7243, %v7152
      %7247 = vst.msk [vmem:[#allocation3 + $0x30] sm:$0xff] %vm7243, %v7154
      %7248 = vst.msk [vmem:[#allocation3 + $0x40] sm:$0xff] %vm7243, %v7156
      %7249 = vst.msk [vmem:[#allocation3 + $0x50] sm:$0xff] %vm7243, %v7158
      %7250 = vst.msk [vmem:[#allocation3 + $0x60] sm:$0xff] %vm7243, %v7160
      %7251 = vst.msk [vmem:[#allocation3 + $0x70] sm:$0xff] %vm7243, %v7162
      %7252 = vst.msk [vmem:[#allocation3 + $0x80] sm:$0xff] %vm7243, %v7164
      %7253 = vst.msk [vmem:[#allocation3 + $0x90] sm:$0xff] %vm7243, %v7166
      %7254 = vst.msk [vmem:[#allocation3 + $0xa0] sm:$0xff] %vm7243, %v7168
      %7255 = vst.msk [vmem:[#allocation3 + $0xb0] sm:$0xff] %vm7243, %v7170
      %7256 = vst.msk [vmem:[#allocation3 + $0xc0] sm:$0xff] %vm7243, %v7172
      %7257 = vst.msk [vmem:[#allocation3 + $0xd0] sm:$0xff] %vm7243, %v7174
      %7258 = vst.msk [vmem:[#allocation3 + $0xe0] sm:$0xff] %vm7243, %v7176
      %7259 = vst.msk [vmem:[#allocation3 + $0xf0] sm:$0xff] %vm7243, %v7178
      %7260 = vst.msk [vmem:[#allocation3 + $0x100] sm:$0xff] %vm7243, %v7180
      %7261 = vst.msk [vmem:[#allocation3 + $0x110] sm:$0xff] %vm7243, %v7182
      %7262 = vst.msk [vmem:[#allocation3 + $0x120] sm:$0xff] %vm7243, %v7184
      %7263 = vst.msk [vmem:[#allocation3 + $0x130] sm:$0xff] %vm7243, %v7186
      %7264 = vst.msk [vmem:[#allocation3 + $0x140] sm:$0xff] %vm7243, %v7188
      %7265 = vst.msk [vmem:[#allocation3 + $0x150] sm:$0xff] %vm7243, %v7190
      %7266 = vst.msk [vmem:[#allocation3 + $0x160] sm:$0xff] %vm7243, %v7192
      %7267 = vst.msk [vmem:[#allocation3 + $0x170] sm:$0xff] %vm7243, %v7194
      %7268 = vst.msk [vmem:[#allocation3 + $0x180] sm:$0xff] %vm7243, %v7196
      %7269 = vst.msk [vmem:[#allocation3 + $0x190] sm:$0xff] %vm7243, %v7198
      %7270 = vst.msk [vmem:[#allocation3 + $0x1a0] sm:$0xff] %vm7243, %v7200
      %7271 = vst.msk [vmem:[#allocation3 + $0x1b0] sm:$0xff] %vm7243, %v7202
      %7272 = vst.msk [vmem:[#allocation3 + $0x1c0] sm:$0xff] %vm7243, %v7204
      %7273 = vst.msk [vmem:[#allocation3 + $0x1d0] sm:$0xff] %vm7243, %v7206
      %7274 = vst.msk [vmem:[#allocation3 + $0x1e0] sm:$0xff] %vm7243, %v7208
      %7275 = vst.msk [vmem:[#allocation3 + $0x1f0] sm:$0xff] %vm7243, %v7210
      %v7276 = vld [vmem:[#allocation2 + $0x1] sm:$0xff]
      %v7277 = vld [vmem:[#allocation2 + $0x9] sm:$0xff]
      %v7278 = vld [vmem:[#allocation2 + $0x19] sm:$0xff]
      %v7279 = vld [vmem:[#allocation2 + $0x21] sm:$0xff]
      %v7280 = vld [vmem:[#allocation2 + $0x31] sm:$0xff]
      %v7281 = vld [vmem:[#allocation2 + $0x39] sm:$0xff]
      %v7282 = vld [vmem:[#allocation2 + $0x49] sm:$0xff]
      %v7283 = vld [vmem:[#allocation2 + $0x51] sm:$0xff]
      %v7284 = vld [vmem:[#allocation2 + $0x61] sm:$0xff]
      %v7285 = vld [vmem:[#allocation2 + $0x69] sm:$0xff]
      %v7286 = vld [vmem:[#allocation2 + $0x79] sm:$0xff]
      %v7287 = vld [vmem:[#allocation2 + $0x81] sm:$0xff]
      %v7288 = vld [vmem:[#allocation2 + $0x91] sm:$0xff]
      %v7289 = vld [vmem:[#allocation2 + $0x99] sm:$0xff]
      %v7290 = vld [vmem:[#allocation2 + $0xa9] sm:$0xff]
      %v7291 = vld [vmem:[#allocation2 + $0xb1] sm:$0xff]
      %v7292 = vld [vmem:[#allocation2 + $0xc1] sm:$0xff]
      %v7293 = vld [vmem:[#allocation2 + $0xc9] sm:$0xff]
      %v7294 = vld [vmem:[#allocation2 + $0xd9] sm:$0xff]
      %v7295 = vld [vmem:[#allocation2 + $0xe1] sm:$0xff]
      %v7296 = vld [vmem:[#allocation2 + $0xf1] sm:$0xff]
      %v7297 = vld [vmem:[#allocation2 + $0xf9] sm:$0xff]
      %v7298 = vld [vmem:[#allocation2 + $0x109] sm:$0xff]
      %v7299 = vld [vmem:[#allocation2 + $0x111] sm:$0xff]
      %v7300 = vld [vmem:[#allocation2 + $0x121] sm:$0xff]
      %v7301 = vld [vmem:[#allocation2 + $0x129] sm:$0xff]
      %v7302 = vld [vmem:[#allocation2 + $0x139] sm:$0xff]
      %v7303 = vld [vmem:[#allocation2 + $0x141] sm:$0xff]
      %v7304 = vld [vmem:[#allocation2 + $0x151] sm:$0xff]
      %v7305 = vld [vmem:[#allocation2 + $0x159] sm:$0xff]
      %v7306 = vld [vmem:[#allocation2 + $0x169] sm:$0xff]
      %v7307 = vld [vmem:[#allocation2 + $0x171] sm:$0xff]
      %7340 = vrot.lane.b32.xlu0 %v7276, 112
      %v7341 = vpop.permute.xlu0 %7340
      %7342 = vrot.lane.b32.xlu0 %v7277, 112
      %v7343 = vpop.permute.xlu0 %7342
      %7344 = vrot.lane.b32.xlu0 %v7278, 112
      %v7345 = vpop.permute.xlu0 %7344
      %7346 = vrot.lane.b32.xlu0 %v7279, 112
      %v7347 = vpop.permute.xlu0 %7346
      %7348 = vrot.lane.b32.xlu0 %v7280, 112
      %v7349 = vpop.permute.xlu0 %7348
      %7350 = vrot.lane.b32.xlu0 %v7281, 112
      %v7351 = vpop.permute.xlu0 %7350
      %7352 = vrot.lane.b32.xlu0 %v7282, 112
      %v7353 = vpop.permute.xlu0 %7352
      %7354 = vrot.lane.b32.xlu0 %v7283, 112
      %v7355 = vpop.permute.xlu0 %7354
      %7356 = vrot.lane.b32.xlu0 %v7284, 112
      %v7357 = vpop.permute.xlu0 %7356
      %7358 = vrot.lane.b32.xlu0 %v7285, 112
      %v7359 = vpop.permute.xlu0 %7358
      %7360 = vrot.lane.b32.xlu0 %v7286, 112
      %v7361 = vpop.permute.xlu0 %7360
      %7362 = vrot.lane.b32.xlu0 %v7287, 112
      %v7363 = vpop.permute.xlu0 %7362
      %7364 = vrot.lane.b32.xlu0 %v7288, 112
      %v7365 = vpop.permute.xlu0 %7364
      %7366 = vrot.lane.b32.xlu0 %v7289, 112
      %v7367 = vpop.permute.xlu0 %7366
      %7368 = vrot.lane.b32.xlu0 %v7290, 112
      %v7369 = vpop.permute.xlu0 %7368
      %7370 = vrot.lane.b32.xlu0 %v7291, 112
      %v7371 = vpop.permute.xlu0 %7370
      %7372 = vrot.lane.b32.xlu0 %v7292, 112
      %v7373 = vpop.permute.xlu0 %7372
      %7374 = vrot.lane.b32.xlu0 %v7293, 112
      %v7375 = vpop.permute.xlu0 %7374
      %7376 = vrot.lane.b32.xlu0 %v7294, 112
      %v7377 = vpop.permute.xlu0 %7376
      %7378 = vrot.lane.b32.xlu0 %v7295, 112
      %v7379 = vpop.permute.xlu0 %7378
      %7380 = vrot.lane.b32.xlu0 %v7296, 112
      %v7381 = vpop.permute.xlu0 %7380
      %7382 = vrot.lane.b32.xlu0 %v7297, 112
      %v7383 = vpop.permute.xlu0 %7382
      %7384 = vrot.lane.b32.xlu0 %v7298, 112
      %v7385 = vpop.permute.xlu0 %7384
      %7386 = vrot.lane.b32.xlu0 %v7299, 112
      %v7387 = vpop.permute.xlu0 %7386
      %7388 = vrot.lane.b32.xlu0 %v7300, 112
      %v7389 = vpop.permute.xlu0 %7388
      %7390 = vrot.lane.b32.xlu0 %v7301, 112
      %v7391 = vpop.permute.xlu0 %7390
      %7392 = vrot.lane.b32.xlu0 %v7302, 112
      %v7393 = vpop.permute.xlu0 %7392
      %7394 = vrot.lane.b32.xlu0 %v7303, 112
      %v7395 = vpop.permute.xlu0 %7394
      %7396 = vrot.lane.b32.xlu0 %v7304, 112
      %v7397 = vpop.permute.xlu0 %7396
      %7398 = vrot.lane.b32.xlu0 %v7305, 112
      %v7399 = vpop.permute.xlu0 %7398
      %7400 = vrot.lane.b32.xlu0 %v7306, 112
      %v7401 = vpop.permute.xlu0 %7400
      %7402 = vrot.lane.b32.xlu0 %v7307, 112
      %v7403 = vpop.permute.xlu0 %7402
      %vm7436 = vcmask 950144
      %7437 = vst.msk [vmem:[#allocation3] sm:$0xff] %vm7436, %v7341
      %7438 = vst.msk [vmem:[#allocation3 + $0x10] sm:$0xff] %vm7436, %v7343
      %7439 = vst.msk [vmem:[#allocation3 + $0x20] sm:$0xff] %vm7436, %v7345
      %7440 = vst.msk [vmem:[#allocation3 + $0x30] sm:$0xff] %vm7436, %v7347
      %7441 = vst.msk [vmem:[#allocation3 + $0x40] sm:$0xff] %vm7436, %v7349
      %7442 = vst.msk [vmem:[#allocation3 + $0x50] sm:$0xff] %vm7436, %v7351
      %7443 = vst.msk [vmem:[#allocation3 + $0x60] sm:$0xff] %vm7436, %v7353
      %7444 = vst.msk [vmem:[#allocation3 + $0x70] sm:$0xff] %vm7436, %v7355
      %7445 = vst.msk [vmem:[#allocation3 + $0x80] sm:$0xff] %vm7436, %v7357
      %7446 = vst.msk [vmem:[#allocation3 + $0x90] sm:$0xff] %vm7436, %v7359
      %7447 = vst.msk [vmem:[#allocation3 + $0xa0] sm:$0xff] %vm7436, %v7361
      %7448 = vst.msk [vmem:[#allocation3 + $0xb0] sm:$0xff] %vm7436, %v7363
      %7449 = vst.msk [vmem:[#allocation3 + $0xc0] sm:$0xff] %vm7436, %v7365
      %7450 = vst.msk [vmem:[#allocation3 + $0xd0] sm:$0xff] %vm7436, %v7367
      %7451 = vst.msk [vmem:[#allocation3 + $0xe0] sm:$0xff] %vm7436, %v7369
      %7452 = vst.msk [vmem:[#allocation3 + $0xf0] sm:$0xff] %vm7436, %v7371
      %7453 = vst.msk [vmem:[#allocation3 + $0x100] sm:$0xff] %vm7436, %v7373
      %7454 = vst.msk [vmem:[#allocation3 + $0x110] sm:$0xff] %vm7436, %v7375
      %7455 = vst.msk [vmem:[#allocation3 + $0x120] sm:$0xff] %vm7436, %v7377
      %7456 = vst.msk [vmem:[#allocation3 + $0x130] sm:$0xff] %vm7436, %v7379
      %7457 = vst.msk [vmem:[#allocation3 + $0x140] sm:$0xff] %vm7436, %v7381
      %7458 = vst.msk [vmem:[#allocation3 + $0x150] sm:$0xff] %vm7436, %v7383
      %7459 = vst.msk [vmem:[#allocation3 + $0x160] sm:$0xff] %vm7436, %v7385
      %7460 = vst.msk [vmem:[#allocation3 + $0x170] sm:$0xff] %vm7436, %v7387
      %7461 = vst.msk [vmem:[#allocation3 + $0x180] sm:$0xff] %vm7436, %v7389
      %7462 = vst.msk [vmem:[#allocation3 + $0x190] sm:$0xff] %vm7436, %v7391
      %7463 = vst.msk [vmem:[#allocation3 + $0x1a0] sm:$0xff] %vm7436, %v7393
      %7464 = vst.msk [vmem:[#allocation3 + $0x1b0] sm:$0xff] %vm7436, %v7395
      %7465 = vst.msk [vmem:[#allocation3 + $0x1c0] sm:$0xff] %vm7436, %v7397
      %7466 = vst.msk [vmem:[#allocation3 + $0x1d0] sm:$0xff] %vm7436, %v7399
      %7467 = vst.msk [vmem:[#allocation3 + $0x1e0] sm:$0xff] %vm7436, %v7401
      %7468 = vst.msk [vmem:[#allocation3 + $0x1f0] sm:$0xff] %vm7436, %v7403
      %v7469 = vld [vmem:[#allocation2 + $0x2] sm:$0xff]
      %v7470 = vld [vmem:[#allocation2 + $0xa] sm:$0xff]
      %v7471 = vld [vmem:[#allocation2 + $0x1a] sm:$0xff]
      %v7472 = vld [vmem:[#allocation2 + $0x22] sm:$0xff]
      %v7473 = vld [vmem:[#allocation2 + $0x32] sm:$0xff]
      %v7474 = vld [vmem:[#allocation2 + $0x3a] sm:$0xff]
      %v7475 = vld [vmem:[#allocation2 + $0x4a] sm:$0xff]
      %v7476 = vld [vmem:[#allocation2 + $0x52] sm:$0xff]
      %v7477 = vld [vmem:[#allocation2 + $0x62] sm:$0xff]
      %v7478 = vld [vmem:[#allocation2 + $0x6a] sm:$0xff]
      %v7479 = vld [vmem:[#allocation2 + $0x7a] sm:$0xff]
      %v7480 = vld [vmem:[#allocation2 + $0x82] sm:$0xff]
      %v7481 = vld [vmem:[#allocation2 + $0x92] sm:$0xff]
      %v7482 = vld [vmem:[#allocation2 + $0x9a] sm:$0xff]
      %v7483 = vld [vmem:[#allocation2 + $0xaa] sm:$0xff]
      %v7484 = vld [vmem:[#allocation2 + $0xb2] sm:$0xff]
      %v7485 = vld [vmem:[#allocation2 + $0xc2] sm:$0xff]
      %v7486 = vld [vmem:[#allocation2 + $0xca] sm:$0xff]
      %v7487 = vld [vmem:[#allocation2 + $0xda] sm:$0xff]
      %v7488 = vld [vmem:[#allocation2 + $0xe2] sm:$0xff]
      %v7489 = vld [vmem:[#allocation2 + $0xf2] sm:$0xff]
      %v7490 = vld [vmem:[#allocation2 + $0xfa] sm:$0xff]
      %v7491 = vld [vmem:[#allocation2 + $0x10a] sm:$0xff]
      %v7492 = vld [vmem:[#allocation2 + $0x112] sm:$0xff]
      %v7493 = vld [vmem:[#allocation2 + $0x122] sm:$0xff]
      %v7494 = vld [vmem:[#allocation2 + $0x12a] sm:$0xff]
      %v7495 = vld [vmem:[#allocation2 + $0x13a] sm:$0xff]
      %v7496 = vld [vmem:[#allocation2 + $0x142] sm:$0xff]
      %v7497 = vld [vmem:[#allocation2 + $0x152] sm:$0xff]
      %v7498 = vld [vmem:[#allocation2 + $0x15a] sm:$0xff]
      %v7499 = vld [vmem:[#allocation2 + $0x16a] sm:$0xff]
      %v7500 = vld [vmem:[#allocation2 + $0x172] sm:$0xff]
      %7533 = vrot.lane.b32.xlu0 %v7469, 116
      %v7534 = vpop.permute.xlu0 %7533
      %7535 = vrot.lane.b32.xlu0 %v7470, 116
      %v7536 = vpop.permute.xlu0 %7535
      %7537 = vrot.lane.b32.xlu0 %v7471, 116
      %v7538 = vpop.permute.xlu0 %7537
      %7539 = vrot.lane.b32.xlu0 %v7472, 116
      %v7540 = vpop.permute.xlu0 %7539
      %7541 = vrot.lane.b32.xlu0 %v7473, 116
      %v7542 = vpop.permute.xlu0 %7541
      %7543 = vrot.lane.b32.xlu0 %v7474, 116
      %v7544 = vpop.permute.xlu0 %7543
      %7545 = vrot.lane.b32.xlu0 %v7475, 116
      %v7546 = vpop.permute.xlu0 %7545
      %7547 = vrot.lane.b32.xlu0 %v7476, 116
      %v7548 = vpop.permute.xlu0 %7547
      %7549 = vrot.lane.b32.xlu0 %v7477, 116
      %v7550 = vpop.permute.xlu0 %7549
      %7551 = vrot.lane.b32.xlu0 %v7478, 116
      %v7552 = vpop.permute.xlu0 %7551
      %7553 = vrot.lane.b32.xlu0 %v7479, 116
      %v7554 = vpop.permute.xlu0 %7553
      %7555 = vrot.lane.b32.xlu0 %v7480, 116
      %v7556 = vpop.permute.xlu0 %7555
      %7557 = vrot.lane.b32.xlu0 %v7481, 116
      %v7558 = vpop.permute.xlu0 %7557
      %7559 = vrot.lane.b32.xlu0 %v7482, 116
      %v7560 = vpop.permute.xlu0 %7559
      %7561 = vrot.lane.b32.xlu0 %v7483, 116
      %v7562 = vpop.permute.xlu0 %7561
      %7563 = vrot.lane.b32.xlu0 %v7484, 116
      %v7564 = vpop.permute.xlu0 %7563
      %7565 = vrot.lane.b32.xlu0 %v7485, 116
      %v7566 = vpop.permute.xlu0 %7565
      %7567 = vrot.lane.b32.xlu0 %v7486, 116
      %v7568 = vpop.permute.xlu0 %7567
      %7569 = vrot.lane.b32.xlu0 %v7487, 116
      %v7570 = vpop.permute.xlu0 %7569
      %7571 = vrot.lane.b32.xlu0 %v7488, 116
      %v7572 = vpop.permute.xlu0 %7571
      %7573 = vrot.lane.b32.xlu0 %v7489, 116
      %v7574 = vpop.permute.xlu0 %7573
      %7575 = vrot.lane.b32.xlu0 %v7490, 116
      %v7576 = vpop.permute.xlu0 %7575
      %7577 = vrot.lane.b32.xlu0 %v7491, 116
      %v7578 = vpop.permute.xlu0 %7577
      %7579 = vrot.lane.b32.xlu0 %v7492, 116
      %v7580 = vpop.permute.xlu0 %7579
      %7581 = vrot.lane.b32.xlu0 %v7493, 116
      %v7582 = vpop.permute.xlu0 %7581
      %7583 = vrot.lane.b32.xlu0 %v7494, 116
      %v7584 = vpop.permute.xlu0 %7583
      %7585 = vrot.lane.b32.xlu0 %v7495, 116
      %v7586 = vpop.permute.xlu0 %7585
      %7587 = vrot.lane.b32.xlu0 %v7496, 116
      %v7588 = vpop.permute.xlu0 %7587
      %7589 = vrot.lane.b32.xlu0 %v7497, 116
      %v7590 = vpop.permute.xlu0 %7589
      %7591 = vrot.lane.b32.xlu0 %v7498, 116
      %v7592 = vpop.permute.xlu0 %7591
      %7593 = vrot.lane.b32.xlu0 %v7499, 116
      %v7594 = vpop.permute.xlu0 %7593
      %7595 = vrot.lane.b32.xlu0 %v7500, 116
      %v7596 = vpop.permute.xlu0 %7595
      %vm7629 = vcmask 982944
      %7630 = vst.msk [vmem:[#allocation3] sm:$0xff] %vm7629, %v7534
      %7631 = vst.msk [vmem:[#allocation3 + $0x10] sm:$0xff] %vm7629, %v7536
      %7632 = vst.msk [vmem:[#allocation3 + $0x20] sm:$0xff] %vm7629, %v7538
      %7633 = vst.msk [vmem:[#allocation3 + $0x30] sm:$0xff] %vm7629, %v7540
      %7634 = vst.msk [vmem:[#allocation3 + $0x40] sm:$0xff] %vm7629, %v7542
      %7635 = vst.msk [vmem:[#allocation3 + $0x50] sm:$0xff] %vm7629, %v7544
      %7636 = vst.msk [vmem:[#allocation3 + $0x60] sm:$0xff] %vm7629, %v7546
      %7637 = vst.msk [vmem:[#allocation3 + $0x70] sm:$0xff] %vm7629, %v7548
      %7638 = vst.msk [vmem:[#allocation3 + $0x80] sm:$0xff] %vm7629, %v7550
      %7639 = vst.msk [vmem:[#allocation3 + $0x90] sm:$0xff] %vm7629, %v7552
      %7640 = vst.msk [vmem:[#allocation3 + $0xa0] sm:$0xff] %vm7629, %v7554
      %7641 = vst.msk [vmem:[#allocation3 + $0xb0] sm:$0xff] %vm7629, %v7556
      %7642 = vst.msk [vmem:[#allocation3 + $0xc0] sm:$0xff] %vm7629, %v7558
      %7643 = vst.msk [vmem:[#allocation3 + $0xd0] sm:$0xff] %vm7629, %v7560
      %7644 = vst.msk [vmem:[#allocation3 + $0xe0] sm:$0xff] %vm7629, %v7562
      %7645 = vst.msk [vmem:[#allocation3 + $0xf0] sm:$0xff] %vm7629, %v7564
      %7646 = vst.msk [vmem:[#allocation3 + $0x100] sm:$0xff] %vm7629, %v7566
      %7647 = vst.msk [vmem:[#allocation3 + $0x110] sm:$0xff] %vm7629, %v7568
      %7648 = vst.msk [vmem:[#allocation3 + $0x120] sm:$0xff] %vm7629, %v7570
      %7649 = vst.msk [vmem:[#allocation3 + $0x130] sm:$0xff] %vm7629, %v7572
      %7650 = vst.msk [vmem:[#allocation3 + $0x140] sm:$0xff] %vm7629, %v7574
      %7651 = vst.msk [vmem:[#allocation3 + $0x150] sm:$0xff] %vm7629, %v7576
      %7652 = vst.msk [vmem:[#allocation3 + $0x160] sm:$0xff] %vm7629, %v7578
      %7653 = vst.msk [vmem:[#allocation3 + $0x170] sm:$0xff] %vm7629, %v7580
      %7654 = vst.msk [vmem:[#allocation3 + $0x180] sm:$0xff] %vm7629, %v7582
      %7655 = vst.msk [vmem:[#allocation3 + $0x190] sm:$0xff] %vm7629, %v7584
      %7656 = vst.msk [vmem:[#allocation3 + $0x1a0] sm:$0xff] %vm7629, %v7586
      %7657 = vst.msk [vmem:[#allocation3 + $0x1b0] sm:$0xff] %vm7629, %v7588
      %7658 = vst.msk [vmem:[#allocation3 + $0x1c0] sm:$0xff] %vm7629, %v7590
      %7659 = vst.msk [vmem:[#allocation3 + $0x1d0] sm:$0xff] %vm7629, %v7592
      %7660 = vst.msk [vmem:[#allocation3 + $0x1e0] sm:$0xff] %vm7629, %v7594
      %7661 = vst.msk [vmem:[#allocation3 + $0x1f0] sm:$0xff] %vm7629, %v7596
      %v7662 = vld [vmem:[%s324] sm:$0xff]
      %v7663 = vld [vmem:[%s324 + $0x8] sm:$0xff]
      %v7664 = vld [vmem:[%s324 + $0x18] sm:$0xff]
      %v7665 = vld [vmem:[%s324 + $0x20] sm:$0xff]
      %v7666 = vld [vmem:[%s324 + $0x30] sm:$0xff]
      %v7667 = vld [vmem:[%s324 + $0x38] sm:$0xff]
      %v7668 = vld [vmem:[%s324 + $0x48] sm:$0xff]
      %v7669 = vld [vmem:[%s324 + $0x50] sm:$0xff]
      %v7670 = vld [vmem:[%s324 + $0x60] sm:$0xff]
      %v7671 = vld [vmem:[%s324 + $0x68] sm:$0xff]
      %v7672 = vld [vmem:[%s324 + $0x78] sm:$0xff]
      %v7673 = vld [vmem:[%s324 + $0x80] sm:$0xff]
      %v7674 = vld [vmem:[%s324 + $0x90] sm:$0xff]
      %v7675 = vld [vmem:[%s324 + $0x98] sm:$0xff]
      %v7676 = vld [vmem:[%s324 + $0xa8] sm:$0xff]
      %v7677 = vld [vmem:[%s324 + $0xb0] sm:$0xff]
      %v7678 = vld [vmem:[%s324 + $0xc0] sm:$0xff]
      %v7679 = vld [vmem:[%s324 + $0xc8] sm:$0xff]
      %v7680 = vld [vmem:[%s324 + $0xd8] sm:$0xff]
      %v7681 = vld [vmem:[%s324 + $0xe0] sm:$0xff]
      %v7682 = vld [vmem:[%s324 + $0xf0] sm:$0xff]
      %v7683 = vld [vmem:[%s324 + $0xf8] sm:$0xff]
      %v7684 = vld [vmem:[%s324 + $0x108] sm:$0xff]
      %v7685 = vld [vmem:[%s324 + $0x110] sm:$0xff]
      %v7686 = vld [vmem:[%s324 + $0x120] sm:$0xff]
      %v7687 = vld [vmem:[%s324 + $0x128] sm:$0xff]
      %v7688 = vld [vmem:[%s324 + $0x138] sm:$0xff]
      %v7689 = vld [vmem:[%s324 + $0x140] sm:$0xff]
      %v7690 = vld [vmem:[%s324 + $0x150] sm:$0xff]
      %v7691 = vld [vmem:[%s324 + $0x158] sm:$0xff]
      %v7692 = vld [vmem:[%s324 + $0x168] sm:$0xff]
      %v7693 = vld [vmem:[%s324 + $0x170] sm:$0xff]
      %7726 = vrot.lane.b32.xlu0 %v7662, 120
      %v7727 = vpop.permute.xlu0 %7726
      %7728 = vrot.lane.b32.xlu0 %v7663, 120
      %v7729 = vpop.permute.xlu0 %7728
      %7730 = vrot.lane.b32.xlu0 %v7664, 120
      %v7731 = vpop.permute.xlu0 %7730
      %7732 = vrot.lane.b32.xlu0 %v7665, 120
      %v7733 = vpop.permute.xlu0 %7732
      %7734 = vrot.lane.b32.xlu0 %v7666, 120
      %v7735 = vpop.permute.xlu0 %7734
      %7736 = vrot.lane.b32.xlu0 %v7667, 120
      %v7737 = vpop.permute.xlu0 %7736
      %7738 = vrot.lane.b32.xlu0 %v7668, 120
      %v7739 = vpop.permute.xlu0 %7738
      %7740 = vrot.lane.b32.xlu0 %v7669, 120
      %v7741 = vpop.permute.xlu0 %7740
      %7742 = vrot.lane.b32.xlu0 %v7670, 120
      %v7743 = vpop.permute.xlu0 %7742
      %7744 = vrot.lane.b32.xlu0 %v7671, 120
      %v7745 = vpop.permute.xlu0 %7744
      %7746 = vrot.lane.b32.xlu0 %v7672, 120
      %v7747 = vpop.permute.xlu0 %7746
      %7748 = vrot.lane.b32.xlu0 %v7673, 120
      %v7749 = vpop.permute.xlu0 %7748
      %7750 = vrot.lane.b32.xlu0 %v7674, 120
      %v7751 = vpop.permute.xlu0 %7750
      %7752 = vrot.lane.b32.xlu0 %v7675, 120
      %v7753 = vpop.permute.xlu0 %7752
      %7754 = vrot.lane.b32.xlu0 %v7676, 120
      %v7755 = vpop.permute.xlu0 %7754
      %7756 = vrot.lane.b32.xlu0 %v7677, 120
      %v7757 = vpop.permute.xlu0 %7756
      %7758 = vrot.lane.b32.xlu0 %v7678, 120
      %v7759 = vpop.permute.xlu0 %7758
      %7760 = vrot.lane.b32.xlu0 %v7679, 120
      %v7761 = vpop.permute.xlu0 %7760
      %7762 = vrot.lane.b32.xlu0 %v7680, 120
      %v7763 = vpop.permute.xlu0 %7762
      %7764 = vrot.lane.b32.xlu0 %v7681, 120
      %v7765 = vpop.permute.xlu0 %7764
      %7766 = vrot.lane.b32.xlu0 %v7682, 120
      %v7767 = vpop.permute.xlu0 %7766
      %7768 = vrot.lane.b32.xlu0 %v7683, 120
      %v7769 = vpop.permute.xlu0 %7768
      %7770 = vrot.lane.b32.xlu0 %v7684, 120
      %v7771 = vpop.permute.xlu0 %7770
      %7772 = vrot.lane.b32.xlu0 %v7685, 120
      %v7773 = vpop.permute.xlu0 %7772
      %7774 = vrot.lane.b32.xlu0 %v7686, 120
      %v7775 = vpop.permute.xlu0 %7774
      %7776 = vrot.lane.b32.xlu0 %v7687, 120
      %v7777 = vpop.permute.xlu0 %7776
      %7778 = vrot.lane.b32.xlu0 %v7688, 120
      %v7779 = vpop.permute.xlu0 %7778
      %7780 = vrot.lane.b32.xlu0 %v7689, 120
      %v7781 = vpop.permute.xlu0 %7780
      %7782 = vrot.lane.b32.xlu0 %v7690, 120
      %v7783 = vpop.permute.xlu0 %7782
      %7784 = vrot.lane.b32.xlu0 %v7691, 120
      %v7785 = vpop.permute.xlu0 %7784
      %7786 = vrot.lane.b32.xlu0 %v7692, 120
      %v7787 = vpop.permute.xlu0 %7786
      %7788 = vrot.lane.b32.xlu0 %v7693, 120
      %v7789 = vpop.permute.xlu0 %7788
      %vm7822 = vcmask 1015744
      %7823 = vst.msk [vmem:[#allocation3] sm:$0xff] %vm7822, %v7727
      %7824 = vst.msk [vmem:[#allocation3 + $0x10] sm:$0xff] %vm7822, %v7729
      %7825 = vst.msk [vmem:[#allocation3 + $0x20] sm:$0xff] %vm7822, %v7731
      %7826 = vst.msk [vmem:[#allocation3 + $0x30] sm:$0xff] %vm7822, %v7733
      %7827 = vst.msk [vmem:[#allocation3 + $0x40] sm:$0xff] %vm7822, %v7735
      %7828 = vst.msk [vmem:[#allocation3 + $0x50] sm:$0xff] %vm7822, %v7737
      %7829 = vst.msk [vmem:[#allocation3 + $0x60] sm:$0xff] %vm7822, %v7739
      %7830 = vst.msk [vmem:[#allocation3 + $0x70] sm:$0xff] %vm7822, %v7741
      %7831 = vst.msk [vmem:[#allocation3 + $0x80] sm:$0xff] %vm7822, %v7743
      %7832 = vst.msk [vmem:[#allocation3 + $0x90] sm:$0xff] %vm7822, %v7745
      %7833 = vst.msk [vmem:[#allocation3 + $0xa0] sm:$0xff] %vm7822, %v7747
      %7834 = vst.msk [vmem:[#allocation3 + $0xb0] sm:$0xff] %vm7822, %v7749
      %7835 = vst.msk [vmem:[#allocation3 + $0xc0] sm:$0xff] %vm7822, %v7751
      %7836 = vst.msk [vmem:[#allocation3 + $0xd0] sm:$0xff] %vm7822, %v7753
      %7837 = vst.msk [vmem:[#allocation3 + $0xe0] sm:$0xff] %vm7822, %v7755
      %7838 = vst.msk [vmem:[#allocation3 + $0xf0] sm:$0xff] %vm7822, %v7757
      %7839 = vst.msk [vmem:[#allocation3 + $0x100] sm:$0xff] %vm7822, %v7759
      %7840 = vst.msk [vmem:[#allocation3 + $0x110] sm:$0xff] %vm7822, %v7761
      %7841 = vst.msk [vmem:[#allocation3 + $0x120] sm:$0xff] %vm7822, %v7763
      %7842 = vst.msk [vmem:[#allocation3 + $0x130] sm:$0xff] %vm7822, %v7765
      %7843 = vst.msk [vmem:[#allocation3 + $0x140] sm:$0xff] %vm7822, %v7767
      %7844 = vst.msk [vmem:[#allocation3 + $0x150] sm:$0xff] %vm7822, %v7769
      %7845 = vst.msk [vmem:[#allocation3 + $0x160] sm:$0xff] %vm7822, %v7771
      %7846 = vst.msk [vmem:[#allocation3 + $0x170] sm:$0xff] %vm7822, %v7773
      %7847 = vst.msk [vmem:[#allocation3 + $0x180] sm:$0xff] %vm7822, %v7775
      %7848 = vst.msk [vmem:[#allocation3 + $0x190] sm:$0xff] %vm7822, %v7777
      %7849 = vst.msk [vmem:[#allocation3 + $0x1a0] sm:$0xff] %vm7822, %v7779
      %7850 = vst.msk [vmem:[#allocation3 + $0x1b0] sm:$0xff] %vm7822, %v7781
      %7851 = vst.msk [vmem:[#allocation3 + $0x1c0] sm:$0xff] %vm7822, %v7783
      %7852 = vst.msk [vmem:[#allocation3 + $0x1d0] sm:$0xff] %vm7822, %v7785
      %7853 = vst.msk [vmem:[#allocation3 + $0x1e0] sm:$0xff] %vm7822, %v7787
      %7854 = vst.msk [vmem:[#allocation3 + $0x1f0] sm:$0xff] %vm7822, %v7789
      %v7855 = vld [vmem:[%s324 + $0x1] sm:$0xff]
      %v7856 = vld [vmem:[%s324 + $0x9] sm:$0xff]
      %v7857 = vld [vmem:[%s324 + $0x19] sm:$0xff]
      %v7858 = vld [vmem:[%s324 + $0x21] sm:$0xff]
      %v7859 = vld [vmem:[%s324 + $0x31] sm:$0xff]
      %v7860 = vld [vmem:[%s324 + $0x39] sm:$0xff]
      %v7861 = vld [vmem:[%s324 + $0x49] sm:$0xff]
      %v7862 = vld [vmem:[%s324 + $0x51] sm:$0xff]
      %v7863 = vld [vmem:[%s324 + $0x61] sm:$0xff]
      %v7864 = vld [vmem:[%s324 + $0x69] sm:$0xff]
      %v7865 = vld [vmem:[%s324 + $0x79] sm:$0xff]
      %v7866 = vld [vmem:[%s324 + $0x81] sm:$0xff]
      %v7867 = vld [vmem:[%s324 + $0x91] sm:$0xff]
      %v7868 = vld [vmem:[%s324 + $0x99] sm:$0xff]
      %v7869 = vld [vmem:[%s324 + $0xa9] sm:$0xff]
      %v7870 = vld [vmem:[%s324 + $0xb1] sm:$0xff]
      %v7871 = vld [vmem:[%s324 + $0xc1] sm:$0xff]
      %v7872 = vld [vmem:[%s324 + $0xc9] sm:$0xff]
      %v7873 = vld [vmem:[%s324 + $0xd9] sm:$0xff]
      %v7874 = vld [vmem:[%s324 + $0xe1] sm:$0xff]
      %v7875 = vld [vmem:[%s324 + $0xf1] sm:$0xff]
      %v7876 = vld [vmem:[%s324 + $0xf9] sm:$0xff]
      %v7877 = vld [vmem:[%s324 + $0x109] sm:$0xff]
      %v7878 = vld [vmem:[%s324 + $0x111] sm:$0xff]
      %v7879 = vld [vmem:[%s324 + $0x121] sm:$0xff]
      %v7880 = vld [vmem:[%s324 + $0x129] sm:$0xff]
      %v7881 = vld [vmem:[%s324 + $0x139] sm:$0xff]
      %v7882 = vld [vmem:[%s324 + $0x141] sm:$0xff]
      %v7883 = vld [vmem:[%s324 + $0x151] sm:$0xff]
      %v7884 = vld [vmem:[%s324 + $0x159] sm:$0xff]
      %v7885 = vld [vmem:[%s324 + $0x169] sm:$0xff]
      %v7886 = vld [vmem:[%s324 + $0x171] sm:$0xff]
      %7919 = vrot.lane.b32.xlu0 %v7855, 124
      %v7920 = vpop.permute.xlu0 %7919
      %7921 = vrot.lane.b32.xlu0 %v7856, 124
      %v7922 = vpop.permute.xlu0 %7921
      %7923 = vrot.lane.b32.xlu0 %v7857, 124
      %v7924 = vpop.permute.xlu0 %7923
      %7925 = vrot.lane.b32.xlu0 %v7858, 124
      %v7926 = vpop.permute.xlu0 %7925
      %7927 = vrot.lane.b32.xlu0 %v7859, 124
      %v7928 = vpop.permute.xlu0 %7927
      %7929 = vrot.lane.b32.xlu0 %v7860, 124
      %v7930 = vpop.permute.xlu0 %7929
      %7931 = vrot.lane.b32.xlu0 %v7861, 124
      %v7932 = vpop.permute.xlu0 %7931
      %7933 = vrot.lane.b32.xlu0 %v7862, 124
      %v7934 = vpop.permute.xlu0 %7933
      %7935 = vrot.lane.b32.xlu0 %v7863, 124
      %v7936 = vpop.permute.xlu0 %7935
      %7937 = vrot.lane.b32.xlu0 %v7864, 124
      %v7938 = vpop.permute.xlu0 %7937
      %7939 = vrot.lane.b32.xlu0 %v7865, 124
      %v7940 = vpop.permute.xlu0 %7939
      %7941 = vrot.lane.b32.xlu0 %v7866, 124
      %v7942 = vpop.permute.xlu0 %7941
      %7943 = vrot.lane.b32.xlu0 %v7867, 124
      %v7944 = vpop.permute.xlu0 %7943
      %7945 = vrot.lane.b32.xlu0 %v7868, 124
      %v7946 = vpop.permute.xlu0 %7945
      %7947 = vrot.lane.b32.xlu0 %v7869, 124
      %v7948 = vpop.permute.xlu0 %7947
      %7949 = vrot.lane.b32.xlu0 %v7870, 124
      %v7950 = vpop.permute.xlu0 %7949
      %7951 = vrot.lane.b32.xlu0 %v7871, 124
      %v7952 = vpop.permute.xlu0 %7951
      %7953 = vrot.lane.b32.xlu0 %v7872, 124
      %v7954 = vpop.permute.xlu0 %7953
      %7955 = vrot.lane.b32.xlu0 %v7873, 124
      %v7956 = vpop.permute.xlu0 %7955
      %7957 = vrot.lane.b32.xlu0 %v7874, 124
      %v7958 = vpop.permute.xlu0 %7957
      %7959 = vrot.lane.b32.xlu0 %v7875, 124
      %v7960 = vpop.permute.xlu0 %7959
      %7961 = vrot.lane.b32.xlu0 %v7876, 124
      %v7962 = vpop.permute.xlu0 %7961
      %7963 = vrot.lane.b32.xlu0 %v7877, 124
      %v7964 = vpop.permute.xlu0 %7963
      %7965 = vrot.lane.b32.xlu0 %v7878, 124
      %v7966 = vpop.permute.xlu0 %7965
      %7967 = vrot.lane.b32.xlu0 %v7879, 124
      %v7968 = vpop.permute.xlu0 %7967
      %7969 = vrot.lane.b32.xlu0 %v7880, 124
      %v7970 = vpop.permute.xlu0 %7969
      %7971 = vrot.lane.b32.xlu0 %v7881, 124
      %v7972 = vpop.permute.xlu0 %7971
      %7973 = vrot.lane.b32.xlu0 %v7882, 124
      %v7974 = vpop.permute.xlu0 %7973
      %7975 = vrot.lane.b32.xlu0 %v7883, 124
      %v7976 = vpop.permute.xlu0 %7975
      %7977 = vrot.lane.b32.xlu0 %v7884, 124
      %v7978 = vpop.permute.xlu0 %7977
      %7979 = vrot.lane.b32.xlu0 %v7885, 124
      %v7980 = vpop.permute.xlu0 %7979
      %7981 = vrot.lane.b32.xlu0 %v7886, 124
      %v7982 = vpop.permute.xlu0 %7981
      %vm8015 = vcmask 1048544
      %8016 = vst.msk [vmem:[#allocation3] sm:$0xff] %vm8015, %v7920
      %8017 = vst.msk [vmem:[#allocation3 + $0x10] sm:$0xff] %vm8015, %v7922
      %8018 = vst.msk [vmem:[#allocation3 + $0x20] sm:$0xff] %vm8015, %v7924
      %8019 = vst.msk [vmem:[#allocation3 + $0x30] sm:$0xff] %vm8015, %v7926
      %8020 = vst.msk [vmem:[#allocation3 + $0x40] sm:$0xff] %vm8015, %v7928
      %8021 = vst.msk [vmem:[#allocation3 + $0x50] sm:$0xff] %vm8015, %v7930
      %8022 = vst.msk [vmem:[#allocation3 + $0x60] sm:$0xff] %vm8015, %v7932
      %8023 = vst.msk [vmem:[#allocation3 + $0x70] sm:$0xff] %vm8015, %v7934
      %8024 = vst.msk [vmem:[#allocation3 + $0x80] sm:$0xff] %vm8015, %v7936
      %8025 = vst.msk [vmem:[#allocation3 + $0x90] sm:$0xff] %vm8015, %v7938
      %8026 = vst.msk [vmem:[#allocation3 + $0xa0] sm:$0xff] %vm8015, %v7940
      %8027 = vst.msk [vmem:[#allocation3 + $0xb0] sm:$0xff] %vm8015, %v7942
      %8028 = vst.msk [vmem:[#allocation3 + $0xc0] sm:$0xff] %vm8015, %v7944
      %8029 = vst.msk [vmem:[#allocation3 + $0xd0] sm:$0xff] %vm8015, %v7946
      %8030 = vst.msk [vmem:[#allocation3 + $0xe0] sm:$0xff] %vm8015, %v7948
      %8031 = vst.msk [vmem:[#allocation3 + $0xf0] sm:$0xff] %vm8015, %v7950
      %8032 = vst.msk [vmem:[#allocation3 + $0x100] sm:$0xff] %vm8015, %v7952
      %8033 = vst.msk [vmem:[#allocation3 + $0x110] sm:$0xff] %vm8015, %v7954
      %8034 = vst.msk [vmem:[#allocation3 + $0x120] sm:$0xff] %vm8015, %v7956
      %8035 = vst.msk [vmem:[#allocation3 + $0x130] sm:$0xff] %vm8015, %v7958
      %8036 = vst.msk [vmem:[#allocation3 + $0x140] sm:$0xff] %vm8015, %v7960
      %8037 = vst.msk [vmem:[#allocation3 + $0x150] sm:$0xff] %vm8015, %v7962
      %8038 = vst.msk [vmem:[#allocation3 + $0x160] sm:$0xff] %vm8015, %v7964
      %8039 = vst.msk [vmem:[#allocation3 + $0x170] sm:$0xff] %vm8015, %v7966
      %8040 = vst.msk [vmem:[#allocation3 + $0x180] sm:$0xff] %vm8015, %v7968
      %8041 = vst.msk [vmem:[#allocation3 + $0x190] sm:$0xff] %vm8015, %v7970
      %8042 = vst.msk [vmem:[#allocation3 + $0x1a0] sm:$0xff] %vm8015, %v7972
      %8043 = vst.msk [vmem:[#allocation3 + $0x1b0] sm:$0xff] %vm8015, %v7974
      %8044 = vst.msk [vmem:[#allocation3 + $0x1c0] sm:$0xff] %vm8015, %v7976
      %8045 = vst.msk [vmem:[#allocation3 + $0x1d0] sm:$0xff] %vm8015, %v7978
      %8046 = vst.msk [vmem:[#allocation3 + $0x1e0] sm:$0xff] %vm8015, %v7980
      %8047 = vst.msk [vmem:[#allocation3 + $0x1f0] sm:$0xff] %vm8015, %v7982
      %v8048 = vld [vmem:[%s324 + $0x2] sm:$0xff]
      %v8049 = vld [vmem:[%s324 + $0xa] sm:$0xff]
      %v8050 = vld [vmem:[%s324 + $0x1a] sm:$0xff]
      %v8051 = vld [vmem:[%s324 + $0x22] sm:$0xff]
      %v8052 = vld [vmem:[%s324 + $0x32] sm:$0xff]
      %v8053 = vld [vmem:[%s324 + $0x3a] sm:$0xff]
      %v8054 = vld [vmem:[%s324 + $0x4a] sm:$0xff]
      %v8055 = vld [vmem:[%s324 + $0x52] sm:$0xff]
      %v8056 = vld [vmem:[%s324 + $0x62] sm:$0xff]
      %v8057 = vld [vmem:[%s324 + $0x6a] sm:$0xff]
      %v8058 = vld [vmem:[%s324 + $0x7a] sm:$0xff]
      %v8059 = vld [vmem:[%s324 + $0x82] sm:$0xff]
      %v8060 = vld [vmem:[%s324 + $0x92] sm:$0xff]
      %v8061 = vld [vmem:[%s324 + $0x9a] sm:$0xff]
      %v8062 = vld [vmem:[%s324 + $0xaa] sm:$0xff]
      %v8063 = vld [vmem:[%s324 + $0xb2] sm:$0xff]
      %v8064 = vld [vmem:[%s324 + $0xc2] sm:$0xff]
      %v8065 = vld [vmem:[%s324 + $0xca] sm:$0xff]
      %v8066 = vld [vmem:[%s324 + $0xda] sm:$0xff]
      %v8067 = vld [vmem:[%s324 + $0xe2] sm:$0xff]
      %v8068 = vld [vmem:[%s324 + $0xf2] sm:$0xff]
      %v8069 = vld [vmem:[%s324 + $0xfa] sm:$0xff]
      %v8070 = vld [vmem:[%s324 + $0x10a] sm:$0xff]
      %v8071 = vld [vmem:[%s324 + $0x112] sm:$0xff]
      %v8072 = vld [vmem:[%s324 + $0x122] sm:$0xff]
      %v8073 = vld [vmem:[%s324 + $0x12a] sm:$0xff]
      %v8074 = vld [vmem:[%s324 + $0x13a] sm:$0xff]
      %v8075 = vld [vmem:[%s324 + $0x142] sm:$0xff]
      %v8076 = vld [vmem:[%s324 + $0x152] sm:$0xff]
      %v8077 = vld [vmem:[%s324 + $0x15a] sm:$0xff]
      %v8078 = vld [vmem:[%s324 + $0x16a] sm:$0xff]
      %v8079 = vld [vmem:[%s324 + $0x172] sm:$0xff]
      %8080 = vst.msk [vmem:[#allocation3 + $0x8] sm:$0xff] %vm171, %v8048
      %8081 = vst.msk [vmem:[#allocation3 + $0x18] sm:$0xff] %vm171, %v8049
      %8082 = vst.msk [vmem:[#allocation3 + $0x28] sm:$0xff] %vm171, %v8050
      %8083 = vst.msk [vmem:[#allocation3 + $0x38] sm:$0xff] %vm171, %v8051
      %8084 = vst.msk [vmem:[#allocation3 + $0x48] sm:$0xff] %vm171, %v8052
      %8085 = vst.msk [vmem:[#allocation3 + $0x58] sm:$0xff] %vm171, %v8053
      %8086 = vst.msk [vmem:[#allocation3 + $0x68] sm:$0xff] %vm171, %v8054
      %8087 = vst.msk [vmem:[#allocation3 + $0x78] sm:$0xff] %vm171, %v8055
      %8088 = vst.msk [vmem:[#allocation3 + $0x88] sm:$0xff] %vm171, %v8056
      %8089 = vst.msk [vmem:[#allocation3 + $0x98] sm:$0xff] %vm171, %v8057
      %8090 = vst.msk [vmem:[#allocation3 + $0xa8] sm:$0xff] %vm171, %v8058
      %8091 = vst.msk [vmem:[#allocation3 + $0xb8] sm:$0xff] %vm171, %v8059
      %8092 = vst.msk [vmem:[#allocation3 + $0xc8] sm:$0xff] %vm171, %v8060
      %8093 = vst.msk [vmem:[#allocation3 + $0xd8] sm:$0xff] %vm171, %v8061
      %8094 = vst.msk [vmem:[#allocation3 + $0xe8] sm:$0xff] %vm171, %v8062
      %8095 = vst.msk [vmem:[#allocation3 + $0xf8] sm:$0xff] %vm171, %v8063
      %8096 = vst.msk [vmem:[#allocation3 + $0x108] sm:$0xff] %vm171, %v8064
      %8097 = vst.msk [vmem:[#allocation3 + $0x118] sm:$0xff] %vm171, %v8065
      %8098 = vst.msk [vmem:[#allocation3 + $0x128] sm:$0xff] %vm171, %v8066
      %8099 = vst.msk [vmem:[#allocation3 + $0x138] sm:$0xff] %vm171, %v8067
      %8100 = vst.msk [vmem:[#allocation3 + $0x148] sm:$0xff] %vm171, %v8068
      %8101 = vst.msk [vmem:[#allocation3 + $0x158] sm:$0xff] %vm171, %v8069
      %8102 = vst.msk [vmem:[#allocation3 + $0x168] sm:$0xff] %vm171, %v8070
      %8103 = vst.msk [vmem:[#allocation3 + $0x178] sm:$0xff] %vm171, %v8071
      %8104 = vst.msk [vmem:[#allocation3 + $0x188] sm:$0xff] %vm171, %v8072
      %8105 = vst.msk [vmem:[#allocation3 + $0x198] sm:$0xff] %vm171, %v8073
      %8106 = vst.msk [vmem:[#allocation3 + $0x1a8] sm:$0xff] %vm171, %v8074
      %8107 = vst.msk [vmem:[#allocation3 + $0x1b8] sm:$0xff] %vm171, %v8075
      %8108 = vst.msk [vmem:[#allocation3 + $0x1c8] sm:$0xff] %vm171, %v8076
      %8109 = vst.msk [vmem:[#allocation3 + $0x1d8] sm:$0xff] %vm171, %v8077
      %8110 = vst.msk [vmem:[#allocation3 + $0x1e8] sm:$0xff] %vm171, %v8078
      %8111 = vst.msk [vmem:[#allocation3 + $0x1f8] sm:$0xff] %vm171, %v8079
      %v8112 = vld [vmem:[%s1386] sm:$0xff]
      %v8113 = vld [vmem:[%s1386 + $0x8] sm:$0xff]
      %v8114 = vld [vmem:[%s1386 + $0x18] sm:$0xff]
      %v8115 = vld [vmem:[%s1386 + $0x20] sm:$0xff]
      %v8116 = vld [vmem:[%s1386 + $0x30] sm:$0xff]
      %v8117 = vld [vmem:[%s1386 + $0x38] sm:$0xff]
      %v8118 = vld [vmem:[%s1386 + $0x48] sm:$0xff]
      %v8119 = vld [vmem:[%s1386 + $0x50] sm:$0xff]
      %v8120 = vld [vmem:[%s1386 + $0x60] sm:$0xff]
      %v8121 = vld [vmem:[%s1386 + $0x68] sm:$0xff]
      %v8122 = vld [vmem:[%s1386 + $0x78] sm:$0xff]
      %v8123 = vld [vmem:[%s1386 + $0x80] sm:$0xff]
      %v8124 = vld [vmem:[%s1386 + $0x90] sm:$0xff]
      %v8125 = vld [vmem:[%s1386 + $0x98] sm:$0xff]
      %v8126 = vld [vmem:[%s1386 + $0xa8] sm:$0xff]
      %v8127 = vld [vmem:[%s1386 + $0xb0] sm:$0xff]
      %v8128 = vld [vmem:[%s1386 + $0xc0] sm:$0xff]
      %v8129 = vld [vmem:[%s1386 + $0xc8] sm:$0xff]
      %v8130 = vld [vmem:[%s1386 + $0xd8] sm:$0xff]
      %v8131 = vld [vmem:[%s1386 + $0xe0] sm:$0xff]
      %v8132 = vld [vmem:[%s1386 + $0xf0] sm:$0xff]
      %v8133 = vld [vmem:[%s1386 + $0xf8] sm:$0xff]
      %v8134 = vld [vmem:[%s1386 + $0x108] sm:$0xff]
      %v8135 = vld [vmem:[%s1386 + $0x110] sm:$0xff]
      %v8136 = vld [vmem:[%s1386 + $0x120] sm:$0xff]
      %v8137 = vld [vmem:[%s1386 + $0x128] sm:$0xff]
      %v8138 = vld [vmem:[%s1386 + $0x138] sm:$0xff]
      %v8139 = vld [vmem:[%s1386 + $0x140] sm:$0xff]
      %v8140 = vld [vmem:[%s1386 + $0x150] sm:$0xff]
      %v8141 = vld [vmem:[%s1386 + $0x158] sm:$0xff]
      %v8142 = vld [vmem:[%s1386 + $0x168] sm:$0xff]
      %v8143 = vld [vmem:[%s1386 + $0x170] sm:$0xff]
      %8176 = vrot.lane.b32.xlu0 %v8112, 4
      %v8177 = vpop.permute.xlu0 %8176
      %8178 = vrot.lane.b32.xlu0 %v8113, 4
      %v8179 = vpop.permute.xlu0 %8178
      %8180 = vrot.lane.b32.xlu0 %v8114, 4
      %v8181 = vpop.permute.xlu0 %8180
      %8182 = vrot.lane.b32.xlu0 %v8115, 4
      %v8183 = vpop.permute.xlu0 %8182
      %8184 = vrot.lane.b32.xlu0 %v8116, 4
      %v8185 = vpop.permute.xlu0 %8184
      %8186 = vrot.lane.b32.xlu0 %v8117, 4
      %v8187 = vpop.permute.xlu0 %8186
      %8188 = vrot.lane.b32.xlu0 %v8118, 4
      %v8189 = vpop.permute.xlu0 %8188
      %8190 = vrot.lane.b32.xlu0 %v8119, 4
      %v8191 = vpop.permute.xlu0 %8190
      %8192 = vrot.lane.b32.xlu0 %v8120, 4
      %v8193 = vpop.permute.xlu0 %8192
      %8194 = vrot.lane.b32.xlu0 %v8121, 4
      %v8195 = vpop.permute.xlu0 %8194
      %8196 = vrot.lane.b32.xlu0 %v8122, 4
      %v8197 = vpop.permute.xlu0 %8196
      %8198 = vrot.lane.b32.xlu0 %v8123, 4
      %v8199 = vpop.permute.xlu0 %8198
      %8200 = vrot.lane.b32.xlu0 %v8124, 4
      %v8201 = vpop.permute.xlu0 %8200
      %8202 = vrot.lane.b32.xlu0 %v8125, 4
      %v8203 = vpop.permute.xlu0 %8202
      %8204 = vrot.lane.b32.xlu0 %v8126, 4
      %v8205 = vpop.permute.xlu0 %8204
      %8206 = vrot.lane.b32.xlu0 %v8127, 4
      %v8207 = vpop.permute.xlu0 %8206
      %8208 = vrot.lane.b32.xlu0 %v8128, 4
      %v8209 = vpop.permute.xlu0 %8208
      %8210 = vrot.lane.b32.xlu0 %v8129, 4
      %v8211 = vpop.permute.xlu0 %8210
      %8212 = vrot.lane.b32.xlu0 %v8130, 4
      %v8213 = vpop.permute.xlu0 %8212
      %8214 = vrot.lane.b32.xlu0 %v8131, 4
      %v8215 = vpop.permute.xlu0 %8214
      %8216 = vrot.lane.b32.xlu0 %v8132, 4
      %v8217 = vpop.permute.xlu0 %8216
      %8218 = vrot.lane.b32.xlu0 %v8133, 4
      %v8219 = vpop.permute.xlu0 %8218
      %8220 = vrot.lane.b32.xlu0 %v8134, 4
      %v8221 = vpop.permute.xlu0 %8220
      %8222 = vrot.lane.b32.xlu0 %v8135, 4
      %v8223 = vpop.permute.xlu0 %8222
      %8224 = vrot.lane.b32.xlu0 %v8136, 4
      %v8225 = vpop.permute.xlu0 %8224
      %8226 = vrot.lane.b32.xlu0 %v8137, 4
      %v8227 = vpop.permute.xlu0 %8226
      %8228 = vrot.lane.b32.xlu0 %v8138, 4
      %v8229 = vpop.permute.xlu0 %8228
      %8230 = vrot.lane.b32.xlu0 %v8139, 4
      %v8231 = vpop.permute.xlu0 %8230
      %8232 = vrot.lane.b32.xlu0 %v8140, 4
      %v8233 = vpop.permute.xlu0 %8232
      %8234 = vrot.lane.b32.xlu0 %v8141, 4
      %v8235 = vpop.permute.xlu0 %8234
      %8236 = vrot.lane.b32.xlu0 %v8142, 4
      %v8237 = vpop.permute.xlu0 %8236
      %8238 = vrot.lane.b32.xlu0 %v8143, 4
      %v8239 = vpop.permute.xlu0 %8238
      %8272 = vst.msk [vmem:[#allocation3 + $0x8] sm:$0xff] %vm581, %v8177
      %8273 = vst.msk [vmem:[#allocation3 + $0x18] sm:$0xff] %vm581, %v8179
      %8274 = vst.msk [vmem:[#allocation3 + $0x28] sm:$0xff] %vm581, %v8181
      %8275 = vst.msk [vmem:[#allocation3 + $0x38] sm:$0xff] %vm581, %v8183
      %8276 = vst.msk [vmem:[#allocation3 + $0x48] sm:$0xff] %vm581, %v8185
      %8277 = vst.msk [vmem:[#allocation3 + $0x58] sm:$0xff] %vm581, %v8187
      %8278 = vst.msk [vmem:[#allocation3 + $0x68] sm:$0xff] %vm581, %v8189
      %8279 = vst.msk [vmem:[#allocation3 + $0x78] sm:$0xff] %vm581, %v8191
      %8280 = vst.msk [vmem:[#allocation3 + $0x88] sm:$0xff] %vm581, %v8193
      %8281 = vst.msk [vmem:[#allocation3 + $0x98] sm:$0xff] %vm581, %v8195
      %8282 = vst.msk [vmem:[#allocation3 + $0xa8] sm:$0xff] %vm581, %v8197
      %8283 = vst.msk [vmem:[#allocation3 + $0xb8] sm:$0xff] %vm581, %v8199
      %8284 = vst.msk [vmem:[#allocation3 + $0xc8] sm:$0xff] %vm581, %v8201
      %8285 = vst.msk [vmem:[#allocation3 + $0xd8] sm:$0xff] %vm581, %v8203
      %8286 = vst.msk [vmem:[#allocation3 + $0xe8] sm:$0xff] %vm581, %v8205
      %8287 = vst.msk [vmem:[#allocation3 + $0xf8] sm:$0xff] %vm581, %v8207
      %8288 = vst.msk [vmem:[#allocation3 + $0x108] sm:$0xff] %vm581, %v8209
      %8289 = vst.msk [vmem:[#allocation3 + $0x118] sm:$0xff] %vm581, %v8211
      %8290 = vst.msk [vmem:[#allocation3 + $0x128] sm:$0xff] %vm581, %v8213
      %8291 = vst.msk [vmem:[#allocation3 + $0x138] sm:$0xff] %vm581, %v8215
      %8292 = vst.msk [vmem:[#allocation3 + $0x148] sm:$0xff] %vm581, %v8217
      %8293 = vst.msk [vmem:[#allocation3 + $0x158] sm:$0xff] %vm581, %v8219
      %8294 = vst.msk [vmem:[#allocation3 + $0x168] sm:$0xff] %vm581, %v8221
      %8295 = vst.msk [vmem:[#allocation3 + $0x178] sm:$0xff] %vm581, %v8223
      %8296 = vst.msk [vmem:[#allocation3 + $0x188] sm:$0xff] %vm581, %v8225
      %8297 = vst.msk [vmem:[#allocation3 + $0x198] sm:$0xff] %vm581, %v8227
      %8298 = vst.msk [vmem:[#allocation3 + $0x1a8] sm:$0xff] %vm581, %v8229
      %8299 = vst.msk [vmem:[#allocation3 + $0x1b8] sm:$0xff] %vm581, %v8231
      %8300 = vst.msk [vmem:[#allocation3 + $0x1c8] sm:$0xff] %vm581, %v8233
      %8301 = vst.msk [vmem:[#allocation3 + $0x1d8] sm:$0xff] %vm581, %v8235
      %8302 = vst.msk [vmem:[#allocation3 + $0x1e8] sm:$0xff] %vm581, %v8237
      %8303 = vst.msk [vmem:[#allocation3 + $0x1f8] sm:$0xff] %vm581, %v8239
      %v8304 = vld [vmem:[%s1386 + $0x1] sm:$0xff]
      %v8305 = vld [vmem:[%s1386 + $0x9] sm:$0xff]
      %v8306 = vld [vmem:[%s1386 + $0x19] sm:$0xff]
      %v8307 = vld [vmem:[%s1386 + $0x21] sm:$0xff]
      %v8308 = vld [vmem:[%s1386 + $0x31] sm:$0xff]
      %v8309 = vld [vmem:[%s1386 + $0x39] sm:$0xff]
      %v8310 = vld [vmem:[%s1386 + $0x49] sm:$0xff]
      %v8311 = vld [vmem:[%s1386 + $0x51] sm:$0xff]
      %v8312 = vld [vmem:[%s1386 + $0x61] sm:$0xff]
      %v8313 = vld [vmem:[%s1386 + $0x69] sm:$0xff]
      %v8314 = vld [vmem:[%s1386 + $0x79] sm:$0xff]
      %v8315 = vld [vmem:[%s1386 + $0x81] sm:$0xff]
      %v8316 = vld [vmem:[%s1386 + $0x91] sm:$0xff]
      %v8317 = vld [vmem:[%s1386 + $0x99] sm:$0xff]
      %v8318 = vld [vmem:[%s1386 + $0xa9] sm:$0xff]
      %v8319 = vld [vmem:[%s1386 + $0xb1] sm:$0xff]
      %v8320 = vld [vmem:[%s1386 + $0xc1] sm:$0xff]
      %v8321 = vld [vmem:[%s1386 + $0xc9] sm:$0xff]
      %v8322 = vld [vmem:[%s1386 + $0xd9] sm:$0xff]
      %v8323 = vld [vmem:[%s1386 + $0xe1] sm:$0xff]
      %v8324 = vld [vmem:[%s1386 + $0xf1] sm:$0xff]
      %v8325 = vld [vmem:[%s1386 + $0xf9] sm:$0xff]
      %v8326 = vld [vmem:[%s1386 + $0x109] sm:$0xff]
      %v8327 = vld [vmem:[%s1386 + $0x111] sm:$0xff]
      %v8328 = vld [vmem:[%s1386 + $0x121] sm:$0xff]
      %v8329 = vld [vmem:[%s1386 + $0x129] sm:$0xff]
      %v8330 = vld [vmem:[%s1386 + $0x139] sm:$0xff]
      %v8331 = vld [vmem:[%s1386 + $0x141] sm:$0xff]
      %v8332 = vld [vmem:[%s1386 + $0x151] sm:$0xff]
      %v8333 = vld [vmem:[%s1386 + $0x159] sm:$0xff]
      %v8334 = vld [vmem:[%s1386 + $0x169] sm:$0xff]
      %v8335 = vld [vmem:[%s1386 + $0x171] sm:$0xff]
      %8368 = vrot.lane.b32.xlu0 %v8304, 8
      %v8369 = vpop.permute.xlu0 %8368
      %8370 = vrot.lane.b32.xlu0 %v8305, 8
      %v8371 = vpop.permute.xlu0 %8370
      %8372 = vrot.lane.b32.xlu0 %v8306, 8
      %v8373 = vpop.permute.xlu0 %8372
      %8374 = vrot.lane.b32.xlu0 %v8307, 8
      %v8375 = vpop.permute.xlu0 %8374
      %8376 = vrot.lane.b32.xlu0 %v8308, 8
      %v8377 = vpop.permute.xlu0 %8376
      %8378 = vrot.lane.b32.xlu0 %v8309, 8
      %v8379 = vpop.permute.xlu0 %8378
      %8380 = vrot.lane.b32.xlu0 %v8310, 8
      %v8381 = vpop.permute.xlu0 %8380
      %8382 = vrot.lane.b32.xlu0 %v8311, 8
      %v8383 = vpop.permute.xlu0 %8382
      %8384 = vrot.lane.b32.xlu0 %v8312, 8
      %v8385 = vpop.permute.xlu0 %8384
      %8386 = vrot.lane.b32.xlu0 %v8313, 8
      %v8387 = vpop.permute.xlu0 %8386
      %8388 = vrot.lane.b32.xlu0 %v8314, 8
      %v8389 = vpop.permute.xlu0 %8388
      %8390 = vrot.lane.b32.xlu0 %v8315, 8
      %v8391 = vpop.permute.xlu0 %8390
      %8392 = vrot.lane.b32.xlu0 %v8316, 8
      %v8393 = vpop.permute.xlu0 %8392
      %8394 = vrot.lane.b32.xlu0 %v8317, 8
      %v8395 = vpop.permute.xlu0 %8394
      %8396 = vrot.lane.b32.xlu0 %v8318, 8
      %v8397 = vpop.permute.xlu0 %8396
      %8398 = vrot.lane.b32.xlu0 %v8319, 8
      %v8399 = vpop.permute.xlu0 %8398
      %8400 = vrot.lane.b32.xlu0 %v8320, 8
      %v8401 = vpop.permute.xlu0 %8400
      %8402 = vrot.lane.b32.xlu0 %v8321, 8
      %v8403 = vpop.permute.xlu0 %8402
      %8404 = vrot.lane.b32.xlu0 %v8322, 8
      %v8405 = vpop.permute.xlu0 %8404
      %8406 = vrot.lane.b32.xlu0 %v8323, 8
      %v8407 = vpop.permute.xlu0 %8406
      %8408 = vrot.lane.b32.xlu0 %v8324, 8
      %v8409 = vpop.permute.xlu0 %8408
      %8410 = vrot.lane.b32.xlu0 %v8325, 8
      %v8411 = vpop.permute.xlu0 %8410
      %8412 = vrot.lane.b32.xlu0 %v8326, 8
      %v8413 = vpop.permute.xlu0 %8412
      %8414 = vrot.lane.b32.xlu0 %v8327, 8
      %v8415 = vpop.permute.xlu0 %8414
      %8416 = vrot.lane.b32.xlu0 %v8328, 8
      %v8417 = vpop.permute.xlu0 %8416
      %8418 = vrot.lane.b32.xlu0 %v8329, 8
      %v8419 = vpop.permute.xlu0 %8418
      %8420 = vrot.lane.b32.xlu0 %v8330, 8
      %v8421 = vpop.permute.xlu0 %8420
      %8422 = vrot.lane.b32.xlu0 %v8331, 8
      %v8423 = vpop.permute.xlu0 %8422
      %8424 = vrot.lane.b32.xlu0 %v8332, 8
      %v8425 = vpop.permute.xlu0 %8424
      %8426 = vrot.lane.b32.xlu0 %v8333, 8
      %v8427 = vpop.permute.xlu0 %8426
      %8428 = vrot.lane.b32.xlu0 %v8334, 8
      %v8429 = vpop.permute.xlu0 %8428
      %8430 = vrot.lane.b32.xlu0 %v8335, 8
      %v8431 = vpop.permute.xlu0 %8430
      %8464 = vst.msk [vmem:[#allocation3 + $0x8] sm:$0xff] %vm774, %v8369
      %8465 = vst.msk [vmem:[#allocation3 + $0x18] sm:$0xff] %vm774, %v8371
      %8466 = vst.msk [vmem:[#allocation3 + $0x28] sm:$0xff] %vm774, %v8373
      %8467 = vst.msk [vmem:[#allocation3 + $0x38] sm:$0xff] %vm774, %v8375
      %8468 = vst.msk [vmem:[#allocation3 + $0x48] sm:$0xff] %vm774, %v8377
      %8469 = vst.msk [vmem:[#allocation3 + $0x58] sm:$0xff] %vm774, %v8379
      %8470 = vst.msk [vmem:[#allocation3 + $0x68] sm:$0xff] %vm774, %v8381
      %8471 = vst.msk [vmem:[#allocation3 + $0x78] sm:$0xff] %vm774, %v8383
      %8472 = vst.msk [vmem:[#allocation3 + $0x88] sm:$0xff] %vm774, %v8385
      %8473 = vst.msk [vmem:[#allocation3 + $0x98] sm:$0xff] %vm774, %v8387
      %8474 = vst.msk [vmem:[#allocation3 + $0xa8] sm:$0xff] %vm774, %v8389
      %8475 = vst.msk [vmem:[#allocation3 + $0xb8] sm:$0xff] %vm774, %v8391
      %8476 = vst.msk [vmem:[#allocation3 + $0xc8] sm:$0xff] %vm774, %v8393
      %8477 = vst.msk [vmem:[#allocation3 + $0xd8] sm:$0xff] %vm774, %v8395
      %8478 = vst.msk [vmem:[#allocation3 + $0xe8] sm:$0xff] %vm774, %v8397
      %8479 = vst.msk [vmem:[#allocation3 + $0xf8] sm:$0xff] %vm774, %v8399
      %8480 = vst.msk [vmem:[#allocation3 + $0x108] sm:$0xff] %vm774, %v8401
      %8481 = vst.msk [vmem:[#allocation3 + $0x118] sm:$0xff] %vm774, %v8403
      %8482 = vst.msk [vmem:[#allocation3 + $0x128] sm:$0xff] %vm774, %v8405
      %8483 = vst.msk [vmem:[#allocation3 + $0x138] sm:$0xff] %vm774, %v8407
      %8484 = vst.msk [vmem:[#allocation3 + $0x148] sm:$0xff] %vm774, %v8409
      %8485 = vst.msk [vmem:[#allocation3 + $0x158] sm:$0xff] %vm774, %v8411
      %8486 = vst.msk [vmem:[#allocation3 + $0x168] sm:$0xff] %vm774, %v8413
      %8487 = vst.msk [vmem:[#allocation3 + $0x178] sm:$0xff] %vm774, %v8415
      %8488 = vst.msk [vmem:[#allocation3 + $0x188] sm:$0xff] %vm774, %v8417
      %8489 = vst.msk [vmem:[#allocation3 + $0x198] sm:$0xff] %vm774, %v8419
      %8490 = vst.msk [vmem:[#allocation3 + $0x1a8] sm:$0xff] %vm774, %v8421
      %8491 = vst.msk [vmem:[#allocation3 + $0x1b8] sm:$0xff] %vm774, %v8423
      %8492 = vst.msk [vmem:[#allocation3 + $0x1c8] sm:$0xff] %vm774, %v8425
      %8493 = vst.msk [vmem:[#allocation3 + $0x1d8] sm:$0xff] %vm774, %v8427
      %8494 = vst.msk [vmem:[#allocation3 + $0x1e8] sm:$0xff] %vm774, %v8429
      %8495 = vst.msk [vmem:[#allocation3 + $0x1f8] sm:$0xff] %vm774, %v8431
      %v8496 = vld [vmem:[%s1386 + $0x2] sm:$0xff]
      %v8497 = vld [vmem:[%s1386 + $0xa] sm:$0xff]
      %v8498 = vld [vmem:[%s1386 + $0x1a] sm:$0xff]
      %v8499 = vld [vmem:[%s1386 + $0x22] sm:$0xff]
      %v8500 = vld [vmem:[%s1386 + $0x32] sm:$0xff]
      %v8501 = vld [vmem:[%s1386 + $0x3a] sm:$0xff]
      %v8502 = vld [vmem:[%s1386 + $0x4a] sm:$0xff]
      %v8503 = vld [vmem:[%s1386 + $0x52] sm:$0xff]
      %v8504 = vld [vmem:[%s1386 + $0x62] sm:$0xff]
      %v8505 = vld [vmem:[%s1386 + $0x6a] sm:$0xff]
      %v8506 = vld [vmem:[%s1386 + $0x7a] sm:$0xff]
      %v8507 = vld [vmem:[%s1386 + $0x82] sm:$0xff]
      %v8508 = vld [vmem:[%s1386 + $0x92] sm:$0xff]
      %v8509 = vld [vmem:[%s1386 + $0x9a] sm:$0xff]
      %v8510 = vld [vmem:[%s1386 + $0xaa] sm:$0xff]
      %v8511 = vld [vmem:[%s1386 + $0xb2] sm:$0xff]
      %v8512 = vld [vmem:[%s1386 + $0xc2] sm:$0xff]
      %v8513 = vld [vmem:[%s1386 + $0xca] sm:$0xff]
      %v8514 = vld [vmem:[%s1386 + $0xda] sm:$0xff]
      %v8515 = vld [vmem:[%s1386 + $0xe2] sm:$0xff]
      %v8516 = vld [vmem:[%s1386 + $0xf2] sm:$0xff]
      %v8517 = vld [vmem:[%s1386 + $0xfa] sm:$0xff]
      %v8518 = vld [vmem:[%s1386 + $0x10a] sm:$0xff]
      %v8519 = vld [vmem:[%s1386 + $0x112] sm:$0xff]
      %v8520 = vld [vmem:[%s1386 + $0x122] sm:$0xff]
      %v8521 = vld [vmem:[%s1386 + $0x12a] sm:$0xff]
      %v8522 = vld [vmem:[%s1386 + $0x13a] sm:$0xff]
      %v8523 = vld [vmem:[%s1386 + $0x142] sm:$0xff]
      %v8524 = vld [vmem:[%s1386 + $0x152] sm:$0xff]
      %v8525 = vld [vmem:[%s1386 + $0x15a] sm:$0xff]
      %v8526 = vld [vmem:[%s1386 + $0x16a] sm:$0xff]
      %v8527 = vld [vmem:[%s1386 + $0x172] sm:$0xff]
      %8560 = vrot.lane.b32.xlu0 %v8496, 12
      %v8561 = vpop.permute.xlu0 %8560
      %8562 = vrot.lane.b32.xlu0 %v8497, 12
      %v8563 = vpop.permute.xlu0 %8562
      %8564 = vrot.lane.b32.xlu0 %v8498, 12
      %v8565 = vpop.permute.xlu0 %8564
      %8566 = vrot.lane.b32.xlu0 %v8499, 12
      %v8567 = vpop.permute.xlu0 %8566
      %8568 = vrot.lane.b32.xlu0 %v8500, 12
      %v8569 = vpop.permute.xlu0 %8568
      %8570 = vrot.lane.b32.xlu0 %v8501, 12
      %v8571 = vpop.permute.xlu0 %8570
      %8572 = vrot.lane.b32.xlu0 %v8502, 12
      %v8573 = vpop.permute.xlu0 %8572
      %8574 = vrot.lane.b32.xlu0 %v8503, 12
      %v8575 = vpop.permute.xlu0 %8574
      %8576 = vrot.lane.b32.xlu0 %v8504, 12
      %v8577 = vpop.permute.xlu0 %8576
      %8578 = vrot.lane.b32.xlu0 %v8505, 12
      %v8579 = vpop.permute.xlu0 %8578
      %8580 = vrot.lane.b32.xlu0 %v8506, 12
      %v8581 = vpop.permute.xlu0 %8580
      %8582 = vrot.lane.b32.xlu0 %v8507, 12
      %v8583 = vpop.permute.xlu0 %8582
      %8584 = vrot.lane.b32.xlu0 %v8508, 12
      %v8585 = vpop.permute.xlu0 %8584
      %8586 = vrot.lane.b32.xlu0 %v8509, 12
      %v8587 = vpop.permute.xlu0 %8586
      %8588 = vrot.lane.b32.xlu0 %v8510, 12
      %v8589 = vpop.permute.xlu0 %8588
      %8590 = vrot.lane.b32.xlu0 %v8511, 12
      %v8591 = vpop.permute.xlu0 %8590
      %8592 = vrot.lane.b32.xlu0 %v8512, 12
      %v8593 = vpop.permute.xlu0 %8592
      %8594 = vrot.lane.b32.xlu0 %v8513, 12
      %v8595 = vpop.permute.xlu0 %8594
      %8596 = vrot.lane.b32.xlu0 %v8514, 12
      %v8597 = vpop.permute.xlu0 %8596
      %8598 = vrot.lane.b32.xlu0 %v8515, 12
      %v8599 = vpop.permute.xlu0 %8598
      %8600 = vrot.lane.b32.xlu0 %v8516, 12
      %v8601 = vpop.permute.xlu0 %8600
      %8602 = vrot.lane.b32.xlu0 %v8517, 12
      %v8603 = vpop.permute.xlu0 %8602
      %8604 = vrot.lane.b32.xlu0 %v8518, 12
      %v8605 = vpop.permute.xlu0 %8604
      %8606 = vrot.lane.b32.xlu0 %v8519, 12
      %v8607 = vpop.permute.xlu0 %8606
      %8608 = vrot.lane.b32.xlu0 %v8520, 12
      %v8609 = vpop.permute.xlu0 %8608
      %8610 = vrot.lane.b32.xlu0 %v8521, 12
      %v8611 = vpop.permute.xlu0 %8610
      %8612 = vrot.lane.b32.xlu0 %v8522, 12
      %v8613 = vpop.permute.xlu0 %8612
      %8614 = vrot.lane.b32.xlu0 %v8523, 12
      %v8615 = vpop.permute.xlu0 %8614
      %8616 = vrot.lane.b32.xlu0 %v8524, 12
      %v8617 = vpop.permute.xlu0 %8616
      %8618 = vrot.lane.b32.xlu0 %v8525, 12
      %v8619 = vpop.permute.xlu0 %8618
      %8620 = vrot.lane.b32.xlu0 %v8526, 12
      %v8621 = vpop.permute.xlu0 %8620
      %8622 = vrot.lane.b32.xlu0 %v8527, 12
      %v8623 = vpop.permute.xlu0 %8622
      %8656 = vst.msk [vmem:[#allocation3 + $0x8] sm:$0xff] %vm967, %v8561
      %8657 = vst.msk [vmem:[#allocation3 + $0x18] sm:$0xff] %vm967, %v8563
      %8658 = vst.msk [vmem:[#allocation3 + $0x28] sm:$0xff] %vm967, %v8565
      %8659 = vst.msk [vmem:[#allocation3 + $0x38] sm:$0xff] %vm967, %v8567
      %8660 = vst.msk [vmem:[#allocation3 + $0x48] sm:$0xff] %vm967, %v8569
      %8661 = vst.msk [vmem:[#allocation3 + $0x58] sm:$0xff] %vm967, %v8571
      %8662 = vst.msk [vmem:[#allocation3 + $0x68] sm:$0xff] %vm967, %v8573
      %8663 = vst.msk [vmem:[#allocation3 + $0x78] sm:$0xff] %vm967, %v8575
      %8664 = vst.msk [vmem:[#allocation3 + $0x88] sm:$0xff] %vm967, %v8577
      %8665 = vst.msk [vmem:[#allocation3 + $0x98] sm:$0xff] %vm967, %v8579
      %8666 = vst.msk [vmem:[#allocation3 + $0xa8] sm:$0xff] %vm967, %v8581
      %8667 = vst.msk [vmem:[#allocation3 + $0xb8] sm:$0xff] %vm967, %v8583
      %8668 = vst.msk [vmem:[#allocation3 + $0xc8] sm:$0xff] %vm967, %v8585
      %8669 = vst.msk [vmem:[#allocation3 + $0xd8] sm:$0xff] %vm967, %v8587
      %8670 = vst.msk [vmem:[#allocation3 + $0xe8] sm:$0xff] %vm967, %v8589
      %8671 = vst.msk [vmem:[#allocation3 + $0xf8] sm:$0xff] %vm967, %v8591
      %8672 = vst.msk [vmem:[#allocation3 + $0x108] sm:$0xff] %vm967, %v8593
      %8673 = vst.msk [vmem:[#allocation3 + $0x118] sm:$0xff] %vm967, %v8595
      %8674 = vst.msk [vmem:[#allocation3 + $0x128] sm:$0xff] %vm967, %v8597
      %8675 = vst.msk [vmem:[#allocation3 + $0x138] sm:$0xff] %vm967, %v8599
      %8676 = vst.msk [vmem:[#allocation3 + $0x148] sm:$0xff] %vm967, %v8601
      %8677 = vst.msk [vmem:[#allocation3 + $0x158] sm:$0xff] %vm967, %v8603
      %8678 = vst.msk [vmem:[#allocation3 + $0x168] sm:$0xff] %vm967, %v8605
      %8679 = vst.msk [vmem:[#allocation3 + $0x178] sm:$0xff] %vm967, %v8607
      %8680 = vst.msk [vmem:[#allocation3 + $0x188] sm:$0xff] %vm967, %v8609
      %8681 = vst.msk [vmem:[#allocation3 + $0x198] sm:$0xff] %vm967, %v8611
      %8682 = vst.msk [vmem:[#allocation3 + $0x1a8] sm:$0xff] %vm967, %v8613
      %8683 = vst.msk [vmem:[#allocation3 + $0x1b8] sm:$0xff] %vm967, %v8615
      %8684 = vst.msk [vmem:[#allocation3 + $0x1c8] sm:$0xff] %vm967, %v8617
      %8685 = vst.msk [vmem:[#allocation3 + $0x1d8] sm:$0xff] %vm967, %v8619
      %8686 = vst.msk [vmem:[#allocation3 + $0x1e8] sm:$0xff] %vm967, %v8621
      %8687 = vst.msk [vmem:[#allocation3 + $0x1f8] sm:$0xff] %vm967, %v8623
      %v8688 = vld [vmem:[#allocation3] sm:$0xff]
      %v8689 = vld [vmem:[#allocation3 + $0x8] sm:$0xff]
      %v8690 = vld [vmem:[#allocation3 + $0x10] sm:$0xff]
      %v8691 = vld [vmem:[#allocation3 + $0x18] sm:$0xff]
      %v8692 = vld [vmem:[#allocation3 + $0x20] sm:$0xff]
      %v8693 = vld [vmem:[#allocation3 + $0x28] sm:$0xff]
      %v8694 = vld [vmem:[#allocation3 + $0x30] sm:$0xff]
      %v8695 = vld [vmem:[#allocation3 + $0x38] sm:$0xff]
      %v8696 = vld [vmem:[#allocation3 + $0x40] sm:$0xff]
      %v8697 = vld [vmem:[#allocation3 + $0x48] sm:$0xff]
      %v8698 = vld [vmem:[#allocation3 + $0x50] sm:$0xff]
      %v8699 = vld [vmem:[#allocation3 + $0x58] sm:$0xff]
      %v8700 = vld [vmem:[#allocation3 + $0x60] sm:$0xff]
      %v8701 = vld [vmem:[#allocation3 + $0x68] sm:$0xff]
      %v8702 = vld [vmem:[#allocation3 + $0x70] sm:$0xff]
      %v8703 = vld [vmem:[#allocation3 + $0x78] sm:$0xff]
      %v8704 = vld [vmem:[#allocation3 + $0x80] sm:$0xff]
      %v8705 = vld [vmem:[#allocation3 + $0x88] sm:$0xff]
      %v8706 = vld [vmem:[#allocation3 + $0x90] sm:$0xff]
      %v8707 = vld [vmem:[#allocation3 + $0x98] sm:$0xff]
      %v8708 = vld [vmem:[#allocation3 + $0xa0] sm:$0xff]
      %v8709 = vld [vmem:[#allocation3 + $0xa8] sm:$0xff]
      %v8710 = vld [vmem:[#allocation3 + $0xb0] sm:$0xff]
      %v8711 = vld [vmem:[#allocation3 + $0xb8] sm:$0xff]
      %v8712 = vld [vmem:[#allocation3 + $0xc0] sm:$0xff]
      %v8713 = vld [vmem:[#allocation3 + $0xc8] sm:$0xff]
      %v8714 = vld [vmem:[#allocation3 + $0xd0] sm:$0xff]
      %v8715 = vld [vmem:[#allocation3 + $0xd8] sm:$0xff]
      %v8716 = vld [vmem:[#allocation3 + $0xe0] sm:$0xff]
      %v8717 = vld [vmem:[#allocation3 + $0xe8] sm:$0xff]
      %v8718 = vld [vmem:[#allocation3 + $0xf0] sm:$0xff]
      %v8719 = vld [vmem:[#allocation3 + $0xf8] sm:$0xff]
      %v8720 = vld [vmem:[#allocation3 + $0x100] sm:$0xff]
      %v8721 = vld [vmem:[#allocation3 + $0x108] sm:$0xff]
      %v8722 = vld [vmem:[#allocation3 + $0x110] sm:$0xff]
      %v8723 = vld [vmem:[#allocation3 + $0x118] sm:$0xff]
      %v8724 = vld [vmem:[#allocation3 + $0x120] sm:$0xff]
      %v8725 = vld [vmem:[#allocation3 + $0x128] sm:$0xff]
      %v8726 = vld [vmem:[#allocation3 + $0x130] sm:$0xff]
      %v8727 = vld [vmem:[#allocation3 + $0x138] sm:$0xff]
      %v8728 = vld [vmem:[#allocation3 + $0x140] sm:$0xff]
      %v8729 = vld [vmem:[#allocation3 + $0x148] sm:$0xff]
      %v8730 = vld [vmem:[#allocation3 + $0x150] sm:$0xff]
      %v8731 = vld [vmem:[#allocation3 + $0x158] sm:$0xff]
      %v8732 = vld [vmem:[#allocation3 + $0x160] sm:$0xff]
      %v8733 = vld [vmem:[#allocation3 + $0x168] sm:$0xff]
      %v8734 = vld [vmem:[#allocation3 + $0x170] sm:$0xff]
      %v8735 = vld [vmem:[#allocation3 + $0x178] sm:$0xff]
      %v8736 = vld [vmem:[#allocation3 + $0x180] sm:$0xff]
      %v8737 = vld [vmem:[#allocation3 + $0x188] sm:$0xff]
      %v8738 = vld [vmem:[#allocation3 + $0x190] sm:$0xff]
      %v8739 = vld [vmem:[#allocation3 + $0x198] sm:$0xff]
      %v8740 = vld [vmem:[#allocation3 + $0x1a0] sm:$0xff]
      %v8741 = vld [vmem:[#allocation3 + $0x1a8] sm:$0xff]
      %v8742 = vld [vmem:[#allocation3 + $0x1b0] sm:$0xff]
      %v8743 = vld [vmem:[#allocation3 + $0x1b8] sm:$0xff]
      %v8744 = vld [vmem:[#allocation3 + $0x1c0] sm:$0xff]
      %v8745 = vld [vmem:[#allocation3 + $0x1c8] sm:$0xff]
      %v8746 = vld [vmem:[#allocation3 + $0x1d0] sm:$0xff]
      %v8747 = vld [vmem:[#allocation3 + $0x1d8] sm:$0xff]
      %v8748 = vld [vmem:[#allocation3 + $0x1e0] sm:$0xff]
      %v8749 = vld [vmem:[#allocation3 + $0x1e8] sm:$0xff]
      %v8750 = vld [vmem:[#allocation3 + $0x1f0] sm:$0xff]
      %v8751 = vld [vmem:[#allocation3 + $0x1f8] sm:$0xff]
      %s8752 = scalar_lea.vmem %s1, 552
      %v8753 = vld [vmem:[%s8752] sm:$0xff]
      %v8754 = vld [vmem:[%s8752 + $0x8] sm:$0xff]
      %v8755 = vld [vmem:[%s8752 + $0x10] sm:$0xff]
      %v8756 = vld [vmem:[%s8752 + $0x18] sm:$0xff]
      %v8757 = vld [vmem:[%s8752 + $0x20] sm:$0xff]
      %v8758 = vld [vmem:[%s8752 + $0x28] sm:$0xff]
      %v8759 = vld [vmem:[%s8752 + $0x30] sm:$0xff]
      %v8760 = vld [vmem:[%s8752 + $0x38] sm:$0xff]
      %v8761 = vld [vmem:[%s8752 + $0x40] sm:$0xff]
      %v8762 = vld [vmem:[%s8752 + $0x48] sm:$0xff]
      %v8763 = vld [vmem:[%s8752 + $0x50] sm:$0xff]
      %v8764 = vld [vmem:[%s8752 + $0x58] sm:$0xff]
      %v8765 = vld [vmem:[%s8752 + $0x60] sm:$0xff]
      %v8766 = vld [vmem:[%s8752 + $0x68] sm:$0xff]
      %v8767 = vld [vmem:[%s8752 + $0x70] sm:$0xff]
      %v8768 = vld [vmem:[%s8752 + $0x78] sm:$0xff]
      %v8769 = vld [vmem:[%s8752 + $0x80] sm:$0xff]
      %v8770 = vld [vmem:[%s8752 + $0x88] sm:$0xff]
      %v8771 = vld [vmem:[%s8752 + $0x90] sm:$0xff]
      %v8772 = vld [vmem:[%s8752 + $0x98] sm:$0xff]
      %v8773 = vld [vmem:[%s8752 + $0xa0] sm:$0xff]
      %v8774 = vld [vmem:[%s8752 + $0xa8] sm:$0xff]
      %v8775 = vld [vmem:[%s8752 + $0xb0] sm:$0xf]
      %s8776 = scalar_lea.vmem %s2, 3
      %v8777 = vld [vmem:[%s8776] sm:$0x1]
      %v8779 = vlaneseq
      %v8780 = vshrl.u32 %v8779, 7
      %v8781 = vsub.s32 0, %v8780
      %v8782 = vrot.slane %v8777, %v8781
      %v8785 = vsel %vm228, %v8689, 0
      %v8788 = vsel %vm228, %v8691, 0
      %v8791 = vsel %vm228, %v8693, 0
      %v8794 = vsel %vm228, %v8695, 0
      %v8797 = vsel %vm228, %v8697, 0
      %v8800 = vsel %vm228, %v8699, 0
      %v8803 = vsel %vm228, %v8701, 0
      %v8806 = vsel %vm228, %v8703, 0
      %v8809 = vsel %vm228, %v8705, 0
      %v8812 = vsel %vm228, %v8707, 0
      %v8815 = vsel %vm228, %v8709, 0
      %v8818 = vsel %vm228, %v8711, 0
      %v8821 = vsel %vm228, %v8713, 0
      %v8824 = vsel %vm228, %v8715, 0
      %v8827 = vsel %vm228, %v8717, 0
      %v8830 = vsel %vm228, %v8719, 0
      %v8833 = vsel %vm228, %v8721, 0
      %v8836 = vsel %vm228, %v8723, 0
      %v8839 = vsel %vm228, %v8725, 0
      %v8842 = vsel %vm228, %v8727, 0
      %v8845 = vsel %vm228, %v8729, 0
      %v8848 = vsel %vm228, %v8731, 0
      %v8851 = vsel %vm228, %v8733, 0
      %v8854 = vsel %vm228, %v8735, 0
      %v8857 = vsel %vm228, %v8737, 0
      %v8860 = vsel %vm228, %v8739, 0
      %v8863 = vsel %vm228, %v8741, 0
      %v8866 = vsel %vm228, %v8743, 0
      %v8869 = vsel %vm228, %v8745, 0
      %v8872 = vsel %vm228, %v8747, 0
      %v8875 = vsel %vm228, %v8749, 0
      %v8878 = vsel %vm228, %v8751, 0
      %v8881 = vsel %vm2156, %v8775, 0
      %8883 = vmatprep.subr.mxu0 0.0
      %8884 = vmatpush1.msra.mxu0 %v8753
      %8885 = vmatprep.subr.mxu0 0.0
      %8886 = vmatpush1.msra.mxu0 %v8754
      %8887 = vmatprep.subr.mxu0 0.0
      %8888 = vmatpush1.msra.mxu0 %v8755
      %8889 = vmatprep.subr.mxu0 0.0
      %8890 = vmatpush1.msra.mxu0 %v8756
      %8891 = vmatprep.subr.mxu0 0.0
      %8892 = vmatpush1.msra.mxu0 %v8757
      %8893 = vmatprep.subr.mxu0 0.0
      %8894 = vmatpush1.msra.mxu0 %v8758
      %8895 = vmatprep.subr.mxu0 0.0
      %8896 = vmatpush1.msra.mxu0 %v8759
      %8897 = vmatprep.subr.mxu0 0.0
      %8898 = vmatpush1.msra.mxu0 %v8760
      %8899 = vmatprep.subr.mxu0 0.0
      %8900 = vmatpush1.msra.mxu0 %v8761
      %8901 = vmatprep.subr.mxu0 0.0
      %8902 = vmatpush1.msra.mxu0 %v8762
      %8903 = vmatprep.subr.mxu0 0.0
      %8904 = vmatpush1.msra.mxu0 %v8763
      %8905 = vmatprep.subr.mxu0 0.0
      %8906 = vmatpush1.msra.mxu0 %v8764
      %8907 = vmatprep.subr.mxu0 0.0
      %8908 = vmatpush1.msra.mxu0 %v8765
      %8909 = vmatprep.subr.mxu0 0.0
      %8910 = vmatpush1.msra.mxu0 %v8766
      %8911 = vmatprep.subr.mxu0 0.0
      %8912 = vmatpush1.msra.mxu0 %v8767
      %8913 = vmatprep.subr.mxu0 0.0
      %8914 = vmatpush1.msra.mxu0 %v8768
      %8915 = vmatprep.subr.mxu0 0.0
      %8916 = vmatpush1.msra.mxu0 %v8769
      %8917 = vmatprep.subr.mxu0 0.0
      %8918 = vmatpush1.msra.mxu0 %v8770
      %8919 = vmatprep.subr.mxu0 0.0
      %8920 = vmatpush1.msra.mxu0 %v8771
      %8921 = vmatprep.subr.mxu0 0.0
      %8922 = vmatpush1.msra.mxu0 %v8772
      %8923 = vmatprep.subr.mxu0 0.0
      %8924 = vmatpush1.msra.mxu0 %v8773
      %8925 = vmatprep.subr.mxu0 0.0
      %8926 = vmatpush1.msra.mxu0 %v8774
      %8927 = vmatprep.subr.mxu0 0.0
      %8928 = vmatpush1.msra.mxu0 %v8881
      %8929 = vmatprep.subr.mxu0 0.0
      %8930 = vmatpush1.msra.mxu0 0.0
      %8931 = vmatprep.subr.mxu0 0.0
      %8932 = vmatpush1.msra.mxu0 0.0
      %8933 = vmatprep.subr.mxu0 0.0
      %8934 = vmatpush1.msra.mxu0 0.0
      %8935 = vmatprep.subr.mxu0 0.0
      %8936 = vmatpush1.msra.mxu0 0.0
      %8937 = vmatprep.subr.mxu0 0.0
      %8938 = vmatpush1.msra.mxu0 0.0
      %8939 = vmatprep.subr.mxu0 0.0
      %8940 = vmatpush1.msra.mxu0 0.0
      %8941 = vmatprep.subr.mxu0 0.0
      %8942 = vmatpush1.msra.mxu0 0.0
      %8943 = vmatprep.subr.mxu0 0.0
      %8944 = vmatpush1.msra.mxu0 0.0
      %8945 = vmatprep.subr.mxu0 0.0
      %8946 = vmatpush1.msra.mxu0 0.0
      %8947 = vmatprep.mubr.f32.mxu0 %v8785
      %8948 = vmatmul.mubr.f32.gmra.mrb[0].mxu0 %v8688
      %v8949 = vpop.f32.mrb[0].mxu0
      %v8950 = vadd.f32 %v8782, %v8949
      %v8951 = vpop.f32.mrb[0].mxu0
      %8952 = vmatprep.mubr.f32.mxu0 %v8788
      %8953 = vmatmul.mubr.f32.gmra.mrb[0].mxu0 %v8690
      %v8954 = vpop.f32.mrb[0].mxu0
      %v8955 = vadd.f32 %v8782, %v8954
      %v8956 = vpop.f32.mrb[0].mxu0
      %8957 = vmatprep.mubr.f32.mxu0 %v8791
      %8958 = vmatmul.mubr.f32.gmra.mrb[0].mxu0 %v8692
      %v8959 = vpop.f32.mrb[0].mxu0
      %v8960 = vadd.f32 %v8782, %v8959
      %v8961 = vpop.f32.mrb[0].mxu0
      %8962 = vmatprep.mubr.f32.mxu0 %v8794
      %8963 = vmatmul.mubr.f32.gmra.mrb[0].mxu0 %v8694
      %v8964 = vpop.f32.mrb[0].mxu0
      %v8965 = vadd.f32 %v8782, %v8964
      %v8966 = vpop.f32.mrb[0].mxu0
      %8967 = vmatprep.mubr.f32.mxu0 %v8797
      %8968 = vmatmul.mubr.f32.gmra.mrb[0].mxu0 %v8696
      %v8969 = vpop.f32.mrb[0].mxu0
      %v8970 = vadd.f32 %v8782, %v8969
      %v8971 = vpop.f32.mrb[0].mxu0
      %8972 = vmatprep.mubr.f32.mxu0 %v8800
      %8973 = vmatmul.mubr.f32.gmra.mrb[0].mxu0 %v8698
      %v8974 = vpop.f32.mrb[0].mxu0
      %v8975 = vadd.f32 %v8782, %v8974
      %v8976 = vpop.f32.mrb[0].mxu0
      %8977 = vmatprep.mubr.f32.mxu0 %v8803
      %8978 = vmatmul.mubr.f32.gmra.mrb[0].mxu0 %v8700
      %v8979 = vpop.f32.mrb[0].mxu0
      %v8980 = vadd.f32 %v8782, %v8979
      %v8981 = vpop.f32.mrb[0].mxu0
      %8982 = vmatprep.mubr.f32.mxu0 %v8806
      %8983 = vmatmul.mubr.f32.gmra.mrb[0].mxu0 %v8702
      %v8984 = vpop.f32.mrb[0].mxu0
      %v8985 = vadd.f32 %v8782, %v8984
      %v8986 = vpop.f32.mrb[0].mxu0
      %8987 = vmatprep.mubr.f32.mxu0 %v8809
      %8988 = vmatmul.mubr.f32.gmra.mrb[0].mxu0 %v8704
      %v8989 = vpop.f32.mrb[0].mxu0
      %v8990 = vadd.f32 %v8782, %v8989
      %v8991 = vpop.f32.mrb[0].mxu0
      %8992 = vmatprep.mubr.f32.mxu0 %v8812
      %8993 = vmatmul.mubr.f32.gmra.mrb[0].mxu0 %v8706
      %v8994 = vpop.f32.mrb[0].mxu0
      %v8995 = vadd.f32 %v8782, %v8994
      %v8996 = vpop.f32.mrb[0].mxu0
      %8997 = vmatprep.mubr.f32.mxu0 %v8815
      %8998 = vmatmul.mubr.f32.gmra.mrb[0].mxu0 %v8708
      %v8999 = vpop.f32.mrb[0].mxu0
      %v9000 = vadd.f32 %v8782, %v8999
      %v9001 = vpop.f32.mrb[0].mxu0
      %9002 = vmatprep.mubr.f32.mxu0 %v8818
      %9003 = vmatmul.mubr.f32.gmra.mrb[0].mxu0 %v8710
      %v9004 = vpop.f32.mrb[0].mxu0
      %v9005 = vadd.f32 %v8782, %v9004
      %v9006 = vpop.f32.mrb[0].mxu0
      %9007 = vmatprep.mubr.f32.mxu0 %v8821
      %9008 = vmatmul.mubr.f32.gmra.mrb[0].mxu0 %v8712
      %v9009 = vpop.f32.mrb[0].mxu0
      %v9010 = vadd.f32 %v8782, %v9009
      %v9011 = vpop.f32.mrb[0].mxu0
      %9012 = vmatprep.mubr.f32.mxu0 %v8824
      %9013 = vmatmul.mubr.f32.gmra.mrb[0].mxu0 %v8714
      %v9014 = vpop.f32.mrb[0].mxu0
      %v9015 = vadd.f32 %v8782, %v9014
      %v9016 = vpop.f32.mrb[0].mxu0
      %9017 = vmatprep.mubr.f32.mxu0 %v8827
      %9018 = vmatmul.mubr.f32.gmra.mrb[0].mxu0 %v8716
      %v9019 = vpop.f32.mrb[0].mxu0
      %v9020 = vadd.f32 %v8782, %v9019
      %v9021 = vpop.f32.mrb[0].mxu0
      %9022 = vmatprep.mubr.f32.mxu0 %v8830
      %9023 = vmatmul.mubr.f32.gmra.mrb[0].mxu0 %v8718
      %v9024 = vpop.f32.mrb[0].mxu0
      %v9025 = vadd.f32 %v8782, %v9024
      %v9026 = vpop.f32.mrb[0].mxu0
      %9027 = vmatprep.mubr.f32.mxu0 %v8833
      %9028 = vmatmul.mubr.f32.gmra.mrb[0].mxu0 %v8720
      %v9029 = vpop.f32.mrb[0].mxu0
      %v9030 = vadd.f32 %v8782, %v9029
      %v9031 = vpop.f32.mrb[0].mxu0
      %9032 = vmatprep.mubr.f32.mxu0 %v8836
      %9033 = vmatmul.mubr.f32.gmra.mrb[0].mxu0 %v8722
      %v9034 = vpop.f32.mrb[0].mxu0
      %v9035 = vadd.f32 %v8782, %v9034
      %v9036 = vpop.f32.mrb[0].mxu0
      %9037 = vmatprep.mubr.f32.mxu0 %v8839
      %9038 = vmatmul.mubr.f32.gmra.mrb[0].mxu0 %v8724
      %v9039 = vpop.f32.mrb[0].mxu0
      %v9040 = vadd.f32 %v8782, %v9039
      %v9041 = vpop.f32.mrb[0].mxu0
      %9042 = vmatprep.mubr.f32.mxu0 %v8842
      %9043 = vmatmul.mubr.f32.gmra.mrb[0].mxu0 %v8726
      %v9044 = vpop.f32.mrb[0].mxu0
      %v9045 = vadd.f32 %v8782, %v9044
      %v9046 = vpop.f32.mrb[0].mxu0
      %9047 = vmatprep.mubr.f32.mxu0 %v8845
      %9048 = vmatmul.mubr.f32.gmra.mrb[0].mxu0 %v8728
      %v9049 = vpop.f32.mrb[0].mxu0
      %v9050 = vadd.f32 %v8782, %v9049
      %v9051 = vpop.f32.mrb[0].mxu0
      %9052 = vmatprep.mubr.f32.mxu0 %v8848
      %9053 = vmatmul.mubr.f32.gmra.mrb[0].mxu0 %v8730
      %v9054 = vpop.f32.mrb[0].mxu0
      %v9055 = vadd.f32 %v8782, %v9054
      %v9056 = vpop.f32.mrb[0].mxu0
      %9057 = vmatprep.mubr.f32.mxu0 %v8851
      %9058 = vmatmul.mubr.f32.gmra.mrb[0].mxu0 %v8732
      %v9059 = vpop.f32.mrb[0].mxu0
      %v9060 = vadd.f32 %v8782, %v9059
      %v9061 = vpop.f32.mrb[0].mxu0
      %9062 = vmatprep.mubr.f32.mxu0 %v8854
      %9063 = vmatmul.mubr.f32.gmra.mrb[0].mxu0 %v8734
      %v9064 = vpop.f32.mrb[0].mxu0
      %v9065 = vadd.f32 %v8782, %v9064
      %v9066 = vpop.f32.mrb[0].mxu0
      %9067 = vmatprep.mubr.f32.mxu0 %v8857
      %9068 = vmatmul.mubr.f32.gmra.mrb[0].mxu0 %v8736
      %v9069 = vpop.f32.mrb[0].mxu0
      %v9070 = vadd.f32 %v8782, %v9069
      %v9071 = vpop.f32.mrb[0].mxu0
      %9072 = vmatprep.mubr.f32.mxu0 %v8860
      %9073 = vmatmul.mubr.f32.gmra.mrb[0].mxu0 %v8738
      %v9074 = vpop.f32.mrb[0].mxu0
      %v9075 = vadd.f32 %v8782, %v9074
      %v9076 = vpop.f32.mrb[0].mxu0
      %9077 = vmatprep.mubr.f32.mxu0 %v8863
      %9078 = vmatmul.mubr.f32.gmra.mrb[0].mxu0 %v8740
      %v9079 = vpop.f32.mrb[0].mxu0
      %v9080 = vadd.f32 %v8782, %v9079
      %v9081 = vpop.f32.mrb[0].mxu0
      %9082 = vmatprep.mubr.f32.mxu0 %v8866
      %9083 = vmatmul.mubr.f32.gmra.mrb[0].mxu0 %v8742
      %v9084 = vpop.f32.mrb[0].mxu0
      %v9085 = vadd.f32 %v8782, %v9084
      %v9086 = vpop.f32.mrb[0].mxu0
      %9087 = vmatprep.mubr.f32.mxu0 %v8869
      %9088 = vmatmul.mubr.f32.gmra.mrb[0].mxu0 %v8744
      %v9089 = vpop.f32.mrb[0].mxu0
      %v9090 = vadd.f32 %v8782, %v9089
      %v9091 = vpop.f32.mrb[0].mxu0
      %9092 = vmatprep.mubr.f32.mxu0 %v8872
      %9093 = vmatmul.mubr.f32.gmra.mrb[0].mxu0 %v8746
      %v9094 = vpop.f32.mrb[0].mxu0
      %v9095 = vadd.f32 %v8782, %v9094
      %v9096 = vpop.f32.mrb[0].mxu0
      %9097 = vmatprep.mubr.f32.mxu0 %v8875
      %9098 = vmatmul.mubr.f32.gmra.mrb[0].mxu0 %v8748
      %v9099 = vpop.f32.mrb[0].mxu0
      %v9100 = vadd.f32 %v8782, %v9099
      %v9101 = vpop.f32.mrb[0].mxu0
      %9102 = vmatprep.mubr.f32.mxu0 %v8878
      %9103 = vmatmul.mubr.f32.gmra.mrb[0].mxu0 %v8750
      %v9104 = vpop.f32.mrb[0].mxu0
      %v9105 = vadd.f32 %v8782, %v9104
      %v9106 = vpop.f32.mrb[0].mxu0
      %9107 = vdwg.mxu0
      %vm9108 = vcmp.ge.f32.partialorder %v8950, 0.0
      %vm9109 = vcmp.ge.f32.partialorder %v8955, 0.0
      %vm9110 = vcmp.ge.f32.partialorder %v8960, 0.0
      %vm9111 = vcmp.ge.f32.partialorder %v8965, 0.0
      %vm9112 = vcmp.ge.f32.partialorder %v8970, 0.0
      %vm9113 = vcmp.ge.f32.partialorder %v8975, 0.0
      %vm9114 = vcmp.ge.f32.partialorder %v8980, 0.0
      %vm9115 = vcmp.ge.f32.partialorder %v8985, 0.0
      %vm9116 = vcmp.ge.f32.partialorder %v8990, 0.0
      %vm9117 = vcmp.ge.f32.partialorder %v8995, 0.0
      %vm9118 = vcmp.ge.f32.partialorder %v9000, 0.0
      %vm9119 = vcmp.ge.f32.partialorder %v9005, 0.0
      %vm9120 = vcmp.ge.f32.partialorder %v9010, 0.0
      %vm9121 = vcmp.ge.f32.partialorder %v9015, 0.0
      %vm9122 = vcmp.ge.f32.partialorder %v9020, 0.0
      %vm9123 = vcmp.ge.f32.partialorder %v9025, 0.0
      %vm9124 = vcmp.ge.f32.partialorder %v9030, 0.0
      %vm9125 = vcmp.ge.f32.partialorder %v9035, 0.0
      %vm9126 = vcmp.ge.f32.partialorder %v9040, 0.0
      %vm9127 = vcmp.ge.f32.partialorder %v9045, 0.0
      %vm9128 = vcmp.ge.f32.partialorder %v9050, 0.0
      %vm9129 = vcmp.ge.f32.partialorder %v9055, 0.0
      %vm9130 = vcmp.ge.f32.partialorder %v9060, 0.0
      %vm9131 = vcmp.ge.f32.partialorder %v9065, 0.0
      %vm9132 = vcmp.ge.f32.partialorder %v9070, 0.0
      %vm9133 = vcmp.ge.f32.partialorder %v9075, 0.0
      %vm9134 = vcmp.ge.f32.partialorder %v9080, 0.0
      %vm9135 = vcmp.ge.f32.partialorder %v9085, 0.0
      %vm9136 = vcmp.ge.f32.partialorder %v9090, 0.0
      %vm9137 = vcmp.ge.f32.partialorder %v9095, 0.0
      %vm9138 = vcmp.ge.f32.partialorder %v9100, 0.0
      %vm9139 = vcmp.ge.f32.partialorder %v9105, 0.0
      %v9140 = vmul.f32 %v8950, 0.2
      %v9141 = vmul.f32 %v8955, 0.2
      %v9142 = vmul.f32 %v8960, 0.2
      %v9143 = vmul.f32 %v8965, 0.2
      %v9144 = vmul.f32 %v8970, 0.2
      %v9145 = vmul.f32 %v8975, 0.2
      %v9146 = vmul.f32 %v8980, 0.2
      %v9147 = vmul.f32 %v8985, 0.2
      %v9148 = vmul.f32 %v8990, 0.2
      %v9149 = vmul.f32 %v8995, 0.2
      %v9150 = vmul.f32 %v9000, 0.2
      %v9151 = vmul.f32 %v9005, 0.2
      %v9152 = vmul.f32 %v9010, 0.2
      %v9153 = vmul.f32 %v9015, 0.2
      %v9154 = vmul.f32 %v9020, 0.2
      %v9155 = vmul.f32 %v9025, 0.2
      %v9156 = vmul.f32 %v9030, 0.2
      %v9157 = vmul.f32 %v9035, 0.2
      %v9158 = vmul.f32 %v9040, 0.2
      %v9159 = vmul.f32 %v9045, 0.2
      %v9160 = vmul.f32 %v9050, 0.2
      %v9161 = vmul.f32 %v9055, 0.2
      %v9162 = vmul.f32 %v9060, 0.2
      %v9163 = vmul.f32 %v9065, 0.2
      %v9164 = vmul.f32 %v9070, 0.2
      %v9165 = vmul.f32 %v9075, 0.2
      %v9166 = vmul.f32 %v9080, 0.2
      %v9167 = vmul.f32 %v9085, 0.2
      %v9168 = vmul.f32 %v9090, 0.2
      %v9169 = vmul.f32 %v9095, 0.2
      %v9170 = vmul.f32 %v9100, 0.2
      %v9171 = vmul.f32 %v9105, 0.2
      %v9172 = vsel %vm9108, %v8950, %v9140
      %v9173 = vsel %vm9109, %v8955, %v9141
      %v9174 = vsel %vm9110, %v8960, %v9142
      %v9175 = vsel %vm9111, %v8965, %v9143
      %v9176 = vsel %vm9112, %v8970, %v9144
      %v9177 = vsel %vm9113, %v8975, %v9145
      %v9178 = vsel %vm9114, %v8980, %v9146
      %v9179 = vsel %vm9115, %v8985, %v9147
      %v9180 = vsel %vm9116, %v8990, %v9148
      %v9181 = vsel %vm9117, %v8995, %v9149
      %v9182 = vsel %vm9118, %v9000, %v9150
      %v9183 = vsel %vm9119, %v9005, %v9151
      %v9184 = vsel %vm9120, %v9010, %v9152
      %v9185 = vsel %vm9121, %v9015, %v9153
      %v9186 = vsel %vm9122, %v9020, %v9154
      %v9187 = vsel %vm9123, %v9025, %v9155
      %v9188 = vsel %vm9124, %v9030, %v9156
      %v9189 = vsel %vm9125, %v9035, %v9157
      %v9190 = vsel %vm9126, %v9040, %v9158
      %v9191 = vsel %vm9127, %v9045, %v9159
      %v9192 = vsel %vm9128, %v9050, %v9160
      %v9193 = vsel %vm9129, %v9055, %v9161
      %v9194 = vsel %vm9130, %v9060, %v9162
      %v9195 = vsel %vm9131, %v9065, %v9163
      %v9196 = vsel %vm9132, %v9070, %v9164
      %v9197 = vsel %vm9133, %v9075, %v9165
      %v9198 = vsel %vm9134, %v9080, %v9166
      %v9199 = vsel %vm9135, %v9085, %v9167
      %v9200 = vsel %vm9136, %v9090, %v9168
      %v9201 = vsel %vm9137, %v9095, %v9169
      %v9202 = vsel %vm9138, %v9100, %v9170
      %v9203 = vsel %vm9139, %v9105, %v9171
      %9204 = vst.msk [vmem:[%s324 + $0x1] sm:$0xff] %vm171, %v9172
      %9205 = vst.msk [vmem:[%s324 + $0x9] sm:$0xff] %vm171, %v9173
      %9206 = vst.msk [vmem:[%s324 + $0x19] sm:$0xff] %vm171, %v9174
      %9207 = vst.msk [vmem:[%s324 + $0x21] sm:$0xff] %vm171, %v9175
      %9208 = vst.msk [vmem:[%s324 + $0x31] sm:$0xff] %vm171, %v9176
      %9209 = vst.msk [vmem:[%s324 + $0x39] sm:$0xff] %vm171, %v9177
      %9210 = vst.msk [vmem:[%s324 + $0x49] sm:$0xff] %vm171, %v9178
      %9211 = vst.msk [vmem:[%s324 + $0x51] sm:$0xff] %vm171, %v9179
      %9212 = vst.msk [vmem:[%s324 + $0x61] sm:$0xff] %vm171, %v9180
      %9213 = vst.msk [vmem:[%s324 + $0x69] sm:$0xff] %vm171, %v9181
      %9214 = vst.msk [vmem:[%s324 + $0x79] sm:$0xff] %vm171, %v9182
      %9215 = vst.msk [vmem:[%s324 + $0x81] sm:$0xff] %vm171, %v9183
      %9216 = vst.msk [vmem:[%s324 + $0x91] sm:$0xff] %vm171, %v9184
      %9217 = vst.msk [vmem:[%s324 + $0x99] sm:$0xff] %vm171, %v9185
      %9218 = vst.msk [vmem:[%s324 + $0xa9] sm:$0xff] %vm171, %v9186
      %9219 = vst.msk [vmem:[%s324 + $0xb1] sm:$0xff] %vm171, %v9187
      %9220 = vst.msk [vmem:[%s324 + $0xc1] sm:$0xff] %vm171, %v9188
      %9221 = vst.msk [vmem:[%s324 + $0xc9] sm:$0xff] %vm171, %v9189
      %9222 = vst.msk [vmem:[%s324 + $0xd9] sm:$0xff] %vm171, %v9190
      %9223 = vst.msk [vmem:[%s324 + $0xe1] sm:$0xff] %vm171, %v9191
      %9224 = vst.msk [vmem:[%s324 + $0xf1] sm:$0xff] %vm171, %v9192
      %9225 = vst.msk [vmem:[%s324 + $0xf9] sm:$0xff] %vm171, %v9193
      %9226 = vst.msk [vmem:[%s324 + $0x109] sm:$0xff] %vm171, %v9194
      %9227 = vst.msk [vmem:[%s324 + $0x111] sm:$0xff] %vm171, %v9195
      %9228 = vst.msk [vmem:[%s324 + $0x121] sm:$0xff] %vm171, %v9196
      %9229 = vst.msk [vmem:[%s324 + $0x129] sm:$0xff] %vm171, %v9197
      %9230 = vst.msk [vmem:[%s324 + $0x139] sm:$0xff] %vm171, %v9198
      %9231 = vst.msk [vmem:[%s324 + $0x141] sm:$0xff] %vm171, %v9199
      %9232 = vst.msk [vmem:[%s324 + $0x151] sm:$0xff] %vm171, %v9200
      %9233 = vst.msk [vmem:[%s324 + $0x159] sm:$0xff] %vm171, %v9201
      %9234 = vst.msk [vmem:[%s324 + $0x169] sm:$0xff] %vm171, %v9202
      %9235 = vst.msk [vmem:[%s324 + $0x171] sm:$0xff] %vm171, %v9203
      %v9236 = vld [vmem:[#allocation2] sm:$0xff]
      %v9237 = vld [vmem:[#allocation2 + $0x8] sm:$0xff]
      %v9238 = vld [vmem:[#allocation2 + $0x18] sm:$0xff]
      %v9239 = vld [vmem:[#allocation2 + $0x20] sm:$0xff]
      %v9240 = vld [vmem:[#allocation2 + $0x30] sm:$0xff]
      %v9241 = vld [vmem:[#allocation2 + $0x38] sm:$0xff]
      %v9242 = vld [vmem:[#allocation2 + $0x48] sm:$0xff]
      %v9243 = vld [vmem:[#allocation2 + $0x50] sm:$0xff]
      %v9244 = vld [vmem:[#allocation2 + $0x60] sm:$0xff]
      %v9245 = vld [vmem:[#allocation2 + $0x68] sm:$0xff]
      %v9246 = vld [vmem:[#allocation2 + $0x78] sm:$0xff]
      %v9247 = vld [vmem:[#allocation2 + $0x80] sm:$0xff]
      %v9248 = vld [vmem:[#allocation2 + $0x90] sm:$0xff]
      %v9249 = vld [vmem:[#allocation2 + $0x98] sm:$0xff]
      %v9250 = vld [vmem:[#allocation2 + $0xa8] sm:$0xff]
      %v9251 = vld [vmem:[#allocation2 + $0xb0] sm:$0xff]
      %v9252 = vld [vmem:[#allocation2 + $0xc0] sm:$0xff]
      %v9253 = vld [vmem:[#allocation2 + $0xc8] sm:$0xff]
      %v9254 = vld [vmem:[#allocation2 + $0xd8] sm:$0xff]
      %v9255 = vld [vmem:[#allocation2 + $0xe0] sm:$0xff]
      %v9256 = vld [vmem:[#allocation2 + $0xf0] sm:$0xff]
      %v9257 = vld [vmem:[#allocation2 + $0xf8] sm:$0xff]
      %v9258 = vld [vmem:[#allocation2 + $0x108] sm:$0xff]
      %v9259 = vld [vmem:[#allocation2 + $0x110] sm:$0xff]
      %v9260 = vld [vmem:[#allocation2 + $0x120] sm:$0xff]
      %v9261 = vld [vmem:[#allocation2 + $0x128] sm:$0xff]
      %v9262 = vld [vmem:[#allocation2 + $0x138] sm:$0xff]
      %v9263 = vld [vmem:[#allocation2 + $0x140] sm:$0xff]
      %v9264 = vld [vmem:[#allocation2 + $0x150] sm:$0xff]
      %v9265 = vld [vmem:[#allocation2 + $0x158] sm:$0xff]
      %v9266 = vld [vmem:[#allocation2 + $0x168] sm:$0xff]
      %v9267 = vld [vmem:[#allocation2 + $0x170] sm:$0xff]
      %9300 = vrot.lane.b32.xlu0 %v9236, 16
      %v9301 = vpop.permute.xlu0 %9300
      %9302 = vrot.lane.b32.xlu0 %v9237, 16
      %v9303 = vpop.permute.xlu0 %9302
      %9304 = vrot.lane.b32.xlu0 %v9238, 16
      %v9305 = vpop.permute.xlu0 %9304
      %9306 = vrot.lane.b32.xlu0 %v9239, 16
      %v9307 = vpop.permute.xlu0 %9306
      %9308 = vrot.lane.b32.xlu0 %v9240, 16
      %v9309 = vpop.permute.xlu0 %9308
      %9310 = vrot.lane.b32.xlu0 %v9241, 16
      %v9311 = vpop.permute.xlu0 %9310
      %9312 = vrot.lane.b32.xlu0 %v9242, 16
      %v9313 = vpop.permute.xlu0 %9312
      %9314 = vrot.lane.b32.xlu0 %v9243, 16
      %v9315 = vpop.permute.xlu0 %9314
      %9316 = vrot.lane.b32.xlu0 %v9244, 16
      %v9317 = vpop.permute.xlu0 %9316
      %9318 = vrot.lane.b32.xlu0 %v9245, 16
      %v9319 = vpop.permute.xlu0 %9318
      %9320 = vrot.lane.b32.xlu0 %v9246, 16
      %v9321 = vpop.permute.xlu0 %9320
      %9322 = vrot.lane.b32.xlu0 %v9247, 16
      %v9323 = vpop.permute.xlu0 %9322
      %9324 = vrot.lane.b32.xlu0 %v9248, 16
      %v9325 = vpop.permute.xlu0 %9324
      %9326 = vrot.lane.b32.xlu0 %v9249, 16
      %v9327 = vpop.permute.xlu0 %9326
      %9328 = vrot.lane.b32.xlu0 %v9250, 16
      %v9329 = vpop.permute.xlu0 %9328
      %9330 = vrot.lane.b32.xlu0 %v9251, 16
      %v9331 = vpop.permute.xlu0 %9330
      %9332 = vrot.lane.b32.xlu0 %v9252, 16
      %v9333 = vpop.permute.xlu0 %9332
      %9334 = vrot.lane.b32.xlu0 %v9253, 16
      %v9335 = vpop.permute.xlu0 %9334
      %9336 = vrot.lane.b32.xlu0 %v9254, 16
      %v9337 = vpop.permute.xlu0 %9336
      %9338 = vrot.lane.b32.xlu0 %v9255, 16
      %v9339 = vpop.permute.xlu0 %9338
      %9340 = vrot.lane.b32.xlu0 %v9256, 16
      %v9341 = vpop.permute.xlu0 %9340
      %9342 = vrot.lane.b32.xlu0 %v9257, 16
      %v9343 = vpop.permute.xlu0 %9342
      %9344 = vrot.lane.b32.xlu0 %v9258, 16
      %v9345 = vpop.permute.xlu0 %9344
      %9346 = vrot.lane.b32.xlu0 %v9259, 16
      %v9347 = vpop.permute.xlu0 %9346
      %9348 = vrot.lane.b32.xlu0 %v9260, 16
      %v9349 = vpop.permute.xlu0 %9348
      %9350 = vrot.lane.b32.xlu0 %v9261, 16
      %v9351 = vpop.permute.xlu0 %9350
      %9352 = vrot.lane.b32.xlu0 %v9262, 16
      %v9353 = vpop.permute.xlu0 %9352
      %9354 = vrot.lane.b32.xlu0 %v9263, 16
      %v9355 = vpop.permute.xlu0 %9354
      %9356 = vrot.lane.b32.xlu0 %v9264, 16
      %v9357 = vpop.permute.xlu0 %9356
      %9358 = vrot.lane.b32.xlu0 %v9265, 16
      %v9359 = vpop.permute.xlu0 %9358
      %9360 = vrot.lane.b32.xlu0 %v9266, 16
      %v9361 = vpop.permute.xlu0 %9360
      %9362 = vrot.lane.b32.xlu0 %v9267, 16
      %v9363 = vpop.permute.xlu0 %9362
      %9396 = vst.msk [vmem:[#allocation3 + $0x8] sm:$0xff] %vm1160, %v9301
      %9397 = vst.msk [vmem:[#allocation3 + $0x18] sm:$0xff] %vm1160, %v9303
      %9398 = vst.msk [vmem:[#allocation3 + $0x28] sm:$0xff] %vm1160, %v9305
      %9399 = vst.msk [vmem:[#allocation3 + $0x38] sm:$0xff] %vm1160, %v9307
      %9400 = vst.msk [vmem:[#allocation3 + $0x48] sm:$0xff] %vm1160, %v9309
      %9401 = vst.msk [vmem:[#allocation3 + $0x58] sm:$0xff] %vm1160, %v9311
      %9402 = vst.msk [vmem:[#allocation3 + $0x68] sm:$0xff] %vm1160, %v9313
      %9403 = vst.msk [vmem:[#allocation3 + $0x78] sm:$0xff] %vm1160, %v9315
      %9404 = vst.msk [vmem:[#allocation3 + $0x88] sm:$0xff] %vm1160, %v9317
      %9405 = vst.msk [vmem:[#allocation3 + $0x98] sm:$0xff] %vm1160, %v9319
      %9406 = vst.msk [vmem:[#allocation3 + $0xa8] sm:$0xff] %vm1160, %v9321
      %9407 = vst.msk [vmem:[#allocation3 + $0xb8] sm:$0xff] %vm1160, %v9323
      %9408 = vst.msk [vmem:[#allocation3 + $0xc8] sm:$0xff] %vm1160, %v9325
      %9409 = vst.msk [vmem:[#allocation3 + $0xd8] sm:$0xff] %vm1160, %v9327
      %9410 = vst.msk [vmem:[#allocation3 + $0xe8] sm:$0xff] %vm1160, %v9329
      %9411 = vst.msk [vmem:[#allocation3 + $0xf8] sm:$0xff] %vm1160, %v9331
      %9412 = vst.msk [vmem:[#allocation3 + $0x108] sm:$0xff] %vm1160, %v9333
      %9413 = vst.msk [vmem:[#allocation3 + $0x118] sm:$0xff] %vm1160, %v9335
      %9414 = vst.msk [vmem:[#allocation3 + $0x128] sm:$0xff] %vm1160, %v9337
      %9415 = vst.msk [vmem:[#allocation3 + $0x138] sm:$0xff] %vm1160, %v9339
      %9416 = vst.msk [vmem:[#allocation3 + $0x148] sm:$0xff] %vm1160, %v9341
      %9417 = vst.msk [vmem:[#allocation3 + $0x158] sm:$0xff] %vm1160, %v9343
      %9418 = vst.msk [vmem:[#allocation3 + $0x168] sm:$0xff] %vm1160, %v9345
      %9419 = vst.msk [vmem:[#allocation3 + $0x178] sm:$0xff] %vm1160, %v9347
      %9420 = vst.msk [vmem:[#allocation3 + $0x188] sm:$0xff] %vm1160, %v9349
      %9421 = vst.msk [vmem:[#allocation3 + $0x198] sm:$0xff] %vm1160, %v9351
      %9422 = vst.msk [vmem:[#allocation3 + $0x1a8] sm:$0xff] %vm1160, %v9353
      %9423 = vst.msk [vmem:[#allocation3 + $0x1b8] sm:$0xff] %vm1160, %v9355
      %9424 = vst.msk [vmem:[#allocation3 + $0x1c8] sm:$0xff] %vm1160, %v9357
      %9425 = vst.msk [vmem:[#allocation3 + $0x1d8] sm:$0xff] %vm1160, %v9359
      %9426 = vst.msk [vmem:[#allocation3 + $0x1e8] sm:$0xff] %vm1160, %v9361
      %9427 = vst.msk [vmem:[#allocation3 + $0x1f8] sm:$0xff] %vm1160, %v9363
      %v9428 = vld [vmem:[#allocation2 + $0x1] sm:$0xff]
      %v9429 = vld [vmem:[#allocation2 + $0x9] sm:$0xff]
      %v9430 = vld [vmem:[#allocation2 + $0x19] sm:$0xff]
      %v9431 = vld [vmem:[#allocation2 + $0x21] sm:$0xff]
      %v9432 = vld [vmem:[#allocation2 + $0x31] sm:$0xff]
      %v9433 = vld [vmem:[#allocation2 + $0x39] sm:$0xff]
      %v9434 = vld [vmem:[#allocation2 + $0x49] sm:$0xff]
      %v9435 = vld [vmem:[#allocation2 + $0x51] sm:$0xff]
      %v9436 = vld [vmem:[#allocation2 + $0x61] sm:$0xff]
      %v9437 = vld [vmem:[#allocation2 + $0x69] sm:$0xff]
      %v9438 = vld [vmem:[#allocation2 + $0x79] sm:$0xff]
      %v9439 = vld [vmem:[#allocation2 + $0x81] sm:$0xff]
      %v9440 = vld [vmem:[#allocation2 + $0x91] sm:$0xff]
      %v9441 = vld [vmem:[#allocation2 + $0x99] sm:$0xff]
      %v9442 = vld [vmem:[#allocation2 + $0xa9] sm:$0xff]
      %v9443 = vld [vmem:[#allocation2 + $0xb1] sm:$0xff]
      %v9444 = vld [vmem:[#allocation2 + $0xc1] sm:$0xff]
      %v9445 = vld [vmem:[#allocation2 + $0xc9] sm:$0xff]
      %v9446 = vld [vmem:[#allocation2 + $0xd9] sm:$0xff]
      %v9447 = vld [vmem:[#allocation2 + $0xe1] sm:$0xff]
      %v9448 = vld [vmem:[#allocation2 + $0xf1] sm:$0xff]
      %v9449 = vld [vmem:[#allocation2 + $0xf9] sm:$0xff]
      %v9450 = vld [vmem:[#allocation2 + $0x109] sm:$0xff]
      %v9451 = vld [vmem:[#allocation2 + $0x111] sm:$0xff]
      %v9452 = vld [vmem:[#allocation2 + $0x121] sm:$0xff]
      %v9453 = vld [vmem:[#allocation2 + $0x129] sm:$0xff]
      %v9454 = vld [vmem:[#allocation2 + $0x139] sm:$0xff]
      %v9455 = vld [vmem:[#allocation2 + $0x141] sm:$0xff]
      %v9456 = vld [vmem:[#allocation2 + $0x151] sm:$0xff]
      %v9457 = vld [vmem:[#allocation2 + $0x159] sm:$0xff]
      %v9458 = vld [vmem:[#allocation2 + $0x169] sm:$0xff]
      %v9459 = vld [vmem:[#allocation2 + $0x171] sm:$0xff]
      %9492 = vrot.lane.b32.xlu0 %v9428, 20
      %v9493 = vpop.permute.xlu0 %9492
      %9494 = vrot.lane.b32.xlu0 %v9429, 20
      %v9495 = vpop.permute.xlu0 %9494
      %9496 = vrot.lane.b32.xlu0 %v9430, 20
      %v9497 = vpop.permute.xlu0 %9496
      %9498 = vrot.lane.b32.xlu0 %v9431, 20
      %v9499 = vpop.permute.xlu0 %9498
      %9500 = vrot.lane.b32.xlu0 %v9432, 20
      %v9501 = vpop.permute.xlu0 %9500
      %9502 = vrot.lane.b32.xlu0 %v9433, 20
      %v9503 = vpop.permute.xlu0 %9502
      %9504 = vrot.lane.b32.xlu0 %v9434, 20
      %v9505 = vpop.permute.xlu0 %9504
      %9506 = vrot.lane.b32.xlu0 %v9435, 20
      %v9507 = vpop.permute.xlu0 %9506
      %9508 = vrot.lane.b32.xlu0 %v9436, 20
      %v9509 = vpop.permute.xlu0 %9508
      %9510 = vrot.lane.b32.xlu0 %v9437, 20
      %v9511 = vpop.permute.xlu0 %9510
      %9512 = vrot.lane.b32.xlu0 %v9438, 20
      %v9513 = vpop.permute.xlu0 %9512
      %9514 = vrot.lane.b32.xlu0 %v9439, 20
      %v9515 = vpop.permute.xlu0 %9514
      %9516 = vrot.lane.b32.xlu0 %v9440, 20
      %v9517 = vpop.permute.xlu0 %9516
      %9518 = vrot.lane.b32.xlu0 %v9441, 20
      %v9519 = vpop.permute.xlu0 %9518
      %9520 = vrot.lane.b32.xlu0 %v9442, 20
      %v9521 = vpop.permute.xlu0 %9520
      %9522 = vrot.lane.b32.xlu0 %v9443, 20
      %v9523 = vpop.permute.xlu0 %9522
      %9524 = vrot.lane.b32.xlu0 %v9444, 20
      %v9525 = vpop.permute.xlu0 %9524
      %9526 = vrot.lane.b32.xlu0 %v9445, 20
      %v9527 = vpop.permute.xlu0 %9526
      %9528 = vrot.lane.b32.xlu0 %v9446, 20
      %v9529 = vpop.permute.xlu0 %9528
      %9530 = vrot.lane.b32.xlu0 %v9447, 20
      %v9531 = vpop.permute.xlu0 %9530
      %9532 = vrot.lane.b32.xlu0 %v9448, 20
      %v9533 = vpop.permute.xlu0 %9532
      %9534 = vrot.lane.b32.xlu0 %v9449, 20
      %v9535 = vpop.permute.xlu0 %9534
      %9536 = vrot.lane.b32.xlu0 %v9450, 20
      %v9537 = vpop.permute.xlu0 %9536
      %9538 = vrot.lane.b32.xlu0 %v9451, 20
      %v9539 = vpop.permute.xlu0 %9538
      %9540 = vrot.lane.b32.xlu0 %v9452, 20
      %v9541 = vpop.permute.xlu0 %9540
      %9542 = vrot.lane.b32.xlu0 %v9453, 20
      %v9543 = vpop.permute.xlu0 %9542
      %9544 = vrot.lane.b32.xlu0 %v9454, 20
      %v9545 = vpop.permute.xlu0 %9544
      %9546 = vrot.lane.b32.xlu0 %v9455, 20
      %v9547 = vpop.permute.xlu0 %9546
      %9548 = vrot.lane.b32.xlu0 %v9456, 20
      %v9549 = vpop.permute.xlu0 %9548
      %9550 = vrot.lane.b32.xlu0 %v9457, 20
      %v9551 = vpop.permute.xlu0 %9550
      %9552 = vrot.lane.b32.xlu0 %v9458, 20
      %v9553 = vpop.permute.xlu0 %9552
      %9554 = vrot.lane.b32.xlu0 %v9459, 20
      %v9555 = vpop.permute.xlu0 %9554
      %9588 = vst.msk [vmem:[#allocation3 + $0x8] sm:$0xff] %vm1353, %v9493
      %9589 = vst.msk [vmem:[#allocation3 + $0x18] sm:$0xff] %vm1353, %v9495
      %9590 = vst.msk [vmem:[#allocation3 + $0x28] sm:$0xff] %vm1353, %v9497
      %9591 = vst.msk [vmem:[#allocation3 + $0x38] sm:$0xff] %vm1353, %v9499
      %9592 = vst.msk [vmem:[#allocation3 + $0x48] sm:$0xff] %vm1353, %v9501
      %9593 = vst.msk [vmem:[#allocation3 + $0x58] sm:$0xff] %vm1353, %v9503
      %9594 = vst.msk [vmem:[#allocation3 + $0x68] sm:$0xff] %vm1353, %v9505
      %9595 = vst.msk [vmem:[#allocation3 + $0x78] sm:$0xff] %vm1353, %v9507
      %9596 = vst.msk [vmem:[#allocation3 + $0x88] sm:$0xff] %vm1353, %v9509
      %9597 = vst.msk [vmem:[#allocation3 + $0x98] sm:$0xff] %vm1353, %v9511
      %9598 = vst.msk [vmem:[#allocation3 + $0xa8] sm:$0xff] %vm1353, %v9513
      %9599 = vst.msk [vmem:[#allocation3 + $0xb8] sm:$0xff] %vm1353, %v9515
      %9600 = vst.msk [vmem:[#allocation3 + $0xc8] sm:$0xff] %vm1353, %v9517
      %9601 = vst.msk [vmem:[#allocation3 + $0xd8] sm:$0xff] %vm1353, %v9519
      %9602 = vst.msk [vmem:[#allocation3 + $0xe8] sm:$0xff] %vm1353, %v9521
      %9603 = vst.msk [vmem:[#allocation3 + $0xf8] sm:$0xff] %vm1353, %v9523
      %9604 = vst.msk [vmem:[#allocation3 + $0x108] sm:$0xff] %vm1353, %v9525
      %9605 = vst.msk [vmem:[#allocation3 + $0x118] sm:$0xff] %vm1353, %v9527
      %9606 = vst.msk [vmem:[#allocation3 + $0x128] sm:$0xff] %vm1353, %v9529
      %9607 = vst.msk [vmem:[#allocation3 + $0x138] sm:$0xff] %vm1353, %v9531
      %9608 = vst.msk [vmem:[#allocation3 + $0x148] sm:$0xff] %vm1353, %v9533
      %9609 = vst.msk [vmem:[#allocation3 + $0x158] sm:$0xff] %vm1353, %v9535
      %9610 = vst.msk [vmem:[#allocation3 + $0x168] sm:$0xff] %vm1353, %v9537
      %9611 = vst.msk [vmem:[#allocation3 + $0x178] sm:$0xff] %vm1353, %v9539
      %9612 = vst.msk [vmem:[#allocation3 + $0x188] sm:$0xff] %vm1353, %v9541
      %9613 = vst.msk [vmem:[#allocation3 + $0x198] sm:$0xff] %vm1353, %v9543
      %9614 = vst.msk [vmem:[#allocation3 + $0x1a8] sm:$0xff] %vm1353, %v9545
      %9615 = vst.msk [vmem:[#allocation3 + $0x1b8] sm:$0xff] %vm1353, %v9547
      %9616 = vst.msk [vmem:[#allocation3 + $0x1c8] sm:$0xff] %vm1353, %v9549
      %9617 = vst.msk [vmem:[#allocation3 + $0x1d8] sm:$0xff] %vm1353, %v9551
      %9618 = vst.msk [vmem:[#allocation3 + $0x1e8] sm:$0xff] %vm1353, %v9553
      %9619 = vst.msk [vmem:[#allocation3 + $0x1f8] sm:$0xff] %vm1353, %v9555
      %v9620 = vld [vmem:[#allocation2 + $0x2] sm:$0xff]
      %v9621 = vld [vmem:[#allocation2 + $0xa] sm:$0xff]
      %v9622 = vld [vmem:[#allocation2 + $0x1a] sm:$0xff]
      %v9623 = vld [vmem:[#allocation2 + $0x22] sm:$0xff]
      %v9624 = vld [vmem:[#allocation2 + $0x32] sm:$0xff]
      %v9625 = vld [vmem:[#allocation2 + $0x3a] sm:$0xff]
      %v9626 = vld [vmem:[#allocation2 + $0x4a] sm:$0xff]
      %v9627 = vld [vmem:[#allocation2 + $0x52] sm:$0xff]
      %v9628 = vld [vmem:[#allocation2 + $0x62] sm:$0xff]
      %v9629 = vld [vmem:[#allocation2 + $0x6a] sm:$0xff]
      %v9630 = vld [vmem:[#allocation2 + $0x7a] sm:$0xff]
      %v9631 = vld [vmem:[#allocation2 + $0x82] sm:$0xff]
      %v9632 = vld [vmem:[#allocation2 + $0x92] sm:$0xff]
      %v9633 = vld [vmem:[#allocation2 + $0x9a] sm:$0xff]
      %v9634 = vld [vmem:[#allocation2 + $0xaa] sm:$0xff]
      %v9635 = vld [vmem:[#allocation2 + $0xb2] sm:$0xff]
      %v9636 = vld [vmem:[#allocation2 + $0xc2] sm:$0xff]
      %v9637 = vld [vmem:[#allocation2 + $0xca] sm:$0xff]
      %v9638 = vld [vmem:[#allocation2 + $0xda] sm:$0xff]
      %v9639 = vld [vmem:[#allocation2 + $0xe2] sm:$0xff]
      %v9640 = vld [vmem:[#allocation2 + $0xf2] sm:$0xff]
      %v9641 = vld [vmem:[#allocation2 + $0xfa] sm:$0xff]
      %v9642 = vld [vmem:[#allocation2 + $0x10a] sm:$0xff]
      %v9643 = vld [vmem:[#allocation2 + $0x112] sm:$0xff]
      %v9644 = vld [vmem:[#allocation2 + $0x122] sm:$0xff]
      %v9645 = vld [vmem:[#allocation2 + $0x12a] sm:$0xff]
      %v9646 = vld [vmem:[#allocation2 + $0x13a] sm:$0xff]
      %v9647 = vld [vmem:[#allocation2 + $0x142] sm:$0xff]
      %v9648 = vld [vmem:[#allocation2 + $0x152] sm:$0xff]
      %v9649 = vld [vmem:[#allocation2 + $0x15a] sm:$0xff]
      %v9650 = vld [vmem:[#allocation2 + $0x16a] sm:$0xff]
      %v9651 = vld [vmem:[#allocation2 + $0x172] sm:$0xff]
      %9684 = vrot.lane.b32.xlu0 %v9620, 24
      %v9685 = vpop.permute.xlu0 %9684
      %9686 = vrot.lane.b32.xlu0 %v9621, 24
      %v9687 = vpop.permute.xlu0 %9686
      %9688 = vrot.lane.b32.xlu0 %v9622, 24
      %v9689 = vpop.permute.xlu0 %9688
      %9690 = vrot.lane.b32.xlu0 %v9623, 24
      %v9691 = vpop.permute.xlu0 %9690
      %9692 = vrot.lane.b32.xlu0 %v9624, 24
      %v9693 = vpop.permute.xlu0 %9692
      %9694 = vrot.lane.b32.xlu0 %v9625, 24
      %v9695 = vpop.permute.xlu0 %9694
      %9696 = vrot.lane.b32.xlu0 %v9626, 24
      %v9697 = vpop.permute.xlu0 %9696
      %9698 = vrot.lane.b32.xlu0 %v9627, 24
      %v9699 = vpop.permute.xlu0 %9698
      %9700 = vrot.lane.b32.xlu0 %v9628, 24
      %v9701 = vpop.permute.xlu0 %9700
      %9702 = vrot.lane.b32.xlu0 %v9629, 24
      %v9703 = vpop.permute.xlu0 %9702
      %9704 = vrot.lane.b32.xlu0 %v9630, 24
      %v9705 = vpop.permute.xlu0 %9704
      %9706 = vrot.lane.b32.xlu0 %v9631, 24
      %v9707 = vpop.permute.xlu0 %9706
      %9708 = vrot.lane.b32.xlu0 %v9632, 24
      %v9709 = vpop.permute.xlu0 %9708
      %9710 = vrot.lane.b32.xlu0 %v9633, 24
      %v9711 = vpop.permute.xlu0 %9710
      %9712 = vrot.lane.b32.xlu0 %v9634, 24
      %v9713 = vpop.permute.xlu0 %9712
      %9714 = vrot.lane.b32.xlu0 %v9635, 24
      %v9715 = vpop.permute.xlu0 %9714
      %9716 = vrot.lane.b32.xlu0 %v9636, 24
      %v9717 = vpop.permute.xlu0 %9716
      %9718 = vrot.lane.b32.xlu0 %v9637, 24
      %v9719 = vpop.permute.xlu0 %9718
      %9720 = vrot.lane.b32.xlu0 %v9638, 24
      %v9721 = vpop.permute.xlu0 %9720
      %9722 = vrot.lane.b32.xlu0 %v9639, 24
      %v9723 = vpop.permute.xlu0 %9722
      %9724 = vrot.lane.b32.xlu0 %v9640, 24
      %v9725 = vpop.permute.xlu0 %9724
      %9726 = vrot.lane.b32.xlu0 %v9641, 24
      %v9727 = vpop.permute.xlu0 %9726
      %9728 = vrot.lane.b32.xlu0 %v9642, 24
      %v9729 = vpop.permute.xlu0 %9728
      %9730 = vrot.lane.b32.xlu0 %v9643, 24
      %v9731 = vpop.permute.xlu0 %9730
      %9732 = vrot.lane.b32.xlu0 %v9644, 24
      %v9733 = vpop.permute.xlu0 %9732
      %9734 = vrot.lane.b32.xlu0 %v9645, 24
      %v9735 = vpop.permute.xlu0 %9734
      %9736 = vrot.lane.b32.xlu0 %v9646, 24
      %v9737 = vpop.permute.xlu0 %9736
      %9738 = vrot.lane.b32.xlu0 %v9647, 24
      %v9739 = vpop.permute.xlu0 %9738
      %9740 = vrot.lane.b32.xlu0 %v9648, 24
      %v9741 = vpop.permute.xlu0 %9740
      %9742 = vrot.lane.b32.xlu0 %v9649, 24
      %v9743 = vpop.permute.xlu0 %9742
      %9744 = vrot.lane.b32.xlu0 %v9650, 24
      %v9745 = vpop.permute.xlu0 %9744
      %9746 = vrot.lane.b32.xlu0 %v9651, 24
      %v9747 = vpop.permute.xlu0 %9746
      %9780 = vst.msk [vmem:[#allocation3 + $0x8] sm:$0xff] %vm1547, %v9685
      %9781 = vst.msk [vmem:[#allocation3 + $0x18] sm:$0xff] %vm1547, %v9687
      %9782 = vst.msk [vmem:[#allocation3 + $0x28] sm:$0xff] %vm1547, %v9689
      %9783 = vst.msk [vmem:[#allocation3 + $0x38] sm:$0xff] %vm1547, %v9691
      %9784 = vst.msk [vmem:[#allocation3 + $0x48] sm:$0xff] %vm1547, %v9693
      %9785 = vst.msk [vmem:[#allocation3 + $0x58] sm:$0xff] %vm1547, %v9695
      %9786 = vst.msk [vmem:[#allocation3 + $0x68] sm:$0xff] %vm1547, %v9697
      %9787 = vst.msk [vmem:[#allocation3 + $0x78] sm:$0xff] %vm1547, %v9699
      %9788 = vst.msk [vmem:[#allocation3 + $0x88] sm:$0xff] %vm1547, %v9701
      %9789 = vst.msk [vmem:[#allocation3 + $0x98] sm:$0xff] %vm1547, %v9703
      %9790 = vst.msk [vmem:[#allocation3 + $0xa8] sm:$0xff] %vm1547, %v9705
      %9791 = vst.msk [vmem:[#allocation3 + $0xb8] sm:$0xff] %vm1547, %v9707
      %9792 = vst.msk [vmem:[#allocation3 + $0xc8] sm:$0xff] %vm1547, %v9709
      %9793 = vst.msk [vmem:[#allocation3 + $0xd8] sm:$0xff] %vm1547, %v9711
      %9794 = vst.msk [vmem:[#allocation3 + $0xe8] sm:$0xff] %vm1547, %v9713
      %9795 = vst.msk [vmem:[#allocation3 + $0xf8] sm:$0xff] %vm1547, %v9715
      %9796 = vst.msk [vmem:[#allocation3 + $0x108] sm:$0xff] %vm1547, %v9717
      %9797 = vst.msk [vmem:[#allocation3 + $0x118] sm:$0xff] %vm1547, %v9719
      %9798 = vst.msk [vmem:[#allocation3 + $0x128] sm:$0xff] %vm1547, %v9721
      %9799 = vst.msk [vmem:[#allocation3 + $0x138] sm:$0xff] %vm1547, %v9723
      %9800 = vst.msk [vmem:[#allocation3 + $0x148] sm:$0xff] %vm1547, %v9725
      %9801 = vst.msk [vmem:[#allocation3 + $0x158] sm:$0xff] %vm1547, %v9727
      %9802 = vst.msk [vmem:[#allocation3 + $0x168] sm:$0xff] %vm1547, %v9729
      %9803 = vst.msk [vmem:[#allocation3 + $0x178] sm:$0xff] %vm1547, %v9731
      %9804 = vst.msk [vmem:[#allocation3 + $0x188] sm:$0xff] %vm1547, %v9733
      %9805 = vst.msk [vmem:[#allocation3 + $0x198] sm:$0xff] %vm1547, %v9735
      %9806 = vst.msk [vmem:[#allocation3 + $0x1a8] sm:$0xff] %vm1547, %v9737
      %9807 = vst.msk [vmem:[#allocation3 + $0x1b8] sm:$0xff] %vm1547, %v9739
      %9808 = vst.msk [vmem:[#allocation3 + $0x1c8] sm:$0xff] %vm1547, %v9741
      %9809 = vst.msk [vmem:[#allocation3 + $0x1d8] sm:$0xff] %vm1547, %v9743
      %9810 = vst.msk [vmem:[#allocation3 + $0x1e8] sm:$0xff] %vm1547, %v9745
      %9811 = vst.msk [vmem:[#allocation3 + $0x1f8] sm:$0xff] %vm1547, %v9747
      %v9812 = vld [vmem:[%s324] sm:$0xff]
      %v9813 = vld [vmem:[%s324 + $0x8] sm:$0xff]
      %v9814 = vld [vmem:[%s324 + $0x18] sm:$0xff]
      %v9815 = vld [vmem:[%s324 + $0x20] sm:$0xff]
      %v9816 = vld [vmem:[%s324 + $0x30] sm:$0xff]
      %v9817 = vld [vmem:[%s324 + $0x38] sm:$0xff]
      %v9818 = vld [vmem:[%s324 + $0x48] sm:$0xff]
      %v9819 = vld [vmem:[%s324 + $0x50] sm:$0xff]
      %v9820 = vld [vmem:[%s324 + $0x60] sm:$0xff]
      %v9821 = vld [vmem:[%s324 + $0x68] sm:$0xff]
      %v9822 = vld [vmem:[%s324 + $0x78] sm:$0xff]
      %v9823 = vld [vmem:[%s324 + $0x80] sm:$0xff]
      %v9824 = vld [vmem:[%s324 + $0x90] sm:$0xff]
      %v9825 = vld [vmem:[%s324 + $0x98] sm:$0xff]
      %v9826 = vld [vmem:[%s324 + $0xa8] sm:$0xff]
      %v9827 = vld [vmem:[%s324 + $0xb0] sm:$0xff]
      %v9828 = vld [vmem:[%s324 + $0xc0] sm:$0xff]
      %v9829 = vld [vmem:[%s324 + $0xc8] sm:$0xff]
      %v9830 = vld [vmem:[%s324 + $0xd8] sm:$0xff]
      %v9831 = vld [vmem:[%s324 + $0xe0] sm:$0xff]
      %v9832 = vld [vmem:[%s324 + $0xf0] sm:$0xff]
      %v9833 = vld [vmem:[%s324 + $0xf8] sm:$0xff]
      %v9834 = vld [vmem:[%s324 + $0x108] sm:$0xff]
      %v9835 = vld [vmem:[%s324 + $0x110] sm:$0xff]
      %v9836 = vld [vmem:[%s324 + $0x120] sm:$0xff]
      %v9837 = vld [vmem:[%s324 + $0x128] sm:$0xff]
      %v9838 = vld [vmem:[%s324 + $0x138] sm:$0xff]
      %v9839 = vld [vmem:[%s324 + $0x140] sm:$0xff]
      %v9840 = vld [vmem:[%s324 + $0x150] sm:$0xff]
      %v9841 = vld [vmem:[%s324 + $0x158] sm:$0xff]
      %v9842 = vld [vmem:[%s324 + $0x168] sm:$0xff]
      %v9843 = vld [vmem:[%s324 + $0x170] sm:$0xff]
      %9876 = vrot.lane.b32.xlu0 %v9812, 28
      %v9877 = vpop.permute.xlu0 %9876
      %9878 = vrot.lane.b32.xlu0 %v9813, 28
      %v9879 = vpop.permute.xlu0 %9878
      %9880 = vrot.lane.b32.xlu0 %v9814, 28
      %v9881 = vpop.permute.xlu0 %9880
      %9882 = vrot.lane.b32.xlu0 %v9815, 28
      %v9883 = vpop.permute.xlu0 %9882
      %9884 = vrot.lane.b32.xlu0 %v9816, 28
      %v9885 = vpop.permute.xlu0 %9884
      %9886 = vrot.lane.b32.xlu0 %v9817, 28
      %v9887 = vpop.permute.xlu0 %9886
      %9888 = vrot.lane.b32.xlu0 %v9818, 28
      %v9889 = vpop.permute.xlu0 %9888
      %9890 = vrot.lane.b32.xlu0 %v9819, 28
      %v9891 = vpop.permute.xlu0 %9890
      %9892 = vrot.lane.b32.xlu0 %v9820, 28
      %v9893 = vpop.permute.xlu0 %9892
      %9894 = vrot.lane.b32.xlu0 %v9821, 28
      %v9895 = vpop.permute.xlu0 %9894
      %9896 = vrot.lane.b32.xlu0 %v9822, 28
      %v9897 = vpop.permute.xlu0 %9896
      %9898 = vrot.lane.b32.xlu0 %v9823, 28
      %v9899 = vpop.permute.xlu0 %9898
      %9900 = vrot.lane.b32.xlu0 %v9824, 28
      %v9901 = vpop.permute.xlu0 %9900
      %9902 = vrot.lane.b32.xlu0 %v9825, 28
      %v9903 = vpop.permute.xlu0 %9902
      %9904 = vrot.lane.b32.xlu0 %v9826, 28
      %v9905 = vpop.permute.xlu0 %9904
      %9906 = vrot.lane.b32.xlu0 %v9827, 28
      %v9907 = vpop.permute.xlu0 %9906
      %9908 = vrot.lane.b32.xlu0 %v9828, 28
      %v9909 = vpop.permute.xlu0 %9908
      %9910 = vrot.lane.b32.xlu0 %v9829, 28
      %v9911 = vpop.permute.xlu0 %9910
      %9912 = vrot.lane.b32.xlu0 %v9830, 28
      %v9913 = vpop.permute.xlu0 %9912
      %9914 = vrot.lane.b32.xlu0 %v9831, 28
      %v9915 = vpop.permute.xlu0 %9914
      %9916 = vrot.lane.b32.xlu0 %v9832, 28
      %v9917 = vpop.permute.xlu0 %9916
      %9918 = vrot.lane.b32.xlu0 %v9833, 28
      %v9919 = vpop.permute.xlu0 %9918
      %9920 = vrot.lane.b32.xlu0 %v9834, 28
      %v9921 = vpop.permute.xlu0 %9920
      %9922 = vrot.lane.b32.xlu0 %v9835, 28
      %v9923 = vpop.permute.xlu0 %9922
      %9924 = vrot.lane.b32.xlu0 %v9836, 28
      %v9925 = vpop.permute.xlu0 %9924
      %9926 = vrot.lane.b32.xlu0 %v9837, 28
      %v9927 = vpop.permute.xlu0 %9926
      %9928 = vrot.lane.b32.xlu0 %v9838, 28
      %v9929 = vpop.permute.xlu0 %9928
      %9930 = vrot.lane.b32.xlu0 %v9839, 28
      %v9931 = vpop.permute.xlu0 %9930
      %9932 = vrot.lane.b32.xlu0 %v9840, 28
      %v9933 = vpop.permute.xlu0 %9932
      %9934 = vrot.lane.b32.xlu0 %v9841, 28
      %v9935 = vpop.permute.xlu0 %9934
      %9936 = vrot.lane.b32.xlu0 %v9842, 28
      %v9937 = vpop.permute.xlu0 %9936
      %9938 = vrot.lane.b32.xlu0 %v9843, 28
      %v9939 = vpop.permute.xlu0 %9938
      %9972 = vst.msk [vmem:[#allocation3 + $0x8] sm:$0xff] %vm1740, %v9877
      %9973 = vst.msk [vmem:[#allocation3 + $0x18] sm:$0xff] %vm1740, %v9879
      %9974 = vst.msk [vmem:[#allocation3 + $0x28] sm:$0xff] %vm1740, %v9881
      %9975 = vst.msk [vmem:[#allocation3 + $0x38] sm:$0xff] %vm1740, %v9883
      %9976 = vst.msk [vmem:[#allocation3 + $0x48] sm:$0xff] %vm1740, %v9885
      %9977 = vst.msk [vmem:[#allocation3 + $0x58] sm:$0xff] %vm1740, %v9887
      %9978 = vst.msk [vmem:[#allocation3 + $0x68] sm:$0xff] %vm1740, %v9889
      %9979 = vst.msk [vmem:[#allocation3 + $0x78] sm:$0xff] %vm1740, %v9891
      %9980 = vst.msk [vmem:[#allocation3 + $0x88] sm:$0xff] %vm1740, %v9893
      %9981 = vst.msk [vmem:[#allocation3 + $0x98] sm:$0xff] %vm1740, %v9895
      %9982 = vst.msk [vmem:[#allocation3 + $0xa8] sm:$0xff] %vm1740, %v9897
      %9983 = vst.msk [vmem:[#allocation3 + $0xb8] sm:$0xff] %vm1740, %v9899
      %9984 = vst.msk [vmem:[#allocation3 + $0xc8] sm:$0xff] %vm1740, %v9901
      %9985 = vst.msk [vmem:[#allocation3 + $0xd8] sm:$0xff] %vm1740, %v9903
      %9986 = vst.msk [vmem:[#allocation3 + $0xe8] sm:$0xff] %vm1740, %v9905
      %9987 = vst.msk [vmem:[#allocation3 + $0xf8] sm:$0xff] %vm1740, %v9907
      %9988 = vst.msk [vmem:[#allocation3 + $0x108] sm:$0xff] %vm1740, %v9909
      %9989 = vst.msk [vmem:[#allocation3 + $0x118] sm:$0xff] %vm1740, %v9911
      %9990 = vst.msk [vmem:[#allocation3 + $0x128] sm:$0xff] %vm1740, %v9913
      %9991 = vst.msk [vmem:[#allocation3 + $0x138] sm:$0xff] %vm1740, %v9915
      %9992 = vst.msk [vmem:[#allocation3 + $0x148] sm:$0xff] %vm1740, %v9917
      %9993 = vst.msk [vmem:[#allocation3 + $0x158] sm:$0xff] %vm1740, %v9919
      %9994 = vst.msk [vmem:[#allocation3 + $0x168] sm:$0xff] %vm1740, %v9921
      %9995 = vst.msk [vmem:[#allocation3 + $0x178] sm:$0xff] %vm1740, %v9923
      %9996 = vst.msk [vmem:[#allocation3 + $0x188] sm:$0xff] %vm1740, %v9925
      %9997 = vst.msk [vmem:[#allocation3 + $0x198] sm:$0xff] %vm1740, %v9927
      %9998 = vst.msk [vmem:[#allocation3 + $0x1a8] sm:$0xff] %vm1740, %v9929
      %9999 = vst.msk [vmem:[#allocation3 + $0x1b8] sm:$0xff] %vm1740, %v9931
      %10000 = vst.msk [vmem:[#allocation3 + $0x1c8] sm:$0xff] %vm1740, %v9933
      %10001 = vst.msk [vmem:[#allocation3 + $0x1d8] sm:$0xff] %vm1740, %v9935
      %10002 = vst.msk [vmem:[#allocation3 + $0x1e8] sm:$0xff] %vm1740, %v9937
      %10003 = vst.msk [vmem:[#allocation3 + $0x1f8] sm:$0xff] %vm1740, %v9939
      %v10004 = vld [vmem:[%s324 + $0x1] sm:$0xff]
      %v10005 = vld [vmem:[%s324 + $0x9] sm:$0xff]
      %v10006 = vld [vmem:[%s324 + $0x19] sm:$0xff]
      %v10007 = vld [vmem:[%s324 + $0x21] sm:$0xff]
      %v10008 = vld [vmem:[%s324 + $0x31] sm:$0xff]
      %v10009 = vld [vmem:[%s324 + $0x39] sm:$0xff]
      %v10010 = vld [vmem:[%s324 + $0x49] sm:$0xff]
      %v10011 = vld [vmem:[%s324 + $0x51] sm:$0xff]
      %v10012 = vld [vmem:[%s324 + $0x61] sm:$0xff]
      %v10013 = vld [vmem:[%s324 + $0x69] sm:$0xff]
      %v10014 = vld [vmem:[%s324 + $0x79] sm:$0xff]
      %v10015 = vld [vmem:[%s324 + $0x81] sm:$0xff]
      %v10016 = vld [vmem:[%s324 + $0x91] sm:$0xff]
      %v10017 = vld [vmem:[%s324 + $0x99] sm:$0xff]
      %v10018 = vld [vmem:[%s324 + $0xa9] sm:$0xff]
      %v10019 = vld [vmem:[%s324 + $0xb1] sm:$0xff]
      %v10020 = vld [vmem:[%s324 + $0xc1] sm:$0xff]
      %v10021 = vld [vmem:[%s324 + $0xc9] sm:$0xff]
      %v10022 = vld [vmem:[%s324 + $0xd9] sm:$0xff]
      %v10023 = vld [vmem:[%s324 + $0xe1] sm:$0xff]
      %v10024 = vld [vmem:[%s324 + $0xf1] sm:$0xff]
      %v10025 = vld [vmem:[%s324 + $0xf9] sm:$0xff]
      %v10026 = vld [vmem:[%s324 + $0x109] sm:$0xff]
      %v10027 = vld [vmem:[%s324 + $0x111] sm:$0xff]
      %v10028 = vld [vmem:[%s324 + $0x121] sm:$0xff]
      %v10029 = vld [vmem:[%s324 + $0x129] sm:$0xff]
      %v10030 = vld [vmem:[%s324 + $0x139] sm:$0xff]
      %v10031 = vld [vmem:[%s324 + $0x141] sm:$0xff]
      %v10032 = vld [vmem:[%s324 + $0x151] sm:$0xff]
      %v10033 = vld [vmem:[%s324 + $0x159] sm:$0xff]
      %v10034 = vld [vmem:[%s324 + $0x169] sm:$0xff]
      %v10035 = vld [vmem:[%s324 + $0x171] sm:$0xff]
      %10068 = vrot.lane.b32.xlu0 %v10004, 32
      %v10069 = vpop.permute.xlu0 %10068
      %10070 = vrot.lane.b32.xlu0 %v10005, 32
      %v10071 = vpop.permute.xlu0 %10070
      %10072 = vrot.lane.b32.xlu0 %v10006, 32
      %v10073 = vpop.permute.xlu0 %10072
      %10074 = vrot.lane.b32.xlu0 %v10007, 32
      %v10075 = vpop.permute.xlu0 %10074
      %10076 = vrot.lane.b32.xlu0 %v10008, 32
      %v10077 = vpop.permute.xlu0 %10076
      %10078 = vrot.lane.b32.xlu0 %v10009, 32
      %v10079 = vpop.permute.xlu0 %10078
      %10080 = vrot.lane.b32.xlu0 %v10010, 32
      %v10081 = vpop.permute.xlu0 %10080
      %10082 = vrot.lane.b32.xlu0 %v10011, 32
      %v10083 = vpop.permute.xlu0 %10082
      %10084 = vrot.lane.b32.xlu0 %v10012, 32
      %v10085 = vpop.permute.xlu0 %10084
      %10086 = vrot.lane.b32.xlu0 %v10013, 32
      %v10087 = vpop.permute.xlu0 %10086
      %10088 = vrot.lane.b32.xlu0 %v10014, 32
      %v10089 = vpop.permute.xlu0 %10088
      %10090 = vrot.lane.b32.xlu0 %v10015, 32
      %v10091 = vpop.permute.xlu0 %10090
      %10092 = vrot.lane.b32.xlu0 %v10016, 32
      %v10093 = vpop.permute.xlu0 %10092
      %10094 = vrot.lane.b32.xlu0 %v10017, 32
      %v10095 = vpop.permute.xlu0 %10094
      %10096 = vrot.lane.b32.xlu0 %v10018, 32
      %v10097 = vpop.permute.xlu0 %10096
      %10098 = vrot.lane.b32.xlu0 %v10019, 32
      %v10099 = vpop.permute.xlu0 %10098
      %10100 = vrot.lane.b32.xlu0 %v10020, 32
      %v10101 = vpop.permute.xlu0 %10100
      %10102 = vrot.lane.b32.xlu0 %v10021, 32
      %v10103 = vpop.permute.xlu0 %10102
      %10104 = vrot.lane.b32.xlu0 %v10022, 32
      %v10105 = vpop.permute.xlu0 %10104
      %10106 = vrot.lane.b32.xlu0 %v10023, 32
      %v10107 = vpop.permute.xlu0 %10106
      %10108 = vrot.lane.b32.xlu0 %v10024, 32
      %v10109 = vpop.permute.xlu0 %10108
      %10110 = vrot.lane.b32.xlu0 %v10025, 32
      %v10111 = vpop.permute.xlu0 %10110
      %10112 = vrot.lane.b32.xlu0 %v10026, 32
      %v10113 = vpop.permute.xlu0 %10112
      %10114 = vrot.lane.b32.xlu0 %v10027, 32
      %v10115 = vpop.permute.xlu0 %10114
      %10116 = vrot.lane.b32.xlu0 %v10028, 32
      %v10117 = vpop.permute.xlu0 %10116
      %10118 = vrot.lane.b32.xlu0 %v10029, 32
      %v10119 = vpop.permute.xlu0 %10118
      %10120 = vrot.lane.b32.xlu0 %v10030, 32
      %v10121 = vpop.permute.xlu0 %10120
      %10122 = vrot.lane.b32.xlu0 %v10031, 32
      %v10123 = vpop.permute.xlu0 %10122
      %10124 = vrot.lane.b32.xlu0 %v10032, 32
      %v10125 = vpop.permute.xlu0 %10124
      %10126 = vrot.lane.b32.xlu0 %v10033, 32
      %v10127 = vpop.permute.xlu0 %10126
      %10128 = vrot.lane.b32.xlu0 %v10034, 32
      %v10129 = vpop.permute.xlu0 %10128
      %10130 = vrot.lane.b32.xlu0 %v10035, 32
      %v10131 = vpop.permute.xlu0 %10130
      %10164 = vst.msk [vmem:[#allocation3 + $0x8] sm:$0xff] %vm1933, %v10069
      %10165 = vst.msk [vmem:[#allocation3 + $0x18] sm:$0xff] %vm1933, %v10071
      %10166 = vst.msk [vmem:[#allocation3 + $0x28] sm:$0xff] %vm1933, %v10073
      %10167 = vst.msk [vmem:[#allocation3 + $0x38] sm:$0xff] %vm1933, %v10075
      %10168 = vst.msk [vmem:[#allocation3 + $0x48] sm:$0xff] %vm1933, %v10077
      %10169 = vst.msk [vmem:[#allocation3 + $0x58] sm:$0xff] %vm1933, %v10079
      %10170 = vst.msk [vmem:[#allocation3 + $0x68] sm:$0xff] %vm1933, %v10081
      %10171 = vst.msk [vmem:[#allocation3 + $0x78] sm:$0xff] %vm1933, %v10083
      %10172 = vst.msk [vmem:[#allocation3 + $0x88] sm:$0xff] %vm1933, %v10085
      %10173 = vst.msk [vmem:[#allocation3 + $0x98] sm:$0xff] %vm1933, %v10087
      %10174 = vst.msk [vmem:[#allocation3 + $0xa8] sm:$0xff] %vm1933, %v10089
      %10175 = vst.msk [vmem:[#allocation3 + $0xb8] sm:$0xff] %vm1933, %v10091
      %10176 = vst.msk [vmem:[#allocation3 + $0xc8] sm:$0xff] %vm1933, %v10093
      %10177 = vst.msk [vmem:[#allocation3 + $0xd8] sm:$0xff] %vm1933, %v10095
      %10178 = vst.msk [vmem:[#allocation3 + $0xe8] sm:$0xff] %vm1933, %v10097
      %10179 = vst.msk [vmem:[#allocation3 + $0xf8] sm:$0xff] %vm1933, %v10099
      %10180 = vst.msk [vmem:[#allocation3 + $0x108] sm:$0xff] %vm1933, %v10101
      %10181 = vst.msk [vmem:[#allocation3 + $0x118] sm:$0xff] %vm1933, %v10103
      %10182 = vst.msk [vmem:[#allocation3 + $0x128] sm:$0xff] %vm1933, %v10105
      %10183 = vst.msk [vmem:[#allocation3 + $0x138] sm:$0xff] %vm1933, %v10107
      %10184 = vst.msk [vmem:[#allocation3 + $0x148] sm:$0xff] %vm1933, %v10109
      %10185 = vst.msk [vmem:[#allocation3 + $0x158] sm:$0xff] %vm1933, %v10111
      %10186 = vst.msk [vmem:[#allocation3 + $0x168] sm:$0xff] %vm1933, %v10113
      %10187 = vst.msk [vmem:[#allocation3 + $0x178] sm:$0xff] %vm1933, %v10115
      %10188 = vst.msk [vmem:[#allocation3 + $0x188] sm:$0xff] %vm1933, %v10117
      %10189 = vst.msk [vmem:[#allocation3 + $0x198] sm:$0xff] %vm1933, %v10119
      %10190 = vst.msk [vmem:[#allocation3 + $0x1a8] sm:$0xff] %vm1933, %v10121
      %10191 = vst.msk [vmem:[#allocation3 + $0x1b8] sm:$0xff] %vm1933, %v10123
      %10192 = vst.msk [vmem:[#allocation3 + $0x1c8] sm:$0xff] %vm1933, %v10125
      %10193 = vst.msk [vmem:[#allocation3 + $0x1d8] sm:$0xff] %vm1933, %v10127
      %10194 = vst.msk [vmem:[#allocation3 + $0x1e8] sm:$0xff] %vm1933, %v10129
      %10195 = vst.msk [vmem:[#allocation3 + $0x1f8] sm:$0xff] %vm1933, %v10131
      %v10196 = vld [vmem:[%s324 + $0x2] sm:$0xff]
      %v10197 = vld [vmem:[%s324 + $0xa] sm:$0xff]
      %v10198 = vld [vmem:[%s324 + $0x1a] sm:$0xff]
      %v10199 = vld [vmem:[%s324 + $0x22] sm:$0xff]
      %v10200 = vld [vmem:[%s324 + $0x32] sm:$0xff]
      %v10201 = vld [vmem:[%s324 + $0x3a] sm:$0xff]
      %v10202 = vld [vmem:[%s324 + $0x4a] sm:$0xff]
      %v10203 = vld [vmem:[%s324 + $0x52] sm:$0xff]
      %v10204 = vld [vmem:[%s324 + $0x62] sm:$0xff]
      %v10205 = vld [vmem:[%s324 + $0x6a] sm:$0xff]
      %v10206 = vld [vmem:[%s324 + $0x7a] sm:$0xff]
      %v10207 = vld [vmem:[%s324 + $0x82] sm:$0xff]
      %v10208 = vld [vmem:[%s324 + $0x92] sm:$0xff]
      %v10209 = vld [vmem:[%s324 + $0x9a] sm:$0xff]
      %v10210 = vld [vmem:[%s324 + $0xaa] sm:$0xff]
      %v10211 = vld [vmem:[%s324 + $0xb2] sm:$0xff]
      %v10212 = vld [vmem:[%s324 + $0xc2] sm:$0xff]
      %v10213 = vld [vmem:[%s324 + $0xca] sm:$0xff]
      %v10214 = vld [vmem:[%s324 + $0xda] sm:$0xff]
      %v10215 = vld [vmem:[%s324 + $0xe2] sm:$0xff]
      %v10216 = vld [vmem:[%s324 + $0xf2] sm:$0xff]
      %v10217 = vld [vmem:[%s324 + $0xfa] sm:$0xff]
      %v10218 = vld [vmem:[%s324 + $0x10a] sm:$0xff]
      %v10219 = vld [vmem:[%s324 + $0x112] sm:$0xff]
      %v10220 = vld [vmem:[%s324 + $0x122] sm:$0xff]
      %v10221 = vld [vmem:[%s324 + $0x12a] sm:$0xff]
      %v10222 = vld [vmem:[%s324 + $0x13a] sm:$0xff]
      %v10223 = vld [vmem:[%s324 + $0x142] sm:$0xff]
      %v10224 = vld [vmem:[%s324 + $0x152] sm:$0xff]
      %v10225 = vld [vmem:[%s324 + $0x15a] sm:$0xff]
      %v10226 = vld [vmem:[%s324 + $0x16a] sm:$0xff]
      %v10227 = vld [vmem:[%s324 + $0x172] sm:$0xff]
      %10260 = vrot.lane.b32.xlu0 %v10196, 36
      %v10261 = vpop.permute.xlu0 %10260
      %10262 = vrot.lane.b32.xlu0 %v10197, 36
      %v10263 = vpop.permute.xlu0 %10262
      %10264 = vrot.lane.b32.xlu0 %v10198, 36
      %v10265 = vpop.permute.xlu0 %10264
      %10266 = vrot.lane.b32.xlu0 %v10199, 36
      %v10267 = vpop.permute.xlu0 %10266
      %10268 = vrot.lane.b32.xlu0 %v10200, 36
      %v10269 = vpop.permute.xlu0 %10268
      %10270 = vrot.lane.b32.xlu0 %v10201, 36
      %v10271 = vpop.permute.xlu0 %10270
      %10272 = vrot.lane.b32.xlu0 %v10202, 36
      %v10273 = vpop.permute.xlu0 %10272
      %10274 = vrot.lane.b32.xlu0 %v10203, 36
      %v10275 = vpop.permute.xlu0 %10274
      %10276 = vrot.lane.b32.xlu0 %v10204, 36
      %v10277 = vpop.permute.xlu0 %10276
      %10278 = vrot.lane.b32.xlu0 %v10205, 36
      %v10279 = vpop.permute.xlu0 %10278
      %10280 = vrot.lane.b32.xlu0 %v10206, 36
      %v10281 = vpop.permute.xlu0 %10280
      %10282 = vrot.lane.b32.xlu0 %v10207, 36
      %v10283 = vpop.permute.xlu0 %10282
      %10284 = vrot.lane.b32.xlu0 %v10208, 36
      %v10285 = vpop.permute.xlu0 %10284
      %10286 = vrot.lane.b32.xlu0 %v10209, 36
      %v10287 = vpop.permute.xlu0 %10286
      %10288 = vrot.lane.b32.xlu0 %v10210, 36
      %v10289 = vpop.permute.xlu0 %10288
      %10290 = vrot.lane.b32.xlu0 %v10211, 36
      %v10291 = vpop.permute.xlu0 %10290
      %10292 = vrot.lane.b32.xlu0 %v10212, 36
      %v10293 = vpop.permute.xlu0 %10292
      %10294 = vrot.lane.b32.xlu0 %v10213, 36
      %v10295 = vpop.permute.xlu0 %10294
      %10296 = vrot.lane.b32.xlu0 %v10214, 36
      %v10297 = vpop.permute.xlu0 %10296
      %10298 = vrot.lane.b32.xlu0 %v10215, 36
      %v10299 = vpop.permute.xlu0 %10298
      %10300 = vrot.lane.b32.xlu0 %v10216, 36
      %v10301 = vpop.permute.xlu0 %10300
      %10302 = vrot.lane.b32.xlu0 %v10217, 36
      %v10303 = vpop.permute.xlu0 %10302
      %10304 = vrot.lane.b32.xlu0 %v10218, 36
      %v10305 = vpop.permute.xlu0 %10304
      %10306 = vrot.lane.b32.xlu0 %v10219, 36
      %v10307 = vpop.permute.xlu0 %10306
      %10308 = vrot.lane.b32.xlu0 %v10220, 36
      %v10309 = vpop.permute.xlu0 %10308
      %10310 = vrot.lane.b32.xlu0 %v10221, 36
      %v10311 = vpop.permute.xlu0 %10310
      %10312 = vrot.lane.b32.xlu0 %v10222, 36
      %v10313 = vpop.permute.xlu0 %10312
      %10314 = vrot.lane.b32.xlu0 %v10223, 36
      %v10315 = vpop.permute.xlu0 %10314
      %10316 = vrot.lane.b32.xlu0 %v10224, 36
      %v10317 = vpop.permute.xlu0 %10316
      %10318 = vrot.lane.b32.xlu0 %v10225, 36
      %v10319 = vpop.permute.xlu0 %10318
      %10320 = vrot.lane.b32.xlu0 %v10226, 36
      %v10321 = vpop.permute.xlu0 %10320
      %10322 = vrot.lane.b32.xlu0 %v10227, 36
      %v10323 = vpop.permute.xlu0 %10322
      %10356 = vst.msk [vmem:[#allocation3 + $0x8] sm:$0xff] %vm2673, %v10261
      %10357 = vst.msk [vmem:[#allocation3 + $0x18] sm:$0xff] %vm2673, %v10263
      %10358 = vst.msk [vmem:[#allocation3 + $0x28] sm:$0xff] %vm2673, %v10265
      %10359 = vst.msk [vmem:[#allocation3 + $0x38] sm:$0xff] %vm2673, %v10267
      %10360 = vst.msk [vmem:[#allocation3 + $0x48] sm:$0xff] %vm2673, %v10269
      %10361 = vst.msk [vmem:[#allocation3 + $0x58] sm:$0xff] %vm2673, %v10271
      %10362 = vst.msk [vmem:[#allocation3 + $0x68] sm:$0xff] %vm2673, %v10273
      %10363 = vst.msk [vmem:[#allocation3 + $0x78] sm:$0xff] %vm2673, %v10275
      %10364 = vst.msk [vmem:[#allocation3 + $0x88] sm:$0xff] %vm2673, %v10277
      %10365 = vst.msk [vmem:[#allocation3 + $0x98] sm:$0xff] %vm2673, %v10279
      %10366 = vst.msk [vmem:[#allocation3 + $0xa8] sm:$0xff] %vm2673, %v10281
      %10367 = vst.msk [vmem:[#allocation3 + $0xb8] sm:$0xff] %vm2673, %v10283
      %10368 = vst.msk [vmem:[#allocation3 + $0xc8] sm:$0xff] %vm2673, %v10285
      %10369 = vst.msk [vmem:[#allocation3 + $0xd8] sm:$0xff] %vm2673, %v10287
      %10370 = vst.msk [vmem:[#allocation3 + $0xe8] sm:$0xff] %vm2673, %v10289
      %10371 = vst.msk [vmem:[#allocation3 + $0xf8] sm:$0xff] %vm2673, %v10291
      %10372 = vst.msk [vmem:[#allocation3 + $0x108] sm:$0xff] %vm2673, %v10293
      %10373 = vst.msk [vmem:[#allocation3 + $0x118] sm:$0xff] %vm2673, %v10295
      %10374 = vst.msk [vmem:[#allocation3 + $0x128] sm:$0xff] %vm2673, %v10297
      %10375 = vst.msk [vmem:[#allocation3 + $0x138] sm:$0xff] %vm2673, %v10299
      %10376 = vst.msk [vmem:[#allocation3 + $0x148] sm:$0xff] %vm2673, %v10301
      %10377 = vst.msk [vmem:[#allocation3 + $0x158] sm:$0xff] %vm2673, %v10303
      %10378 = vst.msk [vmem:[#allocation3 + $0x168] sm:$0xff] %vm2673, %v10305
      %10379 = vst.msk [vmem:[#allocation3 + $0x178] sm:$0xff] %vm2673, %v10307
      %10380 = vst.msk [vmem:[#allocation3 + $0x188] sm:$0xff] %vm2673, %v10309
      %10381 = vst.msk [vmem:[#allocation3 + $0x198] sm:$0xff] %vm2673, %v10311
      %10382 = vst.msk [vmem:[#allocation3 + $0x1a8] sm:$0xff] %vm2673, %v10313
      %10383 = vst.msk [vmem:[#allocation3 + $0x1b8] sm:$0xff] %vm2673, %v10315
      %10384 = vst.msk [vmem:[#allocation3 + $0x1c8] sm:$0xff] %vm2673, %v10317
      %10385 = vst.msk [vmem:[#allocation3 + $0x1d8] sm:$0xff] %vm2673, %v10319
      %10386 = vst.msk [vmem:[#allocation3 + $0x1e8] sm:$0xff] %vm2673, %v10321
      %10387 = vst.msk [vmem:[#allocation3 + $0x1f8] sm:$0xff] %vm2673, %v10323
      %v10388 = vld [vmem:[%s1386] sm:$0xff]
      %v10389 = vld [vmem:[%s1386 + $0x8] sm:$0xff]
      %v10390 = vld [vmem:[%s1386 + $0x18] sm:$0xff]
      %v10391 = vld [vmem:[%s1386 + $0x20] sm:$0xff]
      %v10392 = vld [vmem:[%s1386 + $0x30] sm:$0xff]
      %v10393 = vld [vmem:[%s1386 + $0x38] sm:$0xff]
      %v10394 = vld [vmem:[%s1386 + $0x48] sm:$0xff]
      %v10395 = vld [vmem:[%s1386 + $0x50] sm:$0xff]
      %v10396 = vld [vmem:[%s1386 + $0x60] sm:$0xff]
      %v10397 = vld [vmem:[%s1386 + $0x68] sm:$0xff]
      %v10398 = vld [vmem:[%s1386 + $0x78] sm:$0xff]
      %v10399 = vld [vmem:[%s1386 + $0x80] sm:$0xff]
      %v10400 = vld [vmem:[%s1386 + $0x90] sm:$0xff]
      %v10401 = vld [vmem:[%s1386 + $0x98] sm:$0xff]
      %v10402 = vld [vmem:[%s1386 + $0xa8] sm:$0xff]
      %v10403 = vld [vmem:[%s1386 + $0xb0] sm:$0xff]
      %v10404 = vld [vmem:[%s1386 + $0xc0] sm:$0xff]
      %v10405 = vld [vmem:[%s1386 + $0xc8] sm:$0xff]
      %v10406 = vld [vmem:[%s1386 + $0xd8] sm:$0xff]
      %v10407 = vld [vmem:[%s1386 + $0xe0] sm:$0xff]
      %v10408 = vld [vmem:[%s1386 + $0xf0] sm:$0xff]
      %v10409 = vld [vmem:[%s1386 + $0xf8] sm:$0xff]
      %v10410 = vld [vmem:[%s1386 + $0x108] sm:$0xff]
      %v10411 = vld [vmem:[%s1386 + $0x110] sm:$0xff]
      %v10412 = vld [vmem:[%s1386 + $0x120] sm:$0xff]
      %v10413 = vld [vmem:[%s1386 + $0x128] sm:$0xff]
      %v10414 = vld [vmem:[%s1386 + $0x138] sm:$0xff]
      %v10415 = vld [vmem:[%s1386 + $0x140] sm:$0xff]
      %v10416 = vld [vmem:[%s1386 + $0x150] sm:$0xff]
      %v10417 = vld [vmem:[%s1386 + $0x158] sm:$0xff]
      %v10418 = vld [vmem:[%s1386 + $0x168] sm:$0xff]
      %v10419 = vld [vmem:[%s1386 + $0x170] sm:$0xff]
      %10452 = vrot.lane.b32.xlu0 %v10388, 40
      %v10453 = vpop.permute.xlu0 %10452
      %10454 = vrot.lane.b32.xlu0 %v10389, 40
      %v10455 = vpop.permute.xlu0 %10454
      %10456 = vrot.lane.b32.xlu0 %v10390, 40
      %v10457 = vpop.permute.xlu0 %10456
      %10458 = vrot.lane.b32.xlu0 %v10391, 40
      %v10459 = vpop.permute.xlu0 %10458
      %10460 = vrot.lane.b32.xlu0 %v10392, 40
      %v10461 = vpop.permute.xlu0 %10460
      %10462 = vrot.lane.b32.xlu0 %v10393, 40
      %v10463 = vpop.permute.xlu0 %10462
      %10464 = vrot.lane.b32.xlu0 %v10394, 40
      %v10465 = vpop.permute.xlu0 %10464
      %10466 = vrot.lane.b32.xlu0 %v10395, 40
      %v10467 = vpop.permute.xlu0 %10466
      %10468 = vrot.lane.b32.xlu0 %v10396, 40
      %v10469 = vpop.permute.xlu0 %10468
      %10470 = vrot.lane.b32.xlu0 %v10397, 40
      %v10471 = vpop.permute.xlu0 %10470
      %10472 = vrot.lane.b32.xlu0 %v10398, 40
      %v10473 = vpop.permute.xlu0 %10472
      %10474 = vrot.lane.b32.xlu0 %v10399, 40
      %v10475 = vpop.permute.xlu0 %10474
      %10476 = vrot.lane.b32.xlu0 %v10400, 40
      %v10477 = vpop.permute.xlu0 %10476
      %10478 = vrot.lane.b32.xlu0 %v10401, 40
      %v10479 = vpop.permute.xlu0 %10478
      %10480 = vrot.lane.b32.xlu0 %v10402, 40
      %v10481 = vpop.permute.xlu0 %10480
      %10482 = vrot.lane.b32.xlu0 %v10403, 40
      %v10483 = vpop.permute.xlu0 %10482
      %10484 = vrot.lane.b32.xlu0 %v10404, 40
      %v10485 = vpop.permute.xlu0 %10484
      %10486 = vrot.lane.b32.xlu0 %v10405, 40
      %v10487 = vpop.permute.xlu0 %10486
      %10488 = vrot.lane.b32.xlu0 %v10406, 40
      %v10489 = vpop.permute.xlu0 %10488
      %10490 = vrot.lane.b32.xlu0 %v10407, 40
      %v10491 = vpop.permute.xlu0 %10490
      %10492 = vrot.lane.b32.xlu0 %v10408, 40
      %v10493 = vpop.permute.xlu0 %10492
      %10494 = vrot.lane.b32.xlu0 %v10409, 40
      %v10495 = vpop.permute.xlu0 %10494
      %10496 = vrot.lane.b32.xlu0 %v10410, 40
      %v10497 = vpop.permute.xlu0 %10496
      %10498 = vrot.lane.b32.xlu0 %v10411, 40
      %v10499 = vpop.permute.xlu0 %10498
      %10500 = vrot.lane.b32.xlu0 %v10412, 40
      %v10501 = vpop.permute.xlu0 %10500
      %10502 = vrot.lane.b32.xlu0 %v10413, 40
      %v10503 = vpop.permute.xlu0 %10502
      %10504 = vrot.lane.b32.xlu0 %v10414, 40
      %v10505 = vpop.permute.xlu0 %10504
      %10506 = vrot.lane.b32.xlu0 %v10415, 40
      %v10507 = vpop.permute.xlu0 %10506
      %10508 = vrot.lane.b32.xlu0 %v10416, 40
      %v10509 = vpop.permute.xlu0 %10508
      %10510 = vrot.lane.b32.xlu0 %v10417, 40
      %v10511 = vpop.permute.xlu0 %10510
      %10512 = vrot.lane.b32.xlu0 %v10418, 40
      %v10513 = vpop.permute.xlu0 %10512
      %10514 = vrot.lane.b32.xlu0 %v10419, 40
      %v10515 = vpop.permute.xlu0 %10514
      %10548 = vst.msk [vmem:[#allocation3 + $0x8] sm:$0xff] %vm2866, %v10453
      %10549 = vst.msk [vmem:[#allocation3 + $0x18] sm:$0xff] %vm2866, %v10455
      %10550 = vst.msk [vmem:[#allocation3 + $0x28] sm:$0xff] %vm2866, %v10457
      %10551 = vst.msk [vmem:[#allocation3 + $0x38] sm:$0xff] %vm2866, %v10459
      %10552 = vst.msk [vmem:[#allocation3 + $0x48] sm:$0xff] %vm2866, %v10461
      %10553 = vst.msk [vmem:[#allocation3 + $0x58] sm:$0xff] %vm2866, %v10463
      %10554 = vst.msk [vmem:[#allocation3 + $0x68] sm:$0xff] %vm2866, %v10465
      %10555 = vst.msk [vmem:[#allocation3 + $0x78] sm:$0xff] %vm2866, %v10467
      %10556 = vst.msk [vmem:[#allocation3 + $0x88] sm:$0xff] %vm2866, %v10469
      %10557 = vst.msk [vmem:[#allocation3 + $0x98] sm:$0xff] %vm2866, %v10471
      %10558 = vst.msk [vmem:[#allocation3 + $0xa8] sm:$0xff] %vm2866, %v10473
      %10559 = vst.msk [vmem:[#allocation3 + $0xb8] sm:$0xff] %vm2866, %v10475
      %10560 = vst.msk [vmem:[#allocation3 + $0xc8] sm:$0xff] %vm2866, %v10477
      %10561 = vst.msk [vmem:[#allocation3 + $0xd8] sm:$0xff] %vm2866, %v10479
      %10562 = vst.msk [vmem:[#allocation3 + $0xe8] sm:$0xff] %vm2866, %v10481
      %10563 = vst.msk [vmem:[#allocation3 + $0xf8] sm:$0xff] %vm2866, %v10483
      %10564 = vst.msk [vmem:[#allocation3 + $0x108] sm:$0xff] %vm2866, %v10485
      %10565 = vst.msk [vmem:[#allocation3 + $0x118] sm:$0xff] %vm2866, %v10487
      %10566 = vst.msk [vmem:[#allocation3 + $0x128] sm:$0xff] %vm2866, %v10489
      %10567 = vst.msk [vmem:[#allocation3 + $0x138] sm:$0xff] %vm2866, %v10491
      %10568 = vst.msk [vmem:[#allocation3 + $0x148] sm:$0xff] %vm2866, %v10493
      %10569 = vst.msk [vmem:[#allocation3 + $0x158] sm:$0xff] %vm2866, %v10495
      %10570 = vst.msk [vmem:[#allocation3 + $0x168] sm:$0xff] %vm2866, %v10497
      %10571 = vst.msk [vmem:[#allocation3 + $0x178] sm:$0xff] %vm2866, %v10499
      %10572 = vst.msk [vmem:[#allocation3 + $0x188] sm:$0xff] %vm2866, %v10501
      %10573 = vst.msk [vmem:[#allocation3 + $0x198] sm:$0xff] %vm2866, %v10503
      %10574 = vst.msk [vmem:[#allocation3 + $0x1a8] sm:$0xff] %vm2866, %v10505
      %10575 = vst.msk [vmem:[#allocation3 + $0x1b8] sm:$0xff] %vm2866, %v10507
      %10576 = vst.msk [vmem:[#allocation3 + $0x1c8] sm:$0xff] %vm2866, %v10509
      %10577 = vst.msk [vmem:[#allocation3 + $0x1d8] sm:$0xff] %vm2866, %v10511
      %10578 = vst.msk [vmem:[#allocation3 + $0x1e8] sm:$0xff] %vm2866, %v10513
      %10579 = vst.msk [vmem:[#allocation3 + $0x1f8] sm:$0xff] %vm2866, %v10515
      %v10580 = vld [vmem:[%s1386 + $0x1] sm:$0xff]
      %v10581 = vld [vmem:[%s1386 + $0x9] sm:$0xff]
      %v10582 = vld [vmem:[%s1386 + $0x19] sm:$0xff]
      %v10583 = vld [vmem:[%s1386 + $0x21] sm:$0xff]
      %v10584 = vld [vmem:[%s1386 + $0x31] sm:$0xff]
      %v10585 = vld [vmem:[%s1386 + $0x39] sm:$0xff]
      %v10586 = vld [vmem:[%s1386 + $0x49] sm:$0xff]
      %v10587 = vld [vmem:[%s1386 + $0x51] sm:$0xff]
      %v10588 = vld [vmem:[%s1386 + $0x61] sm:$0xff]
      %v10589 = vld [vmem:[%s1386 + $0x69] sm:$0xff]
      %v10590 = vld [vmem:[%s1386 + $0x79] sm:$0xff]
      %v10591 = vld [vmem:[%s1386 + $0x81] sm:$0xff]
      %v10592 = vld [vmem:[%s1386 + $0x91] sm:$0xff]
      %v10593 = vld [vmem:[%s1386 + $0x99] sm:$0xff]
      %v10594 = vld [vmem:[%s1386 + $0xa9] sm:$0xff]
      %v10595 = vld [vmem:[%s1386 + $0xb1] sm:$0xff]
      %v10596 = vld [vmem:[%s1386 + $0xc1] sm:$0xff]
      %v10597 = vld [vmem:[%s1386 + $0xc9] sm:$0xff]
      %v10598 = vld [vmem:[%s1386 + $0xd9] sm:$0xff]
      %v10599 = vld [vmem:[%s1386 + $0xe1] sm:$0xff]
      %v10600 = vld [vmem:[%s1386 + $0xf1] sm:$0xff]
      %v10601 = vld [vmem:[%s1386 + $0xf9] sm:$0xff]
      %v10602 = vld [vmem:[%s1386 + $0x109] sm:$0xff]
      %v10603 = vld [vmem:[%s1386 + $0x111] sm:$0xff]
      %v10604 = vld [vmem:[%s1386 + $0x121] sm:$0xff]
      %v10605 = vld [vmem:[%s1386 + $0x129] sm:$0xff]
      %v10606 = vld [vmem:[%s1386 + $0x139] sm:$0xff]
      %v10607 = vld [vmem:[%s1386 + $0x141] sm:$0xff]
      %v10608 = vld [vmem:[%s1386 + $0x151] sm:$0xff]
      %v10609 = vld [vmem:[%s1386 + $0x159] sm:$0xff]
      %v10610 = vld [vmem:[%s1386 + $0x169] sm:$0xff]
      %v10611 = vld [vmem:[%s1386 + $0x171] sm:$0xff]
      %10644 = vrot.lane.b32.xlu0 %v10580, 44
      %v10645 = vpop.permute.xlu0 %10644
      %10646 = vrot.lane.b32.xlu0 %v10581, 44
      %v10647 = vpop.permute.xlu0 %10646
      %10648 = vrot.lane.b32.xlu0 %v10582, 44
      %v10649 = vpop.permute.xlu0 %10648
      %10650 = vrot.lane.b32.xlu0 %v10583, 44
      %v10651 = vpop.permute.xlu0 %10650
      %10652 = vrot.lane.b32.xlu0 %v10584, 44
      %v10653 = vpop.permute.xlu0 %10652
      %10654 = vrot.lane.b32.xlu0 %v10585, 44
      %v10655 = vpop.permute.xlu0 %10654
      %10656 = vrot.lane.b32.xlu0 %v10586, 44
      %v10657 = vpop.permute.xlu0 %10656
      %10658 = vrot.lane.b32.xlu0 %v10587, 44
      %v10659 = vpop.permute.xlu0 %10658
      %10660 = vrot.lane.b32.xlu0 %v10588, 44
      %v10661 = vpop.permute.xlu0 %10660
      %10662 = vrot.lane.b32.xlu0 %v10589, 44
      %v10663 = vpop.permute.xlu0 %10662
      %10664 = vrot.lane.b32.xlu0 %v10590, 44
      %v10665 = vpop.permute.xlu0 %10664
      %10666 = vrot.lane.b32.xlu0 %v10591, 44
      %v10667 = vpop.permute.xlu0 %10666
      %10668 = vrot.lane.b32.xlu0 %v10592, 44
      %v10669 = vpop.permute.xlu0 %10668
      %10670 = vrot.lane.b32.xlu0 %v10593, 44
      %v10671 = vpop.permute.xlu0 %10670
      %10672 = vrot.lane.b32.xlu0 %v10594, 44
      %v10673 = vpop.permute.xlu0 %10672
      %10674 = vrot.lane.b32.xlu0 %v10595, 44
      %v10675 = vpop.permute.xlu0 %10674
      %10676 = vrot.lane.b32.xlu0 %v10596, 44
      %v10677 = vpop.permute.xlu0 %10676
      %10678 = vrot.lane.b32.xlu0 %v10597, 44
      %v10679 = vpop.permute.xlu0 %10678
      %10680 = vrot.lane.b32.xlu0 %v10598, 44
      %v10681 = vpop.permute.xlu0 %10680
      %10682 = vrot.lane.b32.xlu0 %v10599, 44
      %v10683 = vpop.permute.xlu0 %10682
      %10684 = vrot.lane.b32.xlu0 %v10600, 44
      %v10685 = vpop.permute.xlu0 %10684
      %10686 = vrot.lane.b32.xlu0 %v10601, 44
      %v10687 = vpop.permute.xlu0 %10686
      %10688 = vrot.lane.b32.xlu0 %v10602, 44
      %v10689 = vpop.permute.xlu0 %10688
      %10690 = vrot.lane.b32.xlu0 %v10603, 44
      %v10691 = vpop.permute.xlu0 %10690
      %10692 = vrot.lane.b32.xlu0 %v10604, 44
      %v10693 = vpop.permute.xlu0 %10692
      %10694 = vrot.lane.b32.xlu0 %v10605, 44
      %v10695 = vpop.permute.xlu0 %10694
      %10696 = vrot.lane.b32.xlu0 %v10606, 44
      %v10697 = vpop.permute.xlu0 %10696
      %10698 = vrot.lane.b32.xlu0 %v10607, 44
      %v10699 = vpop.permute.xlu0 %10698
      %10700 = vrot.lane.b32.xlu0 %v10608, 44
      %v10701 = vpop.permute.xlu0 %10700
      %10702 = vrot.lane.b32.xlu0 %v10609, 44
      %v10703 = vpop.permute.xlu0 %10702
      %10704 = vrot.lane.b32.xlu0 %v10610, 44
      %v10705 = vpop.permute.xlu0 %10704
      %10706 = vrot.lane.b32.xlu0 %v10611, 44
      %v10707 = vpop.permute.xlu0 %10706
      %10740 = vst.msk [vmem:[#allocation3 + $0x8] sm:$0xff] %vm3059, %v10645
      %10741 = vst.msk [vmem:[#allocation3 + $0x18] sm:$0xff] %vm3059, %v10647
      %10742 = vst.msk [vmem:[#allocation3 + $0x28] sm:$0xff] %vm3059, %v10649
      %10743 = vst.msk [vmem:[#allocation3 + $0x38] sm:$0xff] %vm3059, %v10651
      %10744 = vst.msk [vmem:[#allocation3 + $0x48] sm:$0xff] %vm3059, %v10653
      %10745 = vst.msk [vmem:[#allocation3 + $0x58] sm:$0xff] %vm3059, %v10655
      %10746 = vst.msk [vmem:[#allocation3 + $0x68] sm:$0xff] %vm3059, %v10657
      %10747 = vst.msk [vmem:[#allocation3 + $0x78] sm:$0xff] %vm3059, %v10659
      %10748 = vst.msk [vmem:[#allocation3 + $0x88] sm:$0xff] %vm3059, %v10661
      %10749 = vst.msk [vmem:[#allocation3 + $0x98] sm:$0xff] %vm3059, %v10663
      %10750 = vst.msk [vmem:[#allocation3 + $0xa8] sm:$0xff] %vm3059, %v10665
      %10751 = vst.msk [vmem:[#allocation3 + $0xb8] sm:$0xff] %vm3059, %v10667
      %10752 = vst.msk [vmem:[#allocation3 + $0xc8] sm:$0xff] %vm3059, %v10669
      %10753 = vst.msk [vmem:[#allocation3 + $0xd8] sm:$0xff] %vm3059, %v10671
      %10754 = vst.msk [vmem:[#allocation3 + $0xe8] sm:$0xff] %vm3059, %v10673
      %10755 = vst.msk [vmem:[#allocation3 + $0xf8] sm:$0xff] %vm3059, %v10675
      %10756 = vst.msk [vmem:[#allocation3 + $0x108] sm:$0xff] %vm3059, %v10677
      %10757 = vst.msk [vmem:[#allocation3 + $0x118] sm:$0xff] %vm3059, %v10679
      %10758 = vst.msk [vmem:[#allocation3 + $0x128] sm:$0xff] %vm3059, %v10681
      %10759 = vst.msk [vmem:[#allocation3 + $0x138] sm:$0xff] %vm3059, %v10683
      %10760 = vst.msk [vmem:[#allocation3 + $0x148] sm:$0xff] %vm3059, %v10685
      %10761 = vst.msk [vmem:[#allocation3 + $0x158] sm:$0xff] %vm3059, %v10687
      %10762 = vst.msk [vmem:[#allocation3 + $0x168] sm:$0xff] %vm3059, %v10689
      %10763 = vst.msk [vmem:[#allocation3 + $0x178] sm:$0xff] %vm3059, %v10691
      %10764 = vst.msk [vmem:[#allocation3 + $0x188] sm:$0xff] %vm3059, %v10693
      %10765 = vst.msk [vmem:[#allocation3 + $0x198] sm:$0xff] %vm3059, %v10695
      %10766 = vst.msk [vmem:[#allocation3 + $0x1a8] sm:$0xff] %vm3059, %v10697
      %10767 = vst.msk [vmem:[#allocation3 + $0x1b8] sm:$0xff] %vm3059, %v10699
      %10768 = vst.msk [vmem:[#allocation3 + $0x1c8] sm:$0xff] %vm3059, %v10701
      %10769 = vst.msk [vmem:[#allocation3 + $0x1d8] sm:$0xff] %vm3059, %v10703
      %10770 = vst.msk [vmem:[#allocation3 + $0x1e8] sm:$0xff] %vm3059, %v10705
      %10771 = vst.msk [vmem:[#allocation3 + $0x1f8] sm:$0xff] %vm3059, %v10707
      %v10772 = vld [vmem:[%s1386 + $0x2] sm:$0xff]
      %v10773 = vld [vmem:[%s1386 + $0xa] sm:$0xff]
      %v10774 = vld [vmem:[%s1386 + $0x1a] sm:$0xff]
      %v10775 = vld [vmem:[%s1386 + $0x22] sm:$0xff]
      %v10776 = vld [vmem:[%s1386 + $0x32] sm:$0xff]
      %v10777 = vld [vmem:[%s1386 + $0x3a] sm:$0xff]
      %v10778 = vld [vmem:[%s1386 + $0x4a] sm:$0xff]
      %v10779 = vld [vmem:[%s1386 + $0x52] sm:$0xff]
      %v10780 = vld [vmem:[%s1386 + $0x62] sm:$0xff]
      %v10781 = vld [vmem:[%s1386 + $0x6a] sm:$0xff]
      %v10782 = vld [vmem:[%s1386 + $0x7a] sm:$0xff]
      %v10783 = vld [vmem:[%s1386 + $0x82] sm:$0xff]
      %v10784 = vld [vmem:[%s1386 + $0x92] sm:$0xff]
      %v10785 = vld [vmem:[%s1386 + $0x9a] sm:$0xff]
      %v10786 = vld [vmem:[%s1386 + $0xaa] sm:$0xff]
      %v10787 = vld [vmem:[%s1386 + $0xb2] sm:$0xff]
      %v10788 = vld [vmem:[%s1386 + $0xc2] sm:$0xff]
      %v10789 = vld [vmem:[%s1386 + $0xca] sm:$0xff]
      %v10790 = vld [vmem:[%s1386 + $0xda] sm:$0xff]
      %v10791 = vld [vmem:[%s1386 + $0xe2] sm:$0xff]
      %v10792 = vld [vmem:[%s1386 + $0xf2] sm:$0xff]
      %v10793 = vld [vmem:[%s1386 + $0xfa] sm:$0xff]
      %v10794 = vld [vmem:[%s1386 + $0x10a] sm:$0xff]
      %v10795 = vld [vmem:[%s1386 + $0x112] sm:$0xff]
      %v10796 = vld [vmem:[%s1386 + $0x122] sm:$0xff]
      %v10797 = vld [vmem:[%s1386 + $0x12a] sm:$0xff]
      %v10798 = vld [vmem:[%s1386 + $0x13a] sm:$0xff]
      %v10799 = vld [vmem:[%s1386 + $0x142] sm:$0xff]
      %v10800 = vld [vmem:[%s1386 + $0x152] sm:$0xff]
      %v10801 = vld [vmem:[%s1386 + $0x15a] sm:$0xff]
      %v10802 = vld [vmem:[%s1386 + $0x16a] sm:$0xff]
      %v10803 = vld [vmem:[%s1386 + $0x172] sm:$0xff]
      %10836 = vrot.lane.b32.xlu0 %v10772, 48
      %v10837 = vpop.permute.xlu0 %10836
      %10838 = vrot.lane.b32.xlu0 %v10773, 48
      %v10839 = vpop.permute.xlu0 %10838
      %10840 = vrot.lane.b32.xlu0 %v10774, 48
      %v10841 = vpop.permute.xlu0 %10840
      %10842 = vrot.lane.b32.xlu0 %v10775, 48
      %v10843 = vpop.permute.xlu0 %10842
      %10844 = vrot.lane.b32.xlu0 %v10776, 48
      %v10845 = vpop.permute.xlu0 %10844
      %10846 = vrot.lane.b32.xlu0 %v10777, 48
      %v10847 = vpop.permute.xlu0 %10846
      %10848 = vrot.lane.b32.xlu0 %v10778, 48
      %v10849 = vpop.permute.xlu0 %10848
      %10850 = vrot.lane.b32.xlu0 %v10779, 48
      %v10851 = vpop.permute.xlu0 %10850
      %10852 = vrot.lane.b32.xlu0 %v10780, 48
      %v10853 = vpop.permute.xlu0 %10852
      %10854 = vrot.lane.b32.xlu0 %v10781, 48
      %v10855 = vpop.permute.xlu0 %10854
      %10856 = vrot.lane.b32.xlu0 %v10782, 48
      %v10857 = vpop.permute.xlu0 %10856
      %10858 = vrot.lane.b32.xlu0 %v10783, 48
      %v10859 = vpop.permute.xlu0 %10858
      %10860 = vrot.lane.b32.xlu0 %v10784, 48
      %v10861 = vpop.permute.xlu0 %10860
      %10862 = vrot.lane.b32.xlu0 %v10785, 48
      %v10863 = vpop.permute.xlu0 %10862
      %10864 = vrot.lane.b32.xlu0 %v10786, 48
      %v10865 = vpop.permute.xlu0 %10864
      %10866 = vrot.lane.b32.xlu0 %v10787, 48
      %v10867 = vpop.permute.xlu0 %10866
      %10868 = vrot.lane.b32.xlu0 %v10788, 48
      %v10869 = vpop.permute.xlu0 %10868
      %10870 = vrot.lane.b32.xlu0 %v10789, 48
      %v10871 = vpop.permute.xlu0 %10870
      %10872 = vrot.lane.b32.xlu0 %v10790, 48
      %v10873 = vpop.permute.xlu0 %10872
      %10874 = vrot.lane.b32.xlu0 %v10791, 48
      %v10875 = vpop.permute.xlu0 %10874
      %10876 = vrot.lane.b32.xlu0 %v10792, 48
      %v10877 = vpop.permute.xlu0 %10876
      %10878 = vrot.lane.b32.xlu0 %v10793, 48
      %v10879 = vpop.permute.xlu0 %10878
      %10880 = vrot.lane.b32.xlu0 %v10794, 48
      %v10881 = vpop.permute.xlu0 %10880
      %10882 = vrot.lane.b32.xlu0 %v10795, 48
      %v10883 = vpop.permute.xlu0 %10882
      %10884 = vrot.lane.b32.xlu0 %v10796, 48
      %v10885 = vpop.permute.xlu0 %10884
      %10886 = vrot.lane.b32.xlu0 %v10797, 48
      %v10887 = vpop.permute.xlu0 %10886
      %10888 = vrot.lane.b32.xlu0 %v10798, 48
      %v10889 = vpop.permute.xlu0 %10888
      %10890 = vrot.lane.b32.xlu0 %v10799, 48
      %v10891 = vpop.permute.xlu0 %10890
      %10892 = vrot.lane.b32.xlu0 %v10800, 48
      %v10893 = vpop.permute.xlu0 %10892
      %10894 = vrot.lane.b32.xlu0 %v10801, 48
      %v10895 = vpop.permute.xlu0 %10894
      %10896 = vrot.lane.b32.xlu0 %v10802, 48
      %v10897 = vpop.permute.xlu0 %10896
      %10898 = vrot.lane.b32.xlu0 %v10803, 48
      %v10899 = vpop.permute.xlu0 %10898
      %10932 = vst.msk [vmem:[#allocation3 + $0x8] sm:$0xff] %vm3252, %v10837
      %10933 = vst.msk [vmem:[#allocation3 + $0x18] sm:$0xff] %vm3252, %v10839
      %10934 = vst.msk [vmem:[#allocation3 + $0x28] sm:$0xff] %vm3252, %v10841
      %10935 = vst.msk [vmem:[#allocation3 + $0x38] sm:$0xff] %vm3252, %v10843
      %10936 = vst.msk [vmem:[#allocation3 + $0x48] sm:$0xff] %vm3252, %v10845
      %10937 = vst.msk [vmem:[#allocation3 + $0x58] sm:$0xff] %vm3252, %v10847
      %10938 = vst.msk [vmem:[#allocation3 + $0x68] sm:$0xff] %vm3252, %v10849
      %10939 = vst.msk [vmem:[#allocation3 + $0x78] sm:$0xff] %vm3252, %v10851
      %10940 = vst.msk [vmem:[#allocation3 + $0x88] sm:$0xff] %vm3252, %v10853
      %10941 = vst.msk [vmem:[#allocation3 + $0x98] sm:$0xff] %vm3252, %v10855
      %10942 = vst.msk [vmem:[#allocation3 + $0xa8] sm:$0xff] %vm3252, %v10857
      %10943 = vst.msk [vmem:[#allocation3 + $0xb8] sm:$0xff] %vm3252, %v10859
      %10944 = vst.msk [vmem:[#allocation3 + $0xc8] sm:$0xff] %vm3252, %v10861
      %10945 = vst.msk [vmem:[#allocation3 + $0xd8] sm:$0xff] %vm3252, %v10863
      %10946 = vst.msk [vmem:[#allocation3 + $0xe8] sm:$0xff] %vm3252, %v10865
      %10947 = vst.msk [vmem:[#allocation3 + $0xf8] sm:$0xff] %vm3252, %v10867
      %10948 = vst.msk [vmem:[#allocation3 + $0x108] sm:$0xff] %vm3252, %v10869
      %10949 = vst.msk [vmem:[#allocation3 + $0x118] sm:$0xff] %vm3252, %v10871
      %10950 = vst.msk [vmem:[#allocation3 + $0x128] sm:$0xff] %vm3252, %v10873
      %10951 = vst.msk [vmem:[#allocation3 + $0x138] sm:$0xff] %vm3252, %v10875
      %10952 = vst.msk [vmem:[#allocation3 + $0x148] sm:$0xff] %vm3252, %v10877
      %10953 = vst.msk [vmem:[#allocation3 + $0x158] sm:$0xff] %vm3252, %v10879
      %10954 = vst.msk [vmem:[#allocation3 + $0x168] sm:$0xff] %vm3252, %v10881
      %10955 = vst.msk [vmem:[#allocation3 + $0x178] sm:$0xff] %vm3252, %v10883
      %10956 = vst.msk [vmem:[#allocation3 + $0x188] sm:$0xff] %vm3252, %v10885
      %10957 = vst.msk [vmem:[#allocation3 + $0x198] sm:$0xff] %vm3252, %v10887
      %10958 = vst.msk [vmem:[#allocation3 + $0x1a8] sm:$0xff] %vm3252, %v10889
      %10959 = vst.msk [vmem:[#allocation3 + $0x1b8] sm:$0xff] %vm3252, %v10891
      %10960 = vst.msk [vmem:[#allocation3 + $0x1c8] sm:$0xff] %vm3252, %v10893
      %10961 = vst.msk [vmem:[#allocation3 + $0x1d8] sm:$0xff] %vm3252, %v10895
      %10962 = vst.msk [vmem:[#allocation3 + $0x1e8] sm:$0xff] %vm3252, %v10897
      %10963 = vst.msk [vmem:[#allocation3 + $0x1f8] sm:$0xff] %vm3252, %v10899
      %v10964 = vld [vmem:[#allocation3] sm:$0xff]
      %v10965 = vld [vmem:[#allocation3 + $0x8] sm:$0xff]
      %v10966 = vld [vmem:[#allocation3 + $0x10] sm:$0xff]
      %v10967 = vld [vmem:[#allocation3 + $0x18] sm:$0xff]
      %v10968 = vld [vmem:[#allocation3 + $0x20] sm:$0xff]
      %v10969 = vld [vmem:[#allocation3 + $0x28] sm:$0xff]
      %v10970 = vld [vmem:[#allocation3 + $0x30] sm:$0xff]
      %v10971 = vld [vmem:[#allocation3 + $0x38] sm:$0xff]
      %v10972 = vld [vmem:[#allocation3 + $0x40] sm:$0xff]
      %v10973 = vld [vmem:[#allocation3 + $0x48] sm:$0xff]
      %v10974 = vld [vmem:[#allocation3 + $0x50] sm:$0xff]
      %v10975 = vld [vmem:[#allocation3 + $0x58] sm:$0xff]
      %v10976 = vld [vmem:[#allocation3 + $0x60] sm:$0xff]
      %v10977 = vld [vmem:[#allocation3 + $0x68] sm:$0xff]
      %v10978 = vld [vmem:[#allocation3 + $0x70] sm:$0xff]
      %v10979 = vld [vmem:[#allocation3 + $0x78] sm:$0xff]
      %v10980 = vld [vmem:[#allocation3 + $0x80] sm:$0xff]
      %v10981 = vld [vmem:[#allocation3 + $0x88] sm:$0xff]
      %v10982 = vld [vmem:[#allocation3 + $0x90] sm:$0xff]
      %v10983 = vld [vmem:[#allocation3 + $0x98] sm:$0xff]
      %v10984 = vld [vmem:[#allocation3 + $0xa0] sm:$0xff]
      %v10985 = vld [vmem:[#allocation3 + $0xa8] sm:$0xff]
      %v10986 = vld [vmem:[#allocation3 + $0xb0] sm:$0xff]
      %v10987 = vld [vmem:[#allocation3 + $0xb8] sm:$0xff]
      %v10988 = vld [vmem:[#allocation3 + $0xc0] sm:$0xff]
      %v10989 = vld [vmem:[#allocation3 + $0xc8] sm:$0xff]
      %v10990 = vld [vmem:[#allocation3 + $0xd0] sm:$0xff]
      %v10991 = vld [vmem:[#allocation3 + $0xd8] sm:$0xff]
      %v10992 = vld [vmem:[#allocation3 + $0xe0] sm:$0xff]
      %v10993 = vld [vmem:[#allocation3 + $0xe8] sm:$0xff]
      %v10994 = vld [vmem:[#allocation3 + $0xf0] sm:$0xff]
      %v10995 = vld [vmem:[#allocation3 + $0xf8] sm:$0xff]
      %v10996 = vld [vmem:[#allocation3 + $0x100] sm:$0xff]
      %v10997 = vld [vmem:[#allocation3 + $0x108] sm:$0xff]
      %v10998 = vld [vmem:[#allocation3 + $0x110] sm:$0xff]
      %v10999 = vld [vmem:[#allocation3 + $0x118] sm:$0xff]
      %v11000 = vld [vmem:[#allocation3 + $0x120] sm:$0xff]
      %v11001 = vld [vmem:[#allocation3 + $0x128] sm:$0xff]
      %v11002 = vld [vmem:[#allocation3 + $0x130] sm:$0xff]
      %v11003 = vld [vmem:[#allocation3 + $0x138] sm:$0xff]
      %v11004 = vld [vmem:[#allocation3 + $0x140] sm:$0xff]
      %v11005 = vld [vmem:[#allocation3 + $0x148] sm:$0xff]
      %v11006 = vld [vmem:[#allocation3 + $0x150] sm:$0xff]
      %v11007 = vld [vmem:[#allocation3 + $0x158] sm:$0xff]
      %v11008 = vld [vmem:[#allocation3 + $0x160] sm:$0xff]
      %v11009 = vld [vmem:[#allocation3 + $0x168] sm:$0xff]
      %v11010 = vld [vmem:[#allocation3 + $0x170] sm:$0xff]
      %v11011 = vld [vmem:[#allocation3 + $0x178] sm:$0xff]
      %v11012 = vld [vmem:[#allocation3 + $0x180] sm:$0xff]
      %v11013 = vld [vmem:[#allocation3 + $0x188] sm:$0xff]
      %v11014 = vld [vmem:[#allocation3 + $0x190] sm:$0xff]
      %v11015 = vld [vmem:[#allocation3 + $0x198] sm:$0xff]
      %v11016 = vld [vmem:[#allocation3 + $0x1a0] sm:$0xff]
      %v11017 = vld [vmem:[#allocation3 + $0x1a8] sm:$0xff]
      %v11018 = vld [vmem:[#allocation3 + $0x1b0] sm:$0xff]
      %v11019 = vld [vmem:[#allocation3 + $0x1b8] sm:$0xff]
      %v11020 = vld [vmem:[#allocation3 + $0x1c0] sm:$0xff]
      %v11021 = vld [vmem:[#allocation3 + $0x1c8] sm:$0xff]
      %v11022 = vld [vmem:[#allocation3 + $0x1d0] sm:$0xff]
      %v11023 = vld [vmem:[#allocation3 + $0x1d8] sm:$0xff]
      %v11024 = vld [vmem:[#allocation3 + $0x1e0] sm:$0xff]
      %v11025 = vld [vmem:[#allocation3 + $0x1e8] sm:$0xff]
      %v11026 = vld [vmem:[#allocation3 + $0x1f0] sm:$0xff]
      %v11027 = vld [vmem:[#allocation3 + $0x1f8] sm:$0xff]
      %s11028 = scalar_lea.vmem %s1, 736
      %v11029 = vld [vmem:[%s11028] sm:$0xff]
      %v11030 = vld [vmem:[%s11028 + $0x8] sm:$0xff]
      %v11031 = vld [vmem:[%s11028 + $0x10] sm:$0xff]
      %v11032 = vld [vmem:[%s11028 + $0x18] sm:$0xff]
      %v11033 = vld [vmem:[%s11028 + $0x20] sm:$0xff]
      %v11034 = vld [vmem:[%s11028 + $0x28] sm:$0xff]
      %v11035 = vld [vmem:[%s11028 + $0x30] sm:$0xff]
      %v11036 = vld [vmem:[%s11028 + $0x38] sm:$0xff]
      %v11037 = vld [vmem:[%s11028 + $0x40] sm:$0xff]
      %v11038 = vld [vmem:[%s11028 + $0x48] sm:$0xff]
      %v11039 = vld [vmem:[%s11028 + $0x50] sm:$0xff]
      %v11040 = vld [vmem:[%s11028 + $0x58] sm:$0xff]
      %v11041 = vld [vmem:[%s11028 + $0x60] sm:$0xff]
      %v11042 = vld [vmem:[%s11028 + $0x68] sm:$0xff]
      %v11043 = vld [vmem:[%s11028 + $0x70] sm:$0xff]
      %v11044 = vld [vmem:[%s11028 + $0x78] sm:$0xff]
      %v11045 = vld [vmem:[%s11028 + $0x80] sm:$0xff]
      %v11046 = vld [vmem:[%s11028 + $0x88] sm:$0xff]
      %v11047 = vld [vmem:[%s11028 + $0x90] sm:$0xff]
      %v11048 = vld [vmem:[%s11028 + $0x98] sm:$0xff]
      %v11049 = vld [vmem:[%s11028 + $0xa0] sm:$0xff]
      %v11050 = vld [vmem:[%s11028 + $0xa8] sm:$0xff]
      %v11051 = vld [vmem:[%s11028 + $0xb0] sm:$0xf]
      %s11052 = scalar_lea.vmem %s2, 4
      %v11053 = vld [vmem:[%s11052] sm:$0x1]
      %v11055 = vlaneseq
      %v11056 = vshrl.u32 %v11055, 7
      %v11057 = vsub.s32 0, %v11056
      %v11058 = vrot.slane %v11053, %v11057
      %v11061 = vsel %vm228, %v10965, 0
      %v11064 = vsel %vm228, %v10967, 0
      %v11067 = vsel %vm228, %v10969, 0
      %v11070 = vsel %vm228, %v10971, 0
      %v11073 = vsel %vm228, %v10973, 0
      %v11076 = vsel %vm228, %v10975, 0
      %v11079 = vsel %vm228, %v10977, 0
      %v11082 = vsel %vm228, %v10979, 0
      %v11085 = vsel %vm228, %v10981, 0
      %v11088 = vsel %vm228, %v10983, 0
      %v11091 = vsel %vm228, %v10985, 0
      %v11094 = vsel %vm228, %v10987, 0
      %v11097 = vsel %vm228, %v10989, 0
      %v11100 = vsel %vm228, %v10991, 0
      %v11103 = vsel %vm228, %v10993, 0
      %v11106 = vsel %vm228, %v10995, 0
      %v11109 = vsel %vm228, %v10997, 0
      %v11112 = vsel %vm228, %v10999, 0
      %v11115 = vsel %vm228, %v11001, 0
      %v11118 = vsel %vm228, %v11003, 0
      %v11121 = vsel %vm228, %v11005, 0
      %v11124 = vsel %vm228, %v11007, 0
      %v11127 = vsel %vm228, %v11009, 0
      %v11130 = vsel %vm228, %v11011, 0
      %v11133 = vsel %vm228, %v11013, 0
      %v11136 = vsel %vm228, %v11015, 0
      %v11139 = vsel %vm228, %v11017, 0
      %v11142 = vsel %vm228, %v11019, 0
      %v11145 = vsel %vm228, %v11021, 0
      %v11148 = vsel %vm228, %v11023, 0
      %v11151 = vsel %vm228, %v11025, 0
      %v11154 = vsel %vm228, %v11027, 0
      %v11157 = vsel %vm2156, %v11051, 0
      %11159 = vmatprep.subr.mxu0 0.0
      %11160 = vmatpush1.msra.mxu0 %v11029
      %11161 = vmatprep.subr.mxu0 0.0
      %11162 = vmatpush1.msra.mxu0 %v11030
      %11163 = vmatprep.subr.mxu0 0.0
      %11164 = vmatpush1.msra.mxu0 %v11031
      %11165 = vmatprep.subr.mxu0 0.0
      %11166 = vmatpush1.msra.mxu0 %v11032
      %11167 = vmatprep.subr.mxu0 0.0
      %11168 = vmatpush1.msra.mxu0 %v11033
      %11169 = vmatprep.subr.mxu0 0.0
      %11170 = vmatpush1.msra.mxu0 %v11034
      %11171 = vmatprep.subr.mxu0 0.0
      %11172 = vmatpush1.msra.mxu0 %v11035
      %11173 = vmatprep.subr.mxu0 0.0
      %11174 = vmatpush1.msra.mxu0 %v11036
      %11175 = vmatprep.subr.mxu0 0.0
      %11176 = vmatpush1.msra.mxu0 %v11037
      %11177 = vmatprep.subr.mxu0 0.0
      %11178 = vmatpush1.msra.mxu0 %v11038
      %11179 = vmatprep.subr.mxu0 0.0
      %11180 = vmatpush1.msra.mxu0 %v11039
      %11181 = vmatprep.subr.mxu0 0.0
      %11182 = vmatpush1.msra.mxu0 %v11040
      %11183 = vmatprep.subr.mxu0 0.0
      %11184 = vmatpush1.msra.mxu0 %v11041
      %11185 = vmatprep.subr.mxu0 0.0
      %11186 = vmatpush1.msra.mxu0 %v11042
      %11187 = vmatprep.subr.mxu0 0.0
      %11188 = vmatpush1.msra.mxu0 %v11043
      %11189 = vmatprep.subr.mxu0 0.0
      %11190 = vmatpush1.msra.mxu0 %v11044
      %11191 = vmatprep.subr.mxu0 0.0
      %11192 = vmatpush1.msra.mxu0 %v11045
      %11193 = vmatprep.subr.mxu0 0.0
      %11194 = vmatpush1.msra.mxu0 %v11046
      %11195 = vmatprep.subr.mxu0 0.0
      %11196 = vmatpush1.msra.mxu0 %v11047
      %11197 = vmatprep.subr.mxu0 0.0
      %11198 = vmatpush1.msra.mxu0 %v11048
      %11199 = vmatprep.subr.mxu0 0.0
      %11200 = vmatpush1.msra.mxu0 %v11049
      %11201 = vmatprep.subr.mxu0 0.0
      %11202 = vmatpush1.msra.mxu0 %v11050
      %11203 = vmatprep.subr.mxu0 0.0
      %11204 = vmatpush1.msra.mxu0 %v11157
      %11205 = vmatprep.subr.mxu0 0.0
      %11206 = vmatpush1.msra.mxu0 0.0
      %11207 = vmatprep.subr.mxu0 0.0
      %11208 = vmatpush1.msra.mxu0 0.0
      %11209 = vmatprep.subr.mxu0 0.0
      %11210 = vmatpush1.msra.mxu0 0.0
      %11211 = vmatprep.subr.mxu0 0.0
      %11212 = vmatpush1.msra.mxu0 0.0
      %11213 = vmatprep.subr.mxu0 0.0
      %11214 = vmatpush1.msra.mxu0 0.0
      %11215 = vmatprep.subr.mxu0 0.0
      %11216 = vmatpush1.msra.mxu0 0.0
      %11217 = vmatprep.subr.mxu0 0.0
      %11218 = vmatpush1.msra.mxu0 0.0
      %11219 = vmatprep.subr.mxu0 0.0
      %11220 = vmatpush1.msra.mxu0 0.0
      %11221 = vmatprep.subr.mxu0 0.0
      %11222 = vmatpush1.msra.mxu0 0.0
      %11223 = vmatprep.mubr.f32.mxu0 %v11061
      %11224 = vmatmul.mubr.f32.gmra.mrb[0].mxu0 %v10964
      %v11225 = vpop.f32.mrb[0].mxu0
      %v11226 = vadd.f32 %v11058, %v11225
      %v11227 = vpop.f32.mrb[0].mxu0
      %11228 = vmatprep.mubr.f32.mxu0 %v11064
      %11229 = vmatmul.mubr.f32.gmra.mrb[0].mxu0 %v10966
      %v11230 = vpop.f32.mrb[0].mxu0
      %v11231 = vadd.f32 %v11058, %v11230
      %v11232 = vpop.f32.mrb[0].mxu0
      %11233 = vmatprep.mubr.f32.mxu0 %v11067
      %11234 = vmatmul.mubr.f32.gmra.mrb[0].mxu0 %v10968
      %v11235 = vpop.f32.mrb[0].mxu0
      %v11236 = vadd.f32 %v11058, %v11235
      %v11237 = vpop.f32.mrb[0].mxu0
      %11238 = vmatprep.mubr.f32.mxu0 %v11070
      %11239 = vmatmul.mubr.f32.gmra.mrb[0].mxu0 %v10970
      %v11240 = vpop.f32.mrb[0].mxu0
      %v11241 = vadd.f32 %v11058, %v11240
      %v11242 = vpop.f32.mrb[0].mxu0
      %11243 = vmatprep.mubr.f32.mxu0 %v11073
      %11244 = vmatmul.mubr.f32.gmra.mrb[0].mxu0 %v10972
      %v11245 = vpop.f32.mrb[0].mxu0
      %v11246 = vadd.f32 %v11058, %v11245
      %v11247 = vpop.f32.mrb[0].mxu0
      %11248 = vmatprep.mubr.f32.mxu0 %v11076
      %11249 = vmatmul.mubr.f32.gmra.mrb[0].mxu0 %v10974
      %v11250 = vpop.f32.mrb[0].mxu0
      %v11251 = vadd.f32 %v11058, %v11250
      %v11252 = vpop.f32.mrb[0].mxu0
      %11253 = vmatprep.mubr.f32.mxu0 %v11079
      %11254 = vmatmul.mubr.f32.gmra.mrb[0].mxu0 %v10976
      %v11255 = vpop.f32.mrb[0].mxu0
      %v11256 = vadd.f32 %v11058, %v11255
      %v11257 = vpop.f32.mrb[0].mxu0
      %11258 = vmatprep.mubr.f32.mxu0 %v11082
      %11259 = vmatmul.mubr.f32.gmra.mrb[0].mxu0 %v10978
      %v11260 = vpop.f32.mrb[0].mxu0
      %v11261 = vadd.f32 %v11058, %v11260
      %v11262 = vpop.f32.mrb[0].mxu0
      %11263 = vmatprep.mubr.f32.mxu0 %v11085
      %11264 = vmatmul.mubr.f32.gmra.mrb[0].mxu0 %v10980
      %v11265 = vpop.f32.mrb[0].mxu0
      %v11266 = vadd.f32 %v11058, %v11265
      %v11267 = vpop.f32.mrb[0].mxu0
      %11268 = vmatprep.mubr.f32.mxu0 %v11088
      %11269 = vmatmul.mubr.f32.gmra.mrb[0].mxu0 %v10982
      %v11270 = vpop.f32.mrb[0].mxu0
      %v11271 = vadd.f32 %v11058, %v11270
      %v11272 = vpop.f32.mrb[0].mxu0
      %11273 = vmatprep.mubr.f32.mxu0 %v11091
      %11274 = vmatmul.mubr.f32.gmra.mrb[0].mxu0 %v10984
      %v11275 = vpop.f32.mrb[0].mxu0
      %v11276 = vadd.f32 %v11058, %v11275
      %v11277 = vpop.f32.mrb[0].mxu0
      %11278 = vmatprep.mubr.f32.mxu0 %v11094
      %11279 = vmatmul.mubr.f32.gmra.mrb[0].mxu0 %v10986
      %v11280 = vpop.f32.mrb[0].mxu0
      %v11281 = vadd.f32 %v11058, %v11280
      %v11282 = vpop.f32.mrb[0].mxu0
      %11283 = vmatprep.mubr.f32.mxu0 %v11097
      %11284 = vmatmul.mubr.f32.gmra.mrb[0].mxu0 %v10988
      %v11285 = vpop.f32.mrb[0].mxu0
      %v11286 = vadd.f32 %v11058, %v11285
      %v11287 = vpop.f32.mrb[0].mxu0
      %11288 = vmatprep.mubr.f32.mxu0 %v11100
      %11289 = vmatmul.mubr.f32.gmra.mrb[0].mxu0 %v10990
      %v11290 = vpop.f32.mrb[0].mxu0
      %v11291 = vadd.f32 %v11058, %v11290
      %v11292 = vpop.f32.mrb[0].mxu0
      %11293 = vmatprep.mubr.f32.mxu0 %v11103
      %11294 = vmatmul.mubr.f32.gmra.mrb[0].mxu0 %v10992
      %v11295 = vpop.f32.mrb[0].mxu0
      %v11296 = vadd.f32 %v11058, %v11295
      %v11297 = vpop.f32.mrb[0].mxu0
      %11298 = vmatprep.mubr.f32.mxu0 %v11106
      %11299 = vmatmul.mubr.f32.gmra.mrb[0].mxu0 %v10994
      %v11300 = vpop.f32.mrb[0].mxu0
      %v11301 = vadd.f32 %v11058, %v11300
      %v11302 = vpop.f32.mrb[0].mxu0
      %11303 = vmatprep.mubr.f32.mxu0 %v11109
      %11304 = vmatmul.mubr.f32.gmra.mrb[0].mxu0 %v10996
      %v11305 = vpop.f32.mrb[0].mxu0
      %v11306 = vadd.f32 %v11058, %v11305
      %v11307 = vpop.f32.mrb[0].mxu0
      %11308 = vmatprep.mubr.f32.mxu0 %v11112
      %11309 = vmatmul.mubr.f32.gmra.mrb[0].mxu0 %v10998
      %v11310 = vpop.f32.mrb[0].mxu0
      %v11311 = vadd.f32 %v11058, %v11310
      %v11312 = vpop.f32.mrb[0].mxu0
      %11313 = vmatprep.mubr.f32.mxu0 %v11115
      %11314 = vmatmul.mubr.f32.gmra.mrb[0].mxu0 %v11000
      %v11315 = vpop.f32.mrb[0].mxu0
      %v11316 = vadd.f32 %v11058, %v11315
      %v11317 = vpop.f32.mrb[0].mxu0
      %11318 = vmatprep.mubr.f32.mxu0 %v11118
      %11319 = vmatmul.mubr.f32.gmra.mrb[0].mxu0 %v11002
      %v11320 = vpop.f32.mrb[0].mxu0
      %v11321 = vadd.f32 %v11058, %v11320
      %v11322 = vpop.f32.mrb[0].mxu0
      %11323 = vmatprep.mubr.f32.mxu0 %v11121
      %11324 = vmatmul.mubr.f32.gmra.mrb[0].mxu0 %v11004
      %v11325 = vpop.f32.mrb[0].mxu0
      %v11326 = vadd.f32 %v11058, %v11325
      %v11327 = vpop.f32.mrb[0].mxu0
      %11328 = vmatprep.mubr.f32.mxu0 %v11124
      %11329 = vmatmul.mubr.f32.gmra.mrb[0].mxu0 %v11006
      %v11330 = vpop.f32.mrb[0].mxu0
      %v11331 = vadd.f32 %v11058, %v11330
      %v11332 = vpop.f32.mrb[0].mxu0
      %11333 = vmatprep.mubr.f32.mxu0 %v11127
      %11334 = vmatmul.mubr.f32.gmra.mrb[0].mxu0 %v11008
      %v11335 = vpop.f32.mrb[0].mxu0
      %v11336 = vadd.f32 %v11058, %v11335
      %v11337 = vpop.f32.mrb[0].mxu0
      %11338 = vmatprep.mubr.f32.mxu0 %v11130
      %11339 = vmatmul.mubr.f32.gmra.mrb[0].mxu0 %v11010
      %v11340 = vpop.f32.mrb[0].mxu0
      %v11341 = vadd.f32 %v11058, %v11340
      %v11342 = vpop.f32.mrb[0].mxu0
      %11343 = vmatprep.mubr.f32.mxu0 %v11133
      %11344 = vmatmul.mubr.f32.gmra.mrb[0].mxu0 %v11012
      %v11345 = vpop.f32.mrb[0].mxu0
      %v11346 = vadd.f32 %v11058, %v11345
      %v11347 = vpop.f32.mrb[0].mxu0
      %11348 = vmatprep.mubr.f32.mxu0 %v11136
      %11349 = vmatmul.mubr.f32.gmra.mrb[0].mxu0 %v11014
      %v11350 = vpop.f32.mrb[0].mxu0
      %v11351 = vadd.f32 %v11058, %v11350
      %v11352 = vpop.f32.mrb[0].mxu0
      %11353 = vmatprep.mubr.f32.mxu0 %v11139
      %11354 = vmatmul.mubr.f32.gmra.mrb[0].mxu0 %v11016
      %v11355 = vpop.f32.mrb[0].mxu0
      %v11356 = vadd.f32 %v11058, %v11355
      %v11357 = vpop.f32.mrb[0].mxu0
      %11358 = vmatprep.mubr.f32.mxu0 %v11142
      %11359 = vmatmul.mubr.f32.gmra.mrb[0].mxu0 %v11018
      %v11360 = vpop.f32.mrb[0].mxu0
      %v11361 = vadd.f32 %v11058, %v11360
      %v11362 = vpop.f32.mrb[0].mxu0
      %11363 = vmatprep.mubr.f32.mxu0 %v11145
      %11364 = vmatmul.mubr.f32.gmra.mrb[0].mxu0 %v11020
      %v11365 = vpop.f32.mrb[0].mxu0
      %v11366 = vadd.f32 %v11058, %v11365
      %v11367 = vpop.f32.mrb[0].mxu0
      %11368 = vmatprep.mubr.f32.mxu0 %v11148
      %11369 = vmatmul.mubr.f32.gmra.mrb[0].mxu0 %v11022
      %v11370 = vpop.f32.mrb[0].mxu0
      %v11371 = vadd.f32 %v11058, %v11370
      %v11372 = vpop.f32.mrb[0].mxu0
      %11373 = vmatprep.mubr.f32.mxu0 %v11151
      %11374 = vmatmul.mubr.f32.gmra.mrb[0].mxu0 %v11024
      %v11375 = vpop.f32.mrb[0].mxu0
      %v11376 = vadd.f32 %v11058, %v11375
      %v11377 = vpop.f32.mrb[0].mxu0
      %11378 = vmatprep.mubr.f32.mxu0 %v11154
      %11379 = vmatmul.mubr.f32.gmra.mrb[0].mxu0 %v11026
      %v11380 = vpop.f32.mrb[0].mxu0
      %v11381 = vadd.f32 %v11058, %v11380
      %v11382 = vpop.f32.mrb[0].mxu0
      %11383 = vdwg.mxu0
      %v11384 = vmul.f32 %v11226, 0.2
      %v11385 = vmul.f32 %v11231, 0.2
      %v11386 = vmul.f32 %v11236, 0.2
      %v11387 = vmul.f32 %v11241, 0.2
      %v11388 = vmul.f32 %v11246, 0.2
      %v11389 = vmul.f32 %v11251, 0.2
      %v11390 = vmul.f32 %v11256, 0.2
      %v11391 = vmul.f32 %v11261, 0.2
      %v11392 = vmul.f32 %v11266, 0.2
      %v11393 = vmul.f32 %v11271, 0.2
      %v11394 = vmul.f32 %v11276, 0.2
      %v11395 = vmul.f32 %v11281, 0.2
      %v11396 = vmul.f32 %v11286, 0.2
      %v11397 = vmul.f32 %v11291, 0.2
      %v11398 = vmul.f32 %v11296, 0.2
      %v11399 = vmul.f32 %v11301, 0.2
      %v11400 = vmul.f32 %v11306, 0.2
      %v11401 = vmul.f32 %v11311, 0.2
      %v11402 = vmul.f32 %v11316, 0.2
      %v11403 = vmul.f32 %v11321, 0.2
      %v11404 = vmul.f32 %v11326, 0.2
      %v11405 = vmul.f32 %v11331, 0.2
      %v11406 = vmul.f32 %v11336, 0.2
      %v11407 = vmul.f32 %v11341, 0.2
      %v11408 = vmul.f32 %v11346, 0.2
      %v11409 = vmul.f32 %v11351, 0.2
      %v11410 = vmul.f32 %v11356, 0.2
      %v11411 = vmul.f32 %v11361, 0.2
      %v11412 = vmul.f32 %v11366, 0.2
      %v11413 = vmul.f32 %v11371, 0.2
      %v11414 = vmul.f32 %v11376, 0.2
      %v11415 = vmul.f32 %v11381, 0.2
      %v11416 = vadd.f32 %v11384, %v292
      %v11417 = vadd.f32 %v11385, %v293
      %v11418 = vadd.f32 %v11386, %v294
      %v11419 = vadd.f32 %v11387, %v295
      %v11420 = vadd.f32 %v11388, %v296
      %v11421 = vadd.f32 %v11389, %v297
      %v11422 = vadd.f32 %v11390, %v298
      %v11423 = vadd.f32 %v11391, %v299
      %v11424 = vadd.f32 %v11392, %v300
      %v11425 = vadd.f32 %v11393, %v301
      %v11426 = vadd.f32 %v11394, %v302
      %v11427 = vadd.f32 %v11395, %v303
      %v11428 = vadd.f32 %v11396, %v304
      %v11429 = vadd.f32 %v11397, %v305
      %v11430 = vadd.f32 %v11398, %v306
      %v11431 = vadd.f32 %v11399, %v307
      %v11432 = vadd.f32 %v11400, %v308
      %v11433 = vadd.f32 %v11401, %v309
      %v11434 = vadd.f32 %v11402, %v310
      %v11435 = vadd.f32 %v11403, %v311
      %v11436 = vadd.f32 %v11404, %v312
      %v11437 = vadd.f32 %v11405, %v313
      %v11438 = vadd.f32 %v11406, %v314
      %v11439 = vadd.f32 %v11407, %v315
      %v11440 = vadd.f32 %v11408, %v316
      %v11441 = vadd.f32 %v11409, %v317
      %v11442 = vadd.f32 %v11410, %v318
      %v11443 = vadd.f32 %v11411, %v319
      %v11444 = vadd.f32 %v11412, %v320
      %v11445 = vadd.f32 %v11413, %v321
      %v11446 = vadd.f32 %v11414, %v322
      %v11447 = vadd.f32 %v11415, %v323
      %11448 = vst.msk [vmem:[%s170] sm:$0xff] %vm171, %v11416
      %11449 = vst.msk [vmem:[%s170 + $0x8] sm:$0xff] %vm171, %v11417
      %11450 = vst.msk [vmem:[%s170 + $0x10] sm:$0xff] %vm171, %v11418
      %11451 = vst.msk [vmem:[%s170 + $0x18] sm:$0xff] %vm171, %v11419
      %11452 = vst.msk [vmem:[%s170 + $0x20] sm:$0xff] %vm171, %v11420
      %11453 = vst.msk [vmem:[%s170 + $0x28] sm:$0xff] %vm171, %v11421
      %11454 = vst.msk [vmem:[%s170 + $0x30] sm:$0xff] %vm171, %v11422
      %11455 = vst.msk [vmem:[%s170 + $0x38] sm:$0xff] %vm171, %v11423
      %11456 = vst.msk [vmem:[%s170 + $0x40] sm:$0xff] %vm171, %v11424
      %11457 = vst.msk [vmem:[%s170 + $0x48] sm:$0xff] %vm171, %v11425
      %11458 = vst.msk [vmem:[%s170 + $0x50] sm:$0xff] %vm171, %v11426
      %11459 = vst.msk [vmem:[%s170 + $0x58] sm:$0xff] %vm171, %v11427
      %11460 = vst.msk [vmem:[%s170 + $0x60] sm:$0xff] %vm171, %v11428
      %11461 = vst.msk [vmem:[%s170 + $0x68] sm:$0xff] %vm171, %v11429
      %11462 = vst.msk [vmem:[%s170 + $0x70] sm:$0xff] %vm171, %v11430
      %11463 = vst.msk [vmem:[%s170 + $0x78] sm:$0xff] %vm171, %v11431
      %11464 = vst.msk [vmem:[%s170 + $0x80] sm:$0xff] %vm171, %v11432
      %11465 = vst.msk [vmem:[%s170 + $0x88] sm:$0xff] %vm171, %v11433
      %11466 = vst.msk [vmem:[%s170 + $0x90] sm:$0xff] %vm171, %v11434
      %11467 = vst.msk [vmem:[%s170 + $0x98] sm:$0xff] %vm171, %v11435
      %11468 = vst.msk [vmem:[%s170 + $0xa0] sm:$0xff] %vm171, %v11436
      %11469 = vst.msk [vmem:[%s170 + $0xa8] sm:$0xff] %vm171, %v11437
      %11470 = vst.msk [vmem:[%s170 + $0xb0] sm:$0xff] %vm171, %v11438
      %11471 = vst.msk [vmem:[%s170 + $0xb8] sm:$0xff] %vm171, %v11439
      %11472 = vst.msk [vmem:[%s170 + $0xc0] sm:$0xff] %vm171, %v11440
      %11473 = vst.msk [vmem:[%s170 + $0xc8] sm:$0xff] %vm171, %v11441
      %11474 = vst.msk [vmem:[%s170 + $0xd0] sm:$0xff] %vm171, %v11442
      %11475 = vst.msk [vmem:[%s170 + $0xd8] sm:$0xff] %vm171, %v11443
      %11476 = vst.msk [vmem:[%s170 + $0xe0] sm:$0xff] %vm171, %v11444
      %11477 = vst.msk [vmem:[%s170 + $0xe8] sm:$0xff] %vm171, %v11445
      %11478 = vst.msk [vmem:[%s170 + $0xf0] sm:$0xff] %vm171, %v11446
      %11479 = vst.msk [vmem:[%s170 + $0xf8] sm:$0xff] %vm171, %v11447
      %p11480 = scmp.lt.s32.totalorder %s14, 1
      %s11481 = scalar_select %p11480, %s14, 1
      %s11482 = smul.addr %s11481, 32
      %s11483 = smul.addr %s11482, 8
      %s11484 = scalar_lea.vmem %s3, %s11483
      // Predicated region
      $region33: #{dense_block_forward.1} parent=31 // pred_check
        %p11485 = pneg %p100
      $region34: #{dense_block_forward.1} parent=31 // pred_check_branch
        %11487 = sbr.rel (%p11485) target = $region36
      $region35: #{dense_block_forward.1} parent=31 // pred_region
        _
      $region36: #{dense_block_forward.1} parent=31 // pred_fallthru
        _
    $region32: #{dense_block_forward.1} parent=5 // pred_fallthru
      _
    %p11488 = scmp.le.s32.totalorder 2, %s9
    // Predicated region
    $region37: #{dense_block_forward.1} parent=5 // pred_check
      %p11489 = pneg %p11488
    $region38: #{dense_block_forward.1} parent=5 // pred_check_branch
      %11491 = sbr.rel (%p11489) target = $region40
    $region39: #{dense_block_forward.1} parent=5 // pred_region
      %s11492 = ssub.s32 %s9, 2
      // Predicated region
      $region41: #{dense_block_forward.1} parent=39 // pred_check
        %p11493 = pneg %p106
      $region42: #{dense_block_forward.1} parent=39 // pred_check_branch
        %11495 = sbr.rel (%p11493) target = $region44
      $region43: #{dense_block_forward.1} parent=39 // pred_region
        %p11496 = scmp.lt.s32.totalorder %s15, 1
        %s11497 = scalar_select %p11496, %s15, 1
        %s11498 = smul.addr %s11497, 32
        %s11499 = smul.addr %s11498, 8
        %s11500 = scalar_lea.vmem %s3, %s11499
      $region44: #{dense_block_forward.1} parent=39 // pred_fallthru
        _
    $region40: #{dense_block_forward.1} parent=5 // pred_fallthru
      _
  $region6: #{dense_block_forward.1} parent=0 // loop_footer
    %s13 = sadd.s32 1, %s9
  $region7: #{dense_block_forward.1} parent=0 // loop_footer_branch
    %8 = sbr.rel target = $region3
  $region8: #{dense_block_forward.1} parent=0 // loop_exit
    _

</llo_original>
